<compile_context>
chip_gen: v7x
topology: tpu7x:2x2x1
jax: 0.10.0
libtpu: 0.0.40
codegen_flags: <defaults>
</compile_context>

<pallas_src>
import functools

import numpy as np
import jax
import jax.numpy as jnp
from jax import lax
from jax.experimental import pallas as pl
from jax.experimental.pallas import tpu as pltpu

EPS = 1e-5  # nn.InstanceNorm2d default eps (affine=False, no running stats)


# ------------------------------ Pallas kernel ------------------------------ #

def _resblock_kernel(x_ref, w1_ref, w2_ref, o_ref, y_ref, *, H, W, Hp, Ws):
    """Fused CycleGAN ResnetBlock for one sample.

    x_ref:  (1, Hp, Ws, C)  reflect-padded input (cols Wp..Ws-1 are zero
                            stride padding), compute dtype.
    w1_ref: (3, 3C, C)      conv1 weights, [dy][dx*Cin + cin][cout].
    w2_ref: (3, 3C, C)      conv2 weights.
    o_ref:  (1, H, W, C)    x + block(x), interior only (compact), out dtype.
    y_ref:  (Hp, Ws, C)     VMEM scratch: reflect-padded stage-1 activation.
    """
    C = x_ref.shape[-1]
    G = H * Ws                        # flattened compute-grid rows
    inv_hw = 1.0 / float(H * W)

    def roll(v, s):                   # np.roll semantics; normalized shift
        return pltpu.roll(v, s % G, 0)

    # ----- masks: computed & broadcast once, reused by both IN stages ------ #
    col = lax.broadcasted_iota(jnp.int32, (G, 1), 0) & (Ws - 1)   # Ws is 2^k
    interior_nc = jnp.broadcast_to(
        ((col >= 1) & (col <= W)).astype(jnp.float32), (G, C))    # valid cols
    is_col0 = col == 0                # padded col 0   (left reflect target)
    is_colR = col == W + 1            # padded col W+1 (right reflect target)

    def conv3x3(slabs, w_ref):
        """slabs: [dy=0,1,2] of (G, C) tap rows; returns (G, C) f32.

        dx taps come from XLU rolls of the already-loaded dy slab; the three
        are concatenated so each dy is a single K=3C MXU matmul (accumulation
        happens inside the MXU K-pass, only 2 register adds remain)."""
        acc = None
        for dy in range(3):
            s = slabs[dy]
            lhs = jnp.concatenate([roll(s, 1), s, roll(s, -1)], axis=-1)
            p = jnp.dot(lhs, w_ref[dy], preferred_element_type=jnp.float32)
            acc = p if acc is None else acc + p
        return acc

    def inst_norm(acc):
        # Single-pass f32 stats over the H*W interior columns only.
        v = acc * interior_nc
        mean = jnp.sum(v, axis=0, keepdims=True) * inv_hw
        ex2 = jnp.sum(v * v, axis=0, keepdims=True) * inv_hw
        var = jnp.maximum(ex2 - mean * mean, 0.0)
        return (acc - mean) * lax.rsqrt(var + EPS)

    # -------------------- stage 1: Conv3x3 -> IN -> ReLU -------------------- #
    x_slabs = [x_ref[0, dy:dy + H].reshape(G, C) for dy in range(3)]
    y1 = jnp.maximum(inst_norm(conv3x3(x_slabs, w1_ref)), 0.0)      # f32

    # Left/right reflect columns folded into the single y1 store (col 0 <-
    # col 2, col W+1 <- col W-1); rolls run on the otherwise-idle XLU.
    y1 = jnp.where(is_col0, roll(y1, -2),
                   jnp.where(is_colR, roll(y1, 2), y1))
    y1c = y1.astype(y_ref.dtype)
    y_ref[1:H + 1] = y1c.reshape(H, Ws, C)
    # Top/bottom reflect rows: two narrow (Ws, C) copies.  Rows 2 / H-1 are
    # already column-fixed, so the four corners come out correct as well.
    y_ref[0] = y_ref[2]
    y_ref[Hp - 1] = y_ref[Hp - 3]

    # ------------ stage 2: Conv3x3 -> IN -> + residual (compact) ------------ #
    y_slabs = [y_ref[0:H].reshape(G, C),        # dy=0: needs row-fixed row 0
               y1c,                             # dy=1: reuse registers, no reload
               y_ref[2:H + 2].reshape(G, C)]    # dy=2: needs row-fixed row H+1
    y2 = inst_norm(conv3x3(y_slabs, w2_ref))

    res = x_slabs[1].astype(jnp.float32) + y2   # residual reuses centre x slab
    # Compact to interior columns 1..W: aligned slice after a -1 roll.
    res = roll(res, -1).reshape(H, Ws, C)[:, :W, :]
    o_ref[0] = res.astype(o_ref.dtype)


# --------------------------------- wrapper ---------------------------------- #

def resnet_block(x_nchw, w1, b1, w2, b2, *, compute_dtype=jnp.bfloat16):
    """CycleGAN ResnetBlock forward.  w1, w2: (3,3,Cin,Cout) HWIO; b1, b2: (C,).

    b1/b2 are accepted for API parity but unused: a per-channel bias applied
    right before an affine-free InstanceNorm2d is exactly cancelled by the
    mean subtraction.  (Only valid for affine=False, no running stats.)
    """
    del b1, b2
    N, C, H, W = x_nchw.shape
    assert H >= 2 and W >= 2, "ReflectionPad2d(1) needs spatial dims >= 2"
    Hp, Wp = H + 2, W + 2
    # Power-of-two row stride >= 16: keeps the dy tap shifts sublane-aligned
    # (bf16 packing) and lets the kernel build column masks with a bitwise AND.
    # TODO(synk): for large W a multiple-of-16 (non pow2) stride wastes less
    # width; not worth it at these shapes.
    Ws = max(16, pl.next_power_of_2(Wp))

    # NCHW -> NHWC, cast to the MXU compute dtype, reflect-pad spatial dims,
    # zero-pad the width out to the Ws stride.  (XLA fuses these copies.)
    x = jnp.transpose(x_nchw, (0, 2, 3, 1)).astype(compute_dtype)
    xp = jnp.pad(x, ((0, 0), (1, 1), (1, 1), (0, 0)), mode="reflect")
    x_in = jnp.pad(xp, ((0, 0), (0, 0), (0, Ws - Wp), (0, 0)))

    # (3,3,Cin,Cout) -> (dy, dx*Cin, Cout): matches the per-dy (rows, 3C) LHS.
    w1r = jnp.asarray(w1, jnp.float32).reshape(3, 3 * C, C).astype(compute_dtype)
    w2r = jnp.asarray(w2, jnp.float32).reshape(3, 3 * C, C).astype(compute_dtype)

    # Use most of the chip's real VMEM (128 MiB v5e/v6e, 64 MiB v7x) instead
    # of a hard-coded cap.
    try:
        vmem_cap = pltpu.get_tpu_info().vmem_capacity_bytes
    except Exception:
        vmem_cap = 64 * 1024 * 1024
    vmem_limit = min(int(vmem_cap * 0.85), 110 * 1024 * 1024)

    kernel = functools.partial(_resblock_kernel, H=H, W=W, Hp=Hp, Ws=Ws)

    out = pl.pallas_call(
        kernel,
        out_shape=jax.ShapeDtypeStruct((N, H, W, C), x_nchw.dtype),
        grid=(N,),
        in_specs=[
            pl.BlockSpec((1, Hp, Ws, C), lambda n: (n, 0, 0, 0)),   # padded x
            pl.BlockSpec((3, 3 * C, C), lambda n: (0, 0, 0)),       # conv1 w
            pl.BlockSpec((3, 3 * C, C), lambda n: (0, 0, 0)),       # conv2 w
        ],
        out_specs=pl.BlockSpec((1, H, W, C), lambda n: (n, 0, 0, 0)),
        scratch_shapes=[pltpu.VMEM((Hp, Ws, C), compute_dtype)],
        compiler_params=pltpu.CompilerParams(
            dimension_semantics=("parallel",),
            vmem_limit_bytes=vmem_limit),
    )(x_in, w1r, w2r)

    return jnp.transpose(out, (0, 3, 1, 2))          # NHWC -> NCHW


# ----------------------------- pure-JAX reference ---------------------------- #

def ref_resnet_block(x_nchw, w1, b1, w2, b2):
    def conv_in(x, w, b):
        xp = jnp.pad(x, ((0, 0), (0, 0), (1, 1), (1, 1)), mode="reflect")
        y = lax.conv_general_dilated(
            xp, w, (1, 1), "VALID",
            dimension_numbers=("NCHW", "HWIO", "NCHW"),
            precision=lax.Precision.HIGHEST)
        y = y + b.reshape(1, -1, 1, 1)
        mean = jnp.mean(y, axis=(2, 3), keepdims=True)
        var = jnp.mean((y - mean) ** 2, axis=(2, 3), keepdims=True)
        return (y - mean) * lax.rsqrt(var + EPS)

    h = jax.nn.relu(conv_in(x_nchw, w1, b1))
    return x_nchw + conv_in(h, w2, b2)


# ----------------------------------- main ------------------------------------ #

if __name__ == "__main__":
    key = jax.random.PRNGKey(0)
    k1, k2, k3, k4, k5 = jax.random.split(key, 5)

    N, C, H, W = 2, 4, 16, 16                        # x: (2, 4, 16, 16) NCHW
    x = jax.random.normal(k1, (N, C, H, W), jnp.float32)

    fan_in = 9 * C
    w1 = jax.random.normal(k2, (3, 3, C, C), jnp.float32) / jnp.sqrt(fan_in)
    b1 = 0.1 * jax.random.normal(k3, (C,), jnp.float32)
    w2 = jax.random.normal(k4, (3, 3, C, C), jnp.float32) / jnp.sqrt(fan_in)
    b2 = 0.1 * jax.random.normal(k5, (C,), jnp.float32)

    ref = jax.block_until_ready(ref_resnet_block(x, w1, b1, w2, b2))

    # Strict-precision path (f32 MXU): must match the HIGHEST-precision ref.
    out_f32 = jax.block_until_ready(
        resnet_block(x, w1, b1, w2, b2, compute_dtype=jnp.float32))
    assert out_f32.shape == x.shape and out_f32.dtype == x.dtype
    np.testing.assert_allclose(np.asarray(out_f32), np.asarray(ref),
                               atol=2e-4, rtol=2e-4)

    # Default bf16 MXU path: loose sanity tolerance (conv inputs / residual
    # are bf16-rounded; accumulation and statistics stay f32).
    out_bf16 = jax.block_until_ready(resnet_block(x, w1, b1, w2, b2))
    assert out_bf16.shape == x.shape and out_bf16.dtype == x.dtype
    np.testing.assert_allclose(np.asarray(out_bf16), np.asarray(ref),
                               atol=1e-1, rtol=1e-1)

    print("KERNEL_OK")
</pallas_src>

<mosaic_0001>
module attributes {stable_mosaic.version = 11 : i64} {
  func.func @_resblock_kernel(%arg0: i32, %arg1: memref<1x18x32x4xf32, #tpu.memory_space<vmem>>, %arg2: memref<3x12x4xf32, #tpu.memory_space<vmem>>, %arg3: memref<3x12x4xf32, #tpu.memory_space<vmem>>, %arg4: memref<1x16x16x4xf32, #tpu.memory_space<vmem>>, %arg5: memref<18x32x4xf32, #tpu.memory_space<vmem>>) attributes {dimension_semantics = [#tpu.dimension_semantics<parallel>], iteration_bounds = array<i64: 2>, scalar_prefetch = 0 : i64, scratch_operands = 1 : i64, tpu.core_type = #tpu.core_type<tc>, window_params = [{transform_indices = @transform_0, window_bounds = array<i64: 1, 18, 32, 4>}, {pipeline_mode = #tpu.pipeline_mode<synchronous>, transform_indices = @transform_1, window_bounds = array<i64: 3, 12, 4>}, {pipeline_mode = #tpu.pipeline_mode<synchronous>, transform_indices = @transform_2, window_bounds = array<i64: 3, 12, 4>}, {transform_indices = @transform_3, window_bounds = array<i64: 1, 16, 16, 4>}]} {
    %0 = tpu.iota {dimensions = array<i32: 0>} : vector<512x1xi32>
    %c31_i32 = arith.constant 31 : i32
    %1 = vector.broadcast %c31_i32 : i32 to vector<512x1xi32>
    %2 = arith.andi %0, %1 : vector<512x1xi32>
    %c1_i32 = arith.constant 1 : i32
    %3 = vector.broadcast %c1_i32 : i32 to vector<512x1xi32>
    %4 = arith.cmpi sge, %2, %3 : vector<512x1xi32>
    %c16_i32 = arith.constant 16 : i32
    %5 = vector.broadcast %c16_i32 : i32 to vector<512x1xi32>
    %6 = arith.cmpi sle, %2, %5 : vector<512x1xi32>
    %7 = arith.andi %4, %6 : vector<512x1xi1>
    %8 = arith.extui %7 : vector<512x1xi1> to vector<512x1xi32>
    %9 = arith.sitofp %8 : vector<512x1xi32> to vector<512x1xf32>
    %10 = vector.shape_cast %9 : vector<512x1xf32> to vector<512x1xf32>
    %11 = vector.broadcast %10 : vector<512x1xf32> to vector<512x4xf32>
    %c0_i32 = arith.constant 0 : i32
    %12 = vector.broadcast %c0_i32 : i32 to vector<512x1xi32>
    %13 = arith.cmpi eq, %2, %12 : vector<512x1xi32>
    %c17_i32 = arith.constant 17 : i32
    %14 = vector.broadcast %c17_i32 : i32 to vector<512x1xi32>
    %15 = arith.cmpi eq, %2, %14 : vector<512x1xi32>
    %c0 = arith.constant 0 : index
    %c0_0 = arith.constant 0 : index
    %c0_1 = arith.constant 0 : index
    %c0_2 = arith.constant 0 : index
    %16 = vector.load %arg1[%c0, %c0_0, %c0_1, %c0_2] : memref<1x18x32x4xf32, #tpu.memory_space<vmem>>, vector<1x16x32x4xf32>
    %17 = vector.shape_cast %16 : vector<1x16x32x4xf32> to vector<16x32x4xf32>
    %18 = vector.shape_cast %17 : vector<16x32x4xf32> to vector<512x4xf32>
    %c0_3 = arith.constant 0 : index
    %c1 = arith.constant 1 : index
    %c0_4 = arith.constant 0 : index
    %c0_5 = arith.constant 0 : index
    %19 = vector.load %arg1[%c0_3, %c1, %c0_4, %c0_5] : memref<1x18x32x4xf32, #tpu.memory_space<vmem>>, vector<1x16x32x4xf32>
    %20 = vector.shape_cast %19 : vector<1x16x32x4xf32> to vector<16x32x4xf32>
    %21 = vector.shape_cast %20 : vector<16x32x4xf32> to vector<512x4xf32>
    %c0_6 = arith.constant 0 : index
    %c2 = arith.constant 2 : index
    %c0_7 = arith.constant 0 : index
    %c0_8 = arith.constant 0 : index
    %22 = vector.load %arg1[%c0_6, %c2, %c0_7, %c0_8] : memref<1x18x32x4xf32, #tpu.memory_space<vmem>>, vector<1x16x32x4xf32>
    %23 = vector.shape_cast %22 : vector<1x16x32x4xf32> to vector<16x32x4xf32>
    %24 = vector.shape_cast %23 : vector<16x32x4xf32> to vector<512x4xf32>
    %c1_i32_9 = arith.constant 1 : i32
    %25 = tpu.dynamic_rotate %18 by %c1_i32_9 dim 0 : vector<512x4xf32>, i32 -> vector<512x4xf32>
    %c511_i32 = arith.constant 511 : i32
    %26 = tpu.dynamic_rotate %18 by %c511_i32 dim 0 : vector<512x4xf32>, i32 -> vector<512x4xf32>
    %27 = tpu.concatenate %25, %18, %26 in 1 : vector<512x4xf32>, vector<512x4xf32>, vector<512x4xf32> -> vector<512x12xf32>
    %c0_10 = arith.constant 0 : index
    %c0_11 = arith.constant 0 : index
    %c0_12 = arith.constant 0 : index
    %28 = vector.load %arg2[%c0_10, %c0_11, %c0_12] : memref<3x12x4xf32, #tpu.memory_space<vmem>>, vector<1x12x4xf32>
    %29 = vector.shape_cast %28 : vector<1x12x4xf32> to vector<12x4xf32>
    %cst = arith.constant dense<0.000000e+00> : vector<512x4xf32>
    %30 = tpu.matmul %27, %29, %cst {dimension_numbers = #tpu.dot_dimension_numbers<[1], [0], [0], [1], [0, 0, 1, 1], [], []>} : vector<512x12xf32>, vector<12x4xf32>, vector<512x4xf32> -> vector<512x4xf32>
    %c1_i32_13 = arith.constant 1 : i32
    %31 = tpu.dynamic_rotate %21 by %c1_i32_13 dim 0 : vector<512x4xf32>, i32 -> vector<512x4xf32>
    %c511_i32_14 = arith.constant 511 : i32
    %32 = tpu.dynamic_rotate %21 by %c511_i32_14 dim 0 : vector<512x4xf32>, i32 -> vector<512x4xf32>
    %33 = tpu.concatenate %31, %21, %32 in 1 : vector<512x4xf32>, vector<512x4xf32>, vector<512x4xf32> -> vector<512x12xf32>
    %c1_15 = arith.constant 1 : index
    %c0_16 = arith.constant 0 : index
    %c0_17 = arith.constant 0 : index
    %34 = vector.load %arg2[%c1_15, %c0_16, %c0_17] : memref<3x12x4xf32, #tpu.memory_space<vmem>>, vector<1x12x4xf32>
    %35 = vector.shape_cast %34 : vector<1x12x4xf32> to vector<12x4xf32>
    %cst_18 = arith.constant dense<0.000000e+00> : vector<512x4xf32>
    %36 = tpu.matmul %33, %35, %cst_18 {dimension_numbers = #tpu.dot_dimension_numbers<[1], [0], [0], [1], [0, 0, 1, 1], [], []>} : vector<512x12xf32>, vector<12x4xf32>, vector<512x4xf32> -> vector<512x4xf32>
    %37 = arith.addf %30, %36 : vector<512x4xf32>
    %c1_i32_19 = arith.constant 1 : i32
    %38 = tpu.dynamic_rotate %24 by %c1_i32_19 dim 0 : vector<512x4xf32>, i32 -> vector<512x4xf32>
    %c511_i32_20 = arith.constant 511 : i32
    %39 = tpu.dynamic_rotate %24 by %c511_i32_20 dim 0 : vector<512x4xf32>, i32 -> vector<512x4xf32>
    %40 = tpu.concatenate %38, %24, %39 in 1 : vector<512x4xf32>, vector<512x4xf32>, vector<512x4xf32> -> vector<512x12xf32>
    %c2_21 = arith.constant 2 : index
    %c0_22 = arith.constant 0 : index
    %c0_23 = arith.constant 0 : index
    %41 = vector.load %arg2[%c2_21, %c0_22, %c0_23] : memref<3x12x4xf32, #tpu.memory_space<vmem>>, vector<1x12x4xf32>
    %42 = vector.shape_cast %41 : vector<1x12x4xf32> to vector<12x4xf32>
    %cst_24 = arith.constant dense<0.000000e+00> : vector<512x4xf32>
    %43 = tpu.matmul %40, %42, %cst_24 {dimension_numbers = #tpu.dot_dimension_numbers<[1], [0], [0], [1], [0, 0, 1, 1], [], []>} : vector<512x12xf32>, vector<12x4xf32>, vector<512x4xf32> -> vector<512x4xf32>
    %44 = arith.addf %37, %43 : vector<512x4xf32>
    %45 = arith.mulf %44, %11 : vector<512x4xf32>
    %cst_25 = arith.constant dense<0.000000e+00> : vector<4xf32>
    %46 = vector.multi_reduction <add>, %45, %cst_25 [0] : vector<512x4xf32> to vector<4xf32>
    %47 = vector.shape_cast %46 : vector<4xf32> to vector<1x4xf32>
    %cst_26 = arith.constant 3.906250e-03 : f32
    %48 = vector.broadcast %cst_26 : f32 to vector<1x4xf32>
    %49 = arith.mulf %47, %48 : vector<1x4xf32>
    %50 = arith.mulf %45, %45 : vector<512x4xf32>
    %cst_27 = arith.constant dense<0.000000e+00> : vector<4xf32>
    %51 = vector.multi_reduction <add>, %50, %cst_27 [0] : vector<512x4xf32> to vector<4xf32>
    %52 = vector.shape_cast %51 : vector<4xf32> to vector<1x4xf32>
    %cst_28 = arith.constant 3.906250e-03 : f32
    %53 = vector.broadcast %cst_28 : f32 to vector<1x4xf32>
    %54 = arith.mulf %52, %53 : vector<1x4xf32>
    %55 = arith.mulf %49, %49 : vector<1x4xf32>
    %56 = arith.subf %54, %55 : vector<1x4xf32>
    %cst_29 = arith.constant 0.000000e+00 : f32
    %57 = vector.broadcast %cst_29 : f32 to vector<1x4xf32>
    %58 = arith.maximumf %56, %57 : vector<1x4xf32>
    %59 = vector.broadcast %49 : vector<1x4xf32> to vector<512x4xf32>
    %60 = arith.subf %44, %59 : vector<512x4xf32>
    %cst_30 = arith.constant 9.99999974E-6 : f32
    %61 = vector.broadcast %cst_30 : f32 to vector<1x4xf32>
    %62 = arith.addf %58, %61 : vector<1x4xf32>
    %63 = math.rsqrt %62 : vector<1x4xf32>
    %64 = vector.broadcast %63 : vector<1x4xf32> to vector<512x4xf32>
    %65 = arith.mulf %60, %64 : vector<512x4xf32>
    %cst_31 = arith.constant 0.000000e+00 : f32
    %66 = vector.broadcast %cst_31 : f32 to vector<512x4xf32>
    %67 = arith.maximumf %65, %66 : vector<512x4xf32>
    %c510_i32 = arith.constant 510 : i32
    %68 = tpu.dynamic_rotate %67 by %c510_i32 dim 0 : vector<512x4xf32>, i32 -> vector<512x4xf32>
    %c2_i32 = arith.constant 2 : i32
    %69 = tpu.dynamic_rotate %67 by %c2_i32 dim 0 : vector<512x4xf32>, i32 -> vector<512x4xf32>
    %70 = vector.shape_cast %15 : vector<512x1xi1> to vector<512x1xi1>
    %71 = vector.broadcast %70 : vector<512x1xi1> to vector<512x4xi1>
    %72 = arith.select %71, %69, %67 : vector<512x4xi1>, vector<512x4xf32>
    %73 = vector.shape_cast %13 : vector<512x1xi1> to vector<512x1xi1>
    %74 = vector.broadcast %73 : vector<512x1xi1> to vector<512x4xi1>
    %75 = arith.select %74, %68, %72 : vector<512x4xi1>, vector<512x4xf32>
    %76 = vector.shape_cast %75 : vector<512x4xf32> to vector<16x32x4xf32>
    %c1_32 = arith.constant 1 : index
    %c0_33 = arith.constant 0 : index
    %c0_34 = arith.constant 0 : index
    %77 = vector.load %arg5[%c1_32, %c0_33, %c0_34] : memref<18x32x4xf32, #tpu.memory_space<vmem>>, vector<16x32x4xf32>
    tpu.vector_store %arg5[%c1_32, %c0_33, %c0_34], %76 {strides = array<i32>} : memref<18x32x4xf32, #tpu.memory_space<vmem>>, vector<16x32x4xf32>,
    %c2_35 = arith.constant 2 : index
    %c0_36 = arith.constant 0 : index
    %c0_37 = arith.constant 0 : index
    %78 = vector.load %arg5[%c2_35, %c0_36, %c0_37] : memref<18x32x4xf32, #tpu.memory_space<vmem>>, vector<1x32x4xf32>
    %79 = vector.shape_cast %78 : vector<1x32x4xf32> to vector<32x4xf32>
    %c0_38 = arith.constant 0 : index
    %c0_39 = arith.constant 0 : index
    %c0_40 = arith.constant 0 : index
    %80 = vector.load %arg5[%c0_38, %c0_39, %c0_40] : memref<18x32x4xf32, #tpu.memory_space<vmem>>, vector<1x32x4xf32>
    %81 = vector.shape_cast %80 : vector<1x32x4xf32> to vector<32x4xf32>
    %82 = vector.shape_cast %79 : vector<32x4xf32> to vector<1x32x4xf32>
    tpu.vector_store %arg5[%c0_38, %c0_39, %c0_40], %82 {strides = array<i32>} : memref<18x32x4xf32, #tpu.memory_space<vmem>>, vector<1x32x4xf32>,
    %c15 = arith.constant 15 : index
    %c0_41 = arith.constant 0 : index
    %c0_42 = arith.constant 0 : index
    %83 = vector.load %arg5[%c15, %c0_41, %c0_42] : memref<18x32x4xf32, #tpu.memory_space<vmem>>, vector<1x32x4xf32>
    %84 = vector.shape_cast %83 : vector<1x32x4xf32> to vector<32x4xf32>
    %c17 = arith.constant 17 : index
    %c0_43 = arith.constant 0 : index
    %c0_44 = arith.constant 0 : index
    %85 = vector.load %arg5[%c17, %c0_43, %c0_44] : memref<18x32x4xf32, #tpu.memory_space<vmem>>, vector<1x32x4xf32>
    %86 = vector.shape_cast %85 : vector<1x32x4xf32> to vector<32x4xf32>
    %87 = vector.shape_cast %84 : vector<32x4xf32> to vector<1x32x4xf32>
    tpu.vector_store %arg5[%c17, %c0_43, %c0_44], %87 {strides = array<i32>} : memref<18x32x4xf32, #tpu.memory_space<vmem>>, vector<1x32x4xf32>,
    %c0_45 = arith.constant 0 : index
    %c0_46 = arith.constant 0 : index
    %c0_47 = arith.constant 0 : index
    %88 = vector.load %arg5[%c0_45, %c0_46, %c0_47] : memref<18x32x4xf32, #tpu.memory_space<vmem>>, vector<16x32x4xf32>
    %89 = vector.shape_cast %88 : vector<16x32x4xf32> to vector<512x4xf32>
    %c2_48 = arith.constant 2 : index
    %c0_49 = arith.constant 0 : index
    %c0_50 = arith.constant 0 : index
    %90 = vector.load %arg5[%c2_48, %c0_49, %c0_50] : memref<18x32x4xf32, #tpu.memory_space<vmem>>, vector<16x32x4xf32>
    %91 = vector.shape_cast %90 : vector<16x32x4xf32> to vector<512x4xf32>
    %c1_i32_51 = arith.constant 1 : i32
    %92 = tpu.dynamic_rotate %89 by %c1_i32_51 dim 0 : vector<512x4xf32>, i32 -> vector<512x4xf32>
    %c511_i32_52 = arith.constant 511 : i32
    %93 = tpu.dynamic_rotate %89 by %c511_i32_52 dim 0 : vector<512x4xf32>, i32 -> vector<512x4xf32>
    %94 = tpu.concatenate %92, %89, %93 in 1 : vector<512x4xf32>, vector<512x4xf32>, vector<512x4xf32> -> vector<512x12xf32>
    %c0_53 = arith.constant 0 : index
    %c0_54 = arith.constant 0 : index
    %c0_55 = arith.constant 0 : index
    %95 = vector.load %arg3[%c0_53, %c0_54, %c0_55] : memref<3x12x4xf32, #tpu.memory_space<vmem>>, vector<1x12x4xf32>
    %96 = vector.shape_cast %95 : vector<1x12x4xf32> to vector<12x4xf32>
    %cst_56 = arith.constant dense<0.000000e+00> : vector<512x4xf32>
    %97 = tpu.matmul %94, %96, %cst_56 {dimension_numbers = #tpu.dot_dimension_numbers<[1], [0], [0], [1], [0, 0, 1, 1], [], []>} : vector<512x12xf32>, vector<12x4xf32>, vector<512x4xf32> -> vector<512x4xf32>
    %c1_i32_57 = arith.constant 1 : i32
    %98 = tpu.dynamic_rotate %75 by %c1_i32_57 dim 0 : vector<512x4xf32>, i32 -> vector<512x4xf32>
    %c511_i32_58 = arith.constant 511 : i32
    %99 = tpu.dynamic_rotate %75 by %c511_i32_58 dim 0 : vector<512x4xf32>, i32 -> vector<512x4xf32>
    %100 = tpu.concatenate %98, %75, %99 in 1 : vector<512x4xf32>, vector<512x4xf32>, vector<512x4xf32> -> vector<512x12xf32>
    %c1_59 = arith.constant 1 : index
    %c0_60 = arith.constant 0 : index
    %c0_61 = arith.constant 0 : index
    %101 = vector.load %arg3[%c1_59, %c0_60, %c0_61] : memref<3x12x4xf32, #tpu.memory_space<vmem>>, vector<1x12x4xf32>
    %102 = vector.shape_cast %101 : vector<1x12x4xf32> to vector<12x4xf32>
    %cst_62 = arith.constant dense<0.000000e+00> : vector<512x4xf32>
    %103 = tpu.matmul %100, %102, %cst_62 {dimension_numbers = #tpu.dot_dimension_numbers<[1], [0], [0], [1], [0, 0, 1, 1], [], []>} : vector<512x12xf32>, vector<12x4xf32>, vector<512x4xf32> -> vector<512x4xf32>
    %104 = arith.addf %97, %103 : vector<512x4xf32>
    %c1_i32_63 = arith.constant 1 : i32
    %105 = tpu.dynamic_rotate %91 by %c1_i32_63 dim 0 : vector<512x4xf32>, i32 -> vector<512x4xf32>
    %c511_i32_64 = arith.constant 511 : i32
    %106 = tpu.dynamic_rotate %91 by %c511_i32_64 dim 0 : vector<512x4xf32>, i32 -> vector<512x4xf32>
    %107 = tpu.concatenate %105, %91, %106 in 1 : vector<512x4xf32>, vector<512x4xf32>, vector<512x4xf32> -> vector<512x12xf32>
    %c2_65 = arith.constant 2 : index
    %c0_66 = arith.constant 0 : index
    %c0_67 = arith.constant 0 : index
    %108 = vector.load %arg3[%c2_65, %c0_66, %c0_67] : memref<3x12x4xf32, #tpu.memory_space<vmem>>, vector<1x12x4xf32>
    %109 = vector.shape_cast %108 : vector<1x12x4xf32> to vector<12x4xf32>
    %cst_68 = arith.constant dense<0.000000e+00> : vector<512x4xf32>
    %110 = tpu.matmul %107, %109, %cst_68 {dimension_numbers = #tpu.dot_dimension_numbers<[1], [0], [0], [1], [0, 0, 1, 1], [], []>} : vector<512x12xf32>, vector<12x4xf32>, vector<512x4xf32> -> vector<512x4xf32>
    %111 = arith.addf %104, %110 : vector<512x4xf32>
    %112 = arith.mulf %111, %11 : vector<512x4xf32>
    %cst_69 = arith.constant dense<0.000000e+00> : vector<4xf32>
    %113 = vector.multi_reduction <add>, %112, %cst_69 [0] : vector<512x4xf32> to vector<4xf32>
    %114 = vector.shape_cast %113 : vector<4xf32> to vector<1x4xf32>
    %cst_70 = arith.constant 3.906250e-03 : f32
    %115 = vector.broadcast %cst_70 : f32 to vector<1x4xf32>
    %116 = arith.mulf %114, %115 : vector<1x4xf32>
    %117 = arith.mulf %112, %112 : vector<512x4xf32>
    %cst_71 = arith.constant dense<0.000000e+00> : vector<4xf32>
    %118 = vector.multi_reduction <add>, %117, %cst_71 [0] : vector<512x4xf32> to vector<4xf32>
    %119 = vector.shape_cast %118 : vector<4xf32> to vector<1x4xf32>
    %cst_72 = arith.constant 3.906250e-03 : f32
    %120 = vector.broadcast %cst_72 : f32 to vector<1x4xf32>
    %121 = arith.mulf %119, %120 : vector<1x4xf32>
    %122 = arith.mulf %116, %116 : vector<1x4xf32>
    %123 = arith.subf %121, %122 : vector<1x4xf32>
    %cst_73 = arith.constant 0.000000e+00 : f32
    %124 = vector.broadcast %cst_73 : f32 to vector<1x4xf32>
    %125 = arith.maximumf %123, %124 : vector<1x4xf32>
    %126 = vector.broadcast %116 : vector<1x4xf32> to vector<512x4xf32>
    %127 = arith.subf %111, %126 : vector<512x4xf32>
    %cst_74 = arith.constant 9.99999974E-6 : f32
    %128 = vector.broadcast %cst_74 : f32 to vector<1x4xf32>
    %129 = arith.addf %125, %128 : vector<1x4xf32>
    %130 = math.rsqrt %129 : vector<1x4xf32>
    %131 = vector.broadcast %130 : vector<1x4xf32> to vector<512x4xf32>
    %132 = arith.mulf %127, %131 : vector<512x4xf32>
    %133 = arith.addf %21, %132 : vector<512x4xf32>
    %c511_i32_75 = arith.constant 511 : i32
    %134 = tpu.dynamic_rotate %133 by %c511_i32_75 dim 0 : vector<512x4xf32>, i32 -> vector<512x4xf32>
    %135 = vector.shape_cast %134 : vector<512x4xf32> to vector<16x32x4xf32>
    %136 = vector.extract_strided_slice %135 {offsets = [0, 0, 0], sizes = [16, 16, 4], strides = [1, 1, 1]} : vector<16x32x4xf32> to vector<16x16x4xf32>
    %c0_76 = arith.constant 0 : index
    %c0_77 = arith.constant 0 : index
    %c0_78 = arith.constant 0 : index
    %c0_79 = arith.constant 0 : index
    %137 = vector.load %arg4[%c0_76, %c0_77, %c0_78, %c0_79] : memref<1x16x16x4xf32, #tpu.memory_space<vmem>>, vector<1x16x16x4xf32>
    %138 = vector.shape_cast %137 : vector<1x16x16x4xf32> to vector<16x16x4xf32>
    %139 = vector.shape_cast %136 : vector<16x16x4xf32> to vector<1x16x16x4xf32>
    tpu.vector_store %arg4[%c0_76, %c0_77, %c0_78, %c0_79], %139 {strides = array<i32>} : memref<1x16x16x4xf32, #tpu.memory_space<vmem>>, vector<1x16x16x4xf32>,
    return
  }
  func.func @transform_0(%arg0: i32) -> (i32, i32, i32, i32) {
    %c0_i32 = arith.constant 0 : i32
    %c0_i32_0 = arith.constant 0 : i32
    %c0_i32_1 = arith.constant 0 : i32
    %c0_i32_2 = arith.constant 0 : i32
    return %arg0, %c0_i32, %c0_i32_0, %c0_i32_1 : i32, i32, i32, i32
  }
  func.func @transform_1(%arg0: i32) -> (i32, i32, i32) {
    %c0_i32 = arith.constant 0 : i32
    %c0_i32_0 = arith.constant 0 : i32
    %c0_i32_1 = arith.constant 0 : i32
    %c0_i32_2 = arith.constant 0 : i32
    return %c0_i32, %c0_i32_0, %c0_i32_1 : i32, i32, i32
  }
  func.func @transform_2(%arg0: i32) -> (i32, i32, i32) {
    %c0_i32 = arith.constant 0 : i32
    %c0_i32_0 = arith.constant 0 : i32
    %c0_i32_1 = arith.constant 0 : i32
    %c0_i32_2 = arith.constant 0 : i32
    return %c0_i32, %c0_i32_0, %c0_i32_1 : i32, i32, i32
  }
  func.func @transform_3(%arg0: i32) -> (i32, i32, i32, i32) {
    %c0_i32 = arith.constant 0 : i32
    %c0_i32_0 = arith.constant 0 : i32
    %c0_i32_1 = arith.constant 0 : i32
    %c0_i32_2 = arith.constant 0 : i32
    return %arg0, %c0_i32, %c0_i32_0, %c0_i32_1 : i32, i32, i32, i32
  }
}

</mosaic_0001>

<llo_original>
// kernel: tpu_custom_call.1
$region0: #{tpu_custom_call.1}
  #allocation0 [shape = 'u32[]', space=smem, size = 0x4, offset = 0x4, fixed_abs, tag = 'smem constant byte address 0x4 - core index']
  #allocation1 [shape = 'u32[144,128]{1,0:T(1,128)}', space=vmem, size = 0x12000, scoped, tag = 'internal scratch']
  #allocation2 [shape = 'f32[18,32,4]{2,1,0:T(8,128)}', space=vmem, size = 0x48000, scoped, tag = 'scratch operand']
  %s0 = inlined_call_operand.vmem [shape: f32[2,18,32,4], index: 0, kind: input, shape index: {}]
  %s1 = inlined_call_operand.vmem [shape: f32[3,12,4], index: 1, kind: input, shape index: {}]
  %s2 = inlined_call_operand.vmem [shape: f32[3,12,4], index: 2, kind: input, shape index: {}]
  %s3 = inlined_call_operand.vmem [shape: f32[2,16,16,4], index: 3, kind: output, shape index: {}]
  %s4 = sld [smem:[#allocation0]]
  $region45: #{tpu_custom_call.1} parent=0
    _
  %s6 = ssub.s32 1, %s4
  %s7 = scalar_select 0, %s6, %s4
  loop: start=0, step=1, limit=4
  $region2: #{tpu_custom_call.1} parent=0 // loop_pre_header
    _
  $region3: #{tpu_custom_call.1} parent=0 // loop_header
    %s9 = sphi 0, %s13
    %p10 = scmp.ge.s32.totalorder %s9, 4
    %s19 = sphi 0, %s21
    %s22 = sphi 0, %s19
    %s23 = sphi 0, %s22
    %s39 = sphi 0, %s23
    %s43 = sphi 0, %s43
    %s45 = sphi 0, %s43
    %s46 = sphi 0, %s45
    %s60 = sphi 0, %s46
    %s64 = sphi 0, %s64
    %s66 = sphi 0, %s64
    %s67 = sphi 0, %s66
    %s81 = sphi 0, %s67
    %s87 = sphi 0, %s89
    %s90 = sphi 0, %s87
    %s91 = sphi 0, %s90
    %s107 = sphi 0, %s91
  $region4: #{tpu_custom_call.1} parent=0 // loop_header_branch
    %12 = sbr.rel (%p10) target = $region8
  $region5: #{tpu_custom_call.1} parent=0 // loop_body
    %s14 = ssub.s32 %s9, 1
    %s15 = ssub.s32 %s9, 2
    %s16 = sadd.s32 %s9, 1
    %s17 = ssub.s32 %s9, %s16
    %p18 = scmp.eq.s32.totalorder %s17, 0
    %s20 = sadd.s32 %s19, 1
    %s21 = scalar_select %p18, %s19, %s20
    %p24 = pneg %p18
    %p25 = scmp.eq.s32.totalorder %s9, 1
    %p26 = por %p24, %p25
    %p27 = scmp.ne.s32.totalorder %s19, %s22
    %p28 = scmp.eq.s32.totalorder %s9, 0
    %p29 = por %p27, %p28
    %p30 = scmp.ne.s32.totalorder %s19, %s22
    %p31 = scmp.eq.s32.totalorder %s14, 1
    %p32 = por %p30, %p31
    %p33 = scmp.ne.s32.totalorder %s22, %s23
    %p34 = scmp.eq.s32.totalorder %s14, 0
    %p35 = por %p33, %p34
    %p36 = scmp.ne.s32.totalorder %s22, %s23
    %p37 = scmp.eq.s32.totalorder %s15, 1
    %p38 = por %p36, %p37
    %p40 = scmp.ne.s32.totalorder %s23, %s39
    %p41 = scmp.eq.s32.totalorder %s15, 0
    %p42 = por %p40, %p41
    %s44 = sadd.s32 %s43, 1
    %p47 = scmp.eq.s32.totalorder %s9, 1
    %p48 = scmp.ne.s32.totalorder %s43, %s45
    %p49 = scmp.eq.s32.totalorder %s9, 0
    %p50 = por %p48, %p49
    %p51 = scmp.ne.s32.totalorder %s43, %s45
    %p52 = scmp.eq.s32.totalorder %s14, 1
    %p53 = por %p51, %p52
    %p54 = scmp.ne.s32.totalorder %s45, %s46
    %p55 = scmp.eq.s32.totalorder %s14, 0
    %p56 = por %p54, %p55
    %p57 = scmp.ne.s32.totalorder %s45, %s46
    %p58 = scmp.eq.s32.totalorder %s15, 1
    %p59 = por %p57, %p58
    %p61 = scmp.ne.s32.totalorder %s46, %s60
    %p62 = scmp.eq.s32.totalorder %s15, 0
    %p63 = por %p61, %p62
    %s65 = sadd.s32 %s64, 1
    %p68 = scmp.eq.s32.totalorder %s9, 1
    %p69 = scmp.ne.s32.totalorder %s64, %s66
    %p70 = scmp.eq.s32.totalorder %s9, 0
    %p71 = por %p69, %p70
    %p72 = scmp.ne.s32.totalorder %s64, %s66
    %p73 = scmp.eq.s32.totalorder %s14, 1
    %p74 = por %p72, %p73
    %p75 = scmp.ne.s32.totalorder %s66, %s67
    %p76 = scmp.eq.s32.totalorder %s14, 0
    %p77 = por %p75, %p76
    %p78 = scmp.ne.s32.totalorder %s66, %s67
    %p79 = scmp.eq.s32.totalorder %s15, 1
    %p80 = por %p78, %p79
    %p82 = scmp.ne.s32.totalorder %s67, %s81
    %p83 = scmp.eq.s32.totalorder %s15, 0
    %p84 = por %p82, %p83
    %s85 = ssub.s32 %s9, %s16
    %p86 = scmp.eq.s32.totalorder %s85, 0
    %s88 = sadd.s32 %s87, 1
    %s89 = scalar_select %p86, %s87, %s88
    %p92 = pneg %p86
    %p93 = scmp.eq.s32.totalorder %s9, 1
    %p94 = por %p92, %p93
    %p95 = scmp.ne.s32.totalorder %s87, %s90
    %p96 = scmp.eq.s32.totalorder %s9, 0
    %p97 = por %p95, %p96
    %p98 = scmp.ne.s32.totalorder %s87, %s90
    %p99 = scmp.eq.s32.totalorder %s14, 1
    %p100 = por %p98, %p99
    %p101 = scmp.ne.s32.totalorder %s90, %s91
    %p102 = scmp.eq.s32.totalorder %s14, 0
    %p103 = por %p101, %p102
    %p104 = scmp.ne.s32.totalorder %s90, %s91
    %p105 = scmp.eq.s32.totalorder %s15, 1
    %p106 = por %p104, %p105
    %p108 = scmp.ne.s32.totalorder %s91, %s107
    %p109 = scmp.eq.s32.totalorder %s15, 0
    %p110 = por %p108, %p109
    %p111 = scmp.le.s32.totalorder 1, %s9
    %p112 = scmp.lt.s32.totalorder %s9, 3
    %p113 = pnand %p111, %p112
    %p114 = pneg %p113
    // Predicated region
    $region9: #{tpu_custom_call.1} parent=5 // pred_check
      _
    $region10: #{tpu_custom_call.1} parent=5 // pred_check_branch
      %116 = sbr.rel (%p113) target = $region12
    $region11: #{tpu_custom_call.1} parent=5 // pred_region
      %s117 = ssub.s32 %s9, 1
      // Predicated region
      $region13: #{tpu_custom_call.1} parent=11 // pred_check
        %p118 = pneg %p56
      $region14: #{tpu_custom_call.1} parent=11 // pred_check_branch
        %120 = sbr.rel (%p118) target = $region16
      $region15: #{tpu_custom_call.1} parent=11 // pred_region
        _
      $region16: #{tpu_custom_call.1} parent=11 // pred_fallthru
        _
      // Predicated region
      $region17: #{tpu_custom_call.1} parent=11 // pred_check
        %p121 = pneg %p77
      $region18: #{tpu_custom_call.1} parent=11 // pred_check_branch
        %123 = sbr.rel (%p121) target = $region20
      $region19: #{tpu_custom_call.1} parent=11 // pred_region
        _
      $region20: #{tpu_custom_call.1} parent=11 // pred_fallthru
        _
    $region12: #{tpu_custom_call.1} parent=5 // pred_fallthru
      _
    %p124 = scmp.lt.s32.totalorder %s9, 2
    // Predicated region
    $region21: #{tpu_custom_call.1} parent=5 // pred_check
      %p125 = pneg %p124
    $region22: #{tpu_custom_call.1} parent=5 // pred_check_branch
      %127 = sbr.rel (%p125) target = $region24
    $region23: #{tpu_custom_call.1} parent=5 // pred_region
      // Predicated region
      $region25: #{tpu_custom_call.1} parent=23 // pred_check
        %p128 = pneg %p29
      $region26: #{tpu_custom_call.1} parent=23 // pred_check_branch
        %130 = sbr.rel (%p128) target = $region28
      $region27: #{tpu_custom_call.1} parent=23 // pred_region
        %p131 = scmp.lt.s32.totalorder %s9, 1
        %s132 = scalar_select %p131, %s9, 1
        %s133 = smul.addr %s132, 72
        %s134 = smul.addr %s133, 8
        %s135 = scalar_lea.vmem %s0, %s134
      $region28: #{tpu_custom_call.1} parent=23 // pred_fallthru
        _
    $region24: #{tpu_custom_call.1} parent=5 // pred_fallthru
      _
    %p136 = scmp.le.s32.totalorder 1, %s9
    %p137 = scmp.lt.s32.totalorder %s9, 3
    %p138 = pnand %p136, %p137
    %p139 = pneg %p138
    // Predicated region
    $region29: #{tpu_custom_call.1} parent=5 // pred_check
      _
    $region30: #{tpu_custom_call.1} parent=5 // pred_check_branch
      %141 = sbr.rel (%p138) target = $region32
    $region31: #{tpu_custom_call.1} parent=5 // pred_region
      %s142 = ssub.s32 %s9, 1
      %p143 = scmp.lt.s32.totalorder %s14, 1
      %s144 = scalar_select %p143, %s14, 1
      %s145 = smul.addr %s144, 72
      %s146 = smul.addr %s145, 8
      %s147 = scalar_lea.vmem %s0, %s146
      %p148 = pneg %p35
      %p149 = pneg %p32
      %p150 = pneg %p56
      %p151 = pneg %p53
      %p152 = pneg %p77
      %p153 = pneg %p74
      %p154 = pneg %p103
      %p155 = pneg %p100
      %p156 = scmp.lt.s32.totalorder %s14, 1
      %s157 = scalar_select %p156, %s14, 1
      %s158 = smul.addr %s157, 32
      %s159 = smul.addr %s158, 8
      %s160 = scalar_lea.vmem %s3, %s159
      %p161 = scmp.lt.s32.totalorder %s14, 1
      %s162 = scalar_select %p161, %s14, 1
      %s163 = smul.addr %s162, 72
      %s164 = smul.addr %s163, 8
      %s165 = scalar_lea.vmem %s0, %s164
      %p166 = scmp.lt.s32.totalorder %s14, 1
      %s167 = scalar_select %p166, %s14, 1
      %s168 = smul.addr %s167, 32
      %s169 = smul.addr %s168, 8
      %s170 = scalar_lea.vmem %s3, %s169
      %v171 = vlaneseq
      %v172 = vshrl.u32 %v171, 7
      %v173 = vadd.s32 %v172, 8
      %v174 = vadd.s32 %v172, 16
      %v175 = vadd.s32 %v172, 24
      %v176 = vadd.s32 %v172, 32
      %v177 = vadd.s32 %v172, 40
      %v178 = vadd.s32 %v172, 48
      %v179 = vadd.s32 %v172, 56
      %v180 = vadd.s32 %v172, 64
      %v181 = vadd.s32 %v172, 72
      %v182 = vadd.s32 %v172, 80
      %v183 = vadd.s32 %v172, 88
      %v184 = vadd.s32 %v172, 96
      %v185 = vadd.s32 %v172, 104
      %v186 = vadd.s32 %v172, 112
      %v187 = vadd.s32 %v172, 120
      %v188 = vadd.s32 %v172, 128
      %v189 = vadd.s32 %v172, 136
      %v190 = vadd.s32 %v172, 144
      %v191 = vadd.s32 %v172, 152
      %v192 = vadd.s32 %v172, 160
      %v193 = vadd.s32 %v172, 168
      %v194 = vadd.s32 %v172, 176
      %v195 = vadd.s32 %v172, 184
      %v196 = vadd.s32 %v172, 192
      %v197 = vadd.s32 %v172, 200
      %v198 = vadd.s32 %v172, 208
      %v199 = vadd.s32 %v172, 216
      %v200 = vadd.s32 %v172, 224
      %v201 = vadd.s32 %v172, 232
      %v202 = vadd.s32 %v172, 240
      %v203 = vadd.s32 %v172, 248
      %v204 = vadd.s32 %v172, 256
      %v205 = vadd.s32 %v172, 264
      %v206 = vadd.s32 %v172, 272
      %v207 = vadd.s32 %v172, 280
      %v208 = vadd.s32 %v172, 288
      %v209 = vadd.s32 %v172, 296
      %v210 = vadd.s32 %v172, 304
      %v211 = vadd.s32 %v172, 312
      %v212 = vadd.s32 %v172, 320
      %v213 = vadd.s32 %v172, 328
      %v214 = vadd.s32 %v172, 336
      %v215 = vadd.s32 %v172, 344
      %v216 = vadd.s32 %v172, 352
      %v217 = vadd.s32 %v172, 360
      %v218 = vadd.s32 %v172, 368
      %v219 = vadd.s32 %v172, 376
      %v220 = vadd.s32 %v172, 384
      %v221 = vadd.s32 %v172, 392
      %v222 = vadd.s32 %v172, 400
      %v223 = vadd.s32 %v172, 408
      %v224 = vadd.s32 %v172, 416
      %v225 = vadd.s32 %v172, 424
      %v226 = vadd.s32 %v172, 432
      %v227 = vadd.s32 %v172, 440
      %v228 = vadd.s32 %v172, 448
      %v229 = vadd.s32 %v172, 456
      %v230 = vadd.s32 %v172, 464
      %v231 = vadd.s32 %v172, 472
      %v232 = vadd.s32 %v172, 480
      %v233 = vadd.s32 %v172, 488
      %v234 = vadd.s32 %v172, 496
      %v235 = vadd.s32 %v172, 504
      %v236 = vand.u32 %v172, 31
      %v237 = vand.u32 %v173, 31
      %v238 = vand.u32 %v174, 31
      %v239 = vand.u32 %v175, 31
      %v240 = vand.u32 %v176, 31
      %v241 = vand.u32 %v177, 31
      %v242 = vand.u32 %v178, 31
      %v243 = vand.u32 %v179, 31
      %v244 = vand.u32 %v180, 31
      %v245 = vand.u32 %v181, 31
      %v246 = vand.u32 %v182, 31
      %v247 = vand.u32 %v183, 31
      %v248 = vand.u32 %v184, 31
      %v249 = vand.u32 %v185, 31
      %v250 = vand.u32 %v186, 31
      %v251 = vand.u32 %v187, 31
      %v252 = vand.u32 %v188, 31
      %v253 = vand.u32 %v189, 31
      %v254 = vand.u32 %v190, 31
      %v255 = vand.u32 %v191, 31
      %v256 = vand.u32 %v192, 31
      %v257 = vand.u32 %v193, 31
      %v258 = vand.u32 %v194, 31
      %v259 = vand.u32 %v195, 31
      %v260 = vand.u32 %v196, 31
      %v261 = vand.u32 %v197, 31
      %v262 = vand.u32 %v198, 31
      %v263 = vand.u32 %v199, 31
      %v264 = vand.u32 %v200, 31
      %v265 = vand.u32 %v201, 31
      %v266 = vand.u32 %v202, 31
      %v267 = vand.u32 %v203, 31
      %v268 = vand.u32 %v204, 31
      %v269 = vand.u32 %v205, 31
      %v270 = vand.u32 %v206, 31
      %v271 = vand.u32 %v207, 31
      %v272 = vand.u32 %v208, 31
      %v273 = vand.u32 %v209, 31
      %v274 = vand.u32 %v210, 31
      %v275 = vand.u32 %v211, 31
      %v276 = vand.u32 %v212, 31
      %v277 = vand.u32 %v213, 31
      %v278 = vand.u32 %v214, 31
      %v279 = vand.u32 %v215, 31
      %v280 = vand.u32 %v216, 31
      %v281 = vand.u32 %v217, 31
      %v282 = vand.u32 %v218, 31
      %v283 = vand.u32 %v219, 31
      %v284 = vand.u32 %v220, 31
      %v285 = vand.u32 %v221, 31
      %v286 = vand.u32 %v222, 31
      %v287 = vand.u32 %v223, 31
      %v288 = vand.u32 %v224, 31
      %v289 = vand.u32 %v225, 31
      %v290 = vand.u32 %v226, 31
      %v291 = vand.u32 %v227, 31
      %v292 = vand.u32 %v228, 31
      %v293 = vand.u32 %v229, 31
      %v294 = vand.u32 %v230, 31
      %v295 = vand.u32 %v231, 31
      %v296 = vand.u32 %v232, 31
      %v297 = vand.u32 %v233, 31
      %v298 = vand.u32 %v234, 31
      %v299 = vand.u32 %v235, 31
      %vm300 = vcmp.ge.s32.totalorder %v236, 1
      %vm301 = vcmp.ge.s32.totalorder %v237, 1
      %vm302 = vcmp.ge.s32.totalorder %v238, 1
      %vm303 = vcmp.ge.s32.totalorder %v239, 1
      %vm304 = vcmp.ge.s32.totalorder %v240, 1
      %vm305 = vcmp.ge.s32.totalorder %v241, 1
      %vm306 = vcmp.ge.s32.totalorder %v242, 1
      %vm307 = vcmp.ge.s32.totalorder %v243, 1
      %vm308 = vcmp.ge.s32.totalorder %v244, 1
      %vm309 = vcmp.ge.s32.totalorder %v245, 1
      %vm310 = vcmp.ge.s32.totalorder %v246, 1
      %vm311 = vcmp.ge.s32.totalorder %v247, 1
      %vm312 = vcmp.ge.s32.totalorder %v248, 1
      %vm313 = vcmp.ge.s32.totalorder %v249, 1
      %vm314 = vcmp.ge.s32.totalorder %v250, 1
      %vm315 = vcmp.ge.s32.totalorder %v251, 1
      %vm316 = vcmp.ge.s32.totalorder %v252, 1
      %vm317 = vcmp.ge.s32.totalorder %v253, 1
      %vm318 = vcmp.ge.s32.totalorder %v254, 1
      %vm319 = vcmp.ge.s32.totalorder %v255, 1
      %vm320 = vcmp.ge.s32.totalorder %v256, 1
      %vm321 = vcmp.ge.s32.totalorder %v257, 1
      %vm322 = vcmp.ge.s32.totalorder %v258, 1
      %vm323 = vcmp.ge.s32.totalorder %v259, 1
      %vm324 = vcmp.ge.s32.totalorder %v260, 1
      %vm325 = vcmp.ge.s32.totalorder %v261, 1
      %vm326 = vcmp.ge.s32.totalorder %v262, 1
      %vm327 = vcmp.ge.s32.totalorder %v263, 1
      %vm328 = vcmp.ge.s32.totalorder %v264, 1
      %vm329 = vcmp.ge.s32.totalorder %v265, 1
      %vm330 = vcmp.ge.s32.totalorder %v266, 1
      %vm331 = vcmp.ge.s32.totalorder %v267, 1
      %vm332 = vcmp.ge.s32.totalorder %v268, 1
      %vm333 = vcmp.ge.s32.totalorder %v269, 1
      %vm334 = vcmp.ge.s32.totalorder %v270, 1
      %vm335 = vcmp.ge.s32.totalorder %v271, 1
      %vm336 = vcmp.ge.s32.totalorder %v272, 1
      %vm337 = vcmp.ge.s32.totalorder %v273, 1
      %vm338 = vcmp.ge.s32.totalorder %v274, 1
      %vm339 = vcmp.ge.s32.totalorder %v275, 1
      %vm340 = vcmp.ge.s32.totalorder %v276, 1
      %vm341 = vcmp.ge.s32.totalorder %v277, 1
      %vm342 = vcmp.ge.s32.totalorder %v278, 1
      %vm343 = vcmp.ge.s32.totalorder %v279, 1
      %vm344 = vcmp.ge.s32.totalorder %v280, 1
      %vm345 = vcmp.ge.s32.totalorder %v281, 1
      %vm346 = vcmp.ge.s32.totalorder %v282, 1
      %vm347 = vcmp.ge.s32.totalorder %v283, 1
      %vm348 = vcmp.ge.s32.totalorder %v284, 1
      %vm349 = vcmp.ge.s32.totalorder %v285, 1
      %vm350 = vcmp.ge.s32.totalorder %v286, 1
      %vm351 = vcmp.ge.s32.totalorder %v287, 1
      %vm352 = vcmp.ge.s32.totalorder %v288, 1
      %vm353 = vcmp.ge.s32.totalorder %v289, 1
      %vm354 = vcmp.ge.s32.totalorder %v290, 1
      %vm355 = vcmp.ge.s32.totalorder %v291, 1
      %vm356 = vcmp.ge.s32.totalorder %v292, 1
      %vm357 = vcmp.ge.s32.totalorder %v293, 1
      %vm358 = vcmp.ge.s32.totalorder %v294, 1
      %vm359 = vcmp.ge.s32.totalorder %v295, 1
      %vm360 = vcmp.ge.s32.totalorder %v296, 1
      %vm361 = vcmp.ge.s32.totalorder %v297, 1
      %vm362 = vcmp.ge.s32.totalorder %v298, 1
      %vm363 = vcmp.ge.s32.totalorder %v299, 1
      %vm364 = vcmp.le.s32.totalorder %v236, 16
      %vm365 = vcmp.le.s32.totalorder %v237, 16
      %vm366 = vcmp.le.s32.totalorder %v238, 16
      %vm367 = vcmp.le.s32.totalorder %v239, 16
      %vm368 = vcmp.le.s32.totalorder %v240, 16
      %vm369 = vcmp.le.s32.totalorder %v241, 16
      %vm370 = vcmp.le.s32.totalorder %v242, 16
      %vm371 = vcmp.le.s32.totalorder %v243, 16
      %vm372 = vcmp.le.s32.totalorder %v244, 16
      %vm373 = vcmp.le.s32.totalorder %v245, 16
      %vm374 = vcmp.le.s32.totalorder %v246, 16
      %vm375 = vcmp.le.s32.totalorder %v247, 16
      %vm376 = vcmp.le.s32.totalorder %v248, 16
      %vm377 = vcmp.le.s32.totalorder %v249, 16
      %vm378 = vcmp.le.s32.totalorder %v250, 16
      %vm379 = vcmp.le.s32.totalorder %v251, 16
      %vm380 = vcmp.le.s32.totalorder %v252, 16
      %vm381 = vcmp.le.s32.totalorder %v253, 16
      %vm382 = vcmp.le.s32.totalorder %v254, 16
      %vm383 = vcmp.le.s32.totalorder %v255, 16
      %vm384 = vcmp.le.s32.totalorder %v256, 16
      %vm385 = vcmp.le.s32.totalorder %v257, 16
      %vm386 = vcmp.le.s32.totalorder %v258, 16
      %vm387 = vcmp.le.s32.totalorder %v259, 16
      %vm388 = vcmp.le.s32.totalorder %v260, 16
      %vm389 = vcmp.le.s32.totalorder %v261, 16
      %vm390 = vcmp.le.s32.totalorder %v262, 16
      %vm391 = vcmp.le.s32.totalorder %v263, 16
      %vm392 = vcmp.le.s32.totalorder %v264, 16
      %vm393 = vcmp.le.s32.totalorder %v265, 16
      %vm394 = vcmp.le.s32.totalorder %v266, 16
      %vm395 = vcmp.le.s32.totalorder %v267, 16
      %vm396 = vcmp.le.s32.totalorder %v268, 16
      %vm397 = vcmp.le.s32.totalorder %v269, 16
      %vm398 = vcmp.le.s32.totalorder %v270, 16
      %vm399 = vcmp.le.s32.totalorder %v271, 16
      %vm400 = vcmp.le.s32.totalorder %v272, 16
      %vm401 = vcmp.le.s32.totalorder %v273, 16
      %vm402 = vcmp.le.s32.totalorder %v274, 16
      %vm403 = vcmp.le.s32.totalorder %v275, 16
      %vm404 = vcmp.le.s32.totalorder %v276, 16
      %vm405 = vcmp.le.s32.totalorder %v277, 16
      %vm406 = vcmp.le.s32.totalorder %v278, 16
      %vm407 = vcmp.le.s32.totalorder %v279, 16
      %vm408 = vcmp.le.s32.totalorder %v280, 16
      %vm409 = vcmp.le.s32.totalorder %v281, 16
      %vm410 = vcmp.le.s32.totalorder %v282, 16
      %vm411 = vcmp.le.s32.totalorder %v283, 16
      %vm412 = vcmp.le.s32.totalorder %v284, 16
      %vm413 = vcmp.le.s32.totalorder %v285, 16
      %vm414 = vcmp.le.s32.totalorder %v286, 16
      %vm415 = vcmp.le.s32.totalorder %v287, 16
      %vm416 = vcmp.le.s32.totalorder %v288, 16
      %vm417 = vcmp.le.s32.totalorder %v289, 16
      %vm418 = vcmp.le.s32.totalorder %v290, 16
      %vm419 = vcmp.le.s32.totalorder %v291, 16
      %vm420 = vcmp.le.s32.totalorder %v292, 16
      %vm421 = vcmp.le.s32.totalorder %v293, 16
      %vm422 = vcmp.le.s32.totalorder %v294, 16
      %vm423 = vcmp.le.s32.totalorder %v295, 16
      %vm424 = vcmp.le.s32.totalorder %v296, 16
      %vm425 = vcmp.le.s32.totalorder %v297, 16
      %vm426 = vcmp.le.s32.totalorder %v298, 16
      %vm427 = vcmp.le.s32.totalorder %v299, 16
      %vm428 = vmand %vm300, %vm364
      %vm429 = vmand %vm301, %vm365
      %vm430 = vmand %vm302, %vm366
      %vm431 = vmand %vm303, %vm367
      %vm432 = vmand %vm304, %vm368
      %vm433 = vmand %vm305, %vm369
      %vm434 = vmand %vm306, %vm370
      %vm435 = vmand %vm307, %vm371
      %vm436 = vmand %vm308, %vm372
      %vm437 = vmand %vm309, %vm373
      %vm438 = vmand %vm310, %vm374
      %vm439 = vmand %vm311, %vm375
      %vm440 = vmand %vm312, %vm376
      %vm441 = vmand %vm313, %vm377
      %vm442 = vmand %vm314, %vm378
      %vm443 = vmand %vm315, %vm379
      %vm444 = vmand %vm316, %vm380
      %vm445 = vmand %vm317, %vm381
      %vm446 = vmand %vm318, %vm382
      %vm447 = vmand %vm319, %vm383
      %vm448 = vmand %vm320, %vm384
      %vm449 = vmand %vm321, %vm385
      %vm450 = vmand %vm322, %vm386
      %vm451 = vmand %vm323, %vm387
      %vm452 = vmand %vm324, %vm388
      %vm453 = vmand %vm325, %vm389
      %vm454 = vmand %vm326, %vm390
      %vm455 = vmand %vm327, %vm391
      %vm456 = vmand %vm328, %vm392
      %vm457 = vmand %vm329, %vm393
      %vm458 = vmand %vm330, %vm394
      %vm459 = vmand %vm331, %vm395
      %vm460 = vmand %vm332, %vm396
      %vm461 = vmand %vm333, %vm397
      %vm462 = vmand %vm334, %vm398
      %vm463 = vmand %vm335, %vm399
      %vm464 = vmand %vm336, %vm400
      %vm465 = vmand %vm337, %vm401
      %vm466 = vmand %vm338, %vm402
      %vm467 = vmand %vm339, %vm403
      %vm468 = vmand %vm340, %vm404
      %vm469 = vmand %vm341, %vm405
      %vm470 = vmand %vm342, %vm406
      %vm471 = vmand %vm343, %vm407
      %vm472 = vmand %vm344, %vm408
      %vm473 = vmand %vm345, %vm409
      %vm474 = vmand %vm346, %vm410
      %vm475 = vmand %vm347, %vm411
      %vm476 = vmand %vm348, %vm412
      %vm477 = vmand %vm349, %vm413
      %vm478 = vmand %vm350, %vm414
      %vm479 = vmand %vm351, %vm415
      %vm480 = vmand %vm352, %vm416
      %vm481 = vmand %vm353, %vm417
      %vm482 = vmand %vm354, %vm418
      %vm483 = vmand %vm355, %vm419
      %vm484 = vmand %vm356, %vm420
      %vm485 = vmand %vm357, %vm421
      %vm486 = vmand %vm358, %vm422
      %vm487 = vmand %vm359, %vm423
      %vm488 = vmand %vm360, %vm424
      %vm489 = vmand %vm361, %vm425
      %vm490 = vmand %vm362, %vm426
      %vm491 = vmand %vm363, %vm427
      %v492 = vsel %vm428, 1, 0
      %v493 = vsel %vm429, 1, 0
      %v494 = vsel %vm430, 1, 0
      %v495 = vsel %vm431, 1, 0
      %v496 = vsel %vm432, 1, 0
      %v497 = vsel %vm433, 1, 0
      %v498 = vsel %vm434, 1, 0
      %v499 = vsel %vm435, 1, 0
      %v500 = vsel %vm436, 1, 0
      %v501 = vsel %vm437, 1, 0
      %v502 = vsel %vm438, 1, 0
      %v503 = vsel %vm439, 1, 0
      %v504 = vsel %vm440, 1, 0
      %v505 = vsel %vm441, 1, 0
      %v506 = vsel %vm442, 1, 0
      %v507 = vsel %vm443, 1, 0
      %v508 = vsel %vm444, 1, 0
      %v509 = vsel %vm445, 1, 0
      %v510 = vsel %vm446, 1, 0
      %v511 = vsel %vm447, 1, 0
      %v512 = vsel %vm448, 1, 0
      %v513 = vsel %vm449, 1, 0
      %v514 = vsel %vm450, 1, 0
      %v515 = vsel %vm451, 1, 0
      %v516 = vsel %vm452, 1, 0
      %v517 = vsel %vm453, 1, 0
      %v518 = vsel %vm454, 1, 0
      %v519 = vsel %vm455, 1, 0
      %v520 = vsel %vm456, 1, 0
      %v521 = vsel %vm457, 1, 0
      %v522 = vsel %vm458, 1, 0
      %v523 = vsel %vm459, 1, 0
      %v524 = vsel %vm460, 1, 0
      %v525 = vsel %vm461, 1, 0
      %v526 = vsel %vm462, 1, 0
      %v527 = vsel %vm463, 1, 0
      %v528 = vsel %vm464, 1, 0
      %v529 = vsel %vm465, 1, 0
      %v530 = vsel %vm466, 1, 0
      %v531 = vsel %vm467, 1, 0
      %v532 = vsel %vm468, 1, 0
      %v533 = vsel %vm469, 1, 0
      %v534 = vsel %vm470, 1, 0
      %v535 = vsel %vm471, 1, 0
      %v536 = vsel %vm472, 1, 0
      %v537 = vsel %vm473, 1, 0
      %v538 = vsel %vm474, 1, 0
      %v539 = vsel %vm475, 1, 0
      %v540 = vsel %vm476, 1, 0
      %v541 = vsel %vm477, 1, 0
      %v542 = vsel %vm478, 1, 0
      %v543 = vsel %vm479, 1, 0
      %v544 = vsel %vm480, 1, 0
      %v545 = vsel %vm481, 1, 0
      %v546 = vsel %vm482, 1, 0
      %v547 = vsel %vm483, 1, 0
      %v548 = vsel %vm484, 1, 0
      %v549 = vsel %vm485, 1, 0
      %v550 = vsel %vm486, 1, 0
      %v551 = vsel %vm487, 1, 0
      %v552 = vsel %vm488, 1, 0
      %v553 = vsel %vm489, 1, 0
      %v554 = vsel %vm490, 1, 0
      %v555 = vsel %vm491, 1, 0
      %v556 = vcvt.s32.f32 %v492
      %v557 = vcvt.s32.f32 %v493
      %v558 = vcvt.s32.f32 %v494
      %v559 = vcvt.s32.f32 %v495
      %v560 = vcvt.s32.f32 %v496
      %v561 = vcvt.s32.f32 %v497
      %v562 = vcvt.s32.f32 %v498
      %v563 = vcvt.s32.f32 %v499
      %v564 = vcvt.s32.f32 %v500
      %v565 = vcvt.s32.f32 %v501
      %v566 = vcvt.s32.f32 %v502
      %v567 = vcvt.s32.f32 %v503
      %v568 = vcvt.s32.f32 %v504
      %v569 = vcvt.s32.f32 %v505
      %v570 = vcvt.s32.f32 %v506
      %v571 = vcvt.s32.f32 %v507
      %v572 = vcvt.s32.f32 %v508
      %v573 = vcvt.s32.f32 %v509
      %v574 = vcvt.s32.f32 %v510
      %v575 = vcvt.s32.f32 %v511
      %v576 = vcvt.s32.f32 %v512
      %v577 = vcvt.s32.f32 %v513
      %v578 = vcvt.s32.f32 %v514
      %v579 = vcvt.s32.f32 %v515
      %v580 = vcvt.s32.f32 %v516
      %v581 = vcvt.s32.f32 %v517
      %v582 = vcvt.s32.f32 %v518
      %v583 = vcvt.s32.f32 %v519
      %v584 = vcvt.s32.f32 %v520
      %v585 = vcvt.s32.f32 %v521
      %v586 = vcvt.s32.f32 %v522
      %v587 = vcvt.s32.f32 %v523
      %v588 = vcvt.s32.f32 %v524
      %v589 = vcvt.s32.f32 %v525
      %v590 = vcvt.s32.f32 %v526
      %v591 = vcvt.s32.f32 %v527
      %v592 = vcvt.s32.f32 %v528
      %v593 = vcvt.s32.f32 %v529
      %v594 = vcvt.s32.f32 %v530
      %v595 = vcvt.s32.f32 %v531
      %v596 = vcvt.s32.f32 %v532
      %v597 = vcvt.s32.f32 %v533
      %v598 = vcvt.s32.f32 %v534
      %v599 = vcvt.s32.f32 %v535
      %v600 = vcvt.s32.f32 %v536
      %v601 = vcvt.s32.f32 %v537
      %v602 = vcvt.s32.f32 %v538
      %v603 = vcvt.s32.f32 %v539
      %v604 = vcvt.s32.f32 %v540
      %v605 = vcvt.s32.f32 %v541
      %v606 = vcvt.s32.f32 %v542
      %v607 = vcvt.s32.f32 %v543
      %v608 = vcvt.s32.f32 %v544
      %v609 = vcvt.s32.f32 %v545
      %v610 = vcvt.s32.f32 %v546
      %v611 = vcvt.s32.f32 %v547
      %v612 = vcvt.s32.f32 %v548
      %v613 = vcvt.s32.f32 %v549
      %v614 = vcvt.s32.f32 %v550
      %v615 = vcvt.s32.f32 %v551
      %v616 = vcvt.s32.f32 %v552
      %v617 = vcvt.s32.f32 %v553
      %v618 = vcvt.s32.f32 %v554
      %v619 = vcvt.s32.f32 %v555
      %vm620 = vcmp.eq.s32.totalorder %v236, 0
      %vm621 = vcmp.eq.s32.totalorder %v237, 0
      %vm622 = vcmp.eq.s32.totalorder %v238, 0
      %vm623 = vcmp.eq.s32.totalorder %v239, 0
      %vm624 = vcmp.eq.s32.totalorder %v240, 0
      %vm625 = vcmp.eq.s32.totalorder %v241, 0
      %vm626 = vcmp.eq.s32.totalorder %v242, 0
      %vm627 = vcmp.eq.s32.totalorder %v243, 0
      %vm628 = vcmp.eq.s32.totalorder %v244, 0
      %vm629 = vcmp.eq.s32.totalorder %v245, 0
      %vm630 = vcmp.eq.s32.totalorder %v246, 0
      %vm631 = vcmp.eq.s32.totalorder %v247, 0
      %vm632 = vcmp.eq.s32.totalorder %v248, 0
      %vm633 = vcmp.eq.s32.totalorder %v249, 0
      %vm634 = vcmp.eq.s32.totalorder %v250, 0
      %vm635 = vcmp.eq.s32.totalorder %v251, 0
      %vm636 = vcmp.eq.s32.totalorder %v252, 0
      %vm637 = vcmp.eq.s32.totalorder %v253, 0
      %vm638 = vcmp.eq.s32.totalorder %v254, 0
      %vm639 = vcmp.eq.s32.totalorder %v255, 0
      %vm640 = vcmp.eq.s32.totalorder %v256, 0
      %vm641 = vcmp.eq.s32.totalorder %v257, 0
      %vm642 = vcmp.eq.s32.totalorder %v258, 0
      %vm643 = vcmp.eq.s32.totalorder %v259, 0
      %vm644 = vcmp.eq.s32.totalorder %v260, 0
      %vm645 = vcmp.eq.s32.totalorder %v261, 0
      %vm646 = vcmp.eq.s32.totalorder %v262, 0
      %vm647 = vcmp.eq.s32.totalorder %v263, 0
      %vm648 = vcmp.eq.s32.totalorder %v264, 0
      %vm649 = vcmp.eq.s32.totalorder %v265, 0
      %vm650 = vcmp.eq.s32.totalorder %v266, 0
      %vm651 = vcmp.eq.s32.totalorder %v267, 0
      %vm652 = vcmp.eq.s32.totalorder %v268, 0
      %vm653 = vcmp.eq.s32.totalorder %v269, 0
      %vm654 = vcmp.eq.s32.totalorder %v270, 0
      %vm655 = vcmp.eq.s32.totalorder %v271, 0
      %vm656 = vcmp.eq.s32.totalorder %v272, 0
      %vm657 = vcmp.eq.s32.totalorder %v273, 0
      %vm658 = vcmp.eq.s32.totalorder %v274, 0
      %vm659 = vcmp.eq.s32.totalorder %v275, 0
      %vm660 = vcmp.eq.s32.totalorder %v276, 0
      %vm661 = vcmp.eq.s32.totalorder %v277, 0
      %vm662 = vcmp.eq.s32.totalorder %v278, 0
      %vm663 = vcmp.eq.s32.totalorder %v279, 0
      %vm664 = vcmp.eq.s32.totalorder %v280, 0
      %vm665 = vcmp.eq.s32.totalorder %v281, 0
      %vm666 = vcmp.eq.s32.totalorder %v282, 0
      %vm667 = vcmp.eq.s32.totalorder %v283, 0
      %vm668 = vcmp.eq.s32.totalorder %v284, 0
      %vm669 = vcmp.eq.s32.totalorder %v285, 0
      %vm670 = vcmp.eq.s32.totalorder %v286, 0
      %vm671 = vcmp.eq.s32.totalorder %v287, 0
      %vm672 = vcmp.eq.s32.totalorder %v288, 0
      %vm673 = vcmp.eq.s32.totalorder %v289, 0
      %vm674 = vcmp.eq.s32.totalorder %v290, 0
      %vm675 = vcmp.eq.s32.totalorder %v291, 0
      %vm676 = vcmp.eq.s32.totalorder %v292, 0
      %vm677 = vcmp.eq.s32.totalorder %v293, 0
      %vm678 = vcmp.eq.s32.totalorder %v294, 0
      %vm679 = vcmp.eq.s32.totalorder %v295, 0
      %vm680 = vcmp.eq.s32.totalorder %v296, 0
      %vm681 = vcmp.eq.s32.totalorder %v297, 0
      %vm682 = vcmp.eq.s32.totalorder %v298, 0
      %vm683 = vcmp.eq.s32.totalorder %v299, 0
      %vm684 = vcmp.eq.s32.totalorder %v236, 17
      %vm685 = vcmp.eq.s32.totalorder %v237, 17
      %vm686 = vcmp.eq.s32.totalorder %v238, 17
      %vm687 = vcmp.eq.s32.totalorder %v239, 17
      %vm688 = vcmp.eq.s32.totalorder %v240, 17
      %vm689 = vcmp.eq.s32.totalorder %v241, 17
      %vm690 = vcmp.eq.s32.totalorder %v242, 17
      %vm691 = vcmp.eq.s32.totalorder %v243, 17
      %vm692 = vcmp.eq.s32.totalorder %v244, 17
      %vm693 = vcmp.eq.s32.totalorder %v245, 17
      %vm694 = vcmp.eq.s32.totalorder %v246, 17
      %vm695 = vcmp.eq.s32.totalorder %v247, 17
      %vm696 = vcmp.eq.s32.totalorder %v248, 17
      %vm697 = vcmp.eq.s32.totalorder %v249, 17
      %vm698 = vcmp.eq.s32.totalorder %v250, 17
      %vm699 = vcmp.eq.s32.totalorder %v251, 17
      %vm700 = vcmp.eq.s32.totalorder %v252, 17
      %vm701 = vcmp.eq.s32.totalorder %v253, 17
      %vm702 = vcmp.eq.s32.totalorder %v254, 17
      %vm703 = vcmp.eq.s32.totalorder %v255, 17
      %vm704 = vcmp.eq.s32.totalorder %v256, 17
      %vm705 = vcmp.eq.s32.totalorder %v257, 17
      %vm706 = vcmp.eq.s32.totalorder %v258, 17
      %vm707 = vcmp.eq.s32.totalorder %v259, 17
      %vm708 = vcmp.eq.s32.totalorder %v260, 17
      %vm709 = vcmp.eq.s32.totalorder %v261, 17
      %vm710 = vcmp.eq.s32.totalorder %v262, 17
      %vm711 = vcmp.eq.s32.totalorder %v263, 17
      %vm712 = vcmp.eq.s32.totalorder %v264, 17
      %vm713 = vcmp.eq.s32.totalorder %v265, 17
      %vm714 = vcmp.eq.s32.totalorder %v266, 17
      %vm715 = vcmp.eq.s32.totalorder %v267, 17
      %vm716 = vcmp.eq.s32.totalorder %v268, 17
      %vm717 = vcmp.eq.s32.totalorder %v269, 17
      %vm718 = vcmp.eq.s32.totalorder %v270, 17
      %vm719 = vcmp.eq.s32.totalorder %v271, 17
      %vm720 = vcmp.eq.s32.totalorder %v272, 17
      %vm721 = vcmp.eq.s32.totalorder %v273, 17
      %vm722 = vcmp.eq.s32.totalorder %v274, 17
      %vm723 = vcmp.eq.s32.totalorder %v275, 17
      %vm724 = vcmp.eq.s32.totalorder %v276, 17
      %vm725 = vcmp.eq.s32.totalorder %v277, 17
      %vm726 = vcmp.eq.s32.totalorder %v278, 17
      %vm727 = vcmp.eq.s32.totalorder %v279, 17
      %vm728 = vcmp.eq.s32.totalorder %v280, 17
      %vm729 = vcmp.eq.s32.totalorder %v281, 17
      %vm730 = vcmp.eq.s32.totalorder %v282, 17
      %vm731 = vcmp.eq.s32.totalorder %v283, 17
      %vm732 = vcmp.eq.s32.totalorder %v284, 17
      %vm733 = vcmp.eq.s32.totalorder %v285, 17
      %vm734 = vcmp.eq.s32.totalorder %v286, 17
      %vm735 = vcmp.eq.s32.totalorder %v287, 17
      %vm736 = vcmp.eq.s32.totalorder %v288, 17
      %vm737 = vcmp.eq.s32.totalorder %v289, 17
      %vm738 = vcmp.eq.s32.totalorder %v290, 17
      %vm739 = vcmp.eq.s32.totalorder %v291, 17
      %vm740 = vcmp.eq.s32.totalorder %v292, 17
      %vm741 = vcmp.eq.s32.totalorder %v293, 17
      %vm742 = vcmp.eq.s32.totalorder %v294, 17
      %vm743 = vcmp.eq.s32.totalorder %v295, 17
      %vm744 = vcmp.eq.s32.totalorder %v296, 17
      %vm745 = vcmp.eq.s32.totalorder %v297, 17
      %vm746 = vcmp.eq.s32.totalorder %v298, 17
      %vm747 = vcmp.eq.s32.totalorder %v299, 17
      %v748 = vld [vmem:[%s165] sm:$0xff]
      %v749 = vld [vmem:[%s165 + $0x8] sm:$0xff]
      %v750 = vld [vmem:[%s165 + $0x10] sm:$0xff]
      %v751 = vld [vmem:[%s165 + $0x18] sm:$0xff]
      %v752 = vld [vmem:[%s165 + $0x20] sm:$0xff]
      %v753 = vld [vmem:[%s165 + $0x28] sm:$0xff]
      %v754 = vld [vmem:[%s165 + $0x30] sm:$0xff]
      %v755 = vld [vmem:[%s165 + $0x38] sm:$0xff]
      %v756 = vld [vmem:[%s165 + $0x40] sm:$0xff]
      %v757 = vld [vmem:[%s165 + $0x48] sm:$0xff]
      %v758 = vld [vmem:[%s165 + $0x50] sm:$0xff]
      %v759 = vld [vmem:[%s165 + $0x58] sm:$0xff]
      %v760 = vld [vmem:[%s165 + $0x60] sm:$0xff]
      %v761 = vld [vmem:[%s165 + $0x68] sm:$0xff]
      %v762 = vld [vmem:[%s165 + $0x70] sm:$0xff]
      %v763 = vld [vmem:[%s165 + $0x78] sm:$0xff]
      %v764 = vld [vmem:[%s165 + $0x80] sm:$0xff]
      %v765 = vld [vmem:[%s165 + $0x88] sm:$0xff]
      %v766 = vld [vmem:[%s165 + $0x90] sm:$0xff]
      %v767 = vld [vmem:[%s165 + $0x98] sm:$0xff]
      %v768 = vld [vmem:[%s165 + $0xa0] sm:$0xff]
      %v769 = vld [vmem:[%s165 + $0xa8] sm:$0xff]
      %v770 = vld [vmem:[%s165 + $0xb0] sm:$0xff]
      %v771 = vld [vmem:[%s165 + $0xb8] sm:$0xff]
      %v772 = vld [vmem:[%s165 + $0xc0] sm:$0xff]
      %v773 = vld [vmem:[%s165 + $0xc8] sm:$0xff]
      %v774 = vld [vmem:[%s165 + $0xd0] sm:$0xff]
      %v775 = vld [vmem:[%s165 + $0xd8] sm:$0xff]
      %v776 = vld [vmem:[%s165 + $0xe0] sm:$0xff]
      %v777 = vld [vmem:[%s165 + $0xe8] sm:$0xff]
      %v778 = vld [vmem:[%s165 + $0xf0] sm:$0xff]
      %v779 = vld [vmem:[%s165 + $0xf8] sm:$0xff]
      %v780 = vld [vmem:[%s165 + $0x100] sm:$0xff]
      %v781 = vld [vmem:[%s165 + $0x108] sm:$0xff]
      %v782 = vld [vmem:[%s165 + $0x110] sm:$0xff]
      %v783 = vld [vmem:[%s165 + $0x118] sm:$0xff]
      %v784 = vld [vmem:[%s165 + $0x120] sm:$0xff]
      %v785 = vld [vmem:[%s165 + $0x128] sm:$0xff]
      %v786 = vld [vmem:[%s165 + $0x130] sm:$0xff]
      %v787 = vld [vmem:[%s165 + $0x138] sm:$0xff]
      %v788 = vld [vmem:[%s165 + $0x140] sm:$0xff]
      %v789 = vld [vmem:[%s165 + $0x148] sm:$0xff]
      %v790 = vld [vmem:[%s165 + $0x150] sm:$0xff]
      %v791 = vld [vmem:[%s165 + $0x158] sm:$0xff]
      %v792 = vld [vmem:[%s165 + $0x160] sm:$0xff]
      %v793 = vld [vmem:[%s165 + $0x168] sm:$0xff]
      %v794 = vld [vmem:[%s165 + $0x170] sm:$0xff]
      %v795 = vld [vmem:[%s165 + $0x178] sm:$0xff]
      %v796 = vld [vmem:[%s165 + $0x180] sm:$0xff]
      %v797 = vld [vmem:[%s165 + $0x188] sm:$0xff]
      %v798 = vld [vmem:[%s165 + $0x190] sm:$0xff]
      %v799 = vld [vmem:[%s165 + $0x198] sm:$0xff]
      %v800 = vld [vmem:[%s165 + $0x1a0] sm:$0xff]
      %v801 = vld [vmem:[%s165 + $0x1a8] sm:$0xff]
      %v802 = vld [vmem:[%s165 + $0x1b0] sm:$0xff]
      %v803 = vld [vmem:[%s165 + $0x1b8] sm:$0xff]
      %v804 = vld [vmem:[%s165 + $0x1c0] sm:$0xff]
      %v805 = vld [vmem:[%s165 + $0x1c8] sm:$0xff]
      %v806 = vld [vmem:[%s165 + $0x1d0] sm:$0xff]
      %v807 = vld [vmem:[%s165 + $0x1d8] sm:$0xff]
      %v808 = vld [vmem:[%s165 + $0x1e0] sm:$0xff]
      %v809 = vld [vmem:[%s165 + $0x1e8] sm:$0xff]
      %v810 = vld [vmem:[%s165 + $0x1f0] sm:$0xff]
      %v811 = vld [vmem:[%s165 + $0x1f8] sm:$0xff]
      %s812 = scalar_lea.vmem %s165, 32
      %v813 = vld [vmem:[%s812] sm:$0xff]
      %v814 = vld [vmem:[%s812 + $0x8] sm:$0xff]
      %v815 = vld [vmem:[%s812 + $0x10] sm:$0xff]
      %v816 = vld [vmem:[%s812 + $0x18] sm:$0xff]
      %v817 = vld [vmem:[%s812 + $0x20] sm:$0xff]
      %v818 = vld [vmem:[%s812 + $0x28] sm:$0xff]
      %v819 = vld [vmem:[%s812 + $0x30] sm:$0xff]
      %v820 = vld [vmem:[%s812 + $0x38] sm:$0xff]
      %v821 = vld [vmem:[%s812 + $0x40] sm:$0xff]
      %v822 = vld [vmem:[%s812 + $0x48] sm:$0xff]
      %v823 = vld [vmem:[%s812 + $0x50] sm:$0xff]
      %v824 = vld [vmem:[%s812 + $0x58] sm:$0xff]
      %v825 = vld [vmem:[%s812 + $0x60] sm:$0xff]
      %v826 = vld [vmem:[%s812 + $0x68] sm:$0xff]
      %v827 = vld [vmem:[%s812 + $0x70] sm:$0xff]
      %v828 = vld [vmem:[%s812 + $0x78] sm:$0xff]
      %v829 = vld [vmem:[%s812 + $0x80] sm:$0xff]
      %v830 = vld [vmem:[%s812 + $0x88] sm:$0xff]
      %v831 = vld [vmem:[%s812 + $0x90] sm:$0xff]
      %v832 = vld [vmem:[%s812 + $0x98] sm:$0xff]
      %v833 = vld [vmem:[%s812 + $0xa0] sm:$0xff]
      %v834 = vld [vmem:[%s812 + $0xa8] sm:$0xff]
      %v835 = vld [vmem:[%s812 + $0xb0] sm:$0xff]
      %v836 = vld [vmem:[%s812 + $0xb8] sm:$0xff]
      %v837 = vld [vmem:[%s812 + $0xc0] sm:$0xff]
      %v838 = vld [vmem:[%s812 + $0xc8] sm:$0xff]
      %v839 = vld [vmem:[%s812 + $0xd0] sm:$0xff]
      %v840 = vld [vmem:[%s812 + $0xd8] sm:$0xff]
      %v841 = vld [vmem:[%s812 + $0xe0] sm:$0xff]
      %v842 = vld [vmem:[%s812 + $0xe8] sm:$0xff]
      %v843 = vld [vmem:[%s812 + $0xf0] sm:$0xff]
      %v844 = vld [vmem:[%s812 + $0xf8] sm:$0xff]
      %v845 = vld [vmem:[%s812 + $0x100] sm:$0xff]
      %v846 = vld [vmem:[%s812 + $0x108] sm:$0xff]
      %v847 = vld [vmem:[%s812 + $0x110] sm:$0xff]
      %v848 = vld [vmem:[%s812 + $0x118] sm:$0xff]
      %v849 = vld [vmem:[%s812 + $0x120] sm:$0xff]
      %v850 = vld [vmem:[%s812 + $0x128] sm:$0xff]
      %v851 = vld [vmem:[%s812 + $0x130] sm:$0xff]
      %v852 = vld [vmem:[%s812 + $0x138] sm:$0xff]
      %v853 = vld [vmem:[%s812 + $0x140] sm:$0xff]
      %v854 = vld [vmem:[%s812 + $0x148] sm:$0xff]
      %v855 = vld [vmem:[%s812 + $0x150] sm:$0xff]
      %v856 = vld [vmem:[%s812 + $0x158] sm:$0xff]
      %v857 = vld [vmem:[%s812 + $0x160] sm:$0xff]
      %v858 = vld [vmem:[%s812 + $0x168] sm:$0xff]
      %v859 = vld [vmem:[%s812 + $0x170] sm:$0xff]
      %v860 = vld [vmem:[%s812 + $0x178] sm:$0xff]
      %v861 = vld [vmem:[%s812 + $0x180] sm:$0xff]
      %v862 = vld [vmem:[%s812 + $0x188] sm:$0xff]
      %v863 = vld [vmem:[%s812 + $0x190] sm:$0xff]
      %v864 = vld [vmem:[%s812 + $0x198] sm:$0xff]
      %v865 = vld [vmem:[%s812 + $0x1a0] sm:$0xff]
      %v866 = vld [vmem:[%s812 + $0x1a8] sm:$0xff]
      %v867 = vld [vmem:[%s812 + $0x1b0] sm:$0xff]
      %v868 = vld [vmem:[%s812 + $0x1b8] sm:$0xff]
      %v869 = vld [vmem:[%s812 + $0x1c0] sm:$0xff]
      %v870 = vld [vmem:[%s812 + $0x1c8] sm:$0xff]
      %v871 = vld [vmem:[%s812 + $0x1d0] sm:$0xff]
      %v872 = vld [vmem:[%s812 + $0x1d8] sm:$0xff]
      %v873 = vld [vmem:[%s812 + $0x1e0] sm:$0xff]
      %v874 = vld [vmem:[%s812 + $0x1e8] sm:$0xff]
      %v875 = vld [vmem:[%s812 + $0x1f0] sm:$0xff]
      %v876 = vld [vmem:[%s812 + $0x1f8] sm:$0xff]
      %s877 = scalar_lea.vmem %s165, 64
      %v878 = vld [vmem:[%s877] sm:$0xff]
      %v879 = vld [vmem:[%s877 + $0x8] sm:$0xff]
      %v880 = vld [vmem:[%s877 + $0x10] sm:$0xff]
      %v881 = vld [vmem:[%s877 + $0x18] sm:$0xff]
      %v882 = vld [vmem:[%s877 + $0x20] sm:$0xff]
      %v883 = vld [vmem:[%s877 + $0x28] sm:$0xff]
      %v884 = vld [vmem:[%s877 + $0x30] sm:$0xff]
      %v885 = vld [vmem:[%s877 + $0x38] sm:$0xff]
      %v886 = vld [vmem:[%s877 + $0x40] sm:$0xff]
      %v887 = vld [vmem:[%s877 + $0x48] sm:$0xff]
      %v888 = vld [vmem:[%s877 + $0x50] sm:$0xff]
      %v889 = vld [vmem:[%s877 + $0x58] sm:$0xff]
      %v890 = vld [vmem:[%s877 + $0x60] sm:$0xff]
      %v891 = vld [vmem:[%s877 + $0x68] sm:$0xff]
      %v892 = vld [vmem:[%s877 + $0x70] sm:$0xff]
      %v893 = vld [vmem:[%s877 + $0x78] sm:$0xff]
      %v894 = vld [vmem:[%s877 + $0x80] sm:$0xff]
      %v895 = vld [vmem:[%s877 + $0x88] sm:$0xff]
      %v896 = vld [vmem:[%s877 + $0x90] sm:$0xff]
      %v897 = vld [vmem:[%s877 + $0x98] sm:$0xff]
      %v898 = vld [vmem:[%s877 + $0xa0] sm:$0xff]
      %v899 = vld [vmem:[%s877 + $0xa8] sm:$0xff]
      %v900 = vld [vmem:[%s877 + $0xb0] sm:$0xff]
      %v901 = vld [vmem:[%s877 + $0xb8] sm:$0xff]
      %v902 = vld [vmem:[%s877 + $0xc0] sm:$0xff]
      %v903 = vld [vmem:[%s877 + $0xc8] sm:$0xff]
      %v904 = vld [vmem:[%s877 + $0xd0] sm:$0xff]
      %v905 = vld [vmem:[%s877 + $0xd8] sm:$0xff]
      %v906 = vld [vmem:[%s877 + $0xe0] sm:$0xff]
      %v907 = vld [vmem:[%s877 + $0xe8] sm:$0xff]
      %v908 = vld [vmem:[%s877 + $0xf0] sm:$0xff]
      %v909 = vld [vmem:[%s877 + $0xf8] sm:$0xff]
      %v910 = vld [vmem:[%s877 + $0x100] sm:$0xff]
      %v911 = vld [vmem:[%s877 + $0x108] sm:$0xff]
      %v912 = vld [vmem:[%s877 + $0x110] sm:$0xff]
      %v913 = vld [vmem:[%s877 + $0x118] sm:$0xff]
      %v914 = vld [vmem:[%s877 + $0x120] sm:$0xff]
      %v915 = vld [vmem:[%s877 + $0x128] sm:$0xff]
      %v916 = vld [vmem:[%s877 + $0x130] sm:$0xff]
      %v917 = vld [vmem:[%s877 + $0x138] sm:$0xff]
      %v918 = vld [vmem:[%s877 + $0x140] sm:$0xff]
      %v919 = vld [vmem:[%s877 + $0x148] sm:$0xff]
      %v920 = vld [vmem:[%s877 + $0x150] sm:$0xff]
      %v921 = vld [vmem:[%s877 + $0x158] sm:$0xff]
      %v922 = vld [vmem:[%s877 + $0x160] sm:$0xff]
      %v923 = vld [vmem:[%s877 + $0x168] sm:$0xff]
      %v924 = vld [vmem:[%s877 + $0x170] sm:$0xff]
      %v925 = vld [vmem:[%s877 + $0x178] sm:$0xff]
      %v926 = vld [vmem:[%s877 + $0x180] sm:$0xff]
      %v927 = vld [vmem:[%s877 + $0x188] sm:$0xff]
      %v928 = vld [vmem:[%s877 + $0x190] sm:$0xff]
      %v929 = vld [vmem:[%s877 + $0x198] sm:$0xff]
      %v930 = vld [vmem:[%s877 + $0x1a0] sm:$0xff]
      %v931 = vld [vmem:[%s877 + $0x1a8] sm:$0xff]
      %v932 = vld [vmem:[%s877 + $0x1b0] sm:$0xff]
      %v933 = vld [vmem:[%s877 + $0x1b8] sm:$0xff]
      %v934 = vld [vmem:[%s877 + $0x1c0] sm:$0xff]
      %v935 = vld [vmem:[%s877 + $0x1c8] sm:$0xff]
      %v936 = vld [vmem:[%s877 + $0x1d0] sm:$0xff]
      %v937 = vld [vmem:[%s877 + $0x1d8] sm:$0xff]
      %v938 = vld [vmem:[%s877 + $0x1e0] sm:$0xff]
      %v939 = vld [vmem:[%s877 + $0x1e8] sm:$0xff]
      %v940 = vld [vmem:[%s877 + $0x1f0] sm:$0xff]
      %v941 = vld [vmem:[%s877 + $0x1f8] sm:$0xff]
      %v942 = vrot.slane %v748, 7
      %v943 = vrot.slane %v749, 7
      %v944 = vrot.slane %v750, 7
      %v945 = vrot.slane %v751, 7
      %v946 = vrot.slane %v752, 7
      %v947 = vrot.slane %v753, 7
      %v948 = vrot.slane %v754, 7
      %v949 = vrot.slane %v755, 7
      %v950 = vrot.slane %v756, 7
      %v951 = vrot.slane %v757, 7
      %v952 = vrot.slane %v758, 7
      %v953 = vrot.slane %v759, 7
      %v954 = vrot.slane %v760, 7
      %v955 = vrot.slane %v761, 7
      %v956 = vrot.slane %v762, 7
      %v957 = vrot.slane %v763, 7
      %v958 = vrot.slane %v764, 7
      %v959 = vrot.slane %v765, 7
      %v960 = vrot.slane %v766, 7
      %v961 = vrot.slane %v767, 7
      %v962 = vrot.slane %v768, 7
      %v963 = vrot.slane %v769, 7
      %v964 = vrot.slane %v770, 7
      %v965 = vrot.slane %v771, 7
      %v966 = vrot.slane %v772, 7
      %v967 = vrot.slane %v773, 7
      %v968 = vrot.slane %v774, 7
      %v969 = vrot.slane %v775, 7
      %v970 = vrot.slane %v776, 7
      %v971 = vrot.slane %v777, 7
      %v972 = vrot.slane %v778, 7
      %v973 = vrot.slane %v779, 7
      %v974 = vrot.slane %v780, 7
      %v975 = vrot.slane %v781, 7
      %v976 = vrot.slane %v782, 7
      %v977 = vrot.slane %v783, 7
      %v978 = vrot.slane %v784, 7
      %v979 = vrot.slane %v785, 7
      %v980 = vrot.slane %v786, 7
      %v981 = vrot.slane %v787, 7
      %v982 = vrot.slane %v788, 7
      %v983 = vrot.slane %v789, 7
      %v984 = vrot.slane %v790, 7
      %v985 = vrot.slane %v791, 7
      %v986 = vrot.slane %v792, 7
      %v987 = vrot.slane %v793, 7
      %v988 = vrot.slane %v794, 7
      %v989 = vrot.slane %v795, 7
      %v990 = vrot.slane %v796, 7
      %v991 = vrot.slane %v797, 7
      %v992 = vrot.slane %v798, 7
      %v993 = vrot.slane %v799, 7
      %v994 = vrot.slane %v800, 7
      %v995 = vrot.slane %v801, 7
      %v996 = vrot.slane %v802, 7
      %v997 = vrot.slane %v803, 7
      %v998 = vrot.slane %v804, 7
      %v999 = vrot.slane %v805, 7
      %v1000 = vrot.slane %v806, 7
      %v1001 = vrot.slane %v807, 7
      %v1002 = vrot.slane %v808, 7
      %v1003 = vrot.slane %v809, 7
      %v1004 = vrot.slane %v810, 7
      %v1005 = vrot.slane %v811, 7
      %vm1006 = vcmp.lt.s32.totalorder %v172, 1
      %v1007 = vsel %vm1006, %v1004, %v1005
      %v1008 = vsel %vm1006, %v1003, %v1004
      %v1009 = vsel %vm1006, %v1002, %v1003
      %v1010 = vsel %vm1006, %v1001, %v1002
      %v1011 = vsel %vm1006, %v1000, %v1001
      %v1012 = vsel %vm1006, %v999, %v1000
      %v1013 = vsel %vm1006, %v998, %v999
      %v1014 = vsel %vm1006, %v997, %v998
      %v1015 = vsel %vm1006, %v996, %v997
      %v1016 = vsel %vm1006, %v995, %v996
      %v1017 = vsel %vm1006, %v994, %v995
      %v1018 = vsel %vm1006, %v993, %v994
      %v1019 = vsel %vm1006, %v992, %v993
      %v1020 = vsel %vm1006, %v991, %v992
      %v1021 = vsel %vm1006, %v990, %v991
      %v1022 = vsel %vm1006, %v989, %v990
      %v1023 = vsel %vm1006, %v988, %v989
      %v1024 = vsel %vm1006, %v987, %v988
      %v1025 = vsel %vm1006, %v986, %v987
      %v1026 = vsel %vm1006, %v985, %v986
      %v1027 = vsel %vm1006, %v984, %v985
      %v1028 = vsel %vm1006, %v983, %v984
      %v1029 = vsel %vm1006, %v982, %v983
      %v1030 = vsel %vm1006, %v981, %v982
      %v1031 = vsel %vm1006, %v980, %v981
      %v1032 = vsel %vm1006, %v979, %v980
      %v1033 = vsel %vm1006, %v978, %v979
      %v1034 = vsel %vm1006, %v977, %v978
      %v1035 = vsel %vm1006, %v976, %v977
      %v1036 = vsel %vm1006, %v975, %v976
      %v1037 = vsel %vm1006, %v974, %v975
      %v1038 = vsel %vm1006, %v973, %v974
      %v1039 = vsel %vm1006, %v972, %v973
      %v1040 = vsel %vm1006, %v971, %v972
      %v1041 = vsel %vm1006, %v970, %v971
      %v1042 = vsel %vm1006, %v969, %v970
      %v1043 = vsel %vm1006, %v968, %v969
      %v1044 = vsel %vm1006, %v967, %v968
      %v1045 = vsel %vm1006, %v966, %v967
      %v1046 = vsel %vm1006, %v965, %v966
      %v1047 = vsel %vm1006, %v964, %v965
      %v1048 = vsel %vm1006, %v963, %v964
      %v1049 = vsel %vm1006, %v962, %v963
      %v1050 = vsel %vm1006, %v961, %v962
      %v1051 = vsel %vm1006, %v960, %v961
      %v1052 = vsel %vm1006, %v959, %v960
      %v1053 = vsel %vm1006, %v958, %v959
      %v1054 = vsel %vm1006, %v957, %v958
      %v1055 = vsel %vm1006, %v956, %v957
      %v1056 = vsel %vm1006, %v955, %v956
      %v1057 = vsel %vm1006, %v954, %v955
      %v1058 = vsel %vm1006, %v953, %v954
      %v1059 = vsel %vm1006, %v952, %v953
      %v1060 = vsel %vm1006, %v951, %v952
      %v1061 = vsel %vm1006, %v950, %v951
      %v1062 = vsel %vm1006, %v949, %v950
      %v1063 = vsel %vm1006, %v948, %v949
      %v1064 = vsel %vm1006, %v947, %v948
      %v1065 = vsel %vm1006, %v946, %v947
      %v1066 = vsel %vm1006, %v945, %v946
      %v1067 = vsel %vm1006, %v944, %v945
      %v1068 = vsel %vm1006, %v943, %v944
      %v1069 = vsel %vm1006, %v942, %v943
      %v1070 = vsel %vm1006, %v1005, %v942
      %v1071 = vrot.slane %v748, 1
      %v1072 = vrot.slane %v749, 1
      %v1073 = vrot.slane %v750, 1
      %v1074 = vrot.slane %v751, 1
      %v1075 = vrot.slane %v752, 1
      %v1076 = vrot.slane %v753, 1
      %v1077 = vrot.slane %v754, 1
      %v1078 = vrot.slane %v755, 1
      %v1079 = vrot.slane %v756, 1
      %v1080 = vrot.slane %v757, 1
      %v1081 = vrot.slane %v758, 1
      %v1082 = vrot.slane %v759, 1
      %v1083 = vrot.slane %v760, 1
      %v1084 = vrot.slane %v761, 1
      %v1085 = vrot.slane %v762, 1
      %v1086 = vrot.slane %v763, 1
      %v1087 = vrot.slane %v764, 1
      %v1088 = vrot.slane %v765, 1
      %v1089 = vrot.slane %v766, 1
      %v1090 = vrot.slane %v767, 1
      %v1091 = vrot.slane %v768, 1
      %v1092 = vrot.slane %v769, 1
      %v1093 = vrot.slane %v770, 1
      %v1094 = vrot.slane %v771, 1
      %v1095 = vrot.slane %v772, 1
      %v1096 = vrot.slane %v773, 1
      %v1097 = vrot.slane %v774, 1
      %v1098 = vrot.slane %v775, 1
      %v1099 = vrot.slane %v776, 1
      %v1100 = vrot.slane %v777, 1
      %v1101 = vrot.slane %v778, 1
      %v1102 = vrot.slane %v779, 1
      %v1103 = vrot.slane %v780, 1
      %v1104 = vrot.slane %v781, 1
      %v1105 = vrot.slane %v782, 1
      %v1106 = vrot.slane %v783, 1
      %v1107 = vrot.slane %v784, 1
      %v1108 = vrot.slane %v785, 1
      %v1109 = vrot.slane %v786, 1
      %v1110 = vrot.slane %v787, 1
      %v1111 = vrot.slane %v788, 1
      %v1112 = vrot.slane %v789, 1
      %v1113 = vrot.slane %v790, 1
      %v1114 = vrot.slane %v791, 1
      %v1115 = vrot.slane %v792, 1
      %v1116 = vrot.slane %v793, 1
      %v1117 = vrot.slane %v794, 1
      %v1118 = vrot.slane %v795, 1
      %v1119 = vrot.slane %v796, 1
      %v1120 = vrot.slane %v797, 1
      %v1121 = vrot.slane %v798, 1
      %v1122 = vrot.slane %v799, 1
      %v1123 = vrot.slane %v800, 1
      %v1124 = vrot.slane %v801, 1
      %v1125 = vrot.slane %v802, 1
      %v1126 = vrot.slane %v803, 1
      %v1127 = vrot.slane %v804, 1
      %v1128 = vrot.slane %v805, 1
      %v1129 = vrot.slane %v806, 1
      %v1130 = vrot.slane %v807, 1
      %v1131 = vrot.slane %v808, 1
      %v1132 = vrot.slane %v809, 1
      %v1133 = vrot.slane %v810, 1
      %v1134 = vrot.slane %v811, 1
      %vm1135 = vcmp.lt.s32.totalorder %v172, 7
      %v1136 = vsel %vm1135, %v1133, %v1134
      %v1137 = vsel %vm1135, %v1132, %v1133
      %v1138 = vsel %vm1135, %v1131, %v1132
      %v1139 = vsel %vm1135, %v1130, %v1131
      %v1140 = vsel %vm1135, %v1129, %v1130
      %v1141 = vsel %vm1135, %v1128, %v1129
      %v1142 = vsel %vm1135, %v1127, %v1128
      %v1143 = vsel %vm1135, %v1126, %v1127
      %v1144 = vsel %vm1135, %v1125, %v1126
      %v1145 = vsel %vm1135, %v1124, %v1125
      %v1146 = vsel %vm1135, %v1123, %v1124
      %v1147 = vsel %vm1135, %v1122, %v1123
      %v1148 = vsel %vm1135, %v1121, %v1122
      %v1149 = vsel %vm1135, %v1120, %v1121
      %v1150 = vsel %vm1135, %v1119, %v1120
      %v1151 = vsel %vm1135, %v1118, %v1119
      %v1152 = vsel %vm1135, %v1117, %v1118
      %v1153 = vsel %vm1135, %v1116, %v1117
      %v1154 = vsel %vm1135, %v1115, %v1116
      %v1155 = vsel %vm1135, %v1114, %v1115
      %v1156 = vsel %vm1135, %v1113, %v1114
      %v1157 = vsel %vm1135, %v1112, %v1113
      %v1158 = vsel %vm1135, %v1111, %v1112
      %v1159 = vsel %vm1135, %v1110, %v1111
      %v1160 = vsel %vm1135, %v1109, %v1110
      %v1161 = vsel %vm1135, %v1108, %v1109
      %v1162 = vsel %vm1135, %v1107, %v1108
      %v1163 = vsel %vm1135, %v1106, %v1107
      %v1164 = vsel %vm1135, %v1105, %v1106
      %v1165 = vsel %vm1135, %v1104, %v1105
      %v1166 = vsel %vm1135, %v1103, %v1104
      %v1167 = vsel %vm1135, %v1102, %v1103
      %v1168 = vsel %vm1135, %v1101, %v1102
      %v1169 = vsel %vm1135, %v1100, %v1101
      %v1170 = vsel %vm1135, %v1099, %v1100
      %v1171 = vsel %vm1135, %v1098, %v1099
      %v1172 = vsel %vm1135, %v1097, %v1098
      %v1173 = vsel %vm1135, %v1096, %v1097
      %v1174 = vsel %vm1135, %v1095, %v1096
      %v1175 = vsel %vm1135, %v1094, %v1095
      %v1176 = vsel %vm1135, %v1093, %v1094
      %v1177 = vsel %vm1135, %v1092, %v1093
      %v1178 = vsel %vm1135, %v1091, %v1092
      %v1179 = vsel %vm1135, %v1090, %v1091
      %v1180 = vsel %vm1135, %v1089, %v1090
      %v1181 = vsel %vm1135, %v1088, %v1089
      %v1182 = vsel %vm1135, %v1087, %v1088
      %v1183 = vsel %vm1135, %v1086, %v1087
      %v1184 = vsel %vm1135, %v1085, %v1086
      %v1185 = vsel %vm1135, %v1084, %v1085
      %v1186 = vsel %vm1135, %v1083, %v1084
      %v1187 = vsel %vm1135, %v1082, %v1083
      %v1188 = vsel %vm1135, %v1081, %v1082
      %v1189 = vsel %vm1135, %v1080, %v1081
      %v1190 = vsel %vm1135, %v1079, %v1080
      %v1191 = vsel %vm1135, %v1078, %v1079
      %v1192 = vsel %vm1135, %v1077, %v1078
      %v1193 = vsel %vm1135, %v1076, %v1077
      %v1194 = vsel %vm1135, %v1075, %v1076
      %v1195 = vsel %vm1135, %v1074, %v1075
      %v1196 = vsel %vm1135, %v1073, %v1074
      %v1197 = vsel %vm1135, %v1072, %v1073
      %v1198 = vsel %vm1135, %v1071, %v1072
      %v1199 = vsel %vm1135, %v1134, %v1071
      %1264 = vrot.lane.b32.xlu0 %v748, 4
      %v1265 = vpop.permute.xlu0 %1264
      %1266 = vrot.lane.b32.xlu0 %v749, 4
      %v1267 = vpop.permute.xlu0 %1266
      %1268 = vrot.lane.b32.xlu0 %v750, 4
      %v1269 = vpop.permute.xlu0 %1268
      %1270 = vrot.lane.b32.xlu0 %v751, 4
      %v1271 = vpop.permute.xlu0 %1270
      %1272 = vrot.lane.b32.xlu0 %v752, 4
      %v1273 = vpop.permute.xlu0 %1272
      %1274 = vrot.lane.b32.xlu0 %v753, 4
      %v1275 = vpop.permute.xlu0 %1274
      %1276 = vrot.lane.b32.xlu0 %v754, 4
      %v1277 = vpop.permute.xlu0 %1276
      %1278 = vrot.lane.b32.xlu0 %v755, 4
      %v1279 = vpop.permute.xlu0 %1278
      %1280 = vrot.lane.b32.xlu0 %v756, 4
      %v1281 = vpop.permute.xlu0 %1280
      %1282 = vrot.lane.b32.xlu0 %v757, 4
      %v1283 = vpop.permute.xlu0 %1282
      %1284 = vrot.lane.b32.xlu0 %v758, 4
      %v1285 = vpop.permute.xlu0 %1284
      %1286 = vrot.lane.b32.xlu0 %v759, 4
      %v1287 = vpop.permute.xlu0 %1286
      %1288 = vrot.lane.b32.xlu0 %v760, 4
      %v1289 = vpop.permute.xlu0 %1288
      %1290 = vrot.lane.b32.xlu0 %v761, 4
      %v1291 = vpop.permute.xlu0 %1290
      %1292 = vrot.lane.b32.xlu0 %v762, 4
      %v1293 = vpop.permute.xlu0 %1292
      %1294 = vrot.lane.b32.xlu0 %v763, 4
      %v1295 = vpop.permute.xlu0 %1294
      %1296 = vrot.lane.b32.xlu0 %v764, 4
      %v1297 = vpop.permute.xlu0 %1296
      %1298 = vrot.lane.b32.xlu0 %v765, 4
      %v1299 = vpop.permute.xlu0 %1298
      %1300 = vrot.lane.b32.xlu0 %v766, 4
      %v1301 = vpop.permute.xlu0 %1300
      %1302 = vrot.lane.b32.xlu0 %v767, 4
      %v1303 = vpop.permute.xlu0 %1302
      %1304 = vrot.lane.b32.xlu0 %v768, 4
      %v1305 = vpop.permute.xlu0 %1304
      %1306 = vrot.lane.b32.xlu0 %v769, 4
      %v1307 = vpop.permute.xlu0 %1306
      %1308 = vrot.lane.b32.xlu0 %v770, 4
      %v1309 = vpop.permute.xlu0 %1308
      %1310 = vrot.lane.b32.xlu0 %v771, 4
      %v1311 = vpop.permute.xlu0 %1310
      %1312 = vrot.lane.b32.xlu0 %v772, 4
      %v1313 = vpop.permute.xlu0 %1312
      %1314 = vrot.lane.b32.xlu0 %v773, 4
      %v1315 = vpop.permute.xlu0 %1314
      %1316 = vrot.lane.b32.xlu0 %v774, 4
      %v1317 = vpop.permute.xlu0 %1316
      %1318 = vrot.lane.b32.xlu0 %v775, 4
      %v1319 = vpop.permute.xlu0 %1318
      %1320 = vrot.lane.b32.xlu0 %v776, 4
      %v1321 = vpop.permute.xlu0 %1320
      %1322 = vrot.lane.b32.xlu0 %v777, 4
      %v1323 = vpop.permute.xlu0 %1322
      %1324 = vrot.lane.b32.xlu0 %v778, 4
      %v1325 = vpop.permute.xlu0 %1324
      %1326 = vrot.lane.b32.xlu0 %v779, 4
      %v1327 = vpop.permute.xlu0 %1326
      %1328 = vrot.lane.b32.xlu0 %v780, 4
      %v1329 = vpop.permute.xlu0 %1328
      %1330 = vrot.lane.b32.xlu0 %v781, 4
      %v1331 = vpop.permute.xlu0 %1330
      %1332 = vrot.lane.b32.xlu0 %v782, 4
      %v1333 = vpop.permute.xlu0 %1332
      %1334 = vrot.lane.b32.xlu0 %v783, 4
      %v1335 = vpop.permute.xlu0 %1334
      %1336 = vrot.lane.b32.xlu0 %v784, 4
      %v1337 = vpop.permute.xlu0 %1336
      %1338 = vrot.lane.b32.xlu0 %v785, 4
      %v1339 = vpop.permute.xlu0 %1338
      %1340 = vrot.lane.b32.xlu0 %v786, 4
      %v1341 = vpop.permute.xlu0 %1340
      %1342 = vrot.lane.b32.xlu0 %v787, 4
      %v1343 = vpop.permute.xlu0 %1342
      %1344 = vrot.lane.b32.xlu0 %v788, 4
      %v1345 = vpop.permute.xlu0 %1344
      %1346 = vrot.lane.b32.xlu0 %v789, 4
      %v1347 = vpop.permute.xlu0 %1346
      %1348 = vrot.lane.b32.xlu0 %v790, 4
      %v1349 = vpop.permute.xlu0 %1348
      %1350 = vrot.lane.b32.xlu0 %v791, 4
      %v1351 = vpop.permute.xlu0 %1350
      %1352 = vrot.lane.b32.xlu0 %v792, 4
      %v1353 = vpop.permute.xlu0 %1352
      %1354 = vrot.lane.b32.xlu0 %v793, 4
      %v1355 = vpop.permute.xlu0 %1354
      %1356 = vrot.lane.b32.xlu0 %v794, 4
      %v1357 = vpop.permute.xlu0 %1356
      %1358 = vrot.lane.b32.xlu0 %v795, 4
      %v1359 = vpop.permute.xlu0 %1358
      %1360 = vrot.lane.b32.xlu0 %v796, 4
      %v1361 = vpop.permute.xlu0 %1360
      %1362 = vrot.lane.b32.xlu0 %v797, 4
      %v1363 = vpop.permute.xlu0 %1362
      %1364 = vrot.lane.b32.xlu0 %v798, 4
      %v1365 = vpop.permute.xlu0 %1364
      %1366 = vrot.lane.b32.xlu0 %v799, 4
      %v1367 = vpop.permute.xlu0 %1366
      %1368 = vrot.lane.b32.xlu0 %v800, 4
      %v1369 = vpop.permute.xlu0 %1368
      %1370 = vrot.lane.b32.xlu0 %v801, 4
      %v1371 = vpop.permute.xlu0 %1370
      %1372 = vrot.lane.b32.xlu0 %v802, 4
      %v1373 = vpop.permute.xlu0 %1372
      %1374 = vrot.lane.b32.xlu0 %v803, 4
      %v1375 = vpop.permute.xlu0 %1374
      %1376 = vrot.lane.b32.xlu0 %v804, 4
      %v1377 = vpop.permute.xlu0 %1376
      %1378 = vrot.lane.b32.xlu0 %v805, 4
      %v1379 = vpop.permute.xlu0 %1378
      %1380 = vrot.lane.b32.xlu0 %v806, 4
      %v1381 = vpop.permute.xlu0 %1380
      %1382 = vrot.lane.b32.xlu0 %v807, 4
      %v1383 = vpop.permute.xlu0 %1382
      %1384 = vrot.lane.b32.xlu0 %v808, 4
      %v1385 = vpop.permute.xlu0 %1384
      %1386 = vrot.lane.b32.xlu0 %v809, 4
      %v1387 = vpop.permute.xlu0 %1386
      %1388 = vrot.lane.b32.xlu0 %v810, 4
      %v1389 = vpop.permute.xlu0 %1388
      %1390 = vrot.lane.b32.xlu0 %v811, 4
      %v1391 = vpop.permute.xlu0 %1390
      %1520 = vrot.lane.b32.xlu0 %v1198, 8
      %v1521 = vpop.permute.xlu0 %1520
      %1522 = vrot.lane.b32.xlu0 %v1197, 8
      %v1523 = vpop.permute.xlu0 %1522
      %1524 = vrot.lane.b32.xlu0 %v1196, 8
      %v1525 = vpop.permute.xlu0 %1524
      %1526 = vrot.lane.b32.xlu0 %v1195, 8
      %v1527 = vpop.permute.xlu0 %1526
      %1528 = vrot.lane.b32.xlu0 %v1194, 8
      %v1529 = vpop.permute.xlu0 %1528
      %1530 = vrot.lane.b32.xlu0 %v1193, 8
      %v1531 = vpop.permute.xlu0 %1530
      %1532 = vrot.lane.b32.xlu0 %v1192, 8
      %v1533 = vpop.permute.xlu0 %1532
      %1534 = vrot.lane.b32.xlu0 %v1191, 8
      %v1535 = vpop.permute.xlu0 %1534
      %1536 = vrot.lane.b32.xlu0 %v1190, 8
      %v1537 = vpop.permute.xlu0 %1536
      %1538 = vrot.lane.b32.xlu0 %v1189, 8
      %v1539 = vpop.permute.xlu0 %1538
      %1540 = vrot.lane.b32.xlu0 %v1188, 8
      %v1541 = vpop.permute.xlu0 %1540
      %1542 = vrot.lane.b32.xlu0 %v1187, 8
      %v1543 = vpop.permute.xlu0 %1542
      %1544 = vrot.lane.b32.xlu0 %v1186, 8
      %v1545 = vpop.permute.xlu0 %1544
      %1546 = vrot.lane.b32.xlu0 %v1185, 8
      %v1547 = vpop.permute.xlu0 %1546
      %1548 = vrot.lane.b32.xlu0 %v1184, 8
      %v1549 = vpop.permute.xlu0 %1548
      %1550 = vrot.lane.b32.xlu0 %v1183, 8
      %v1551 = vpop.permute.xlu0 %1550
      %1552 = vrot.lane.b32.xlu0 %v1182, 8
      %v1553 = vpop.permute.xlu0 %1552
      %1554 = vrot.lane.b32.xlu0 %v1181, 8
      %v1555 = vpop.permute.xlu0 %1554
      %1556 = vrot.lane.b32.xlu0 %v1180, 8
      %v1557 = vpop.permute.xlu0 %1556
      %1558 = vrot.lane.b32.xlu0 %v1179, 8
      %v1559 = vpop.permute.xlu0 %1558
      %1560 = vrot.lane.b32.xlu0 %v1178, 8
      %v1561 = vpop.permute.xlu0 %1560
      %1562 = vrot.lane.b32.xlu0 %v1177, 8
      %v1563 = vpop.permute.xlu0 %1562
      %1564 = vrot.lane.b32.xlu0 %v1176, 8
      %v1565 = vpop.permute.xlu0 %1564
      %1566 = vrot.lane.b32.xlu0 %v1175, 8
      %v1567 = vpop.permute.xlu0 %1566
      %1568 = vrot.lane.b32.xlu0 %v1174, 8
      %v1569 = vpop.permute.xlu0 %1568
      %1570 = vrot.lane.b32.xlu0 %v1173, 8
      %v1571 = vpop.permute.xlu0 %1570
      %1572 = vrot.lane.b32.xlu0 %v1172, 8
      %v1573 = vpop.permute.xlu0 %1572
      %1574 = vrot.lane.b32.xlu0 %v1171, 8
      %v1575 = vpop.permute.xlu0 %1574
      %1576 = vrot.lane.b32.xlu0 %v1170, 8
      %v1577 = vpop.permute.xlu0 %1576
      %1578 = vrot.lane.b32.xlu0 %v1169, 8
      %v1579 = vpop.permute.xlu0 %1578
      %1580 = vrot.lane.b32.xlu0 %v1168, 8
      %v1581 = vpop.permute.xlu0 %1580
      %1582 = vrot.lane.b32.xlu0 %v1167, 8
      %v1583 = vpop.permute.xlu0 %1582
      %1584 = vrot.lane.b32.xlu0 %v1166, 8
      %v1585 = vpop.permute.xlu0 %1584
      %1586 = vrot.lane.b32.xlu0 %v1165, 8
      %v1587 = vpop.permute.xlu0 %1586
      %1588 = vrot.lane.b32.xlu0 %v1164, 8
      %v1589 = vpop.permute.xlu0 %1588
      %1590 = vrot.lane.b32.xlu0 %v1163, 8
      %v1591 = vpop.permute.xlu0 %1590
      %1592 = vrot.lane.b32.xlu0 %v1162, 8
      %v1593 = vpop.permute.xlu0 %1592
      %1594 = vrot.lane.b32.xlu0 %v1161, 8
      %v1595 = vpop.permute.xlu0 %1594
      %1596 = vrot.lane.b32.xlu0 %v1160, 8
      %v1597 = vpop.permute.xlu0 %1596
      %1598 = vrot.lane.b32.xlu0 %v1159, 8
      %v1599 = vpop.permute.xlu0 %1598
      %1600 = vrot.lane.b32.xlu0 %v1158, 8
      %v1601 = vpop.permute.xlu0 %1600
      %1602 = vrot.lane.b32.xlu0 %v1157, 8
      %v1603 = vpop.permute.xlu0 %1602
      %1604 = vrot.lane.b32.xlu0 %v1156, 8
      %v1605 = vpop.permute.xlu0 %1604
      %1606 = vrot.lane.b32.xlu0 %v1155, 8
      %v1607 = vpop.permute.xlu0 %1606
      %1608 = vrot.lane.b32.xlu0 %v1154, 8
      %v1609 = vpop.permute.xlu0 %1608
      %1610 = vrot.lane.b32.xlu0 %v1153, 8
      %v1611 = vpop.permute.xlu0 %1610
      %1612 = vrot.lane.b32.xlu0 %v1152, 8
      %v1613 = vpop.permute.xlu0 %1612
      %1614 = vrot.lane.b32.xlu0 %v1151, 8
      %v1615 = vpop.permute.xlu0 %1614
      %1616 = vrot.lane.b32.xlu0 %v1150, 8
      %v1617 = vpop.permute.xlu0 %1616
      %1618 = vrot.lane.b32.xlu0 %v1149, 8
      %v1619 = vpop.permute.xlu0 %1618
      %1620 = vrot.lane.b32.xlu0 %v1148, 8
      %v1621 = vpop.permute.xlu0 %1620
      %1622 = vrot.lane.b32.xlu0 %v1147, 8
      %v1623 = vpop.permute.xlu0 %1622
      %1624 = vrot.lane.b32.xlu0 %v1146, 8
      %v1625 = vpop.permute.xlu0 %1624
      %1626 = vrot.lane.b32.xlu0 %v1145, 8
      %v1627 = vpop.permute.xlu0 %1626
      %1628 = vrot.lane.b32.xlu0 %v1144, 8
      %v1629 = vpop.permute.xlu0 %1628
      %1630 = vrot.lane.b32.xlu0 %v1143, 8
      %v1631 = vpop.permute.xlu0 %1630
      %1632 = vrot.lane.b32.xlu0 %v1142, 8
      %v1633 = vpop.permute.xlu0 %1632
      %1634 = vrot.lane.b32.xlu0 %v1141, 8
      %v1635 = vpop.permute.xlu0 %1634
      %1636 = vrot.lane.b32.xlu0 %v1140, 8
      %v1637 = vpop.permute.xlu0 %1636
      %1638 = vrot.lane.b32.xlu0 %v1139, 8
      %v1639 = vpop.permute.xlu0 %1638
      %1640 = vrot.lane.b32.xlu0 %v1138, 8
      %v1641 = vpop.permute.xlu0 %1640
      %1642 = vrot.lane.b32.xlu0 %v1137, 8
      %v1643 = vpop.permute.xlu0 %1642
      %1644 = vrot.lane.b32.xlu0 %v1136, 8
      %v1645 = vpop.permute.xlu0 %1644
      %1646 = vrot.lane.b32.xlu0 %v1199, 8
      %v1647 = vpop.permute.xlu0 %1646
      %vm1712 = vcmask 31744
      %v1713 = vsel %vm1712, %v1070, %v1265
      %v1714 = vsel %vm1712, %v1069, %v1267
      %v1715 = vsel %vm1712, %v1068, %v1269
      %v1716 = vsel %vm1712, %v1067, %v1271
      %v1717 = vsel %vm1712, %v1066, %v1273
      %v1718 = vsel %vm1712, %v1065, %v1275
      %v1719 = vsel %vm1712, %v1064, %v1277
      %v1720 = vsel %vm1712, %v1063, %v1279
      %v1721 = vsel %vm1712, %v1062, %v1281
      %v1722 = vsel %vm1712, %v1061, %v1283
      %v1723 = vsel %vm1712, %v1060, %v1285
      %v1724 = vsel %vm1712, %v1059, %v1287
      %v1725 = vsel %vm1712, %v1058, %v1289
      %v1726 = vsel %vm1712, %v1057, %v1291
      %v1727 = vsel %vm1712, %v1056, %v1293
      %v1728 = vsel %vm1712, %v1055, %v1295
      %v1729 = vsel %vm1712, %v1054, %v1297
      %v1730 = vsel %vm1712, %v1053, %v1299
      %v1731 = vsel %vm1712, %v1052, %v1301
      %v1732 = vsel %vm1712, %v1051, %v1303
      %v1733 = vsel %vm1712, %v1050, %v1305
      %v1734 = vsel %vm1712, %v1049, %v1307
      %v1735 = vsel %vm1712, %v1048, %v1309
      %v1736 = vsel %vm1712, %v1047, %v1311
      %v1737 = vsel %vm1712, %v1046, %v1313
      %v1738 = vsel %vm1712, %v1045, %v1315
      %v1739 = vsel %vm1712, %v1044, %v1317
      %v1740 = vsel %vm1712, %v1043, %v1319
      %v1741 = vsel %vm1712, %v1042, %v1321
      %v1742 = vsel %vm1712, %v1041, %v1323
      %v1743 = vsel %vm1712, %v1040, %v1325
      %v1744 = vsel %vm1712, %v1039, %v1327
      %v1745 = vsel %vm1712, %v1038, %v1329
      %v1746 = vsel %vm1712, %v1037, %v1331
      %v1747 = vsel %vm1712, %v1036, %v1333
      %v1748 = vsel %vm1712, %v1035, %v1335
      %v1749 = vsel %vm1712, %v1034, %v1337
      %v1750 = vsel %vm1712, %v1033, %v1339
      %v1751 = vsel %vm1712, %v1032, %v1341
      %v1752 = vsel %vm1712, %v1031, %v1343
      %v1753 = vsel %vm1712, %v1030, %v1345
      %v1754 = vsel %vm1712, %v1029, %v1347
      %v1755 = vsel %vm1712, %v1028, %v1349
      %v1756 = vsel %vm1712, %v1027, %v1351
      %v1757 = vsel %vm1712, %v1026, %v1353
      %v1758 = vsel %vm1712, %v1025, %v1355
      %v1759 = vsel %vm1712, %v1024, %v1357
      %v1760 = vsel %vm1712, %v1023, %v1359
      %v1761 = vsel %vm1712, %v1022, %v1361
      %v1762 = vsel %vm1712, %v1021, %v1363
      %v1763 = vsel %vm1712, %v1020, %v1365
      %v1764 = vsel %vm1712, %v1019, %v1367
      %v1765 = vsel %vm1712, %v1018, %v1369
      %v1766 = vsel %vm1712, %v1017, %v1371
      %v1767 = vsel %vm1712, %v1016, %v1373
      %v1768 = vsel %vm1712, %v1015, %v1375
      %v1769 = vsel %vm1712, %v1014, %v1377
      %v1770 = vsel %vm1712, %v1013, %v1379
      %v1771 = vsel %vm1712, %v1012, %v1381
      %v1772 = vsel %vm1712, %v1011, %v1383
      %v1773 = vsel %vm1712, %v1010, %v1385
      %v1774 = vsel %vm1712, %v1009, %v1387
      %v1775 = vsel %vm1712, %v1008, %v1389
      %v1776 = vsel %vm1712, %v1007, %v1391
      %vm1777 = vcmask 64512
      %v1778 = vsel %vm1777, %v1713, %v1521
      %v1779 = vsel %vm1777, %v1714, %v1523
      %v1780 = vsel %vm1777, %v1715, %v1525
      %v1781 = vsel %vm1777, %v1716, %v1527
      %v1782 = vsel %vm1777, %v1717, %v1529
      %v1783 = vsel %vm1777, %v1718, %v1531
      %v1784 = vsel %vm1777, %v1719, %v1533
      %v1785 = vsel %vm1777, %v1720, %v1535
      %v1786 = vsel %vm1777, %v1721, %v1537
      %v1787 = vsel %vm1777, %v1722, %v1539
      %v1788 = vsel %vm1777, %v1723, %v1541
      %v1789 = vsel %vm1777, %v1724, %v1543
      %v1790 = vsel %vm1777, %v1725, %v1545
      %v1791 = vsel %vm1777, %v1726, %v1547
      %v1792 = vsel %vm1777, %v1727, %v1549
      %v1793 = vsel %vm1777, %v1728, %v1551
      %v1794 = vsel %vm1777, %v1729, %v1553
      %v1795 = vsel %vm1777, %v1730, %v1555
      %v1796 = vsel %vm1777, %v1731, %v1557
      %v1797 = vsel %vm1777, %v1732, %v1559
      %v1798 = vsel %vm1777, %v1733, %v1561
      %v1799 = vsel %vm1777, %v1734, %v1563
      %v1800 = vsel %vm1777, %v1735, %v1565
      %v1801 = vsel %vm1777, %v1736, %v1567
      %v1802 = vsel %vm1777, %v1737, %v1569
      %v1803 = vsel %vm1777, %v1738, %v1571
      %v1804 = vsel %vm1777, %v1739, %v1573
      %v1805 = vsel %vm1777, %v1740, %v1575
      %v1806 = vsel %vm1777, %v1741, %v1577
      %v1807 = vsel %vm1777, %v1742, %v1579
      %v1808 = vsel %vm1777, %v1743, %v1581
      %v1809 = vsel %vm1777, %v1744, %v1583
      %v1810 = vsel %vm1777, %v1745, %v1585
      %v1811 = vsel %vm1777, %v1746, %v1587
      %v1812 = vsel %vm1777, %v1747, %v1589
      %v1813 = vsel %vm1777, %v1748, %v1591
      %v1814 = vsel %vm1777, %v1749, %v1593
      %v1815 = vsel %vm1777, %v1750, %v1595
      %v1816 = vsel %vm1777, %v1751, %v1597
      %v1817 = vsel %vm1777, %v1752, %v1599
      %v1818 = vsel %vm1777, %v1753, %v1601
      %v1819 = vsel %vm1777, %v1754, %v1603
      %v1820 = vsel %vm1777, %v1755, %v1605
      %v1821 = vsel %vm1777, %v1756, %v1607
      %v1822 = vsel %vm1777, %v1757, %v1609
      %v1823 = vsel %vm1777, %v1758, %v1611
      %v1824 = vsel %vm1777, %v1759, %v1613
      %v1825 = vsel %vm1777, %v1760, %v1615
      %v1826 = vsel %vm1777, %v1761, %v1617
      %v1827 = vsel %vm1777, %v1762, %v1619
      %v1828 = vsel %vm1777, %v1763, %v1621
      %v1829 = vsel %vm1777, %v1764, %v1623
      %v1830 = vsel %vm1777, %v1765, %v1625
      %v1831 = vsel %vm1777, %v1766, %v1627
      %v1832 = vsel %vm1777, %v1767, %v1629
      %v1833 = vsel %vm1777, %v1768, %v1631
      %v1834 = vsel %vm1777, %v1769, %v1633
      %v1835 = vsel %vm1777, %v1770, %v1635
      %v1836 = vsel %vm1777, %v1771, %v1637
      %v1837 = vsel %vm1777, %v1772, %v1639
      %v1838 = vsel %vm1777, %v1773, %v1641
      %v1839 = vsel %vm1777, %v1774, %v1643
      %v1840 = vsel %vm1777, %v1775, %v1645
      %v1841 = vsel %vm1777, %v1776, %v1647
      %v1842 = vld [vmem:[%s1] sm:$0xff]
      %v1843 = vld [vmem:[%s1 + $0x8] sm:$0xf]
      %v1844 = vrot.slane %v813, 7
      %v1845 = vrot.slane %v814, 7
      %v1846 = vrot.slane %v815, 7
      %v1847 = vrot.slane %v816, 7
      %v1848 = vrot.slane %v817, 7
      %v1849 = vrot.slane %v818, 7
      %v1850 = vrot.slane %v819, 7
      %v1851 = vrot.slane %v820, 7
      %v1852 = vrot.slane %v821, 7
      %v1853 = vrot.slane %v822, 7
      %v1854 = vrot.slane %v823, 7
      %v1855 = vrot.slane %v824, 7
      %v1856 = vrot.slane %v825, 7
      %v1857 = vrot.slane %v826, 7
      %v1858 = vrot.slane %v827, 7
      %v1859 = vrot.slane %v828, 7
      %v1860 = vrot.slane %v829, 7
      %v1861 = vrot.slane %v830, 7
      %v1862 = vrot.slane %v831, 7
      %v1863 = vrot.slane %v832, 7
      %v1864 = vrot.slane %v833, 7
      %v1865 = vrot.slane %v834, 7
      %v1866 = vrot.slane %v835, 7
      %v1867 = vrot.slane %v836, 7
      %v1868 = vrot.slane %v837, 7
      %v1869 = vrot.slane %v838, 7
      %v1870 = vrot.slane %v839, 7
      %v1871 = vrot.slane %v840, 7
      %v1872 = vrot.slane %v841, 7
      %v1873 = vrot.slane %v842, 7
      %v1874 = vrot.slane %v843, 7
      %v1875 = vrot.slane %v844, 7
      %v1876 = vrot.slane %v845, 7
      %v1877 = vrot.slane %v846, 7
      %v1878 = vrot.slane %v847, 7
      %v1879 = vrot.slane %v848, 7
      %v1880 = vrot.slane %v849, 7
      %v1881 = vrot.slane %v850, 7
      %v1882 = vrot.slane %v851, 7
      %v1883 = vrot.slane %v852, 7
      %v1884 = vrot.slane %v853, 7
      %v1885 = vrot.slane %v854, 7
      %v1886 = vrot.slane %v855, 7
      %v1887 = vrot.slane %v856, 7
      %v1888 = vrot.slane %v857, 7
      %v1889 = vrot.slane %v858, 7
      %v1890 = vrot.slane %v859, 7
      %v1891 = vrot.slane %v860, 7
      %v1892 = vrot.slane %v861, 7
      %v1893 = vrot.slane %v862, 7
      %v1894 = vrot.slane %v863, 7
      %v1895 = vrot.slane %v864, 7
      %v1896 = vrot.slane %v865, 7
      %v1897 = vrot.slane %v866, 7
      %v1898 = vrot.slane %v867, 7
      %v1899 = vrot.slane %v868, 7
      %v1900 = vrot.slane %v869, 7
      %v1901 = vrot.slane %v870, 7
      %v1902 = vrot.slane %v871, 7
      %v1903 = vrot.slane %v872, 7
      %v1904 = vrot.slane %v873, 7
      %v1905 = vrot.slane %v874, 7
      %v1906 = vrot.slane %v875, 7
      %v1907 = vrot.slane %v876, 7
      %v1908 = vsel %vm1006, %v1906, %v1907
      %v1909 = vsel %vm1006, %v1905, %v1906
      %v1910 = vsel %vm1006, %v1904, %v1905
      %v1911 = vsel %vm1006, %v1903, %v1904
      %v1912 = vsel %vm1006, %v1902, %v1903
      %v1913 = vsel %vm1006, %v1901, %v1902
      %v1914 = vsel %vm1006, %v1900, %v1901
      %v1915 = vsel %vm1006, %v1899, %v1900
      %v1916 = vsel %vm1006, %v1898, %v1899
      %v1917 = vsel %vm1006, %v1897, %v1898
      %v1918 = vsel %vm1006, %v1896, %v1897
      %v1919 = vsel %vm1006, %v1895, %v1896
      %v1920 = vsel %vm1006, %v1894, %v1895
      %v1921 = vsel %vm1006, %v1893, %v1894
      %v1922 = vsel %vm1006, %v1892, %v1893
      %v1923 = vsel %vm1006, %v1891, %v1892
      %v1924 = vsel %vm1006, %v1890, %v1891
      %v1925 = vsel %vm1006, %v1889, %v1890
      %v1926 = vsel %vm1006, %v1888, %v1889
      %v1927 = vsel %vm1006, %v1887, %v1888
      %v1928 = vsel %vm1006, %v1886, %v1887
      %v1929 = vsel %vm1006, %v1885, %v1886
      %v1930 = vsel %vm1006, %v1884, %v1885
      %v1931 = vsel %vm1006, %v1883, %v1884
      %v1932 = vsel %vm1006, %v1882, %v1883
      %v1933 = vsel %vm1006, %v1881, %v1882
      %v1934 = vsel %vm1006, %v1880, %v1881
      %v1935 = vsel %vm1006, %v1879, %v1880
      %v1936 = vsel %vm1006, %v1878, %v1879
      %v1937 = vsel %vm1006, %v1877, %v1878
      %v1938 = vsel %vm1006, %v1876, %v1877
      %v1939 = vsel %vm1006, %v1875, %v1876
      %v1940 = vsel %vm1006, %v1874, %v1875
      %v1941 = vsel %vm1006, %v1873, %v1874
      %v1942 = vsel %vm1006, %v1872, %v1873
      %v1943 = vsel %vm1006, %v1871, %v1872
      %v1944 = vsel %vm1006, %v1870, %v1871
      %v1945 = vsel %vm1006, %v1869, %v1870
      %v1946 = vsel %vm1006, %v1868, %v1869
      %v1947 = vsel %vm1006, %v1867, %v1868
      %v1948 = vsel %vm1006, %v1866, %v1867
      %v1949 = vsel %vm1006, %v1865, %v1866
      %v1950 = vsel %vm1006, %v1864, %v1865
      %v1951 = vsel %vm1006, %v1863, %v1864
      %v1952 = vsel %vm1006, %v1862, %v1863
      %v1953 = vsel %vm1006, %v1861, %v1862
      %v1954 = vsel %vm1006, %v1860, %v1861
      %v1955 = vsel %vm1006, %v1859, %v1860
      %v1956 = vsel %vm1006, %v1858, %v1859
      %v1957 = vsel %vm1006, %v1857, %v1858
      %v1958 = vsel %vm1006, %v1856, %v1857
      %v1959 = vsel %vm1006, %v1855, %v1856
      %v1960 = vsel %vm1006, %v1854, %v1855
      %v1961 = vsel %vm1006, %v1853, %v1854
      %v1962 = vsel %vm1006, %v1852, %v1853
      %v1963 = vsel %vm1006, %v1851, %v1852
      %v1964 = vsel %vm1006, %v1850, %v1851
      %v1965 = vsel %vm1006, %v1849, %v1850
      %v1966 = vsel %vm1006, %v1848, %v1849
      %v1967 = vsel %vm1006, %v1847, %v1848
      %v1968 = vsel %vm1006, %v1846, %v1847
      %v1969 = vsel %vm1006, %v1845, %v1846
      %v1970 = vsel %vm1006, %v1844, %v1845
      %v1971 = vsel %vm1006, %v1907, %v1844
      %v1972 = vrot.slane %v813, 1
      %v1973 = vrot.slane %v814, 1
      %v1974 = vrot.slane %v815, 1
      %v1975 = vrot.slane %v816, 1
      %v1976 = vrot.slane %v817, 1
      %v1977 = vrot.slane %v818, 1
      %v1978 = vrot.slane %v819, 1
      %v1979 = vrot.slane %v820, 1
      %v1980 = vrot.slane %v821, 1
      %v1981 = vrot.slane %v822, 1
      %v1982 = vrot.slane %v823, 1
      %v1983 = vrot.slane %v824, 1
      %v1984 = vrot.slane %v825, 1
      %v1985 = vrot.slane %v826, 1
      %v1986 = vrot.slane %v827, 1
      %v1987 = vrot.slane %v828, 1
      %v1988 = vrot.slane %v829, 1
      %v1989 = vrot.slane %v830, 1
      %v1990 = vrot.slane %v831, 1
      %v1991 = vrot.slane %v832, 1
      %v1992 = vrot.slane %v833, 1
      %v1993 = vrot.slane %v834, 1
      %v1994 = vrot.slane %v835, 1
      %v1995 = vrot.slane %v836, 1
      %v1996 = vrot.slane %v837, 1
      %v1997 = vrot.slane %v838, 1
      %v1998 = vrot.slane %v839, 1
      %v1999 = vrot.slane %v840, 1
      %v2000 = vrot.slane %v841, 1
      %v2001 = vrot.slane %v842, 1
      %v2002 = vrot.slane %v843, 1
      %v2003 = vrot.slane %v844, 1
      %v2004 = vrot.slane %v845, 1
      %v2005 = vrot.slane %v846, 1
      %v2006 = vrot.slane %v847, 1
      %v2007 = vrot.slane %v848, 1
      %v2008 = vrot.slane %v849, 1
      %v2009 = vrot.slane %v850, 1
      %v2010 = vrot.slane %v851, 1
      %v2011 = vrot.slane %v852, 1
      %v2012 = vrot.slane %v853, 1
      %v2013 = vrot.slane %v854, 1
      %v2014 = vrot.slane %v855, 1
      %v2015 = vrot.slane %v856, 1
      %v2016 = vrot.slane %v857, 1
      %v2017 = vrot.slane %v858, 1
      %v2018 = vrot.slane %v859, 1
      %v2019 = vrot.slane %v860, 1
      %v2020 = vrot.slane %v861, 1
      %v2021 = vrot.slane %v862, 1
      %v2022 = vrot.slane %v863, 1
      %v2023 = vrot.slane %v864, 1
      %v2024 = vrot.slane %v865, 1
      %v2025 = vrot.slane %v866, 1
      %v2026 = vrot.slane %v867, 1
      %v2027 = vrot.slane %v868, 1
      %v2028 = vrot.slane %v869, 1
      %v2029 = vrot.slane %v870, 1
      %v2030 = vrot.slane %v871, 1
      %v2031 = vrot.slane %v872, 1
      %v2032 = vrot.slane %v873, 1
      %v2033 = vrot.slane %v874, 1
      %v2034 = vrot.slane %v875, 1
      %v2035 = vrot.slane %v876, 1
      %v2036 = vsel %vm1135, %v2034, %v2035
      %v2037 = vsel %vm1135, %v2033, %v2034
      %v2038 = vsel %vm1135, %v2032, %v2033
      %v2039 = vsel %vm1135, %v2031, %v2032
      %v2040 = vsel %vm1135, %v2030, %v2031
      %v2041 = vsel %vm1135, %v2029, %v2030
      %v2042 = vsel %vm1135, %v2028, %v2029
      %v2043 = vsel %vm1135, %v2027, %v2028
      %v2044 = vsel %vm1135, %v2026, %v2027
      %v2045 = vsel %vm1135, %v2025, %v2026
      %v2046 = vsel %vm1135, %v2024, %v2025
      %v2047 = vsel %vm1135, %v2023, %v2024
      %v2048 = vsel %vm1135, %v2022, %v2023
      %v2049 = vsel %vm1135, %v2021, %v2022
      %v2050 = vsel %vm1135, %v2020, %v2021
      %v2051 = vsel %vm1135, %v2019, %v2020
      %v2052 = vsel %vm1135, %v2018, %v2019
      %v2053 = vsel %vm1135, %v2017, %v2018
      %v2054 = vsel %vm1135, %v2016, %v2017
      %v2055 = vsel %vm1135, %v2015, %v2016
      %v2056 = vsel %vm1135, %v2014, %v2015
      %v2057 = vsel %vm1135, %v2013, %v2014
      %v2058 = vsel %vm1135, %v2012, %v2013
      %v2059 = vsel %vm1135, %v2011, %v2012
      %v2060 = vsel %vm1135, %v2010, %v2011
      %v2061 = vsel %vm1135, %v2009, %v2010
      %v2062 = vsel %vm1135, %v2008, %v2009
      %v2063 = vsel %vm1135, %v2007, %v2008
      %v2064 = vsel %vm1135, %v2006, %v2007
      %v2065 = vsel %vm1135, %v2005, %v2006
      %v2066 = vsel %vm1135, %v2004, %v2005
      %v2067 = vsel %vm1135, %v2003, %v2004
      %v2068 = vsel %vm1135, %v2002, %v2003
      %v2069 = vsel %vm1135, %v2001, %v2002
      %v2070 = vsel %vm1135, %v2000, %v2001
      %v2071 = vsel %vm1135, %v1999, %v2000
      %v2072 = vsel %vm1135, %v1998, %v1999
      %v2073 = vsel %vm1135, %v1997, %v1998
      %v2074 = vsel %vm1135, %v1996, %v1997
      %v2075 = vsel %vm1135, %v1995, %v1996
      %v2076 = vsel %vm1135, %v1994, %v1995
      %v2077 = vsel %vm1135, %v1993, %v1994
      %v2078 = vsel %vm1135, %v1992, %v1993
      %v2079 = vsel %vm1135, %v1991, %v1992
      %v2080 = vsel %vm1135, %v1990, %v1991
      %v2081 = vsel %vm1135, %v1989, %v1990
      %v2082 = vsel %vm1135, %v1988, %v1989
      %v2083 = vsel %vm1135, %v1987, %v1988
      %v2084 = vsel %vm1135, %v1986, %v1987
      %v2085 = vsel %vm1135, %v1985, %v1986
      %v2086 = vsel %vm1135, %v1984, %v1985
      %v2087 = vsel %vm1135, %v1983, %v1984
      %v2088 = vsel %vm1135, %v1982, %v1983
      %v2089 = vsel %vm1135, %v1981, %v1982
      %v2090 = vsel %vm1135, %v1980, %v1981
      %v2091 = vsel %vm1135, %v1979, %v1980
      %v2092 = vsel %vm1135, %v1978, %v1979
      %v2093 = vsel %vm1135, %v1977, %v1978
      %v2094 = vsel %vm1135, %v1976, %v1977
      %v2095 = vsel %vm1135, %v1975, %v1976
      %v2096 = vsel %vm1135, %v1974, %v1975
      %v2097 = vsel %vm1135, %v1973, %v1974
      %v2098 = vsel %vm1135, %v1972, %v1973
      %v2099 = vsel %vm1135, %v2035, %v1972
      %2164 = vrot.lane.b32.xlu0 %v813, 4
      %v2165 = vpop.permute.xlu0 %2164
      %2166 = vrot.lane.b32.xlu0 %v814, 4
      %v2167 = vpop.permute.xlu0 %2166
      %2168 = vrot.lane.b32.xlu0 %v815, 4
      %v2169 = vpop.permute.xlu0 %2168
      %2170 = vrot.lane.b32.xlu0 %v816, 4
      %v2171 = vpop.permute.xlu0 %2170
      %2172 = vrot.lane.b32.xlu0 %v817, 4
      %v2173 = vpop.permute.xlu0 %2172
      %2174 = vrot.lane.b32.xlu0 %v818, 4
      %v2175 = vpop.permute.xlu0 %2174
      %2176 = vrot.lane.b32.xlu0 %v819, 4
      %v2177 = vpop.permute.xlu0 %2176
      %2178 = vrot.lane.b32.xlu0 %v820, 4
      %v2179 = vpop.permute.xlu0 %2178
      %2180 = vrot.lane.b32.xlu0 %v821, 4
      %v2181 = vpop.permute.xlu0 %2180
      %2182 = vrot.lane.b32.xlu0 %v822, 4
      %v2183 = vpop.permute.xlu0 %2182
      %2184 = vrot.lane.b32.xlu0 %v823, 4
      %v2185 = vpop.permute.xlu0 %2184
      %2186 = vrot.lane.b32.xlu0 %v824, 4
      %v2187 = vpop.permute.xlu0 %2186
      %2188 = vrot.lane.b32.xlu0 %v825, 4
      %v2189 = vpop.permute.xlu0 %2188
      %2190 = vrot.lane.b32.xlu0 %v826, 4
      %v2191 = vpop.permute.xlu0 %2190
      %2192 = vrot.lane.b32.xlu0 %v827, 4
      %v2193 = vpop.permute.xlu0 %2192
      %2194 = vrot.lane.b32.xlu0 %v828, 4
      %v2195 = vpop.permute.xlu0 %2194
      %2196 = vrot.lane.b32.xlu0 %v829, 4
      %v2197 = vpop.permute.xlu0 %2196
      %2198 = vrot.lane.b32.xlu0 %v830, 4
      %v2199 = vpop.permute.xlu0 %2198
      %2200 = vrot.lane.b32.xlu0 %v831, 4
      %v2201 = vpop.permute.xlu0 %2200
      %2202 = vrot.lane.b32.xlu0 %v832, 4
      %v2203 = vpop.permute.xlu0 %2202
      %2204 = vrot.lane.b32.xlu0 %v833, 4
      %v2205 = vpop.permute.xlu0 %2204
      %2206 = vrot.lane.b32.xlu0 %v834, 4
      %v2207 = vpop.permute.xlu0 %2206
      %2208 = vrot.lane.b32.xlu0 %v835, 4
      %v2209 = vpop.permute.xlu0 %2208
      %2210 = vrot.lane.b32.xlu0 %v836, 4
      %v2211 = vpop.permute.xlu0 %2210
      %2212 = vrot.lane.b32.xlu0 %v837, 4
      %v2213 = vpop.permute.xlu0 %2212
      %2214 = vrot.lane.b32.xlu0 %v838, 4
      %v2215 = vpop.permute.xlu0 %2214
      %2216 = vrot.lane.b32.xlu0 %v839, 4
      %v2217 = vpop.permute.xlu0 %2216
      %2218 = vrot.lane.b32.xlu0 %v840, 4
      %v2219 = vpop.permute.xlu0 %2218
      %2220 = vrot.lane.b32.xlu0 %v841, 4
      %v2221 = vpop.permute.xlu0 %2220
      %2222 = vrot.lane.b32.xlu0 %v842, 4
      %v2223 = vpop.permute.xlu0 %2222
      %2224 = vrot.lane.b32.xlu0 %v843, 4
      %v2225 = vpop.permute.xlu0 %2224
      %2226 = vrot.lane.b32.xlu0 %v844, 4
      %v2227 = vpop.permute.xlu0 %2226
      %2228 = vrot.lane.b32.xlu0 %v845, 4
      %v2229 = vpop.permute.xlu0 %2228
      %2230 = vrot.lane.b32.xlu0 %v846, 4
      %v2231 = vpop.permute.xlu0 %2230
      %2232 = vrot.lane.b32.xlu0 %v847, 4
      %v2233 = vpop.permute.xlu0 %2232
      %2234 = vrot.lane.b32.xlu0 %v848, 4
      %v2235 = vpop.permute.xlu0 %2234
      %2236 = vrot.lane.b32.xlu0 %v849, 4
      %v2237 = vpop.permute.xlu0 %2236
      %2238 = vrot.lane.b32.xlu0 %v850, 4
      %v2239 = vpop.permute.xlu0 %2238
      %2240 = vrot.lane.b32.xlu0 %v851, 4
      %v2241 = vpop.permute.xlu0 %2240
      %2242 = vrot.lane.b32.xlu0 %v852, 4
      %v2243 = vpop.permute.xlu0 %2242
      %2244 = vrot.lane.b32.xlu0 %v853, 4
      %v2245 = vpop.permute.xlu0 %2244
      %2246 = vrot.lane.b32.xlu0 %v854, 4
      %v2247 = vpop.permute.xlu0 %2246
      %2248 = vrot.lane.b32.xlu0 %v855, 4
      %v2249 = vpop.permute.xlu0 %2248
      %2250 = vrot.lane.b32.xlu0 %v856, 4
      %v2251 = vpop.permute.xlu0 %2250
      %2252 = vrot.lane.b32.xlu0 %v857, 4
      %v2253 = vpop.permute.xlu0 %2252
      %2254 = vrot.lane.b32.xlu0 %v858, 4
      %v2255 = vpop.permute.xlu0 %2254
      %2256 = vrot.lane.b32.xlu0 %v859, 4
      %v2257 = vpop.permute.xlu0 %2256
      %2258 = vrot.lane.b32.xlu0 %v860, 4
      %v2259 = vpop.permute.xlu0 %2258
      %2260 = vrot.lane.b32.xlu0 %v861, 4
      %v2261 = vpop.permute.xlu0 %2260
      %2262 = vrot.lane.b32.xlu0 %v862, 4
      %v2263 = vpop.permute.xlu0 %2262
      %2264 = vrot.lane.b32.xlu0 %v863, 4
      %v2265 = vpop.permute.xlu0 %2264
      %2266 = vrot.lane.b32.xlu0 %v864, 4
      %v2267 = vpop.permute.xlu0 %2266
      %2268 = vrot.lane.b32.xlu0 %v865, 4
      %v2269 = vpop.permute.xlu0 %2268
      %2270 = vrot.lane.b32.xlu0 %v866, 4
      %v2271 = vpop.permute.xlu0 %2270
      %2272 = vrot.lane.b32.xlu0 %v867, 4
      %v2273 = vpop.permute.xlu0 %2272
      %2274 = vrot.lane.b32.xlu0 %v868, 4
      %v2275 = vpop.permute.xlu0 %2274
      %2276 = vrot.lane.b32.xlu0 %v869, 4
      %v2277 = vpop.permute.xlu0 %2276
      %2278 = vrot.lane.b32.xlu0 %v870, 4
      %v2279 = vpop.permute.xlu0 %2278
      %2280 = vrot.lane.b32.xlu0 %v871, 4
      %v2281 = vpop.permute.xlu0 %2280
      %2282 = vrot.lane.b32.xlu0 %v872, 4
      %v2283 = vpop.permute.xlu0 %2282
      %2284 = vrot.lane.b32.xlu0 %v873, 4
      %v2285 = vpop.permute.xlu0 %2284
      %2286 = vrot.lane.b32.xlu0 %v874, 4
      %v2287 = vpop.permute.xlu0 %2286
      %2288 = vrot.lane.b32.xlu0 %v875, 4
      %v2289 = vpop.permute.xlu0 %2288
      %2290 = vrot.lane.b32.xlu0 %v876, 4
      %v2291 = vpop.permute.xlu0 %2290
      %2420 = vrot.lane.b32.xlu0 %v2098, 8
      %v2421 = vpop.permute.xlu0 %2420
      %2422 = vrot.lane.b32.xlu0 %v2097, 8
      %v2423 = vpop.permute.xlu0 %2422
      %2424 = vrot.lane.b32.xlu0 %v2096, 8
      %v2425 = vpop.permute.xlu0 %2424
      %2426 = vrot.lane.b32.xlu0 %v2095, 8
      %v2427 = vpop.permute.xlu0 %2426
      %2428 = vrot.lane.b32.xlu0 %v2094, 8
      %v2429 = vpop.permute.xlu0 %2428
      %2430 = vrot.lane.b32.xlu0 %v2093, 8
      %v2431 = vpop.permute.xlu0 %2430
      %2432 = vrot.lane.b32.xlu0 %v2092, 8
      %v2433 = vpop.permute.xlu0 %2432
      %2434 = vrot.lane.b32.xlu0 %v2091, 8
      %v2435 = vpop.permute.xlu0 %2434
      %2436 = vrot.lane.b32.xlu0 %v2090, 8
      %v2437 = vpop.permute.xlu0 %2436
      %2438 = vrot.lane.b32.xlu0 %v2089, 8
      %v2439 = vpop.permute.xlu0 %2438
      %2440 = vrot.lane.b32.xlu0 %v2088, 8
      %v2441 = vpop.permute.xlu0 %2440
      %2442 = vrot.lane.b32.xlu0 %v2087, 8
      %v2443 = vpop.permute.xlu0 %2442
      %2444 = vrot.lane.b32.xlu0 %v2086, 8
      %v2445 = vpop.permute.xlu0 %2444
      %2446 = vrot.lane.b32.xlu0 %v2085, 8
      %v2447 = vpop.permute.xlu0 %2446
      %2448 = vrot.lane.b32.xlu0 %v2084, 8
      %v2449 = vpop.permute.xlu0 %2448
      %2450 = vrot.lane.b32.xlu0 %v2083, 8
      %v2451 = vpop.permute.xlu0 %2450
      %2452 = vrot.lane.b32.xlu0 %v2082, 8
      %v2453 = vpop.permute.xlu0 %2452
      %2454 = vrot.lane.b32.xlu0 %v2081, 8
      %v2455 = vpop.permute.xlu0 %2454
      %2456 = vrot.lane.b32.xlu0 %v2080, 8
      %v2457 = vpop.permute.xlu0 %2456
      %2458 = vrot.lane.b32.xlu0 %v2079, 8
      %v2459 = vpop.permute.xlu0 %2458
      %2460 = vrot.lane.b32.xlu0 %v2078, 8
      %v2461 = vpop.permute.xlu0 %2460
      %2462 = vrot.lane.b32.xlu0 %v2077, 8
      %v2463 = vpop.permute.xlu0 %2462
      %2464 = vrot.lane.b32.xlu0 %v2076, 8
      %v2465 = vpop.permute.xlu0 %2464
      %2466 = vrot.lane.b32.xlu0 %v2075, 8
      %v2467 = vpop.permute.xlu0 %2466
      %2468 = vrot.lane.b32.xlu0 %v2074, 8
      %v2469 = vpop.permute.xlu0 %2468
      %2470 = vrot.lane.b32.xlu0 %v2073, 8
      %v2471 = vpop.permute.xlu0 %2470
      %2472 = vrot.lane.b32.xlu0 %v2072, 8
      %v2473 = vpop.permute.xlu0 %2472
      %2474 = vrot.lane.b32.xlu0 %v2071, 8
      %v2475 = vpop.permute.xlu0 %2474
      %2476 = vrot.lane.b32.xlu0 %v2070, 8
      %v2477 = vpop.permute.xlu0 %2476
      %2478 = vrot.lane.b32.xlu0 %v2069, 8
      %v2479 = vpop.permute.xlu0 %2478
      %2480 = vrot.lane.b32.xlu0 %v2068, 8
      %v2481 = vpop.permute.xlu0 %2480
      %2482 = vrot.lane.b32.xlu0 %v2067, 8
      %v2483 = vpop.permute.xlu0 %2482
      %2484 = vrot.lane.b32.xlu0 %v2066, 8
      %v2485 = vpop.permute.xlu0 %2484
      %2486 = vrot.lane.b32.xlu0 %v2065, 8
      %v2487 = vpop.permute.xlu0 %2486
      %2488 = vrot.lane.b32.xlu0 %v2064, 8
      %v2489 = vpop.permute.xlu0 %2488
      %2490 = vrot.lane.b32.xlu0 %v2063, 8
      %v2491 = vpop.permute.xlu0 %2490
      %2492 = vrot.lane.b32.xlu0 %v2062, 8
      %v2493 = vpop.permute.xlu0 %2492
      %2494 = vrot.lane.b32.xlu0 %v2061, 8
      %v2495 = vpop.permute.xlu0 %2494
      %2496 = vrot.lane.b32.xlu0 %v2060, 8
      %v2497 = vpop.permute.xlu0 %2496
      %2498 = vrot.lane.b32.xlu0 %v2059, 8
      %v2499 = vpop.permute.xlu0 %2498
      %2500 = vrot.lane.b32.xlu0 %v2058, 8
      %v2501 = vpop.permute.xlu0 %2500
      %2502 = vrot.lane.b32.xlu0 %v2057, 8
      %v2503 = vpop.permute.xlu0 %2502
      %2504 = vrot.lane.b32.xlu0 %v2056, 8
      %v2505 = vpop.permute.xlu0 %2504
      %2506 = vrot.lane.b32.xlu0 %v2055, 8
      %v2507 = vpop.permute.xlu0 %2506
      %2508 = vrot.lane.b32.xlu0 %v2054, 8
      %v2509 = vpop.permute.xlu0 %2508
      %2510 = vrot.lane.b32.xlu0 %v2053, 8
      %v2511 = vpop.permute.xlu0 %2510
      %2512 = vrot.lane.b32.xlu0 %v2052, 8
      %v2513 = vpop.permute.xlu0 %2512
      %2514 = vrot.lane.b32.xlu0 %v2051, 8
      %v2515 = vpop.permute.xlu0 %2514
      %2516 = vrot.lane.b32.xlu0 %v2050, 8
      %v2517 = vpop.permute.xlu0 %2516
      %2518 = vrot.lane.b32.xlu0 %v2049, 8
      %v2519 = vpop.permute.xlu0 %2518
      %2520 = vrot.lane.b32.xlu0 %v2048, 8
      %v2521 = vpop.permute.xlu0 %2520
      %2522 = vrot.lane.b32.xlu0 %v2047, 8
      %v2523 = vpop.permute.xlu0 %2522
      %2524 = vrot.lane.b32.xlu0 %v2046, 8
      %v2525 = vpop.permute.xlu0 %2524
      %2526 = vrot.lane.b32.xlu0 %v2045, 8
      %v2527 = vpop.permute.xlu0 %2526
      %2528 = vrot.lane.b32.xlu0 %v2044, 8
      %v2529 = vpop.permute.xlu0 %2528
      %2530 = vrot.lane.b32.xlu0 %v2043, 8
      %v2531 = vpop.permute.xlu0 %2530
      %2532 = vrot.lane.b32.xlu0 %v2042, 8
      %v2533 = vpop.permute.xlu0 %2532
      %2534 = vrot.lane.b32.xlu0 %v2041, 8
      %v2535 = vpop.permute.xlu0 %2534
      %2536 = vrot.lane.b32.xlu0 %v2040, 8
      %v2537 = vpop.permute.xlu0 %2536
      %2538 = vrot.lane.b32.xlu0 %v2039, 8
      %v2539 = vpop.permute.xlu0 %2538
      %2540 = vrot.lane.b32.xlu0 %v2038, 8
      %v2541 = vpop.permute.xlu0 %2540
      %2542 = vrot.lane.b32.xlu0 %v2037, 8
      %v2543 = vpop.permute.xlu0 %2542
      %2544 = vrot.lane.b32.xlu0 %v2036, 8
      %v2545 = vpop.permute.xlu0 %2544
      %2546 = vrot.lane.b32.xlu0 %v2099, 8
      %v2547 = vpop.permute.xlu0 %2546
      %v2612 = vsel %vm1712, %v1971, %v2165
      %v2613 = vsel %vm1712, %v1970, %v2167
      %v2614 = vsel %vm1712, %v1969, %v2169
      %v2615 = vsel %vm1712, %v1968, %v2171
      %v2616 = vsel %vm1712, %v1967, %v2173
      %v2617 = vsel %vm1712, %v1966, %v2175
      %v2618 = vsel %vm1712, %v1965, %v2177
      %v2619 = vsel %vm1712, %v1964, %v2179
      %v2620 = vsel %vm1712, %v1963, %v2181
      %v2621 = vsel %vm1712, %v1962, %v2183
      %v2622 = vsel %vm1712, %v1961, %v2185
      %v2623 = vsel %vm1712, %v1960, %v2187
      %v2624 = vsel %vm1712, %v1959, %v2189
      %v2625 = vsel %vm1712, %v1958, %v2191
      %v2626 = vsel %vm1712, %v1957, %v2193
      %v2627 = vsel %vm1712, %v1956, %v2195
      %v2628 = vsel %vm1712, %v1955, %v2197
      %v2629 = vsel %vm1712, %v1954, %v2199
      %v2630 = vsel %vm1712, %v1953, %v2201
      %v2631 = vsel %vm1712, %v1952, %v2203
      %v2632 = vsel %vm1712, %v1951, %v2205
      %v2633 = vsel %vm1712, %v1950, %v2207
      %v2634 = vsel %vm1712, %v1949, %v2209
      %v2635 = vsel %vm1712, %v1948, %v2211
      %v2636 = vsel %vm1712, %v1947, %v2213
      %v2637 = vsel %vm1712, %v1946, %v2215
      %v2638 = vsel %vm1712, %v1945, %v2217
      %v2639 = vsel %vm1712, %v1944, %v2219
      %v2640 = vsel %vm1712, %v1943, %v2221
      %v2641 = vsel %vm1712, %v1942, %v2223
      %v2642 = vsel %vm1712, %v1941, %v2225
      %v2643 = vsel %vm1712, %v1940, %v2227
      %v2644 = vsel %vm1712, %v1939, %v2229
      %v2645 = vsel %vm1712, %v1938, %v2231
      %v2646 = vsel %vm1712, %v1937, %v2233
      %v2647 = vsel %vm1712, %v1936, %v2235
      %v2648 = vsel %vm1712, %v1935, %v2237
      %v2649 = vsel %vm1712, %v1934, %v2239
      %v2650 = vsel %vm1712, %v1933, %v2241
      %v2651 = vsel %vm1712, %v1932, %v2243
      %v2652 = vsel %vm1712, %v1931, %v2245
      %v2653 = vsel %vm1712, %v1930, %v2247
      %v2654 = vsel %vm1712, %v1929, %v2249
      %v2655 = vsel %vm1712, %v1928, %v2251
      %v2656 = vsel %vm1712, %v1927, %v2253
      %v2657 = vsel %vm1712, %v1926, %v2255
      %v2658 = vsel %vm1712, %v1925, %v2257
      %v2659 = vsel %vm1712, %v1924, %v2259
      %v2660 = vsel %vm1712, %v1923, %v2261
      %v2661 = vsel %vm1712, %v1922, %v2263
      %v2662 = vsel %vm1712, %v1921, %v2265
      %v2663 = vsel %vm1712, %v1920, %v2267
      %v2664 = vsel %vm1712, %v1919, %v2269
      %v2665 = vsel %vm1712, %v1918, %v2271
      %v2666 = vsel %vm1712, %v1917, %v2273
      %v2667 = vsel %vm1712, %v1916, %v2275
      %v2668 = vsel %vm1712, %v1915, %v2277
      %v2669 = vsel %vm1712, %v1914, %v2279
      %v2670 = vsel %vm1712, %v1913, %v2281
      %v2671 = vsel %vm1712, %v1912, %v2283
      %v2672 = vsel %vm1712, %v1911, %v2285
      %v2673 = vsel %vm1712, %v1910, %v2287
      %v2674 = vsel %vm1712, %v1909, %v2289
      %v2675 = vsel %vm1712, %v1908, %v2291
      %v2676 = vsel %vm1777, %v2612, %v2421
      %v2677 = vsel %vm1777, %v2613, %v2423
      %v2678 = vsel %vm1777, %v2614, %v2425
      %v2679 = vsel %vm1777, %v2615, %v2427
      %v2680 = vsel %vm1777, %v2616, %v2429
      %v2681 = vsel %vm1777, %v2617, %v2431
      %v2682 = vsel %vm1777, %v2618, %v2433
      %v2683 = vsel %vm1777, %v2619, %v2435
      %v2684 = vsel %vm1777, %v2620, %v2437
      %v2685 = vsel %vm1777, %v2621, %v2439
      %v2686 = vsel %vm1777, %v2622, %v2441
      %v2687 = vsel %vm1777, %v2623, %v2443
      %v2688 = vsel %vm1777, %v2624, %v2445
      %v2689 = vsel %vm1777, %v2625, %v2447
      %v2690 = vsel %vm1777, %v2626, %v2449
      %v2691 = vsel %vm1777, %v2627, %v2451
      %v2692 = vsel %vm1777, %v2628, %v2453
      %v2693 = vsel %vm1777, %v2629, %v2455
      %v2694 = vsel %vm1777, %v2630, %v2457
      %v2695 = vsel %vm1777, %v2631, %v2459
      %v2696 = vsel %vm1777, %v2632, %v2461
      %v2697 = vsel %vm1777, %v2633, %v2463
      %v2698 = vsel %vm1777, %v2634, %v2465
      %v2699 = vsel %vm1777, %v2635, %v2467
      %v2700 = vsel %vm1777, %v2636, %v2469
      %v2701 = vsel %vm1777, %v2637, %v2471
      %v2702 = vsel %vm1777, %v2638, %v2473
      %v2703 = vsel %vm1777, %v2639, %v2475
      %v2704 = vsel %vm1777, %v2640, %v2477
      %v2705 = vsel %vm1777, %v2641, %v2479
      %v2706 = vsel %vm1777, %v2642, %v2481
      %v2707 = vsel %vm1777, %v2643, %v2483
      %v2708 = vsel %vm1777, %v2644, %v2485
      %v2709 = vsel %vm1777, %v2645, %v2487
      %v2710 = vsel %vm1777, %v2646, %v2489
      %v2711 = vsel %vm1777, %v2647, %v2491
      %v2712 = vsel %vm1777, %v2648, %v2493
      %v2713 = vsel %vm1777, %v2649, %v2495
      %v2714 = vsel %vm1777, %v2650, %v2497
      %v2715 = vsel %vm1777, %v2651, %v2499
      %v2716 = vsel %vm1777, %v2652, %v2501
      %v2717 = vsel %vm1777, %v2653, %v2503
      %v2718 = vsel %vm1777, %v2654, %v2505
      %v2719 = vsel %vm1777, %v2655, %v2507
      %v2720 = vsel %vm1777, %v2656, %v2509
      %v2721 = vsel %vm1777, %v2657, %v2511
      %v2722 = vsel %vm1777, %v2658, %v2513
      %v2723 = vsel %vm1777, %v2659, %v2515
      %v2724 = vsel %vm1777, %v2660, %v2517
      %v2725 = vsel %vm1777, %v2661, %v2519
      %v2726 = vsel %vm1777, %v2662, %v2521
      %v2727 = vsel %vm1777, %v2663, %v2523
      %v2728 = vsel %vm1777, %v2664, %v2525
      %v2729 = vsel %vm1777, %v2665, %v2527
      %v2730 = vsel %vm1777, %v2666, %v2529
      %v2731 = vsel %vm1777, %v2667, %v2531
      %v2732 = vsel %vm1777, %v2668, %v2533
      %v2733 = vsel %vm1777, %v2669, %v2535
      %v2734 = vsel %vm1777, %v2670, %v2537
      %v2735 = vsel %vm1777, %v2671, %v2539
      %v2736 = vsel %vm1777, %v2672, %v2541
      %v2737 = vsel %vm1777, %v2673, %v2543
      %v2738 = vsel %vm1777, %v2674, %v2545
      %v2739 = vsel %vm1777, %v2675, %v2547
      %s2740 = scalar_lea.vmem %s1, 16
      %v2741 = vld [vmem:[%s2740] sm:$0xff]
      %v2742 = vld [vmem:[%s2740 + $0x8] sm:$0xf]
      %vm2743 = vcmask 97280
      %v2745 = vsel %vm2743, %v2676, 0
      %v2748 = vsel %vm2743, %v2677, 0
      %v2751 = vsel %vm2743, %v2678, 0
      %v2754 = vsel %vm2743, %v2679, 0
      %v2757 = vsel %vm2743, %v2680, 0
      %v2760 = vsel %vm2743, %v2681, 0
      %v2763 = vsel %vm2743, %v2682, 0
      %v2766 = vsel %vm2743, %v2683, 0
      %v2769 = vsel %vm2743, %v2684, 0
      %v2772 = vsel %vm2743, %v2685, 0
      %v2775 = vsel %vm2743, %v2686, 0
      %v2778 = vsel %vm2743, %v2687, 0
      %v2781 = vsel %vm2743, %v2688, 0
      %v2784 = vsel %vm2743, %v2689, 0
      %v2787 = vsel %vm2743, %v2690, 0
      %v2790 = vsel %vm2743, %v2691, 0
      %v2793 = vsel %vm2743, %v2692, 0
      %v2796 = vsel %vm2743, %v2693, 0
      %v2799 = vsel %vm2743, %v2694, 0
      %v2802 = vsel %vm2743, %v2695, 0
      %v2805 = vsel %vm2743, %v2696, 0
      %v2808 = vsel %vm2743, %v2697, 0
      %v2811 = vsel %vm2743, %v2698, 0
      %v2814 = vsel %vm2743, %v2699, 0
      %v2817 = vsel %vm2743, %v2700, 0
      %v2820 = vsel %vm2743, %v2701, 0
      %v2823 = vsel %vm2743, %v2702, 0
      %v2826 = vsel %vm2743, %v2703, 0
      %v2829 = vsel %vm2743, %v2704, 0
      %v2832 = vsel %vm2743, %v2705, 0
      %v2835 = vsel %vm2743, %v2706, 0
      %v2838 = vsel %vm2743, %v2707, 0
      %v2841 = vsel %vm2743, %v2708, 0
      %v2844 = vsel %vm2743, %v2709, 0
      %v2847 = vsel %vm2743, %v2710, 0
      %v2850 = vsel %vm2743, %v2711, 0
      %v2853 = vsel %vm2743, %v2712, 0
      %v2856 = vsel %vm2743, %v2713, 0
      %v2859 = vsel %vm2743, %v2714, 0
      %v2862 = vsel %vm2743, %v2715, 0
      %v2865 = vsel %vm2743, %v2716, 0
      %v2868 = vsel %vm2743, %v2717, 0
      %v2871 = vsel %vm2743, %v2718, 0
      %v2874 = vsel %vm2743, %v2719, 0
      %v2877 = vsel %vm2743, %v2720, 0
      %v2880 = vsel %vm2743, %v2721, 0
      %v2883 = vsel %vm2743, %v2722, 0
      %v2886 = vsel %vm2743, %v2723, 0
      %v2889 = vsel %vm2743, %v2724, 0
      %v2892 = vsel %vm2743, %v2725, 0
      %v2895 = vsel %vm2743, %v2726, 0
      %v2898 = vsel %vm2743, %v2727, 0
      %v2901 = vsel %vm2743, %v2728, 0
      %v2904 = vsel %vm2743, %v2729, 0
      %v2907 = vsel %vm2743, %v2730, 0
      %v2910 = vsel %vm2743, %v2731, 0
      %v2913 = vsel %vm2743, %v2732, 0
      %v2916 = vsel %vm2743, %v2733, 0
      %v2919 = vsel %vm2743, %v2734, 0
      %v2922 = vsel %vm2743, %v2735, 0
      %v2925 = vsel %vm2743, %v2736, 0
      %v2928 = vsel %vm2743, %v2737, 0
      %v2931 = vsel %vm2743, %v2738, 0
      %v2934 = vsel %vm2743, %v2739, 0
      %vm2936 = vcmask 1043456
      %v2938 = vsel %vm2936, %v2742, 0
      %2940 = vmatprep.subr.mxu0 0.0
      %2941 = vmatpush1.msra.mxu0 %v2741
      %2942 = vmatprep.subr.mxu0 0.0
      %2943 = vmatpush1.msra.mxu0 %v2938
      %2944 = vmatprep.subr.mxu0 0.0
      %2945 = vmatpush1.msra.mxu0 0.0
      %2946 = vmatprep.subr.mxu0 0.0
      %2947 = vmatpush1.msra.mxu0 0.0
      %2948 = vmatprep.subr.mxu0 0.0
      %2949 = vmatpush1.msra.mxu0 0.0
      %2950 = vmatprep.subr.mxu0 0.0
      %2951 = vmatpush1.msra.mxu0 0.0
      %2952 = vmatprep.subr.mxu0 0.0
      %2953 = vmatpush1.msra.mxu0 0.0
      %2954 = vmatprep.subr.mxu0 0.0
      %2955 = vmatpush1.msra.mxu0 0.0
      %2956 = vmatprep.subr.mxu0 0.0
      %2957 = vmatpush1.msra.mxu0 0.0
      %2958 = vmatprep.subr.mxu0 0.0
      %2959 = vmatpush1.msra.mxu0 0.0
      %2960 = vmatprep.subr.mxu0 0.0
      %2961 = vmatpush1.msra.mxu0 0.0
      %2962 = vmatprep.subr.mxu0 0.0
      %2963 = vmatpush1.msra.mxu0 0.0
      %2964 = vmatprep.subr.mxu0 0.0
      %2965 = vmatpush1.msra.mxu0 0.0
      %2966 = vmatprep.subr.mxu0 0.0
      %2967 = vmatpush1.msra.mxu0 0.0
      %2968 = vmatprep.subr.mxu0 0.0
      %2969 = vmatpush1.msra.mxu0 0.0
      %2970 = vmatprep.subr.mxu0 0.0
      %2971 = vmatpush1.msra.mxu0 0.0
      %2972 = vmatprep.subr.mxu0 0.0
      %2973 = vmatpush1.msra.mxu0 0.0
      %2974 = vmatprep.subr.mxu0 0.0
      %2975 = vmatpush1.msra.mxu0 0.0
      %2976 = vmatprep.subr.mxu0 0.0
      %2977 = vmatpush1.msra.mxu0 0.0
      %2978 = vmatprep.subr.mxu0 0.0
      %2979 = vmatpush1.msra.mxu0 0.0
      %2980 = vmatprep.subr.mxu0 0.0
      %2981 = vmatpush1.msra.mxu0 0.0
      %2982 = vmatprep.subr.mxu0 0.0
      %2983 = vmatpush1.msra.mxu0 0.0
      %2984 = vmatprep.subr.mxu0 0.0
      %2985 = vmatpush1.msra.mxu0 0.0
      %2986 = vmatprep.subr.mxu0 0.0
      %2987 = vmatpush1.msra.mxu0 0.0
      %2988 = vmatprep.subr.mxu0 0.0
      %2989 = vmatpush1.msra.mxu0 0.0
      %2990 = vmatprep.subr.mxu0 0.0
      %2991 = vmatpush1.msra.mxu0 0.0
      %2992 = vmatprep.subr.mxu0 0.0
      %2993 = vmatpush1.msra.mxu0 0.0
      %2994 = vmatprep.subr.mxu0 0.0
      %2995 = vmatpush1.msra.mxu0 0.0
      %2996 = vmatprep.subr.mxu0 0.0
      %2997 = vmatpush1.msra.mxu0 0.0
      %2998 = vmatprep.subr.mxu0 0.0
      %2999 = vmatpush1.msra.mxu0 0.0
      %3000 = vmatprep.subr.mxu0 0.0
      %3001 = vmatpush1.msra.mxu0 0.0
      %3002 = vmatprep.subr.mxu0 0.0
      %3003 = vmatpush1.msra.mxu0 0.0
      %3004 = vmatprep.mubr.f32.mxu0 0.0
      %3005 = vmatmul.mubr.f32.gmra.mrb[0].mxu0 %v2745
      %v3006 = vpop.f32.mrb[0].mxu0
      %v3007 = vadd.f32 0.0, %v3006
      %v3008 = vpop.f32.mrb[0].mxu0
      %3009 = vmatprep.mubr.f32.mxu0 0.0
      %3010 = vmatmul.mubr.f32.gmra.mrb[0].mxu0 %v2748
      %v3011 = vpop.f32.mrb[0].mxu0
      %v3012 = vadd.f32 0.0, %v3011
      %v3013 = vpop.f32.mrb[0].mxu0
      %3014 = vmatprep.mubr.f32.mxu0 0.0
      %3015 = vmatmul.mubr.f32.gmra.mrb[0].mxu0 %v2751
      %v3016 = vpop.f32.mrb[0].mxu0
      %v3017 = vadd.f32 0.0, %v3016
      %v3018 = vpop.f32.mrb[0].mxu0
      %3019 = vmatprep.mubr.f32.mxu0 0.0
      %3020 = vmatmul.mubr.f32.gmra.mrb[0].mxu0 %v2754
      %v3021 = vpop.f32.mrb[0].mxu0
      %v3022 = vadd.f32 0.0, %v3021
      %v3023 = vpop.f32.mrb[0].mxu0
      %3024 = vmatprep.mubr.f32.mxu0 0.0
      %3025 = vmatmul.mubr.f32.gmra.mrb[0].mxu0 %v2757
      %v3026 = vpop.f32.mrb[0].mxu0
      %v3027 = vadd.f32 0.0, %v3026
      %v3028 = vpop.f32.mrb[0].mxu0
      %3029 = vmatprep.mubr.f32.mxu0 0.0
      %3030 = vmatmul.mubr.f32.gmra.mrb[0].mxu0 %v2760
      %v3031 = vpop.f32.mrb[0].mxu0
      %v3032 = vadd.f32 0.0, %v3031
      %v3033 = vpop.f32.mrb[0].mxu0
      %3034 = vmatprep.mubr.f32.mxu0 0.0
      %3035 = vmatmul.mubr.f32.gmra.mrb[0].mxu0 %v2763
      %v3036 = vpop.f32.mrb[0].mxu0
      %v3037 = vadd.f32 0.0, %v3036
      %v3038 = vpop.f32.mrb[0].mxu0
      %3039 = vmatprep.mubr.f32.mxu0 0.0
      %3040 = vmatmul.mubr.f32.gmra.mrb[0].mxu0 %v2766
      %v3041 = vpop.f32.mrb[0].mxu0
      %v3042 = vadd.f32 0.0, %v3041
      %v3043 = vpop.f32.mrb[0].mxu0
      %3044 = vmatprep.mubr.f32.mxu0 0.0
      %3045 = vmatmul.mubr.f32.gmra.mrb[0].mxu0 %v2769
      %v3046 = vpop.f32.mrb[0].mxu0
      %v3047 = vadd.f32 0.0, %v3046
      %v3048 = vpop.f32.mrb[0].mxu0
      %3049 = vmatprep.mubr.f32.mxu0 0.0
      %3050 = vmatmul.mubr.f32.gmra.mrb[0].mxu0 %v2772
      %v3051 = vpop.f32.mrb[0].mxu0
      %v3052 = vadd.f32 0.0, %v3051
      %v3053 = vpop.f32.mrb[0].mxu0
      %3054 = vmatprep.mubr.f32.mxu0 0.0
      %3055 = vmatmul.mubr.f32.gmra.mrb[0].mxu0 %v2775
      %v3056 = vpop.f32.mrb[0].mxu0
      %v3057 = vadd.f32 0.0, %v3056
      %v3058 = vpop.f32.mrb[0].mxu0
      %3059 = vmatprep.mubr.f32.mxu0 0.0
      %3060 = vmatmul.mubr.f32.gmra.mrb[0].mxu0 %v2778
      %v3061 = vpop.f32.mrb[0].mxu0
      %v3062 = vadd.f32 0.0, %v3061
      %v3063 = vpop.f32.mrb[0].mxu0
      %3064 = vmatprep.mubr.f32.mxu0 0.0
      %3065 = vmatmul.mubr.f32.gmra.mrb[0].mxu0 %v2781
      %v3066 = vpop.f32.mrb[0].mxu0
      %v3067 = vadd.f32 0.0, %v3066
      %v3068 = vpop.f32.mrb[0].mxu0
      %3069 = vmatprep.mubr.f32.mxu0 0.0
      %3070 = vmatmul.mubr.f32.gmra.mrb[0].mxu0 %v2784
      %v3071 = vpop.f32.mrb[0].mxu0
      %v3072 = vadd.f32 0.0, %v3071
      %v3073 = vpop.f32.mrb[0].mxu0
      %3074 = vmatprep.mubr.f32.mxu0 0.0
      %3075 = vmatmul.mubr.f32.gmra.mrb[0].mxu0 %v2787
      %v3076 = vpop.f32.mrb[0].mxu0
      %v3077 = vadd.f32 0.0, %v3076
      %v3078 = vpop.f32.mrb[0].mxu0
      %3079 = vmatprep.mubr.f32.mxu0 0.0
      %3080 = vmatmul.mubr.f32.gmra.mrb[0].mxu0 %v2790
      %v3081 = vpop.f32.mrb[0].mxu0
      %v3082 = vadd.f32 0.0, %v3081
      %v3083 = vpop.f32.mrb[0].mxu0
      %3084 = vmatprep.mubr.f32.mxu0 0.0
      %3085 = vmatmul.mubr.f32.gmra.mrb[0].mxu0 %v2793
      %v3086 = vpop.f32.mrb[0].mxu0
      %v3087 = vadd.f32 0.0, %v3086
      %v3088 = vpop.f32.mrb[0].mxu0
      %3089 = vmatprep.mubr.f32.mxu0 0.0
      %3090 = vmatmul.mubr.f32.gmra.mrb[0].mxu0 %v2796
      %v3091 = vpop.f32.mrb[0].mxu0
      %v3092 = vadd.f32 0.0, %v3091
      %v3093 = vpop.f32.mrb[0].mxu0
      %3094 = vmatprep.mubr.f32.mxu0 0.0
      %3095 = vmatmul.mubr.f32.gmra.mrb[0].mxu0 %v2799
      %v3096 = vpop.f32.mrb[0].mxu0
      %v3097 = vadd.f32 0.0, %v3096
      %v3098 = vpop.f32.mrb[0].mxu0
      %3099 = vmatprep.mubr.f32.mxu0 0.0
      %3100 = vmatmul.mubr.f32.gmra.mrb[0].mxu0 %v2802
      %v3101 = vpop.f32.mrb[0].mxu0
      %v3102 = vadd.f32 0.0, %v3101
      %v3103 = vpop.f32.mrb[0].mxu0
      %3104 = vmatprep.mubr.f32.mxu0 0.0
      %3105 = vmatmul.mubr.f32.gmra.mrb[0].mxu0 %v2805
      %v3106 = vpop.f32.mrb[0].mxu0
      %v3107 = vadd.f32 0.0, %v3106
      %v3108 = vpop.f32.mrb[0].mxu0
      %3109 = vmatprep.mubr.f32.mxu0 0.0
      %3110 = vmatmul.mubr.f32.gmra.mrb[0].mxu0 %v2808
      %v3111 = vpop.f32.mrb[0].mxu0
      %v3112 = vadd.f32 0.0, %v3111
      %v3113 = vpop.f32.mrb[0].mxu0
      %3114 = vmatprep.mubr.f32.mxu0 0.0
      %3115 = vmatmul.mubr.f32.gmra.mrb[0].mxu0 %v2811
      %v3116 = vpop.f32.mrb[0].mxu0
      %v3117 = vadd.f32 0.0, %v3116
      %v3118 = vpop.f32.mrb[0].mxu0
      %3119 = vmatprep.mubr.f32.mxu0 0.0
      %3120 = vmatmul.mubr.f32.gmra.mrb[0].mxu0 %v2814
      %v3121 = vpop.f32.mrb[0].mxu0
      %v3122 = vadd.f32 0.0, %v3121
      %v3123 = vpop.f32.mrb[0].mxu0
      %3124 = vmatprep.mubr.f32.mxu0 0.0
      %3125 = vmatmul.mubr.f32.gmra.mrb[0].mxu0 %v2817
      %v3126 = vpop.f32.mrb[0].mxu0
      %v3127 = vadd.f32 0.0, %v3126
      %v3128 = vpop.f32.mrb[0].mxu0
      %3129 = vmatprep.mubr.f32.mxu0 0.0
      %3130 = vmatmul.mubr.f32.gmra.mrb[0].mxu0 %v2820
      %v3131 = vpop.f32.mrb[0].mxu0
      %v3132 = vadd.f32 0.0, %v3131
      %v3133 = vpop.f32.mrb[0].mxu0
      %3134 = vmatprep.mubr.f32.mxu0 0.0
      %3135 = vmatmul.mubr.f32.gmra.mrb[0].mxu0 %v2823
      %v3136 = vpop.f32.mrb[0].mxu0
      %v3137 = vadd.f32 0.0, %v3136
      %v3138 = vpop.f32.mrb[0].mxu0
      %3139 = vmatprep.mubr.f32.mxu0 0.0
      %3140 = vmatmul.mubr.f32.gmra.mrb[0].mxu0 %v2826
      %v3141 = vpop.f32.mrb[0].mxu0
      %v3142 = vadd.f32 0.0, %v3141
      %v3143 = vpop.f32.mrb[0].mxu0
      %3144 = vmatprep.mubr.f32.mxu0 0.0
      %3145 = vmatmul.mubr.f32.gmra.mrb[0].mxu0 %v2829
      %v3146 = vpop.f32.mrb[0].mxu0
      %v3147 = vadd.f32 0.0, %v3146
      %v3148 = vpop.f32.mrb[0].mxu0
      %3149 = vmatprep.mubr.f32.mxu0 0.0
      %3150 = vmatmul.mubr.f32.gmra.mrb[0].mxu0 %v2832
      %v3151 = vpop.f32.mrb[0].mxu0
      %v3152 = vadd.f32 0.0, %v3151
      %v3153 = vpop.f32.mrb[0].mxu0
      %3154 = vmatprep.mubr.f32.mxu0 0.0
      %3155 = vmatmul.mubr.f32.gmra.mrb[0].mxu0 %v2835
      %v3156 = vpop.f32.mrb[0].mxu0
      %v3157 = vadd.f32 0.0, %v3156
      %v3158 = vpop.f32.mrb[0].mxu0
      %3159 = vmatprep.mubr.f32.mxu0 0.0
      %3160 = vmatmul.mubr.f32.gmra.mrb[0].mxu0 %v2838
      %v3161 = vpop.f32.mrb[0].mxu0
      %v3162 = vadd.f32 0.0, %v3161
      %v3163 = vpop.f32.mrb[0].mxu0
      %3164 = vmatprep.mubr.f32.mxu0 0.0
      %3165 = vmatmul.mubr.f32.gmra.mrb[0].mxu0 %v2841
      %v3166 = vpop.f32.mrb[0].mxu0
      %v3167 = vadd.f32 0.0, %v3166
      %v3168 = vpop.f32.mrb[0].mxu0
      %3169 = vmatprep.mubr.f32.mxu0 0.0
      %3170 = vmatmul.mubr.f32.gmra.mrb[0].mxu0 %v2844
      %v3171 = vpop.f32.mrb[0].mxu0
      %v3172 = vadd.f32 0.0, %v3171
      %v3173 = vpop.f32.mrb[0].mxu0
      %3174 = vmatprep.mubr.f32.mxu0 0.0
      %3175 = vmatmul.mubr.f32.gmra.mrb[0].mxu0 %v2847
      %v3176 = vpop.f32.mrb[0].mxu0
      %v3177 = vadd.f32 0.0, %v3176
      %v3178 = vpop.f32.mrb[0].mxu0
      %3179 = vmatprep.mubr.f32.mxu0 0.0
      %3180 = vmatmul.mubr.f32.gmra.mrb[0].mxu0 %v2850
      %v3181 = vpop.f32.mrb[0].mxu0
      %v3182 = vadd.f32 0.0, %v3181
      %v3183 = vpop.f32.mrb[0].mxu0
      %3184 = vmatprep.mubr.f32.mxu0 0.0
      %3185 = vmatmul.mubr.f32.gmra.mrb[0].mxu0 %v2853
      %v3186 = vpop.f32.mrb[0].mxu0
      %v3187 = vadd.f32 0.0, %v3186
      %v3188 = vpop.f32.mrb[0].mxu0
      %3189 = vmatprep.mubr.f32.mxu0 0.0
      %3190 = vmatmul.mubr.f32.gmra.mrb[0].mxu0 %v2856
      %v3191 = vpop.f32.mrb[0].mxu0
      %v3192 = vadd.f32 0.0, %v3191
      %v3193 = vpop.f32.mrb[0].mxu0
      %3194 = vmatprep.mubr.f32.mxu0 0.0
      %3195 = vmatmul.mubr.f32.gmra.mrb[0].mxu0 %v2859
      %v3196 = vpop.f32.mrb[0].mxu0
      %v3197 = vadd.f32 0.0, %v3196
      %v3198 = vpop.f32.mrb[0].mxu0
      %3199 = vmatprep.mubr.f32.mxu0 0.0
      %3200 = vmatmul.mubr.f32.gmra.mrb[0].mxu0 %v2862
      %v3201 = vpop.f32.mrb[0].mxu0
      %v3202 = vadd.f32 0.0, %v3201
      %v3203 = vpop.f32.mrb[0].mxu0
      %3204 = vmatprep.mubr.f32.mxu0 0.0
      %3205 = vmatmul.mubr.f32.gmra.mrb[0].mxu0 %v2865
      %v3206 = vpop.f32.mrb[0].mxu0
      %v3207 = vadd.f32 0.0, %v3206
      %v3208 = vpop.f32.mrb[0].mxu0
      %3209 = vmatprep.mubr.f32.mxu0 0.0
      %3210 = vmatmul.mubr.f32.gmra.mrb[0].mxu0 %v2868
      %v3211 = vpop.f32.mrb[0].mxu0
      %v3212 = vadd.f32 0.0, %v3211
      %v3213 = vpop.f32.mrb[0].mxu0
      %3214 = vmatprep.mubr.f32.mxu0 0.0
      %3215 = vmatmul.mubr.f32.gmra.mrb[0].mxu0 %v2871
      %v3216 = vpop.f32.mrb[0].mxu0
      %v3217 = vadd.f32 0.0, %v3216
      %v3218 = vpop.f32.mrb[0].mxu0
      %3219 = vmatprep.mubr.f32.mxu0 0.0
      %3220 = vmatmul.mubr.f32.gmra.mrb[0].mxu0 %v2874
      %v3221 = vpop.f32.mrb[0].mxu0
      %v3222 = vadd.f32 0.0, %v3221
      %v3223 = vpop.f32.mrb[0].mxu0
      %3224 = vmatprep.mubr.f32.mxu0 0.0
      %3225 = vmatmul.mubr.f32.gmra.mrb[0].mxu0 %v2877
      %v3226 = vpop.f32.mrb[0].mxu0
      %v3227 = vadd.f32 0.0, %v3226
      %v3228 = vpop.f32.mrb[0].mxu0
      %3229 = vmatprep.mubr.f32.mxu0 0.0
      %3230 = vmatmul.mubr.f32.gmra.mrb[0].mxu0 %v2880
      %v3231 = vpop.f32.mrb[0].mxu0
      %v3232 = vadd.f32 0.0, %v3231
      %v3233 = vpop.f32.mrb[0].mxu0
      %3234 = vmatprep.mubr.f32.mxu0 0.0
      %3235 = vmatmul.mubr.f32.gmra.mrb[0].mxu0 %v2883
      %v3236 = vpop.f32.mrb[0].mxu0
      %v3237 = vadd.f32 0.0, %v3236
      %v3238 = vpop.f32.mrb[0].mxu0
      %3239 = vmatprep.mubr.f32.mxu0 0.0
      %3240 = vmatmul.mubr.f32.gmra.mrb[0].mxu0 %v2886
      %v3241 = vpop.f32.mrb[0].mxu0
      %v3242 = vadd.f32 0.0, %v3241
      %v3243 = vpop.f32.mrb[0].mxu0
      %3244 = vmatprep.mubr.f32.mxu0 0.0
      %3245 = vmatmul.mubr.f32.gmra.mrb[0].mxu0 %v2889
      %v3246 = vpop.f32.mrb[0].mxu0
      %v3247 = vadd.f32 0.0, %v3246
      %v3248 = vpop.f32.mrb[0].mxu0
      %3249 = vmatprep.mubr.f32.mxu0 0.0
      %3250 = vmatmul.mubr.f32.gmra.mrb[0].mxu0 %v2892
      %v3251 = vpop.f32.mrb[0].mxu0
      %v3252 = vadd.f32 0.0, %v3251
      %v3253 = vpop.f32.mrb[0].mxu0
      %3254 = vmatprep.mubr.f32.mxu0 0.0
      %3255 = vmatmul.mubr.f32.gmra.mrb[0].mxu0 %v2895
      %v3256 = vpop.f32.mrb[0].mxu0
      %v3257 = vadd.f32 0.0, %v3256
      %v3258 = vpop.f32.mrb[0].mxu0
      %3259 = vmatprep.mubr.f32.mxu0 0.0
      %3260 = vmatmul.mubr.f32.gmra.mrb[0].mxu0 %v2898
      %v3261 = vpop.f32.mrb[0].mxu0
      %v3262 = vadd.f32 0.0, %v3261
      %v3263 = vpop.f32.mrb[0].mxu0
      %3264 = vmatprep.mubr.f32.mxu0 0.0
      %3265 = vmatmul.mubr.f32.gmra.mrb[0].mxu0 %v2901
      %v3266 = vpop.f32.mrb[0].mxu0
      %v3267 = vadd.f32 0.0, %v3266
      %v3268 = vpop.f32.mrb[0].mxu0
      %3269 = vmatprep.mubr.f32.mxu0 0.0
      %3270 = vmatmul.mubr.f32.gmra.mrb[0].mxu0 %v2904
      %v3271 = vpop.f32.mrb[0].mxu0
      %v3272 = vadd.f32 0.0, %v3271
      %v3273 = vpop.f32.mrb[0].mxu0
      %3274 = vmatprep.mubr.f32.mxu0 0.0
      %3275 = vmatmul.mubr.f32.gmra.mrb[0].mxu0 %v2907
      %v3276 = vpop.f32.mrb[0].mxu0
      %v3277 = vadd.f32 0.0, %v3276
      %v3278 = vpop.f32.mrb[0].mxu0
      %3279 = vmatprep.mubr.f32.mxu0 0.0
      %3280 = vmatmul.mubr.f32.gmra.mrb[0].mxu0 %v2910
      %v3281 = vpop.f32.mrb[0].mxu0
      %v3282 = vadd.f32 0.0, %v3281
      %v3283 = vpop.f32.mrb[0].mxu0
      %3284 = vmatprep.mubr.f32.mxu0 0.0
      %3285 = vmatmul.mubr.f32.gmra.mrb[0].mxu0 %v2913
      %v3286 = vpop.f32.mrb[0].mxu0
      %v3287 = vadd.f32 0.0, %v3286
      %v3288 = vpop.f32.mrb[0].mxu0
      %3289 = vmatprep.mubr.f32.mxu0 0.0
      %3290 = vmatmul.mubr.f32.gmra.mrb[0].mxu0 %v2916
      %v3291 = vpop.f32.mrb[0].mxu0
      %v3292 = vadd.f32 0.0, %v3291
      %v3293 = vpop.f32.mrb[0].mxu0
      %3294 = vmatprep.mubr.f32.mxu0 0.0
      %3295 = vmatmul.mubr.f32.gmra.mrb[0].mxu0 %v2919
      %v3296 = vpop.f32.mrb[0].mxu0
      %v3297 = vadd.f32 0.0, %v3296
      %v3298 = vpop.f32.mrb[0].mxu0
      %3299 = vmatprep.mubr.f32.mxu0 0.0
      %3300 = vmatmul.mubr.f32.gmra.mrb[0].mxu0 %v2922
      %v3301 = vpop.f32.mrb[0].mxu0
      %v3302 = vadd.f32 0.0, %v3301
      %v3303 = vpop.f32.mrb[0].mxu0
      %3304 = vmatprep.mubr.f32.mxu0 0.0
      %3305 = vmatmul.mubr.f32.gmra.mrb[0].mxu0 %v2925
      %v3306 = vpop.f32.mrb[0].mxu0
      %v3307 = vadd.f32 0.0, %v3306
      %v3308 = vpop.f32.mrb[0].mxu0
      %3309 = vmatprep.mubr.f32.mxu0 0.0
      %3310 = vmatmul.mubr.f32.gmra.mrb[0].mxu0 %v2928
      %v3311 = vpop.f32.mrb[0].mxu0
      %v3312 = vadd.f32 0.0, %v3311
      %v3313 = vpop.f32.mrb[0].mxu0
      %3314 = vmatprep.mubr.f32.mxu0 0.0
      %3315 = vmatmul.mubr.f32.gmra.mrb[0].mxu0 %v2931
      %v3316 = vpop.f32.mrb[0].mxu0
      %v3317 = vadd.f32 0.0, %v3316
      %v3318 = vpop.f32.mrb[0].mxu0
      %3319 = vmatprep.mubr.f32.mxu0 0.0
      %3320 = vmatmul.mubr.f32.gmra.mrb[0].mxu0 %v2934
      %v3321 = vpop.f32.mrb[0].mxu0
      %v3322 = vadd.f32 0.0, %v3321
      %v3323 = vpop.f32.mrb[0].mxu0
      %3324 = vdwg.mxu0
      %v3326 = vsel %vm2743, %v1778, 0
      %v3329 = vsel %vm2743, %v1779, 0
      %v3332 = vsel %vm2743, %v1780, 0
      %v3335 = vsel %vm2743, %v1781, 0
      %v3338 = vsel %vm2743, %v1782, 0
      %v3341 = vsel %vm2743, %v1783, 0
      %v3344 = vsel %vm2743, %v1784, 0
      %v3347 = vsel %vm2743, %v1785, 0
      %v3350 = vsel %vm2743, %v1786, 0
      %v3353 = vsel %vm2743, %v1787, 0
      %v3356 = vsel %vm2743, %v1788, 0
      %v3359 = vsel %vm2743, %v1789, 0
      %v3362 = vsel %vm2743, %v1790, 0
      %v3365 = vsel %vm2743, %v1791, 0
      %v3368 = vsel %vm2743, %v1792, 0
      %v3371 = vsel %vm2743, %v1793, 0
      %v3374 = vsel %vm2743, %v1794, 0
      %v3377 = vsel %vm2743, %v1795, 0
      %v3380 = vsel %vm2743, %v1796, 0
      %v3383 = vsel %vm2743, %v1797, 0
      %v3386 = vsel %vm2743, %v1798, 0
      %v3389 = vsel %vm2743, %v1799, 0
      %v3392 = vsel %vm2743, %v1800, 0
      %v3395 = vsel %vm2743, %v1801, 0
      %v3398 = vsel %vm2743, %v1802, 0
      %v3401 = vsel %vm2743, %v1803, 0
      %v3404 = vsel %vm2743, %v1804, 0
      %v3407 = vsel %vm2743, %v1805, 0
      %v3410 = vsel %vm2743, %v1806, 0
      %v3413 = vsel %vm2743, %v1807, 0
      %v3416 = vsel %vm2743, %v1808, 0
      %v3419 = vsel %vm2743, %v1809, 0
      %v3422 = vsel %vm2743, %v1810, 0
      %v3425 = vsel %vm2743, %v1811, 0
      %v3428 = vsel %vm2743, %v1812, 0
      %v3431 = vsel %vm2743, %v1813, 0
      %v3434 = vsel %vm2743, %v1814, 0
      %v3437 = vsel %vm2743, %v1815, 0
      %v3440 = vsel %vm2743, %v1816, 0
      %v3443 = vsel %vm2743, %v1817, 0
      %v3446 = vsel %vm2743, %v1818, 0
      %v3449 = vsel %vm2743, %v1819, 0
      %v3452 = vsel %vm2743, %v1820, 0
      %v3455 = vsel %vm2743, %v1821, 0
      %v3458 = vsel %vm2743, %v1822, 0
      %v3461 = vsel %vm2743, %v1823, 0
      %v3464 = vsel %vm2743, %v1824, 0
      %v3467 = vsel %vm2743, %v1825, 0
      %v3470 = vsel %vm2743, %v1826, 0
      %v3473 = vsel %vm2743, %v1827, 0
      %v3476 = vsel %vm2743, %v1828, 0
      %v3479 = vsel %vm2743, %v1829, 0
      %v3482 = vsel %vm2743, %v1830, 0
      %v3485 = vsel %vm2743, %v1831, 0
      %v3488 = vsel %vm2743, %v1832, 0
      %v3491 = vsel %vm2743, %v1833, 0
      %v3494 = vsel %vm2743, %v1834, 0
      %v3497 = vsel %vm2743, %v1835, 0
      %v3500 = vsel %vm2743, %v1836, 0
      %v3503 = vsel %vm2743, %v1837, 0
      %v3506 = vsel %vm2743, %v1838, 0
      %v3509 = vsel %vm2743, %v1839, 0
      %v3512 = vsel %vm2743, %v1840, 0
      %v3515 = vsel %vm2743, %v1841, 0
      %v3518 = vsel %vm2936, %v1843, 0
      %3520 = vmatprep.subr.mxu0 0.0
      %3521 = vmatpush1.msra.mxu0 %v1842
      %3522 = vmatprep.subr.mxu0 0.0
      %3523 = vmatpush1.msra.mxu0 %v3518
      %3524 = vmatprep.subr.mxu0 0.0
      %3525 = vmatpush1.msra.mxu0 0.0
      %3526 = vmatprep.subr.mxu0 0.0
      %3527 = vmatpush1.msra.mxu0 0.0
      %3528 = vmatprep.subr.mxu0 0.0
      %3529 = vmatpush1.msra.mxu0 0.0
      %3530 = vmatprep.subr.mxu0 0.0
      %3531 = vmatpush1.msra.mxu0 0.0
      %3532 = vmatprep.subr.mxu0 0.0
      %3533 = vmatpush1.msra.mxu0 0.0
      %3534 = vmatprep.subr.mxu0 0.0
      %3535 = vmatpush1.msra.mxu0 0.0
      %3536 = vmatprep.subr.mxu0 0.0
      %3537 = vmatpush1.msra.mxu0 0.0
      %3538 = vmatprep.subr.mxu0 0.0
      %3539 = vmatpush1.msra.mxu0 0.0
      %3540 = vmatprep.subr.mxu0 0.0
      %3541 = vmatpush1.msra.mxu0 0.0
      %3542 = vmatprep.subr.mxu0 0.0
      %3543 = vmatpush1.msra.mxu0 0.0
      %3544 = vmatprep.subr.mxu0 0.0
      %3545 = vmatpush1.msra.mxu0 0.0
      %3546 = vmatprep.subr.mxu0 0.0
      %3547 = vmatpush1.msra.mxu0 0.0
      %3548 = vmatprep.subr.mxu0 0.0
      %3549 = vmatpush1.msra.mxu0 0.0
      %3550 = vmatprep.subr.mxu0 0.0
      %3551 = vmatpush1.msra.mxu0 0.0
      %3552 = vmatprep.subr.mxu0 0.0
      %3553 = vmatpush1.msra.mxu0 0.0
      %3554 = vmatprep.subr.mxu0 0.0
      %3555 = vmatpush1.msra.mxu0 0.0
      %3556 = vmatprep.subr.mxu0 0.0
      %3557 = vmatpush1.msra.mxu0 0.0
      %3558 = vmatprep.subr.mxu0 0.0
      %3559 = vmatpush1.msra.mxu0 0.0
      %3560 = vmatprep.subr.mxu0 0.0
      %3561 = vmatpush1.msra.mxu0 0.0
      %3562 = vmatprep.subr.mxu0 0.0
      %3563 = vmatpush1.msra.mxu0 0.0
      %3564 = vmatprep.subr.mxu0 0.0
      %3565 = vmatpush1.msra.mxu0 0.0
      %3566 = vmatprep.subr.mxu0 0.0
      %3567 = vmatpush1.msra.mxu0 0.0
      %3568 = vmatprep.subr.mxu0 0.0
      %3569 = vmatpush1.msra.mxu0 0.0
      %3570 = vmatprep.subr.mxu0 0.0
      %3571 = vmatpush1.msra.mxu0 0.0
      %3572 = vmatprep.subr.mxu0 0.0
      %3573 = vmatpush1.msra.mxu0 0.0
      %3574 = vmatprep.subr.mxu0 0.0
      %3575 = vmatpush1.msra.mxu0 0.0
      %3576 = vmatprep.subr.mxu0 0.0
      %3577 = vmatpush1.msra.mxu0 0.0
      %3578 = vmatprep.subr.mxu0 0.0
      %3579 = vmatpush1.msra.mxu0 0.0
      %3580 = vmatprep.subr.mxu0 0.0
      %3581 = vmatpush1.msra.mxu0 0.0
      %3582 = vmatprep.subr.mxu0 0.0
      %3583 = vmatpush1.msra.mxu0 0.0
      %3584 = vmatprep.mubr.f32.mxu0 0.0
      %3585 = vmatmul.mubr.f32.gmra.mrb[0].mxu0 %v3326
      %v3586 = vpop.f32.mrb[0].mxu0
      %v3587 = vadd.f32 %v3007, %v3586
      %v3588 = vpop.f32.mrb[0].mxu0
      %3589 = vmatprep.mubr.f32.mxu0 0.0
      %3590 = vmatmul.mubr.f32.gmra.mrb[0].mxu0 %v3329
      %v3591 = vpop.f32.mrb[0].mxu0
      %v3592 = vadd.f32 %v3012, %v3591
      %v3593 = vpop.f32.mrb[0].mxu0
      %3594 = vmatprep.mubr.f32.mxu0 0.0
      %3595 = vmatmul.mubr.f32.gmra.mrb[0].mxu0 %v3332
      %v3596 = vpop.f32.mrb[0].mxu0
      %v3597 = vadd.f32 %v3017, %v3596
      %v3598 = vpop.f32.mrb[0].mxu0
      %3599 = vmatprep.mubr.f32.mxu0 0.0
      %3600 = vmatmul.mubr.f32.gmra.mrb[0].mxu0 %v3335
      %v3601 = vpop.f32.mrb[0].mxu0
      %v3602 = vadd.f32 %v3022, %v3601
      %v3603 = vpop.f32.mrb[0].mxu0
      %3604 = vmatprep.mubr.f32.mxu0 0.0
      %3605 = vmatmul.mubr.f32.gmra.mrb[0].mxu0 %v3338
      %v3606 = vpop.f32.mrb[0].mxu0
      %v3607 = vadd.f32 %v3027, %v3606
      %v3608 = vpop.f32.mrb[0].mxu0
      %3609 = vmatprep.mubr.f32.mxu0 0.0
      %3610 = vmatmul.mubr.f32.gmra.mrb[0].mxu0 %v3341
      %v3611 = vpop.f32.mrb[0].mxu0
      %v3612 = vadd.f32 %v3032, %v3611
      %v3613 = vpop.f32.mrb[0].mxu0
      %3614 = vmatprep.mubr.f32.mxu0 0.0
      %3615 = vmatmul.mubr.f32.gmra.mrb[0].mxu0 %v3344
      %v3616 = vpop.f32.mrb[0].mxu0
      %v3617 = vadd.f32 %v3037, %v3616
      %v3618 = vpop.f32.mrb[0].mxu0
      %3619 = vmatprep.mubr.f32.mxu0 0.0
      %3620 = vmatmul.mubr.f32.gmra.mrb[0].mxu0 %v3347
      %v3621 = vpop.f32.mrb[0].mxu0
      %v3622 = vadd.f32 %v3042, %v3621
      %v3623 = vpop.f32.mrb[0].mxu0
      %3624 = vmatprep.mubr.f32.mxu0 0.0
      %3625 = vmatmul.mubr.f32.gmra.mrb[0].mxu0 %v3350
      %v3626 = vpop.f32.mrb[0].mxu0
      %v3627 = vadd.f32 %v3047, %v3626
      %v3628 = vpop.f32.mrb[0].mxu0
      %3629 = vmatprep.mubr.f32.mxu0 0.0
      %3630 = vmatmul.mubr.f32.gmra.mrb[0].mxu0 %v3353
      %v3631 = vpop.f32.mrb[0].mxu0
      %v3632 = vadd.f32 %v3052, %v3631
      %v3633 = vpop.f32.mrb[0].mxu0
      %3634 = vmatprep.mubr.f32.mxu0 0.0
      %3635 = vmatmul.mubr.f32.gmra.mrb[0].mxu0 %v3356
      %v3636 = vpop.f32.mrb[0].mxu0
      %v3637 = vadd.f32 %v3057, %v3636
      %v3638 = vpop.f32.mrb[0].mxu0
      %3639 = vmatprep.mubr.f32.mxu0 0.0
      %3640 = vmatmul.mubr.f32.gmra.mrb[0].mxu0 %v3359
      %v3641 = vpop.f32.mrb[0].mxu0
      %v3642 = vadd.f32 %v3062, %v3641
      %v3643 = vpop.f32.mrb[0].mxu0
      %3644 = vmatprep.mubr.f32.mxu0 0.0
      %3645 = vmatmul.mubr.f32.gmra.mrb[0].mxu0 %v3362
      %v3646 = vpop.f32.mrb[0].mxu0
      %v3647 = vadd.f32 %v3067, %v3646
      %v3648 = vpop.f32.mrb[0].mxu0
      %3649 = vmatprep.mubr.f32.mxu0 0.0
      %3650 = vmatmul.mubr.f32.gmra.mrb[0].mxu0 %v3365
      %v3651 = vpop.f32.mrb[0].mxu0
      %v3652 = vadd.f32 %v3072, %v3651
      %v3653 = vpop.f32.mrb[0].mxu0
      %3654 = vmatprep.mubr.f32.mxu0 0.0
      %3655 = vmatmul.mubr.f32.gmra.mrb[0].mxu0 %v3368
      %v3656 = vpop.f32.mrb[0].mxu0
      %v3657 = vadd.f32 %v3077, %v3656
      %v3658 = vpop.f32.mrb[0].mxu0
      %3659 = vmatprep.mubr.f32.mxu0 0.0
      %3660 = vmatmul.mubr.f32.gmra.mrb[0].mxu0 %v3371
      %v3661 = vpop.f32.mrb[0].mxu0
      %v3662 = vadd.f32 %v3082, %v3661
      %v3663 = vpop.f32.mrb[0].mxu0
      %3664 = vmatprep.mubr.f32.mxu0 0.0
      %3665 = vmatmul.mubr.f32.gmra.mrb[0].mxu0 %v3374
      %v3666 = vpop.f32.mrb[0].mxu0
      %v3667 = vadd.f32 %v3087, %v3666
      %v3668 = vpop.f32.mrb[0].mxu0
      %3669 = vmatprep.mubr.f32.mxu0 0.0
      %3670 = vmatmul.mubr.f32.gmra.mrb[0].mxu0 %v3377
      %v3671 = vpop.f32.mrb[0].mxu0
      %v3672 = vadd.f32 %v3092, %v3671
      %v3673 = vpop.f32.mrb[0].mxu0
      %3674 = vmatprep.mubr.f32.mxu0 0.0
      %3675 = vmatmul.mubr.f32.gmra.mrb[0].mxu0 %v3380
      %v3676 = vpop.f32.mrb[0].mxu0
      %v3677 = vadd.f32 %v3097, %v3676
      %v3678 = vpop.f32.mrb[0].mxu0
      %3679 = vmatprep.mubr.f32.mxu0 0.0
      %3680 = vmatmul.mubr.f32.gmra.mrb[0].mxu0 %v3383
      %v3681 = vpop.f32.mrb[0].mxu0
      %v3682 = vadd.f32 %v3102, %v3681
      %v3683 = vpop.f32.mrb[0].mxu0
      %3684 = vmatprep.mubr.f32.mxu0 0.0
      %3685 = vmatmul.mubr.f32.gmra.mrb[0].mxu0 %v3386
      %v3686 = vpop.f32.mrb[0].mxu0
      %v3687 = vadd.f32 %v3107, %v3686
      %v3688 = vpop.f32.mrb[0].mxu0
      %3689 = vmatprep.mubr.f32.mxu0 0.0
      %3690 = vmatmul.mubr.f32.gmra.mrb[0].mxu0 %v3389
      %v3691 = vpop.f32.mrb[0].mxu0
      %v3692 = vadd.f32 %v3112, %v3691
      %v3693 = vpop.f32.mrb[0].mxu0
      %3694 = vmatprep.mubr.f32.mxu0 0.0
      %3695 = vmatmul.mubr.f32.gmra.mrb[0].mxu0 %v3392
      %v3696 = vpop.f32.mrb[0].mxu0
      %v3697 = vadd.f32 %v3117, %v3696
      %v3698 = vpop.f32.mrb[0].mxu0
      %3699 = vmatprep.mubr.f32.mxu0 0.0
      %3700 = vmatmul.mubr.f32.gmra.mrb[0].mxu0 %v3395
      %v3701 = vpop.f32.mrb[0].mxu0
      %v3702 = vadd.f32 %v3122, %v3701
      %v3703 = vpop.f32.mrb[0].mxu0
      %3704 = vmatprep.mubr.f32.mxu0 0.0
      %3705 = vmatmul.mubr.f32.gmra.mrb[0].mxu0 %v3398
      %v3706 = vpop.f32.mrb[0].mxu0
      %v3707 = vadd.f32 %v3127, %v3706
      %v3708 = vpop.f32.mrb[0].mxu0
      %3709 = vmatprep.mubr.f32.mxu0 0.0
      %3710 = vmatmul.mubr.f32.gmra.mrb[0].mxu0 %v3401
      %v3711 = vpop.f32.mrb[0].mxu0
      %v3712 = vadd.f32 %v3132, %v3711
      %v3713 = vpop.f32.mrb[0].mxu0
      %3714 = vmatprep.mubr.f32.mxu0 0.0
      %3715 = vmatmul.mubr.f32.gmra.mrb[0].mxu0 %v3404
      %v3716 = vpop.f32.mrb[0].mxu0
      %v3717 = vadd.f32 %v3137, %v3716
      %v3718 = vpop.f32.mrb[0].mxu0
      %3719 = vmatprep.mubr.f32.mxu0 0.0
      %3720 = vmatmul.mubr.f32.gmra.mrb[0].mxu0 %v3407
      %v3721 = vpop.f32.mrb[0].mxu0
      %v3722 = vadd.f32 %v3142, %v3721
      %v3723 = vpop.f32.mrb[0].mxu0
      %3724 = vmatprep.mubr.f32.mxu0 0.0
      %3725 = vmatmul.mubr.f32.gmra.mrb[0].mxu0 %v3410
      %v3726 = vpop.f32.mrb[0].mxu0
      %v3727 = vadd.f32 %v3147, %v3726
      %v3728 = vpop.f32.mrb[0].mxu0
      %3729 = vmatprep.mubr.f32.mxu0 0.0
      %3730 = vmatmul.mubr.f32.gmra.mrb[0].mxu0 %v3413
      %v3731 = vpop.f32.mrb[0].mxu0
      %v3732 = vadd.f32 %v3152, %v3731
      %v3733 = vpop.f32.mrb[0].mxu0
      %3734 = vmatprep.mubr.f32.mxu0 0.0
      %3735 = vmatmul.mubr.f32.gmra.mrb[0].mxu0 %v3416
      %v3736 = vpop.f32.mrb[0].mxu0
      %v3737 = vadd.f32 %v3157, %v3736
      %v3738 = vpop.f32.mrb[0].mxu0
      %3739 = vmatprep.mubr.f32.mxu0 0.0
      %3740 = vmatmul.mubr.f32.gmra.mrb[0].mxu0 %v3419
      %v3741 = vpop.f32.mrb[0].mxu0
      %v3742 = vadd.f32 %v3162, %v3741
      %v3743 = vpop.f32.mrb[0].mxu0
      %3744 = vmatprep.mubr.f32.mxu0 0.0
      %3745 = vmatmul.mubr.f32.gmra.mrb[0].mxu0 %v3422
      %v3746 = vpop.f32.mrb[0].mxu0
      %v3747 = vadd.f32 %v3167, %v3746
      %v3748 = vpop.f32.mrb[0].mxu0
      %3749 = vmatprep.mubr.f32.mxu0 0.0
      %3750 = vmatmul.mubr.f32.gmra.mrb[0].mxu0 %v3425
      %v3751 = vpop.f32.mrb[0].mxu0
      %v3752 = vadd.f32 %v3172, %v3751
      %v3753 = vpop.f32.mrb[0].mxu0
      %3754 = vmatprep.mubr.f32.mxu0 0.0
      %3755 = vmatmul.mubr.f32.gmra.mrb[0].mxu0 %v3428
      %v3756 = vpop.f32.mrb[0].mxu0
      %v3757 = vadd.f32 %v3177, %v3756
      %v3758 = vpop.f32.mrb[0].mxu0
      %3759 = vmatprep.mubr.f32.mxu0 0.0
      %3760 = vmatmul.mubr.f32.gmra.mrb[0].mxu0 %v3431
      %v3761 = vpop.f32.mrb[0].mxu0
      %v3762 = vadd.f32 %v3182, %v3761
      %v3763 = vpop.f32.mrb[0].mxu0
      %3764 = vmatprep.mubr.f32.mxu0 0.0
      %3765 = vmatmul.mubr.f32.gmra.mrb[0].mxu0 %v3434
      %v3766 = vpop.f32.mrb[0].mxu0
      %v3767 = vadd.f32 %v3187, %v3766
      %v3768 = vpop.f32.mrb[0].mxu0
      %3769 = vmatprep.mubr.f32.mxu0 0.0
      %3770 = vmatmul.mubr.f32.gmra.mrb[0].mxu0 %v3437
      %v3771 = vpop.f32.mrb[0].mxu0
      %v3772 = vadd.f32 %v3192, %v3771
      %v3773 = vpop.f32.mrb[0].mxu0
      %3774 = vmatprep.mubr.f32.mxu0 0.0
      %3775 = vmatmul.mubr.f32.gmra.mrb[0].mxu0 %v3440
      %v3776 = vpop.f32.mrb[0].mxu0
      %v3777 = vadd.f32 %v3197, %v3776
      %v3778 = vpop.f32.mrb[0].mxu0
      %3779 = vmatprep.mubr.f32.mxu0 0.0
      %3780 = vmatmul.mubr.f32.gmra.mrb[0].mxu0 %v3443
      %v3781 = vpop.f32.mrb[0].mxu0
      %v3782 = vadd.f32 %v3202, %v3781
      %v3783 = vpop.f32.mrb[0].mxu0
      %3784 = vmatprep.mubr.f32.mxu0 0.0
      %3785 = vmatmul.mubr.f32.gmra.mrb[0].mxu0 %v3446
      %v3786 = vpop.f32.mrb[0].mxu0
      %v3787 = vadd.f32 %v3207, %v3786
      %v3788 = vpop.f32.mrb[0].mxu0
      %3789 = vmatprep.mubr.f32.mxu0 0.0
      %3790 = vmatmul.mubr.f32.gmra.mrb[0].mxu0 %v3449
      %v3791 = vpop.f32.mrb[0].mxu0
      %v3792 = vadd.f32 %v3212, %v3791
      %v3793 = vpop.f32.mrb[0].mxu0
      %3794 = vmatprep.mubr.f32.mxu0 0.0
      %3795 = vmatmul.mubr.f32.gmra.mrb[0].mxu0 %v3452
      %v3796 = vpop.f32.mrb[0].mxu0
      %v3797 = vadd.f32 %v3217, %v3796
      %v3798 = vpop.f32.mrb[0].mxu0
      %3799 = vmatprep.mubr.f32.mxu0 0.0
      %3800 = vmatmul.mubr.f32.gmra.mrb[0].mxu0 %v3455
      %v3801 = vpop.f32.mrb[0].mxu0
      %v3802 = vadd.f32 %v3222, %v3801
      %v3803 = vpop.f32.mrb[0].mxu0
      %3804 = vmatprep.mubr.f32.mxu0 0.0
      %3805 = vmatmul.mubr.f32.gmra.mrb[0].mxu0 %v3458
      %v3806 = vpop.f32.mrb[0].mxu0
      %v3807 = vadd.f32 %v3227, %v3806
      %v3808 = vpop.f32.mrb[0].mxu0
      %3809 = vmatprep.mubr.f32.mxu0 0.0
      %3810 = vmatmul.mubr.f32.gmra.mrb[0].mxu0 %v3461
      %v3811 = vpop.f32.mrb[0].mxu0
      %v3812 = vadd.f32 %v3232, %v3811
      %v3813 = vpop.f32.mrb[0].mxu0
      %3814 = vmatprep.mubr.f32.mxu0 0.0
      %3815 = vmatmul.mubr.f32.gmra.mrb[0].mxu0 %v3464
      %v3816 = vpop.f32.mrb[0].mxu0
      %v3817 = vadd.f32 %v3237, %v3816
      %v3818 = vpop.f32.mrb[0].mxu0
      %3819 = vmatprep.mubr.f32.mxu0 0.0
      %3820 = vmatmul.mubr.f32.gmra.mrb[0].mxu0 %v3467
      %v3821 = vpop.f32.mrb[0].mxu0
      %v3822 = vadd.f32 %v3242, %v3821
      %v3823 = vpop.f32.mrb[0].mxu0
      %3824 = vmatprep.mubr.f32.mxu0 0.0
      %3825 = vmatmul.mubr.f32.gmra.mrb[0].mxu0 %v3470
      %v3826 = vpop.f32.mrb[0].mxu0
      %v3827 = vadd.f32 %v3247, %v3826
      %v3828 = vpop.f32.mrb[0].mxu0
      %3829 = vmatprep.mubr.f32.mxu0 0.0
      %3830 = vmatmul.mubr.f32.gmra.mrb[0].mxu0 %v3473
      %v3831 = vpop.f32.mrb[0].mxu0
      %v3832 = vadd.f32 %v3252, %v3831
      %v3833 = vpop.f32.mrb[0].mxu0
      %3834 = vmatprep.mubr.f32.mxu0 0.0
      %3835 = vmatmul.mubr.f32.gmra.mrb[0].mxu0 %v3476
      %v3836 = vpop.f32.mrb[0].mxu0
      %v3837 = vadd.f32 %v3257, %v3836
      %v3838 = vpop.f32.mrb[0].mxu0
      %3839 = vmatprep.mubr.f32.mxu0 0.0
      %3840 = vmatmul.mubr.f32.gmra.mrb[0].mxu0 %v3479
      %v3841 = vpop.f32.mrb[0].mxu0
      %v3842 = vadd.f32 %v3262, %v3841
      %v3843 = vpop.f32.mrb[0].mxu0
      %3844 = vmatprep.mubr.f32.mxu0 0.0
      %3845 = vmatmul.mubr.f32.gmra.mrb[0].mxu0 %v3482
      %v3846 = vpop.f32.mrb[0].mxu0
      %v3847 = vadd.f32 %v3267, %v3846
      %v3848 = vpop.f32.mrb[0].mxu0
      %3849 = vmatprep.mubr.f32.mxu0 0.0
      %3850 = vmatmul.mubr.f32.gmra.mrb[0].mxu0 %v3485
      %v3851 = vpop.f32.mrb[0].mxu0
      %v3852 = vadd.f32 %v3272, %v3851
      %v3853 = vpop.f32.mrb[0].mxu0
      %3854 = vmatprep.mubr.f32.mxu0 0.0
      %3855 = vmatmul.mubr.f32.gmra.mrb[0].mxu0 %v3488
      %v3856 = vpop.f32.mrb[0].mxu0
      %v3857 = vadd.f32 %v3277, %v3856
      %v3858 = vpop.f32.mrb[0].mxu0
      %3859 = vmatprep.mubr.f32.mxu0 0.0
      %3860 = vmatmul.mubr.f32.gmra.mrb[0].mxu0 %v3491
      %v3861 = vpop.f32.mrb[0].mxu0
      %v3862 = vadd.f32 %v3282, %v3861
      %v3863 = vpop.f32.mrb[0].mxu0
      %3864 = vmatprep.mubr.f32.mxu0 0.0
      %3865 = vmatmul.mubr.f32.gmra.mrb[0].mxu0 %v3494
      %v3866 = vpop.f32.mrb[0].mxu0
      %v3867 = vadd.f32 %v3287, %v3866
      %v3868 = vpop.f32.mrb[0].mxu0
      %3869 = vmatprep.mubr.f32.mxu0 0.0
      %3870 = vmatmul.mubr.f32.gmra.mrb[0].mxu0 %v3497
      %v3871 = vpop.f32.mrb[0].mxu0
      %v3872 = vadd.f32 %v3292, %v3871
      %v3873 = vpop.f32.mrb[0].mxu0
      %3874 = vmatprep.mubr.f32.mxu0 0.0
      %3875 = vmatmul.mubr.f32.gmra.mrb[0].mxu0 %v3500
      %v3876 = vpop.f32.mrb[0].mxu0
      %v3877 = vadd.f32 %v3297, %v3876
      %v3878 = vpop.f32.mrb[0].mxu0
      %3879 = vmatprep.mubr.f32.mxu0 0.0
      %3880 = vmatmul.mubr.f32.gmra.mrb[0].mxu0 %v3503
      %v3881 = vpop.f32.mrb[0].mxu0
      %v3882 = vadd.f32 %v3302, %v3881
      %v3883 = vpop.f32.mrb[0].mxu0
      %3884 = vmatprep.mubr.f32.mxu0 0.0
      %3885 = vmatmul.mubr.f32.gmra.mrb[0].mxu0 %v3506
      %v3886 = vpop.f32.mrb[0].mxu0
      %v3887 = vadd.f32 %v3307, %v3886
      %v3888 = vpop.f32.mrb[0].mxu0
      %3889 = vmatprep.mubr.f32.mxu0 0.0
      %3890 = vmatmul.mubr.f32.gmra.mrb[0].mxu0 %v3509
      %v3891 = vpop.f32.mrb[0].mxu0
      %v3892 = vadd.f32 %v3312, %v3891
      %v3893 = vpop.f32.mrb[0].mxu0
      %3894 = vmatprep.mubr.f32.mxu0 0.0
      %3895 = vmatmul.mubr.f32.gmra.mrb[0].mxu0 %v3512
      %v3896 = vpop.f32.mrb[0].mxu0
      %v3897 = vadd.f32 %v3317, %v3896
      %v3898 = vpop.f32.mrb[0].mxu0
      %3899 = vmatprep.mubr.f32.mxu0 0.0
      %3900 = vmatmul.mubr.f32.gmra.mrb[0].mxu0 %v3515
      %v3901 = vpop.f32.mrb[0].mxu0
      %v3902 = vadd.f32 %v3322, %v3901
      %v3903 = vpop.f32.mrb[0].mxu0
      %3904 = vdwg.mxu0
      %v3905 = vrot.slane %v878, 7
      %v3906 = vrot.slane %v879, 7
      %v3907 = vrot.slane %v880, 7
      %v3908 = vrot.slane %v881, 7
      %v3909 = vrot.slane %v882, 7
      %v3910 = vrot.slane %v883, 7
      %v3911 = vrot.slane %v884, 7
      %v3912 = vrot.slane %v885, 7
      %v3913 = vrot.slane %v886, 7
      %v3914 = vrot.slane %v887, 7
      %v3915 = vrot.slane %v888, 7
      %v3916 = vrot.slane %v889, 7
      %v3917 = vrot.slane %v890, 7
      %v3918 = vrot.slane %v891, 7
      %v3919 = vrot.slane %v892, 7
      %v3920 = vrot.slane %v893, 7
      %v3921 = vrot.slane %v894, 7
      %v3922 = vrot.slane %v895, 7
      %v3923 = vrot.slane %v896, 7
      %v3924 = vrot.slane %v897, 7
      %v3925 = vrot.slane %v898, 7
      %v3926 = vrot.slane %v899, 7
      %v3927 = vrot.slane %v900, 7
      %v3928 = vrot.slane %v901, 7
      %v3929 = vrot.slane %v902, 7
      %v3930 = vrot.slane %v903, 7
      %v3931 = vrot.slane %v904, 7
      %v3932 = vrot.slane %v905, 7
      %v3933 = vrot.slane %v906, 7
      %v3934 = vrot.slane %v907, 7
      %v3935 = vrot.slane %v908, 7
      %v3936 = vrot.slane %v909, 7
      %v3937 = vrot.slane %v910, 7
      %v3938 = vrot.slane %v911, 7
      %v3939 = vrot.slane %v912, 7
      %v3940 = vrot.slane %v913, 7
      %v3941 = vrot.slane %v914, 7
      %v3942 = vrot.slane %v915, 7
      %v3943 = vrot.slane %v916, 7
      %v3944 = vrot.slane %v917, 7
      %v3945 = vrot.slane %v918, 7
      %v3946 = vrot.slane %v919, 7
      %v3947 = vrot.slane %v920, 7
      %v3948 = vrot.slane %v921, 7
      %v3949 = vrot.slane %v922, 7
      %v3950 = vrot.slane %v923, 7
      %v3951 = vrot.slane %v924, 7
      %v3952 = vrot.slane %v925, 7
      %v3953 = vrot.slane %v926, 7
      %v3954 = vrot.slane %v927, 7
      %v3955 = vrot.slane %v928, 7
      %v3956 = vrot.slane %v929, 7
      %v3957 = vrot.slane %v930, 7
      %v3958 = vrot.slane %v931, 7
      %v3959 = vrot.slane %v932, 7
      %v3960 = vrot.slane %v933, 7
      %v3961 = vrot.slane %v934, 7
      %v3962 = vrot.slane %v935, 7
      %v3963 = vrot.slane %v936, 7
      %v3964 = vrot.slane %v937, 7
      %v3965 = vrot.slane %v938, 7
      %v3966 = vrot.slane %v939, 7
      %v3967 = vrot.slane %v940, 7
      %v3968 = vrot.slane %v941, 7
      %v3969 = vsel %vm1006, %v3967, %v3968
      %v3970 = vsel %vm1006, %v3966, %v3967
      %v3971 = vsel %vm1006, %v3965, %v3966
      %v3972 = vsel %vm1006, %v3964, %v3965
      %v3973 = vsel %vm1006, %v3963, %v3964
      %v3974 = vsel %vm1006, %v3962, %v3963
      %v3975 = vsel %vm1006, %v3961, %v3962
      %v3976 = vsel %vm1006, %v3960, %v3961
      %v3977 = vsel %vm1006, %v3959, %v3960
      %v3978 = vsel %vm1006, %v3958, %v3959
      %v3979 = vsel %vm1006, %v3957, %v3958
      %v3980 = vsel %vm1006, %v3956, %v3957
      %v3981 = vsel %vm1006, %v3955, %v3956
      %v3982 = vsel %vm1006, %v3954, %v3955
      %v3983 = vsel %vm1006, %v3953, %v3954
      %v3984 = vsel %vm1006, %v3952, %v3953
      %v3985 = vsel %vm1006, %v3951, %v3952
      %v3986 = vsel %vm1006, %v3950, %v3951
      %v3987 = vsel %vm1006, %v3949, %v3950
      %v3988 = vsel %vm1006, %v3948, %v3949
      %v3989 = vsel %vm1006, %v3947, %v3948
      %v3990 = vsel %vm1006, %v3946, %v3947
      %v3991 = vsel %vm1006, %v3945, %v3946
      %v3992 = vsel %vm1006, %v3944, %v3945
      %v3993 = vsel %vm1006, %v3943, %v3944
      %v3994 = vsel %vm1006, %v3942, %v3943
      %v3995 = vsel %vm1006, %v3941, %v3942
      %v3996 = vsel %vm1006, %v3940, %v3941
      %v3997 = vsel %vm1006, %v3939, %v3940
      %v3998 = vsel %vm1006, %v3938, %v3939
      %v3999 = vsel %vm1006, %v3937, %v3938
      %v4000 = vsel %vm1006, %v3936, %v3937
      %v4001 = vsel %vm1006, %v3935, %v3936
      %v4002 = vsel %vm1006, %v3934, %v3935
      %v4003 = vsel %vm1006, %v3933, %v3934
      %v4004 = vsel %vm1006, %v3932, %v3933
      %v4005 = vsel %vm1006, %v3931, %v3932
      %v4006 = vsel %vm1006, %v3930, %v3931
      %v4007 = vsel %vm1006, %v3929, %v3930
      %v4008 = vsel %vm1006, %v3928, %v3929
      %v4009 = vsel %vm1006, %v3927, %v3928
      %v4010 = vsel %vm1006, %v3926, %v3927
      %v4011 = vsel %vm1006, %v3925, %v3926
      %v4012 = vsel %vm1006, %v3924, %v3925
      %v4013 = vsel %vm1006, %v3923, %v3924
      %v4014 = vsel %vm1006, %v3922, %v3923
      %v4015 = vsel %vm1006, %v3921, %v3922
      %v4016 = vsel %vm1006, %v3920, %v3921
      %v4017 = vsel %vm1006, %v3919, %v3920
      %v4018 = vsel %vm1006, %v3918, %v3919
      %v4019 = vsel %vm1006, %v3917, %v3918
      %v4020 = vsel %vm1006, %v3916, %v3917
      %v4021 = vsel %vm1006, %v3915, %v3916
      %v4022 = vsel %vm1006, %v3914, %v3915
      %v4023 = vsel %vm1006, %v3913, %v3914
      %v4024 = vsel %vm1006, %v3912, %v3913
      %v4025 = vsel %vm1006, %v3911, %v3912
      %v4026 = vsel %vm1006, %v3910, %v3911
      %v4027 = vsel %vm1006, %v3909, %v3910
      %v4028 = vsel %vm1006, %v3908, %v3909
      %v4029 = vsel %vm1006, %v3907, %v3908
      %v4030 = vsel %vm1006, %v3906, %v3907
      %v4031 = vsel %vm1006, %v3905, %v3906
      %v4032 = vsel %vm1006, %v3968, %v3905
      %v4033 = vrot.slane %v878, 1
      %v4034 = vrot.slane %v879, 1
      %v4035 = vrot.slane %v880, 1
      %v4036 = vrot.slane %v881, 1
      %v4037 = vrot.slane %v882, 1
      %v4038 = vrot.slane %v883, 1
      %v4039 = vrot.slane %v884, 1
      %v4040 = vrot.slane %v885, 1
      %v4041 = vrot.slane %v886, 1
      %v4042 = vrot.slane %v887, 1
      %v4043 = vrot.slane %v888, 1
      %v4044 = vrot.slane %v889, 1
      %v4045 = vrot.slane %v890, 1
      %v4046 = vrot.slane %v891, 1
      %v4047 = vrot.slane %v892, 1
      %v4048 = vrot.slane %v893, 1
      %v4049 = vrot.slane %v894, 1
      %v4050 = vrot.slane %v895, 1
      %v4051 = vrot.slane %v896, 1
      %v4052 = vrot.slane %v897, 1
      %v4053 = vrot.slane %v898, 1
      %v4054 = vrot.slane %v899, 1
      %v4055 = vrot.slane %v900, 1
      %v4056 = vrot.slane %v901, 1
      %v4057 = vrot.slane %v902, 1
      %v4058 = vrot.slane %v903, 1
      %v4059 = vrot.slane %v904, 1
      %v4060 = vrot.slane %v905, 1
      %v4061 = vrot.slane %v906, 1
      %v4062 = vrot.slane %v907, 1
      %v4063 = vrot.slane %v908, 1
      %v4064 = vrot.slane %v909, 1
      %v4065 = vrot.slane %v910, 1
      %v4066 = vrot.slane %v911, 1
      %v4067 = vrot.slane %v912, 1
      %v4068 = vrot.slane %v913, 1
      %v4069 = vrot.slane %v914, 1
      %v4070 = vrot.slane %v915, 1
      %v4071 = vrot.slane %v916, 1
      %v4072 = vrot.slane %v917, 1
      %v4073 = vrot.slane %v918, 1
      %v4074 = vrot.slane %v919, 1
      %v4075 = vrot.slane %v920, 1
      %v4076 = vrot.slane %v921, 1
      %v4077 = vrot.slane %v922, 1
      %v4078 = vrot.slane %v923, 1
      %v4079 = vrot.slane %v924, 1
      %v4080 = vrot.slane %v925, 1
      %v4081 = vrot.slane %v926, 1
      %v4082 = vrot.slane %v927, 1
      %v4083 = vrot.slane %v928, 1
      %v4084 = vrot.slane %v929, 1
      %v4085 = vrot.slane %v930, 1
      %v4086 = vrot.slane %v931, 1
      %v4087 = vrot.slane %v932, 1
      %v4088 = vrot.slane %v933, 1
      %v4089 = vrot.slane %v934, 1
      %v4090 = vrot.slane %v935, 1
      %v4091 = vrot.slane %v936, 1
      %v4092 = vrot.slane %v937, 1
      %v4093 = vrot.slane %v938, 1
      %v4094 = vrot.slane %v939, 1
      %v4095 = vrot.slane %v940, 1
      %v4096 = vrot.slane %v941, 1
      %v4097 = vsel %vm1135, %v4095, %v4096
      %v4098 = vsel %vm1135, %v4094, %v4095
      %v4099 = vsel %vm1135, %v4093, %v4094
      %v4100 = vsel %vm1135, %v4092, %v4093
      %v4101 = vsel %vm1135, %v4091, %v4092
      %v4102 = vsel %vm1135, %v4090, %v4091
      %v4103 = vsel %vm1135, %v4089, %v4090
      %v4104 = vsel %vm1135, %v4088, %v4089
      %v4105 = vsel %vm1135, %v4087, %v4088
      %v4106 = vsel %vm1135, %v4086, %v4087
      %v4107 = vsel %vm1135, %v4085, %v4086
      %v4108 = vsel %vm1135, %v4084, %v4085
      %v4109 = vsel %vm1135, %v4083, %v4084
      %v4110 = vsel %vm1135, %v4082, %v4083
      %v4111 = vsel %vm1135, %v4081, %v4082
      %v4112 = vsel %vm1135, %v4080, %v4081
      %v4113 = vsel %vm1135, %v4079, %v4080
      %v4114 = vsel %vm1135, %v4078, %v4079
      %v4115 = vsel %vm1135, %v4077, %v4078
      %v4116 = vsel %vm1135, %v4076, %v4077
      %v4117 = vsel %vm1135, %v4075, %v4076
      %v4118 = vsel %vm1135, %v4074, %v4075
      %v4119 = vsel %vm1135, %v4073, %v4074
      %v4120 = vsel %vm1135, %v4072, %v4073
      %v4121 = vsel %vm1135, %v4071, %v4072
      %v4122 = vsel %vm1135, %v4070, %v4071
      %v4123 = vsel %vm1135, %v4069, %v4070
      %v4124 = vsel %vm1135, %v4068, %v4069
      %v4125 = vsel %vm1135, %v4067, %v4068
      %v4126 = vsel %vm1135, %v4066, %v4067
      %v4127 = vsel %vm1135, %v4065, %v4066
      %v4128 = vsel %vm1135, %v4064, %v4065
      %v4129 = vsel %vm1135, %v4063, %v4064
      %v4130 = vsel %vm1135, %v4062, %v4063
      %v4131 = vsel %vm1135, %v4061, %v4062
      %v4132 = vsel %vm1135, %v4060, %v4061
      %v4133 = vsel %vm1135, %v4059, %v4060
      %v4134 = vsel %vm1135, %v4058, %v4059
      %v4135 = vsel %vm1135, %v4057, %v4058
      %v4136 = vsel %vm1135, %v4056, %v4057
      %v4137 = vsel %vm1135, %v4055, %v4056
      %v4138 = vsel %vm1135, %v4054, %v4055
      %v4139 = vsel %vm1135, %v4053, %v4054
      %v4140 = vsel %vm1135, %v4052, %v4053
      %v4141 = vsel %vm1135, %v4051, %v4052
      %v4142 = vsel %vm1135, %v4050, %v4051
      %v4143 = vsel %vm1135, %v4049, %v4050
      %v4144 = vsel %vm1135, %v4048, %v4049
      %v4145 = vsel %vm1135, %v4047, %v4048
      %v4146 = vsel %vm1135, %v4046, %v4047
      %v4147 = vsel %vm1135, %v4045, %v4046
      %v4148 = vsel %vm1135, %v4044, %v4045
      %v4149 = vsel %vm1135, %v4043, %v4044
      %v4150 = vsel %vm1135, %v4042, %v4043
      %v4151 = vsel %vm1135, %v4041, %v4042
      %v4152 = vsel %vm1135, %v4040, %v4041
      %v4153 = vsel %vm1135, %v4039, %v4040
      %v4154 = vsel %vm1135, %v4038, %v4039
      %v4155 = vsel %vm1135, %v4037, %v4038
      %v4156 = vsel %vm1135, %v4036, %v4037
      %v4157 = vsel %vm1135, %v4035, %v4036
      %v4158 = vsel %vm1135, %v4034, %v4035
      %v4159 = vsel %vm1135, %v4033, %v4034
      %v4160 = vsel %vm1135, %v4096, %v4033
      %4225 = vrot.lane.b32.xlu0 %v878, 4
      %v4226 = vpop.permute.xlu0 %4225
      %4227 = vrot.lane.b32.xlu0 %v879, 4
      %v4228 = vpop.permute.xlu0 %4227
      %4229 = vrot.lane.b32.xlu0 %v880, 4
      %v4230 = vpop.permute.xlu0 %4229
      %4231 = vrot.lane.b32.xlu0 %v881, 4
      %v4232 = vpop.permute.xlu0 %4231
      %4233 = vrot.lane.b32.xlu0 %v882, 4
      %v4234 = vpop.permute.xlu0 %4233
      %4235 = vrot.lane.b32.xlu0 %v883, 4
      %v4236 = vpop.permute.xlu0 %4235
      %4237 = vrot.lane.b32.xlu0 %v884, 4
      %v4238 = vpop.permute.xlu0 %4237
      %4239 = vrot.lane.b32.xlu0 %v885, 4
      %v4240 = vpop.permute.xlu0 %4239
      %4241 = vrot.lane.b32.xlu0 %v886, 4
      %v4242 = vpop.permute.xlu0 %4241
      %4243 = vrot.lane.b32.xlu0 %v887, 4
      %v4244 = vpop.permute.xlu0 %4243
      %4245 = vrot.lane.b32.xlu0 %v888, 4
      %v4246 = vpop.permute.xlu0 %4245
      %4247 = vrot.lane.b32.xlu0 %v889, 4
      %v4248 = vpop.permute.xlu0 %4247
      %4249 = vrot.lane.b32.xlu0 %v890, 4
      %v4250 = vpop.permute.xlu0 %4249
      %4251 = vrot.lane.b32.xlu0 %v891, 4
      %v4252 = vpop.permute.xlu0 %4251
      %4253 = vrot.lane.b32.xlu0 %v892, 4
      %v4254 = vpop.permute.xlu0 %4253
      %4255 = vrot.lane.b32.xlu0 %v893, 4
      %v4256 = vpop.permute.xlu0 %4255
      %4257 = vrot.lane.b32.xlu0 %v894, 4
      %v4258 = vpop.permute.xlu0 %4257
      %4259 = vrot.lane.b32.xlu0 %v895, 4
      %v4260 = vpop.permute.xlu0 %4259
      %4261 = vrot.lane.b32.xlu0 %v896, 4
      %v4262 = vpop.permute.xlu0 %4261
      %4263 = vrot.lane.b32.xlu0 %v897, 4
      %v4264 = vpop.permute.xlu0 %4263
      %4265 = vrot.lane.b32.xlu0 %v898, 4
      %v4266 = vpop.permute.xlu0 %4265
      %4267 = vrot.lane.b32.xlu0 %v899, 4
      %v4268 = vpop.permute.xlu0 %4267
      %4269 = vrot.lane.b32.xlu0 %v900, 4
      %v4270 = vpop.permute.xlu0 %4269
      %4271 = vrot.lane.b32.xlu0 %v901, 4
      %v4272 = vpop.permute.xlu0 %4271
      %4273 = vrot.lane.b32.xlu0 %v902, 4
      %v4274 = vpop.permute.xlu0 %4273
      %4275 = vrot.lane.b32.xlu0 %v903, 4
      %v4276 = vpop.permute.xlu0 %4275
      %4277 = vrot.lane.b32.xlu0 %v904, 4
      %v4278 = vpop.permute.xlu0 %4277
      %4279 = vrot.lane.b32.xlu0 %v905, 4
      %v4280 = vpop.permute.xlu0 %4279
      %4281 = vrot.lane.b32.xlu0 %v906, 4
      %v4282 = vpop.permute.xlu0 %4281
      %4283 = vrot.lane.b32.xlu0 %v907, 4
      %v4284 = vpop.permute.xlu0 %4283
      %4285 = vrot.lane.b32.xlu0 %v908, 4
      %v4286 = vpop.permute.xlu0 %4285
      %4287 = vrot.lane.b32.xlu0 %v909, 4
      %v4288 = vpop.permute.xlu0 %4287
      %4289 = vrot.lane.b32.xlu0 %v910, 4
      %v4290 = vpop.permute.xlu0 %4289
      %4291 = vrot.lane.b32.xlu0 %v911, 4
      %v4292 = vpop.permute.xlu0 %4291
      %4293 = vrot.lane.b32.xlu0 %v912, 4
      %v4294 = vpop.permute.xlu0 %4293
      %4295 = vrot.lane.b32.xlu0 %v913, 4
      %v4296 = vpop.permute.xlu0 %4295
      %4297 = vrot.lane.b32.xlu0 %v914, 4
      %v4298 = vpop.permute.xlu0 %4297
      %4299 = vrot.lane.b32.xlu0 %v915, 4
      %v4300 = vpop.permute.xlu0 %4299
      %4301 = vrot.lane.b32.xlu0 %v916, 4
      %v4302 = vpop.permute.xlu0 %4301
      %4303 = vrot.lane.b32.xlu0 %v917, 4
      %v4304 = vpop.permute.xlu0 %4303
      %4305 = vrot.lane.b32.xlu0 %v918, 4
      %v4306 = vpop.permute.xlu0 %4305
      %4307 = vrot.lane.b32.xlu0 %v919, 4
      %v4308 = vpop.permute.xlu0 %4307
      %4309 = vrot.lane.b32.xlu0 %v920, 4
      %v4310 = vpop.permute.xlu0 %4309
      %4311 = vrot.lane.b32.xlu0 %v921, 4
      %v4312 = vpop.permute.xlu0 %4311
      %4313 = vrot.lane.b32.xlu0 %v922, 4
      %v4314 = vpop.permute.xlu0 %4313
      %4315 = vrot.lane.b32.xlu0 %v923, 4
      %v4316 = vpop.permute.xlu0 %4315
      %4317 = vrot.lane.b32.xlu0 %v924, 4
      %v4318 = vpop.permute.xlu0 %4317
      %4319 = vrot.lane.b32.xlu0 %v925, 4
      %v4320 = vpop.permute.xlu0 %4319
      %4321 = vrot.lane.b32.xlu0 %v926, 4
      %v4322 = vpop.permute.xlu0 %4321
      %4323 = vrot.lane.b32.xlu0 %v927, 4
      %v4324 = vpop.permute.xlu0 %4323
      %4325 = vrot.lane.b32.xlu0 %v928, 4
      %v4326 = vpop.permute.xlu0 %4325
      %4327 = vrot.lane.b32.xlu0 %v929, 4
      %v4328 = vpop.permute.xlu0 %4327
      %4329 = vrot.lane.b32.xlu0 %v930, 4
      %v4330 = vpop.permute.xlu0 %4329
      %4331 = vrot.lane.b32.xlu0 %v931, 4
      %v4332 = vpop.permute.xlu0 %4331
      %4333 = vrot.lane.b32.xlu0 %v932, 4
      %v4334 = vpop.permute.xlu0 %4333
      %4335 = vrot.lane.b32.xlu0 %v933, 4
      %v4336 = vpop.permute.xlu0 %4335
      %4337 = vrot.lane.b32.xlu0 %v934, 4
      %v4338 = vpop.permute.xlu0 %4337
      %4339 = vrot.lane.b32.xlu0 %v935, 4
      %v4340 = vpop.permute.xlu0 %4339
      %4341 = vrot.lane.b32.xlu0 %v936, 4
      %v4342 = vpop.permute.xlu0 %4341
      %4343 = vrot.lane.b32.xlu0 %v937, 4
      %v4344 = vpop.permute.xlu0 %4343
      %4345 = vrot.lane.b32.xlu0 %v938, 4
      %v4346 = vpop.permute.xlu0 %4345
      %4347 = vrot.lane.b32.xlu0 %v939, 4
      %v4348 = vpop.permute.xlu0 %4347
      %4349 = vrot.lane.b32.xlu0 %v940, 4
      %v4350 = vpop.permute.xlu0 %4349
      %4351 = vrot.lane.b32.xlu0 %v941, 4
      %v4352 = vpop.permute.xlu0 %4351
      %4481 = vrot.lane.b32.xlu0 %v4159, 8
      %v4482 = vpop.permute.xlu0 %4481
      %4483 = vrot.lane.b32.xlu0 %v4158, 8
      %v4484 = vpop.permute.xlu0 %4483
      %4485 = vrot.lane.b32.xlu0 %v4157, 8
      %v4486 = vpop.permute.xlu0 %4485
      %4487 = vrot.lane.b32.xlu0 %v4156, 8
      %v4488 = vpop.permute.xlu0 %4487
      %4489 = vrot.lane.b32.xlu0 %v4155, 8
      %v4490 = vpop.permute.xlu0 %4489
      %4491 = vrot.lane.b32.xlu0 %v4154, 8
      %v4492 = vpop.permute.xlu0 %4491
      %4493 = vrot.lane.b32.xlu0 %v4153, 8
      %v4494 = vpop.permute.xlu0 %4493
      %4495 = vrot.lane.b32.xlu0 %v4152, 8
      %v4496 = vpop.permute.xlu0 %4495
      %4497 = vrot.lane.b32.xlu0 %v4151, 8
      %v4498 = vpop.permute.xlu0 %4497
      %4499 = vrot.lane.b32.xlu0 %v4150, 8
      %v4500 = vpop.permute.xlu0 %4499
      %4501 = vrot.lane.b32.xlu0 %v4149, 8
      %v4502 = vpop.permute.xlu0 %4501
      %4503 = vrot.lane.b32.xlu0 %v4148, 8
      %v4504 = vpop.permute.xlu0 %4503
      %4505 = vrot.lane.b32.xlu0 %v4147, 8
      %v4506 = vpop.permute.xlu0 %4505
      %4507 = vrot.lane.b32.xlu0 %v4146, 8
      %v4508 = vpop.permute.xlu0 %4507
      %4509 = vrot.lane.b32.xlu0 %v4145, 8
      %v4510 = vpop.permute.xlu0 %4509
      %4511 = vrot.lane.b32.xlu0 %v4144, 8
      %v4512 = vpop.permute.xlu0 %4511
      %4513 = vrot.lane.b32.xlu0 %v4143, 8
      %v4514 = vpop.permute.xlu0 %4513
      %4515 = vrot.lane.b32.xlu0 %v4142, 8
      %v4516 = vpop.permute.xlu0 %4515
      %4517 = vrot.lane.b32.xlu0 %v4141, 8
      %v4518 = vpop.permute.xlu0 %4517
      %4519 = vrot.lane.b32.xlu0 %v4140, 8
      %v4520 = vpop.permute.xlu0 %4519
      %4521 = vrot.lane.b32.xlu0 %v4139, 8
      %v4522 = vpop.permute.xlu0 %4521
      %4523 = vrot.lane.b32.xlu0 %v4138, 8
      %v4524 = vpop.permute.xlu0 %4523
      %4525 = vrot.lane.b32.xlu0 %v4137, 8
      %v4526 = vpop.permute.xlu0 %4525
      %4527 = vrot.lane.b32.xlu0 %v4136, 8
      %v4528 = vpop.permute.xlu0 %4527
      %4529 = vrot.lane.b32.xlu0 %v4135, 8
      %v4530 = vpop.permute.xlu0 %4529
      %4531 = vrot.lane.b32.xlu0 %v4134, 8
      %v4532 = vpop.permute.xlu0 %4531
      %4533 = vrot.lane.b32.xlu0 %v4133, 8
      %v4534 = vpop.permute.xlu0 %4533
      %4535 = vrot.lane.b32.xlu0 %v4132, 8
      %v4536 = vpop.permute.xlu0 %4535
      %4537 = vrot.lane.b32.xlu0 %v4131, 8
      %v4538 = vpop.permute.xlu0 %4537
      %4539 = vrot.lane.b32.xlu0 %v4130, 8
      %v4540 = vpop.permute.xlu0 %4539
      %4541 = vrot.lane.b32.xlu0 %v4129, 8
      %v4542 = vpop.permute.xlu0 %4541
      %4543 = vrot.lane.b32.xlu0 %v4128, 8
      %v4544 = vpop.permute.xlu0 %4543
      %4545 = vrot.lane.b32.xlu0 %v4127, 8
      %v4546 = vpop.permute.xlu0 %4545
      %4547 = vrot.lane.b32.xlu0 %v4126, 8
      %v4548 = vpop.permute.xlu0 %4547
      %4549 = vrot.lane.b32.xlu0 %v4125, 8
      %v4550 = vpop.permute.xlu0 %4549
      %4551 = vrot.lane.b32.xlu0 %v4124, 8
      %v4552 = vpop.permute.xlu0 %4551
      %4553 = vrot.lane.b32.xlu0 %v4123, 8
      %v4554 = vpop.permute.xlu0 %4553
      %4555 = vrot.lane.b32.xlu0 %v4122, 8
      %v4556 = vpop.permute.xlu0 %4555
      %4557 = vrot.lane.b32.xlu0 %v4121, 8
      %v4558 = vpop.permute.xlu0 %4557
      %4559 = vrot.lane.b32.xlu0 %v4120, 8
      %v4560 = vpop.permute.xlu0 %4559
      %4561 = vrot.lane.b32.xlu0 %v4119, 8
      %v4562 = vpop.permute.xlu0 %4561
      %4563 = vrot.lane.b32.xlu0 %v4118, 8
      %v4564 = vpop.permute.xlu0 %4563
      %4565 = vrot.lane.b32.xlu0 %v4117, 8
      %v4566 = vpop.permute.xlu0 %4565
      %4567 = vrot.lane.b32.xlu0 %v4116, 8
      %v4568 = vpop.permute.xlu0 %4567
      %4569 = vrot.lane.b32.xlu0 %v4115, 8
      %v4570 = vpop.permute.xlu0 %4569
      %4571 = vrot.lane.b32.xlu0 %v4114, 8
      %v4572 = vpop.permute.xlu0 %4571
      %4573 = vrot.lane.b32.xlu0 %v4113, 8
      %v4574 = vpop.permute.xlu0 %4573
      %4575 = vrot.lane.b32.xlu0 %v4112, 8
      %v4576 = vpop.permute.xlu0 %4575
      %4577 = vrot.lane.b32.xlu0 %v4111, 8
      %v4578 = vpop.permute.xlu0 %4577
      %4579 = vrot.lane.b32.xlu0 %v4110, 8
      %v4580 = vpop.permute.xlu0 %4579
      %4581 = vrot.lane.b32.xlu0 %v4109, 8
      %v4582 = vpop.permute.xlu0 %4581
      %4583 = vrot.lane.b32.xlu0 %v4108, 8
      %v4584 = vpop.permute.xlu0 %4583
      %4585 = vrot.lane.b32.xlu0 %v4107, 8
      %v4586 = vpop.permute.xlu0 %4585
      %4587 = vrot.lane.b32.xlu0 %v4106, 8
      %v4588 = vpop.permute.xlu0 %4587
      %4589 = vrot.lane.b32.xlu0 %v4105, 8
      %v4590 = vpop.permute.xlu0 %4589
      %4591 = vrot.lane.b32.xlu0 %v4104, 8
      %v4592 = vpop.permute.xlu0 %4591
      %4593 = vrot.lane.b32.xlu0 %v4103, 8
      %v4594 = vpop.permute.xlu0 %4593
      %4595 = vrot.lane.b32.xlu0 %v4102, 8
      %v4596 = vpop.permute.xlu0 %4595
      %4597 = vrot.lane.b32.xlu0 %v4101, 8
      %v4598 = vpop.permute.xlu0 %4597
      %4599 = vrot.lane.b32.xlu0 %v4100, 8
      %v4600 = vpop.permute.xlu0 %4599
      %4601 = vrot.lane.b32.xlu0 %v4099, 8
      %v4602 = vpop.permute.xlu0 %4601
      %4603 = vrot.lane.b32.xlu0 %v4098, 8
      %v4604 = vpop.permute.xlu0 %4603
      %4605 = vrot.lane.b32.xlu0 %v4097, 8
      %v4606 = vpop.permute.xlu0 %4605
      %4607 = vrot.lane.b32.xlu0 %v4160, 8
      %v4608 = vpop.permute.xlu0 %4607
      %v4673 = vsel %vm1712, %v4032, %v4226
      %v4674 = vsel %vm1712, %v4031, %v4228
      %v4675 = vsel %vm1712, %v4030, %v4230
      %v4676 = vsel %vm1712, %v4029, %v4232
      %v4677 = vsel %vm1712, %v4028, %v4234
      %v4678 = vsel %vm1712, %v4027, %v4236
      %v4679 = vsel %vm1712, %v4026, %v4238
      %v4680 = vsel %vm1712, %v4025, %v4240
      %v4681 = vsel %vm1712, %v4024, %v4242
      %v4682 = vsel %vm1712, %v4023, %v4244
      %v4683 = vsel %vm1712, %v4022, %v4246
      %v4684 = vsel %vm1712, %v4021, %v4248
      %v4685 = vsel %vm1712, %v4020, %v4250
      %v4686 = vsel %vm1712, %v4019, %v4252
      %v4687 = vsel %vm1712, %v4018, %v4254
      %v4688 = vsel %vm1712, %v4017, %v4256
      %v4689 = vsel %vm1712, %v4016, %v4258
      %v4690 = vsel %vm1712, %v4015, %v4260
      %v4691 = vsel %vm1712, %v4014, %v4262
      %v4692 = vsel %vm1712, %v4013, %v4264
      %v4693 = vsel %vm1712, %v4012, %v4266
      %v4694 = vsel %vm1712, %v4011, %v4268
      %v4695 = vsel %vm1712, %v4010, %v4270
      %v4696 = vsel %vm1712, %v4009, %v4272
      %v4697 = vsel %vm1712, %v4008, %v4274
      %v4698 = vsel %vm1712, %v4007, %v4276
      %v4699 = vsel %vm1712, %v4006, %v4278
      %v4700 = vsel %vm1712, %v4005, %v4280
      %v4701 = vsel %vm1712, %v4004, %v4282
      %v4702 = vsel %vm1712, %v4003, %v4284
      %v4703 = vsel %vm1712, %v4002, %v4286
      %v4704 = vsel %vm1712, %v4001, %v4288
      %v4705 = vsel %vm1712, %v4000, %v4290
      %v4706 = vsel %vm1712, %v3999, %v4292
      %v4707 = vsel %vm1712, %v3998, %v4294
      %v4708 = vsel %vm1712, %v3997, %v4296
      %v4709 = vsel %vm1712, %v3996, %v4298
      %v4710 = vsel %vm1712, %v3995, %v4300
      %v4711 = vsel %vm1712, %v3994, %v4302
      %v4712 = vsel %vm1712, %v3993, %v4304
      %v4713 = vsel %vm1712, %v3992, %v4306
      %v4714 = vsel %vm1712, %v3991, %v4308
      %v4715 = vsel %vm1712, %v3990, %v4310
      %v4716 = vsel %vm1712, %v3989, %v4312
      %v4717 = vsel %vm1712, %v3988, %v4314
      %v4718 = vsel %vm1712, %v3987, %v4316
      %v4719 = vsel %vm1712, %v3986, %v4318
      %v4720 = vsel %vm1712, %v3985, %v4320
      %v4721 = vsel %vm1712, %v3984, %v4322
      %v4722 = vsel %vm1712, %v3983, %v4324
      %v4723 = vsel %vm1712, %v3982, %v4326
      %v4724 = vsel %vm1712, %v3981, %v4328
      %v4725 = vsel %vm1712, %v3980, %v4330
      %v4726 = vsel %vm1712, %v3979, %v4332
      %v4727 = vsel %vm1712, %v3978, %v4334
      %v4728 = vsel %vm1712, %v3977, %v4336
      %v4729 = vsel %vm1712, %v3976, %v4338
      %v4730 = vsel %vm1712, %v3975, %v4340
      %v4731 = vsel %vm1712, %v3974, %v4342
      %v4732 = vsel %vm1712, %v3973, %v4344
      %v4733 = vsel %vm1712, %v3972, %v4346
      %v4734 = vsel %vm1712, %v3971, %v4348
      %v4735 = vsel %vm1712, %v3970, %v4350
      %v4736 = vsel %vm1712, %v3969, %v4352
      %v4737 = vsel %vm1777, %v4673, %v4482
      %v4738 = vsel %vm1777, %v4674, %v4484
      %v4739 = vsel %vm1777, %v4675, %v4486
      %v4740 = vsel %vm1777, %v4676, %v4488
      %v4741 = vsel %vm1777, %v4677, %v4490
      %v4742 = vsel %vm1777, %v4678, %v4492
      %v4743 = vsel %vm1777, %v4679, %v4494
      %v4744 = vsel %vm1777, %v4680, %v4496
      %v4745 = vsel %vm1777, %v4681, %v4498
      %v4746 = vsel %vm1777, %v4682, %v4500
      %v4747 = vsel %vm1777, %v4683, %v4502
      %v4748 = vsel %vm1777, %v4684, %v4504
      %v4749 = vsel %vm1777, %v4685, %v4506
      %v4750 = vsel %vm1777, %v4686, %v4508
      %v4751 = vsel %vm1777, %v4687, %v4510
      %v4752 = vsel %vm1777, %v4688, %v4512
      %v4753 = vsel %vm1777, %v4689, %v4514
      %v4754 = vsel %vm1777, %v4690, %v4516
      %v4755 = vsel %vm1777, %v4691, %v4518
      %v4756 = vsel %vm1777, %v4692, %v4520
      %v4757 = vsel %vm1777, %v4693, %v4522
      %v4758 = vsel %vm1777, %v4694, %v4524
      %v4759 = vsel %vm1777, %v4695, %v4526
      %v4760 = vsel %vm1777, %v4696, %v4528
      %v4761 = vsel %vm1777, %v4697, %v4530
      %v4762 = vsel %vm1777, %v4698, %v4532
      %v4763 = vsel %vm1777, %v4699, %v4534
      %v4764 = vsel %vm1777, %v4700, %v4536
      %v4765 = vsel %vm1777, %v4701, %v4538
      %v4766 = vsel %vm1777, %v4702, %v4540
      %v4767 = vsel %vm1777, %v4703, %v4542
      %v4768 = vsel %vm1777, %v4704, %v4544
      %v4769 = vsel %vm1777, %v4705, %v4546
      %v4770 = vsel %vm1777, %v4706, %v4548
      %v4771 = vsel %vm1777, %v4707, %v4550
      %v4772 = vsel %vm1777, %v4708, %v4552
      %v4773 = vsel %vm1777, %v4709, %v4554
      %v4774 = vsel %vm1777, %v4710, %v4556
      %v4775 = vsel %vm1777, %v4711, %v4558
      %v4776 = vsel %vm1777, %v4712, %v4560
      %v4777 = vsel %vm1777, %v4713, %v4562
      %v4778 = vsel %vm1777, %v4714, %v4564
      %v4779 = vsel %vm1777, %v4715, %v4566
      %v4780 = vsel %vm1777, %v4716, %v4568
      %v4781 = vsel %vm1777, %v4717, %v4570
      %v4782 = vsel %vm1777, %v4718, %v4572
      %v4783 = vsel %vm1777, %v4719, %v4574
      %v4784 = vsel %vm1777, %v4720, %v4576
      %v4785 = vsel %vm1777, %v4721, %v4578
      %v4786 = vsel %vm1777, %v4722, %v4580
      %v4787 = vsel %vm1777, %v4723, %v4582
      %v4788 = vsel %vm1777, %v4724, %v4584
      %v4789 = vsel %vm1777, %v4725, %v4586
      %v4790 = vsel %vm1777, %v4726, %v4588
      %v4791 = vsel %vm1777, %v4727, %v4590
      %v4792 = vsel %vm1777, %v4728, %v4592
      %v4793 = vsel %vm1777, %v4729, %v4594
      %v4794 = vsel %vm1777, %v4730, %v4596
      %v4795 = vsel %vm1777, %v4731, %v4598
      %v4796 = vsel %vm1777, %v4732, %v4600
      %v4797 = vsel %vm1777, %v4733, %v4602
      %v4798 = vsel %vm1777, %v4734, %v4604
      %v4799 = vsel %vm1777, %v4735, %v4606
      %v4800 = vsel %vm1777, %v4736, %v4608
      %s4801 = scalar_lea.vmem %s1, 32
      %v4802 = vld [vmem:[%s4801] sm:$0xff]
      %v4803 = vld [vmem:[%s4801 + $0x8] sm:$0xf]
      %v4805 = vsel %vm2743, %v4737, 0
      %v4808 = vsel %vm2743, %v4738, 0
      %v4811 = vsel %vm2743, %v4739, 0
      %v4814 = vsel %vm2743, %v4740, 0
      %v4817 = vsel %vm2743, %v4741, 0
      %v4820 = vsel %vm2743, %v4742, 0
      %v4823 = vsel %vm2743, %v4743, 0
      %v4826 = vsel %vm2743, %v4744, 0
      %v4829 = vsel %vm2743, %v4745, 0
      %v4832 = vsel %vm2743, %v4746, 0
      %v4835 = vsel %vm2743, %v4747, 0
      %v4838 = vsel %vm2743, %v4748, 0
      %v4841 = vsel %vm2743, %v4749, 0
      %v4844 = vsel %vm2743, %v4750, 0
      %v4847 = vsel %vm2743, %v4751, 0
      %v4850 = vsel %vm2743, %v4752, 0
      %v4853 = vsel %vm2743, %v4753, 0
      %v4856 = vsel %vm2743, %v4754, 0
      %v4859 = vsel %vm2743, %v4755, 0
      %v4862 = vsel %vm2743, %v4756, 0
      %v4865 = vsel %vm2743, %v4757, 0
      %v4868 = vsel %vm2743, %v4758, 0
      %v4871 = vsel %vm2743, %v4759, 0
      %v4874 = vsel %vm2743, %v4760, 0
      %v4877 = vsel %vm2743, %v4761, 0
      %v4880 = vsel %vm2743, %v4762, 0
      %v4883 = vsel %vm2743, %v4763, 0
      %v4886 = vsel %vm2743, %v4764, 0
      %v4889 = vsel %vm2743, %v4765, 0
      %v4892 = vsel %vm2743, %v4766, 0
      %v4895 = vsel %vm2743, %v4767, 0
      %v4898 = vsel %vm2743, %v4768, 0
      %v4901 = vsel %vm2743, %v4769, 0
      %v4904 = vsel %vm2743, %v4770, 0
      %v4907 = vsel %vm2743, %v4771, 0
      %v4910 = vsel %vm2743, %v4772, 0
      %v4913 = vsel %vm2743, %v4773, 0
      %v4916 = vsel %vm2743, %v4774, 0
      %v4919 = vsel %vm2743, %v4775, 0
      %v4922 = vsel %vm2743, %v4776, 0
      %v4925 = vsel %vm2743, %v4777, 0
      %v4928 = vsel %vm2743, %v4778, 0
      %v4931 = vsel %vm2743, %v4779, 0
      %v4934 = vsel %vm2743, %v4780, 0
      %v4937 = vsel %vm2743, %v4781, 0
      %v4940 = vsel %vm2743, %v4782, 0
      %v4943 = vsel %vm2743, %v4783, 0
      %v4946 = vsel %vm2743, %v4784, 0
      %v4949 = vsel %vm2743, %v4785, 0
      %v4952 = vsel %vm2743, %v4786, 0
      %v4955 = vsel %vm2743, %v4787, 0
      %v4958 = vsel %vm2743, %v4788, 0
      %v4961 = vsel %vm2743, %v4789, 0
      %v4964 = vsel %vm2743, %v4790, 0
      %v4967 = vsel %vm2743, %v4791, 0
      %v4970 = vsel %vm2743, %v4792, 0
      %v4973 = vsel %vm2743, %v4793, 0
      %v4976 = vsel %vm2743, %v4794, 0
      %v4979 = vsel %vm2743, %v4795, 0
      %v4982 = vsel %vm2743, %v4796, 0
      %v4985 = vsel %vm2743, %v4797, 0
      %v4988 = vsel %vm2743, %v4798, 0
      %v4991 = vsel %vm2743, %v4799, 0
      %v4994 = vsel %vm2743, %v4800, 0
      %v4997 = vsel %vm2936, %v4803, 0
      %4999 = vmatprep.subr.mxu0 0.0
      %5000 = vmatpush1.msra.mxu0 %v4802
      %5001 = vmatprep.subr.mxu0 0.0
      %5002 = vmatpush1.msra.mxu0 %v4997
      %5003 = vmatprep.subr.mxu0 0.0
      %5004 = vmatpush1.msra.mxu0 0.0
      %5005 = vmatprep.subr.mxu0 0.0
      %5006 = vmatpush1.msra.mxu0 0.0
      %5007 = vmatprep.subr.mxu0 0.0
      %5008 = vmatpush1.msra.mxu0 0.0
      %5009 = vmatprep.subr.mxu0 0.0
      %5010 = vmatpush1.msra.mxu0 0.0
      %5011 = vmatprep.subr.mxu0 0.0
      %5012 = vmatpush1.msra.mxu0 0.0
      %5013 = vmatprep.subr.mxu0 0.0
      %5014 = vmatpush1.msra.mxu0 0.0
      %5015 = vmatprep.subr.mxu0 0.0
      %5016 = vmatpush1.msra.mxu0 0.0
      %5017 = vmatprep.subr.mxu0 0.0
      %5018 = vmatpush1.msra.mxu0 0.0
      %5019 = vmatprep.subr.mxu0 0.0
      %5020 = vmatpush1.msra.mxu0 0.0
      %5021 = vmatprep.subr.mxu0 0.0
      %5022 = vmatpush1.msra.mxu0 0.0
      %5023 = vmatprep.subr.mxu0 0.0
      %5024 = vmatpush1.msra.mxu0 0.0
      %5025 = vmatprep.subr.mxu0 0.0
      %5026 = vmatpush1.msra.mxu0 0.0
      %5027 = vmatprep.subr.mxu0 0.0
      %5028 = vmatpush1.msra.mxu0 0.0
      %5029 = vmatprep.subr.mxu0 0.0
      %5030 = vmatpush1.msra.mxu0 0.0
      %5031 = vmatprep.subr.mxu0 0.0
      %5032 = vmatpush1.msra.mxu0 0.0
      %5033 = vmatprep.subr.mxu0 0.0
      %5034 = vmatpush1.msra.mxu0 0.0
      %5035 = vmatprep.subr.mxu0 0.0
      %5036 = vmatpush1.msra.mxu0 0.0
      %5037 = vmatprep.subr.mxu0 0.0
      %5038 = vmatpush1.msra.mxu0 0.0
      %5039 = vmatprep.subr.mxu0 0.0
      %5040 = vmatpush1.msra.mxu0 0.0
      %5041 = vmatprep.subr.mxu0 0.0
      %5042 = vmatpush1.msra.mxu0 0.0
      %5043 = vmatprep.subr.mxu0 0.0
      %5044 = vmatpush1.msra.mxu0 0.0
      %5045 = vmatprep.subr.mxu0 0.0
      %5046 = vmatpush1.msra.mxu0 0.0
      %5047 = vmatprep.subr.mxu0 0.0
      %5048 = vmatpush1.msra.mxu0 0.0
      %5049 = vmatprep.subr.mxu0 0.0
      %5050 = vmatpush1.msra.mxu0 0.0
      %5051 = vmatprep.subr.mxu0 0.0
      %5052 = vmatpush1.msra.mxu0 0.0
      %5053 = vmatprep.subr.mxu0 0.0
      %5054 = vmatpush1.msra.mxu0 0.0
      %5055 = vmatprep.subr.mxu0 0.0
      %5056 = vmatpush1.msra.mxu0 0.0
      %5057 = vmatprep.subr.mxu0 0.0
      %5058 = vmatpush1.msra.mxu0 0.0
      %5059 = vmatprep.subr.mxu0 0.0
      %5060 = vmatpush1.msra.mxu0 0.0
      %5061 = vmatprep.subr.mxu0 0.0
      %5062 = vmatpush1.msra.mxu0 0.0
      %5063 = vmatprep.mubr.f32.mxu0 0.0
      %5064 = vmatmul.mubr.f32.gmra.mrb[0].mxu0 %v4805
      %v5065 = vpop.f32.mrb[0].mxu0
      %v5066 = vadd.f32 0.0, %v5065
      %v5067 = vpop.f32.mrb[0].mxu0
      %5068 = vmatprep.mubr.f32.mxu0 0.0
      %5069 = vmatmul.mubr.f32.gmra.mrb[0].mxu0 %v4808
      %v5070 = vpop.f32.mrb[0].mxu0
      %v5071 = vadd.f32 0.0, %v5070
      %v5072 = vpop.f32.mrb[0].mxu0
      %5073 = vmatprep.mubr.f32.mxu0 0.0
      %5074 = vmatmul.mubr.f32.gmra.mrb[0].mxu0 %v4811
      %v5075 = vpop.f32.mrb[0].mxu0
      %v5076 = vadd.f32 0.0, %v5075
      %v5077 = vpop.f32.mrb[0].mxu0
      %5078 = vmatprep.mubr.f32.mxu0 0.0
      %5079 = vmatmul.mubr.f32.gmra.mrb[0].mxu0 %v4814
      %v5080 = vpop.f32.mrb[0].mxu0
      %v5081 = vadd.f32 0.0, %v5080
      %v5082 = vpop.f32.mrb[0].mxu0
      %5083 = vmatprep.mubr.f32.mxu0 0.0
      %5084 = vmatmul.mubr.f32.gmra.mrb[0].mxu0 %v4817
      %v5085 = vpop.f32.mrb[0].mxu0
      %v5086 = vadd.f32 0.0, %v5085
      %v5087 = vpop.f32.mrb[0].mxu0
      %5088 = vmatprep.mubr.f32.mxu0 0.0
      %5089 = vmatmul.mubr.f32.gmra.mrb[0].mxu0 %v4820
      %v5090 = vpop.f32.mrb[0].mxu0
      %v5091 = vadd.f32 0.0, %v5090
      %v5092 = vpop.f32.mrb[0].mxu0
      %5093 = vmatprep.mubr.f32.mxu0 0.0
      %5094 = vmatmul.mubr.f32.gmra.mrb[0].mxu0 %v4823
      %v5095 = vpop.f32.mrb[0].mxu0
      %v5096 = vadd.f32 0.0, %v5095
      %v5097 = vpop.f32.mrb[0].mxu0
      %5098 = vmatprep.mubr.f32.mxu0 0.0
      %5099 = vmatmul.mubr.f32.gmra.mrb[0].mxu0 %v4826
      %v5100 = vpop.f32.mrb[0].mxu0
      %v5101 = vadd.f32 0.0, %v5100
      %v5102 = vpop.f32.mrb[0].mxu0
      %5103 = vmatprep.mubr.f32.mxu0 0.0
      %5104 = vmatmul.mubr.f32.gmra.mrb[0].mxu0 %v4829
      %v5105 = vpop.f32.mrb[0].mxu0
      %v5106 = vadd.f32 0.0, %v5105
      %v5107 = vpop.f32.mrb[0].mxu0
      %5108 = vmatprep.mubr.f32.mxu0 0.0
      %5109 = vmatmul.mubr.f32.gmra.mrb[0].mxu0 %v4832
      %v5110 = vpop.f32.mrb[0].mxu0
      %v5111 = vadd.f32 0.0, %v5110
      %v5112 = vpop.f32.mrb[0].mxu0
      %5113 = vmatprep.mubr.f32.mxu0 0.0
      %5114 = vmatmul.mubr.f32.gmra.mrb[0].mxu0 %v4835
      %v5115 = vpop.f32.mrb[0].mxu0
      %v5116 = vadd.f32 0.0, %v5115
      %v5117 = vpop.f32.mrb[0].mxu0
      %5118 = vmatprep.mubr.f32.mxu0 0.0
      %5119 = vmatmul.mubr.f32.gmra.mrb[0].mxu0 %v4838
      %v5120 = vpop.f32.mrb[0].mxu0
      %v5121 = vadd.f32 0.0, %v5120
      %v5122 = vpop.f32.mrb[0].mxu0
      %5123 = vmatprep.mubr.f32.mxu0 0.0
      %5124 = vmatmul.mubr.f32.gmra.mrb[0].mxu0 %v4841
      %v5125 = vpop.f32.mrb[0].mxu0
      %v5126 = vadd.f32 0.0, %v5125
      %v5127 = vpop.f32.mrb[0].mxu0
      %5128 = vmatprep.mubr.f32.mxu0 0.0
      %5129 = vmatmul.mubr.f32.gmra.mrb[0].mxu0 %v4844
      %v5130 = vpop.f32.mrb[0].mxu0
      %v5131 = vadd.f32 0.0, %v5130
      %v5132 = vpop.f32.mrb[0].mxu0
      %5133 = vmatprep.mubr.f32.mxu0 0.0
      %5134 = vmatmul.mubr.f32.gmra.mrb[0].mxu0 %v4847
      %v5135 = vpop.f32.mrb[0].mxu0
      %v5136 = vadd.f32 0.0, %v5135
      %v5137 = vpop.f32.mrb[0].mxu0
      %5138 = vmatprep.mubr.f32.mxu0 0.0
      %5139 = vmatmul.mubr.f32.gmra.mrb[0].mxu0 %v4850
      %v5140 = vpop.f32.mrb[0].mxu0
      %v5141 = vadd.f32 0.0, %v5140
      %v5142 = vpop.f32.mrb[0].mxu0
      %5143 = vmatprep.mubr.f32.mxu0 0.0
      %5144 = vmatmul.mubr.f32.gmra.mrb[0].mxu0 %v4853
      %v5145 = vpop.f32.mrb[0].mxu0
      %v5146 = vadd.f32 0.0, %v5145
      %v5147 = vpop.f32.mrb[0].mxu0
      %5148 = vmatprep.mubr.f32.mxu0 0.0
      %5149 = vmatmul.mubr.f32.gmra.mrb[0].mxu0 %v4856
      %v5150 = vpop.f32.mrb[0].mxu0
      %v5151 = vadd.f32 0.0, %v5150
      %v5152 = vpop.f32.mrb[0].mxu0
      %5153 = vmatprep.mubr.f32.mxu0 0.0
      %5154 = vmatmul.mubr.f32.gmra.mrb[0].mxu0 %v4859
      %v5155 = vpop.f32.mrb[0].mxu0
      %v5156 = vadd.f32 0.0, %v5155
      %v5157 = vpop.f32.mrb[0].mxu0
      %5158 = vmatprep.mubr.f32.mxu0 0.0
      %5159 = vmatmul.mubr.f32.gmra.mrb[0].mxu0 %v4862
      %v5160 = vpop.f32.mrb[0].mxu0
      %v5161 = vadd.f32 0.0, %v5160
      %v5162 = vpop.f32.mrb[0].mxu0
      %5163 = vmatprep.mubr.f32.mxu0 0.0
      %5164 = vmatmul.mubr.f32.gmra.mrb[0].mxu0 %v4865
      %v5165 = vpop.f32.mrb[0].mxu0
      %v5166 = vadd.f32 0.0, %v5165
      %v5167 = vpop.f32.mrb[0].mxu0
      %5168 = vmatprep.mubr.f32.mxu0 0.0
      %5169 = vmatmul.mubr.f32.gmra.mrb[0].mxu0 %v4868
      %v5170 = vpop.f32.mrb[0].mxu0
      %v5171 = vadd.f32 0.0, %v5170
      %v5172 = vpop.f32.mrb[0].mxu0
      %5173 = vmatprep.mubr.f32.mxu0 0.0
      %5174 = vmatmul.mubr.f32.gmra.mrb[0].mxu0 %v4871
      %v5175 = vpop.f32.mrb[0].mxu0
      %v5176 = vadd.f32 0.0, %v5175
      %v5177 = vpop.f32.mrb[0].mxu0
      %5178 = vmatprep.mubr.f32.mxu0 0.0
      %5179 = vmatmul.mubr.f32.gmra.mrb[0].mxu0 %v4874
      %v5180 = vpop.f32.mrb[0].mxu0
      %v5181 = vadd.f32 0.0, %v5180
      %v5182 = vpop.f32.mrb[0].mxu0
      %5183 = vmatprep.mubr.f32.mxu0 0.0
      %5184 = vmatmul.mubr.f32.gmra.mrb[0].mxu0 %v4877
      %v5185 = vpop.f32.mrb[0].mxu0
      %v5186 = vadd.f32 0.0, %v5185
      %v5187 = vpop.f32.mrb[0].mxu0
      %5188 = vmatprep.mubr.f32.mxu0 0.0
      %5189 = vmatmul.mubr.f32.gmra.mrb[0].mxu0 %v4880
      %v5190 = vpop.f32.mrb[0].mxu0
      %v5191 = vadd.f32 0.0, %v5190
      %v5192 = vpop.f32.mrb[0].mxu0
      %5193 = vmatprep.mubr.f32.mxu0 0.0
      %5194 = vmatmul.mubr.f32.gmra.mrb[0].mxu0 %v4883
      %v5195 = vpop.f32.mrb[0].mxu0
      %v5196 = vadd.f32 0.0, %v5195
      %v5197 = vpop.f32.mrb[0].mxu0
      %5198 = vmatprep.mubr.f32.mxu0 0.0
      %5199 = vmatmul.mubr.f32.gmra.mrb[0].mxu0 %v4886
      %v5200 = vpop.f32.mrb[0].mxu0
      %v5201 = vadd.f32 0.0, %v5200
      %v5202 = vpop.f32.mrb[0].mxu0
      %5203 = vmatprep.mubr.f32.mxu0 0.0
      %5204 = vmatmul.mubr.f32.gmra.mrb[0].mxu0 %v4889
      %v5205 = vpop.f32.mrb[0].mxu0
      %v5206 = vadd.f32 0.0, %v5205
      %v5207 = vpop.f32.mrb[0].mxu0
      %5208 = vmatprep.mubr.f32.mxu0 0.0
      %5209 = vmatmul.mubr.f32.gmra.mrb[0].mxu0 %v4892
      %v5210 = vpop.f32.mrb[0].mxu0
      %v5211 = vadd.f32 0.0, %v5210
      %v5212 = vpop.f32.mrb[0].mxu0
      %5213 = vmatprep.mubr.f32.mxu0 0.0
      %5214 = vmatmul.mubr.f32.gmra.mrb[0].mxu0 %v4895
      %v5215 = vpop.f32.mrb[0].mxu0
      %v5216 = vadd.f32 0.0, %v5215
      %v5217 = vpop.f32.mrb[0].mxu0
      %5218 = vmatprep.mubr.f32.mxu0 0.0
      %5219 = vmatmul.mubr.f32.gmra.mrb[0].mxu0 %v4898
      %v5220 = vpop.f32.mrb[0].mxu0
      %v5221 = vadd.f32 0.0, %v5220
      %v5222 = vpop.f32.mrb[0].mxu0
      %5223 = vmatprep.mubr.f32.mxu0 0.0
      %5224 = vmatmul.mubr.f32.gmra.mrb[0].mxu0 %v4901
      %v5225 = vpop.f32.mrb[0].mxu0
      %v5226 = vadd.f32 0.0, %v5225
      %v5227 = vpop.f32.mrb[0].mxu0
      %5228 = vmatprep.mubr.f32.mxu0 0.0
      %5229 = vmatmul.mubr.f32.gmra.mrb[0].mxu0 %v4904
      %v5230 = vpop.f32.mrb[0].mxu0
      %v5231 = vadd.f32 0.0, %v5230
      %v5232 = vpop.f32.mrb[0].mxu0
      %5233 = vmatprep.mubr.f32.mxu0 0.0
      %5234 = vmatmul.mubr.f32.gmra.mrb[0].mxu0 %v4907
      %v5235 = vpop.f32.mrb[0].mxu0
      %v5236 = vadd.f32 0.0, %v5235
      %v5237 = vpop.f32.mrb[0].mxu0
      %5238 = vmatprep.mubr.f32.mxu0 0.0
      %5239 = vmatmul.mubr.f32.gmra.mrb[0].mxu0 %v4910
      %v5240 = vpop.f32.mrb[0].mxu0
      %v5241 = vadd.f32 0.0, %v5240
      %v5242 = vpop.f32.mrb[0].mxu0
      %5243 = vmatprep.mubr.f32.mxu0 0.0
      %5244 = vmatmul.mubr.f32.gmra.mrb[0].mxu0 %v4913
      %v5245 = vpop.f32.mrb[0].mxu0
      %v5246 = vadd.f32 0.0, %v5245
      %v5247 = vpop.f32.mrb[0].mxu0
      %5248 = vmatprep.mubr.f32.mxu0 0.0
      %5249 = vmatmul.mubr.f32.gmra.mrb[0].mxu0 %v4916
      %v5250 = vpop.f32.mrb[0].mxu0
      %v5251 = vadd.f32 0.0, %v5250
      %v5252 = vpop.f32.mrb[0].mxu0
      %5253 = vmatprep.mubr.f32.mxu0 0.0
      %5254 = vmatmul.mubr.f32.gmra.mrb[0].mxu0 %v4919
      %v5255 = vpop.f32.mrb[0].mxu0
      %v5256 = vadd.f32 0.0, %v5255
      %v5257 = vpop.f32.mrb[0].mxu0
      %5258 = vmatprep.mubr.f32.mxu0 0.0
      %5259 = vmatmul.mubr.f32.gmra.mrb[0].mxu0 %v4922
      %v5260 = vpop.f32.mrb[0].mxu0
      %v5261 = vadd.f32 0.0, %v5260
      %v5262 = vpop.f32.mrb[0].mxu0
      %5263 = vmatprep.mubr.f32.mxu0 0.0
      %5264 = vmatmul.mubr.f32.gmra.mrb[0].mxu0 %v4925
      %v5265 = vpop.f32.mrb[0].mxu0
      %v5266 = vadd.f32 0.0, %v5265
      %v5267 = vpop.f32.mrb[0].mxu0
      %5268 = vmatprep.mubr.f32.mxu0 0.0
      %5269 = vmatmul.mubr.f32.gmra.mrb[0].mxu0 %v4928
      %v5270 = vpop.f32.mrb[0].mxu0
      %v5271 = vadd.f32 0.0, %v5270
      %v5272 = vpop.f32.mrb[0].mxu0
      %5273 = vmatprep.mubr.f32.mxu0 0.0
      %5274 = vmatmul.mubr.f32.gmra.mrb[0].mxu0 %v4931
      %v5275 = vpop.f32.mrb[0].mxu0
      %v5276 = vadd.f32 0.0, %v5275
      %v5277 = vpop.f32.mrb[0].mxu0
      %5278 = vmatprep.mubr.f32.mxu0 0.0
      %5279 = vmatmul.mubr.f32.gmra.mrb[0].mxu0 %v4934
      %v5280 = vpop.f32.mrb[0].mxu0
      %v5281 = vadd.f32 0.0, %v5280
      %v5282 = vpop.f32.mrb[0].mxu0
      %5283 = vmatprep.mubr.f32.mxu0 0.0
      %5284 = vmatmul.mubr.f32.gmra.mrb[0].mxu0 %v4937
      %v5285 = vpop.f32.mrb[0].mxu0
      %v5286 = vadd.f32 0.0, %v5285
      %v5287 = vpop.f32.mrb[0].mxu0
      %5288 = vmatprep.mubr.f32.mxu0 0.0
      %5289 = vmatmul.mubr.f32.gmra.mrb[0].mxu0 %v4940
      %v5290 = vpop.f32.mrb[0].mxu0
      %v5291 = vadd.f32 0.0, %v5290
      %v5292 = vpop.f32.mrb[0].mxu0
      %5293 = vmatprep.mubr.f32.mxu0 0.0
      %5294 = vmatmul.mubr.f32.gmra.mrb[0].mxu0 %v4943
      %v5295 = vpop.f32.mrb[0].mxu0
      %v5296 = vadd.f32 0.0, %v5295
      %v5297 = vpop.f32.mrb[0].mxu0
      %5298 = vmatprep.mubr.f32.mxu0 0.0
      %5299 = vmatmul.mubr.f32.gmra.mrb[0].mxu0 %v4946
      %v5300 = vpop.f32.mrb[0].mxu0
      %v5301 = vadd.f32 0.0, %v5300
      %v5302 = vpop.f32.mrb[0].mxu0
      %5303 = vmatprep.mubr.f32.mxu0 0.0
      %5304 = vmatmul.mubr.f32.gmra.mrb[0].mxu0 %v4949
      %v5305 = vpop.f32.mrb[0].mxu0
      %v5306 = vadd.f32 0.0, %v5305
      %v5307 = vpop.f32.mrb[0].mxu0
      %5308 = vmatprep.mubr.f32.mxu0 0.0
      %5309 = vmatmul.mubr.f32.gmra.mrb[0].mxu0 %v4952
      %v5310 = vpop.f32.mrb[0].mxu0
      %v5311 = vadd.f32 0.0, %v5310
      %v5312 = vpop.f32.mrb[0].mxu0
      %5313 = vmatprep.mubr.f32.mxu0 0.0
      %5314 = vmatmul.mubr.f32.gmra.mrb[0].mxu0 %v4955
      %v5315 = vpop.f32.mrb[0].mxu0
      %v5316 = vadd.f32 0.0, %v5315
      %v5317 = vpop.f32.mrb[0].mxu0
      %5318 = vmatprep.mubr.f32.mxu0 0.0
      %5319 = vmatmul.mubr.f32.gmra.mrb[0].mxu0 %v4958
      %v5320 = vpop.f32.mrb[0].mxu0
      %v5321 = vadd.f32 0.0, %v5320
      %v5322 = vpop.f32.mrb[0].mxu0
      %5323 = vmatprep.mubr.f32.mxu0 0.0
      %5324 = vmatmul.mubr.f32.gmra.mrb[0].mxu0 %v4961
      %v5325 = vpop.f32.mrb[0].mxu0
      %v5326 = vadd.f32 0.0, %v5325
      %v5327 = vpop.f32.mrb[0].mxu0
      %5328 = vmatprep.mubr.f32.mxu0 0.0
      %5329 = vmatmul.mubr.f32.gmra.mrb[0].mxu0 %v4964
      %v5330 = vpop.f32.mrb[0].mxu0
      %v5331 = vadd.f32 0.0, %v5330
      %v5332 = vpop.f32.mrb[0].mxu0
      %5333 = vmatprep.mubr.f32.mxu0 0.0
      %5334 = vmatmul.mubr.f32.gmra.mrb[0].mxu0 %v4967
      %v5335 = vpop.f32.mrb[0].mxu0
      %v5336 = vadd.f32 0.0, %v5335
      %v5337 = vpop.f32.mrb[0].mxu0
      %5338 = vmatprep.mubr.f32.mxu0 0.0
      %5339 = vmatmul.mubr.f32.gmra.mrb[0].mxu0 %v4970
      %v5340 = vpop.f32.mrb[0].mxu0
      %v5341 = vadd.f32 0.0, %v5340
      %v5342 = vpop.f32.mrb[0].mxu0
      %5343 = vmatprep.mubr.f32.mxu0 0.0
      %5344 = vmatmul.mubr.f32.gmra.mrb[0].mxu0 %v4973
      %v5345 = vpop.f32.mrb[0].mxu0
      %v5346 = vadd.f32 0.0, %v5345
      %v5347 = vpop.f32.mrb[0].mxu0
      %5348 = vmatprep.mubr.f32.mxu0 0.0
      %5349 = vmatmul.mubr.f32.gmra.mrb[0].mxu0 %v4976
      %v5350 = vpop.f32.mrb[0].mxu0
      %v5351 = vadd.f32 0.0, %v5350
      %v5352 = vpop.f32.mrb[0].mxu0
      %5353 = vmatprep.mubr.f32.mxu0 0.0
      %5354 = vmatmul.mubr.f32.gmra.mrb[0].mxu0 %v4979
      %v5355 = vpop.f32.mrb[0].mxu0
      %v5356 = vadd.f32 0.0, %v5355
      %v5357 = vpop.f32.mrb[0].mxu0
      %5358 = vmatprep.mubr.f32.mxu0 0.0
      %5359 = vmatmul.mubr.f32.gmra.mrb[0].mxu0 %v4982
      %v5360 = vpop.f32.mrb[0].mxu0
      %v5361 = vadd.f32 0.0, %v5360
      %v5362 = vpop.f32.mrb[0].mxu0
      %5363 = vmatprep.mubr.f32.mxu0 0.0
      %5364 = vmatmul.mubr.f32.gmra.mrb[0].mxu0 %v4985
      %v5365 = vpop.f32.mrb[0].mxu0
      %v5366 = vadd.f32 0.0, %v5365
      %v5367 = vpop.f32.mrb[0].mxu0
      %5368 = vmatprep.mubr.f32.mxu0 0.0
      %5369 = vmatmul.mubr.f32.gmra.mrb[0].mxu0 %v4988
      %v5370 = vpop.f32.mrb[0].mxu0
      %v5371 = vadd.f32 0.0, %v5370
      %v5372 = vpop.f32.mrb[0].mxu0
      %5373 = vmatprep.mubr.f32.mxu0 0.0
      %5374 = vmatmul.mubr.f32.gmra.mrb[0].mxu0 %v4991
      %v5375 = vpop.f32.mrb[0].mxu0
      %v5376 = vadd.f32 0.0, %v5375
      %v5377 = vpop.f32.mrb[0].mxu0
      %5378 = vmatprep.mubr.f32.mxu0 0.0
      %5379 = vmatmul.mubr.f32.gmra.mrb[0].mxu0 %v4994
      %v5380 = vpop.f32.mrb[0].mxu0
      %v5381 = vadd.f32 0.0, %v5380
      %v5382 = vpop.f32.mrb[0].mxu0
      %5383 = vdwg.mxu0
      %v5384 = vadd.f32 %v3587, %v5066
      %v5385 = vadd.f32 %v3592, %v5071
      %v5386 = vadd.f32 %v3597, %v5076
      %v5387 = vadd.f32 %v3602, %v5081
      %v5388 = vadd.f32 %v3607, %v5086
      %v5389 = vadd.f32 %v3612, %v5091
      %v5390 = vadd.f32 %v3617, %v5096
      %v5391 = vadd.f32 %v3622, %v5101
      %v5392 = vadd.f32 %v3627, %v5106
      %v5393 = vadd.f32 %v3632, %v5111
      %v5394 = vadd.f32 %v3637, %v5116
      %v5395 = vadd.f32 %v3642, %v5121
      %v5396 = vadd.f32 %v3647, %v5126
      %v5397 = vadd.f32 %v3652, %v5131
      %v5398 = vadd.f32 %v3657, %v5136
      %v5399 = vadd.f32 %v3662, %v5141
      %v5400 = vadd.f32 %v3667, %v5146
      %v5401 = vadd.f32 %v3672, %v5151
      %v5402 = vadd.f32 %v3677, %v5156
      %v5403 = vadd.f32 %v3682, %v5161
      %v5404 = vadd.f32 %v3687, %v5166
      %v5405 = vadd.f32 %v3692, %v5171
      %v5406 = vadd.f32 %v3697, %v5176
      %v5407 = vadd.f32 %v3702, %v5181
      %v5408 = vadd.f32 %v3707, %v5186
      %v5409 = vadd.f32 %v3712, %v5191
      %v5410 = vadd.f32 %v3717, %v5196
      %v5411 = vadd.f32 %v3722, %v5201
      %v5412 = vadd.f32 %v3727, %v5206
      %v5413 = vadd.f32 %v3732, %v5211
      %v5414 = vadd.f32 %v3737, %v5216
      %v5415 = vadd.f32 %v3742, %v5221
      %v5416 = vadd.f32 %v3747, %v5226
      %v5417 = vadd.f32 %v3752, %v5231
      %v5418 = vadd.f32 %v3757, %v5236
      %v5419 = vadd.f32 %v3762, %v5241
      %v5420 = vadd.f32 %v3767, %v5246
      %v5421 = vadd.f32 %v3772, %v5251
      %v5422 = vadd.f32 %v3777, %v5256
      %v5423 = vadd.f32 %v3782, %v5261
      %v5424 = vadd.f32 %v3787, %v5266
      %v5425 = vadd.f32 %v3792, %v5271
      %v5426 = vadd.f32 %v3797, %v5276
      %v5427 = vadd.f32 %v3802, %v5281
      %v5428 = vadd.f32 %v3807, %v5286
      %v5429 = vadd.f32 %v3812, %v5291
      %v5430 = vadd.f32 %v3817, %v5296
      %v5431 = vadd.f32 %v3822, %v5301
      %v5432 = vadd.f32 %v3827, %v5306
      %v5433 = vadd.f32 %v3832, %v5311
      %v5434 = vadd.f32 %v3837, %v5316
      %v5435 = vadd.f32 %v3842, %v5321
      %v5436 = vadd.f32 %v3847, %v5326
      %v5437 = vadd.f32 %v3852, %v5331
      %v5438 = vadd.f32 %v3857, %v5336
      %v5439 = vadd.f32 %v3862, %v5341
      %v5440 = vadd.f32 %v3867, %v5346
      %v5441 = vadd.f32 %v3872, %v5351
      %v5442 = vadd.f32 %v3877, %v5356
      %v5443 = vadd.f32 %v3882, %v5361
      %v5444 = vadd.f32 %v3887, %v5366
      %v5445 = vadd.f32 %v3892, %v5371
      %v5446 = vadd.f32 %v3897, %v5376
      %v5447 = vadd.f32 %v3902, %v5381
      %v5448 = vmul.f32 %v5384, %v556
      %v5449 = vmul.f32 %v5385, %v557
      %v5450 = vmul.f32 %v5386, %v558
      %v5451 = vmul.f32 %v5387, %v559
      %v5452 = vmul.f32 %v5388, %v560
      %v5453 = vmul.f32 %v5389, %v561
      %v5454 = vmul.f32 %v5390, %v562
      %v5455 = vmul.f32 %v5391, %v563
      %v5456 = vmul.f32 %v5392, %v564
      %v5457 = vmul.f32 %v5393, %v565
      %v5458 = vmul.f32 %v5394, %v566
      %v5459 = vmul.f32 %v5395, %v567
      %v5460 = vmul.f32 %v5396, %v568
      %v5461 = vmul.f32 %v5397, %v569
      %v5462 = vmul.f32 %v5398, %v570
      %v5463 = vmul.f32 %v5399, %v571
      %v5464 = vmul.f32 %v5400, %v572
      %v5465 = vmul.f32 %v5401, %v573
      %v5466 = vmul.f32 %v5402, %v574
      %v5467 = vmul.f32 %v5403, %v575
      %v5468 = vmul.f32 %v5404, %v576
      %v5469 = vmul.f32 %v5405, %v577
      %v5470 = vmul.f32 %v5406, %v578
      %v5471 = vmul.f32 %v5407, %v579
      %v5472 = vmul.f32 %v5408, %v580
      %v5473 = vmul.f32 %v5409, %v581
      %v5474 = vmul.f32 %v5410, %v582
      %v5475 = vmul.f32 %v5411, %v583
      %v5476 = vmul.f32 %v5412, %v584
      %v5477 = vmul.f32 %v5413, %v585
      %v5478 = vmul.f32 %v5414, %v586
      %v5479 = vmul.f32 %v5415, %v587
      %v5480 = vmul.f32 %v5416, %v588
      %v5481 = vmul.f32 %v5417, %v589
      %v5482 = vmul.f32 %v5418, %v590
      %v5483 = vmul.f32 %v5419, %v591
      %v5484 = vmul.f32 %v5420, %v592
      %v5485 = vmul.f32 %v5421, %v593
      %v5486 = vmul.f32 %v5422, %v594
      %v5487 = vmul.f32 %v5423, %v595
      %v5488 = vmul.f32 %v5424, %v596
      %v5489 = vmul.f32 %v5425, %v597
      %v5490 = vmul.f32 %v5426, %v598
      %v5491 = vmul.f32 %v5427, %v599
      %v5492 = vmul.f32 %v5428, %v600
      %v5493 = vmul.f32 %v5429, %v601
      %v5494 = vmul.f32 %v5430, %v602
      %v5495 = vmul.f32 %v5431, %v603
      %v5496 = vmul.f32 %v5432, %v604
      %v5497 = vmul.f32 %v5433, %v605
      %v5498 = vmul.f32 %v5434, %v606
      %v5499 = vmul.f32 %v5435, %v607
      %v5500 = vmul.f32 %v5436, %v608
      %v5501 = vmul.f32 %v5437, %v609
      %v5502 = vmul.f32 %v5438, %v610
      %v5503 = vmul.f32 %v5439, %v611
      %v5504 = vmul.f32 %v5440, %v612
      %v5505 = vmul.f32 %v5441, %v613
      %v5506 = vmul.f32 %v5442, %v614
      %v5507 = vmul.f32 %v5443, %v615
      %v5508 = vmul.f32 %v5444, %v616
      %v5509 = vmul.f32 %v5445, %v617
      %v5510 = vmul.f32 %v5446, %v618
      %v5511 = vmul.f32 %v5447, %v619
      %v5512 = vsel %vm1712, %v5448, 0.0
      %v5513 = vsel %vm1712, %v5449, 0.0
      %v5514 = vadd.f32 %v5512, %v5513
      %v5515 = vsel %vm1712, %v5450, 0.0
      %v5516 = vadd.f32 %v5514, %v5515
      %v5517 = vsel %vm1712, %v5451, 0.0
      %v5518 = vadd.f32 %v5516, %v5517
      %v5519 = vsel %vm1712, %v5452, 0.0
      %v5520 = vadd.f32 %v5518, %v5519
      %v5521 = vsel %vm1712, %v5453, 0.0
      %v5522 = vadd.f32 %v5520, %v5521
      %v5523 = vsel %vm1712, %v5454, 0.0
      %v5524 = vadd.f32 %v5522, %v5523
      %v5525 = vsel %vm1712, %v5455, 0.0
      %v5526 = vadd.f32 %v5524, %v5525
      %v5527 = vsel %vm1712, %v5456, 0.0
      %v5528 = vadd.f32 %v5526, %v5527
      %v5529 = vsel %vm1712, %v5457, 0.0
      %v5530 = vadd.f32 %v5528, %v5529
      %v5531 = vsel %vm1712, %v5458, 0.0
      %v5532 = vadd.f32 %v5530, %v5531
      %v5533 = vsel %vm1712, %v5459, 0.0
      %v5534 = vadd.f32 %v5532, %v5533
      %v5535 = vsel %vm1712, %v5460, 0.0
      %v5536 = vadd.f32 %v5534, %v5535
      %v5537 = vsel %vm1712, %v5461, 0.0
      %v5538 = vadd.f32 %v5536, %v5537
      %v5539 = vsel %vm1712, %v5462, 0.0
      %v5540 = vadd.f32 %v5538, %v5539
      %v5541 = vsel %vm1712, %v5463, 0.0
      %v5542 = vadd.f32 %v5540, %v5541
      %v5543 = vsel %vm1712, %v5464, 0.0
      %v5544 = vadd.f32 %v5542, %v5543
      %v5545 = vsel %vm1712, %v5465, 0.0
      %v5546 = vadd.f32 %v5544, %v5545
      %v5547 = vsel %vm1712, %v5466, 0.0
      %v5548 = vadd.f32 %v5546, %v5547
      %v5549 = vsel %vm1712, %v5467, 0.0
      %v5550 = vadd.f32 %v5548, %v5549
      %v5551 = vsel %vm1712, %v5468, 0.0
      %v5552 = vadd.f32 %v5550, %v5551
      %v5553 = vsel %vm1712, %v5469, 0.0
      %v5554 = vadd.f32 %v5552, %v5553
      %v5555 = vsel %vm1712, %v5470, 0.0
      %v5556 = vadd.f32 %v5554, %v5555
      %v5557 = vsel %vm1712, %v5471, 0.0
      %v5558 = vadd.f32 %v5556, %v5557
      %v5559 = vsel %vm1712, %v5472, 0.0
      %v5560 = vadd.f32 %v5558, %v5559
      %v5561 = vsel %vm1712, %v5473, 0.0
      %v5562 = vadd.f32 %v5560, %v5561
      %v5563 = vsel %vm1712, %v5474, 0.0
      %v5564 = vadd.f32 %v5562, %v5563
      %v5565 = vsel %vm1712, %v5475, 0.0
      %v5566 = vadd.f32 %v5564, %v5565
      %v5567 = vsel %vm1712, %v5476, 0.0
      %v5568 = vadd.f32 %v5566, %v5567
      %v5569 = vsel %vm1712, %v5477, 0.0
      %v5570 = vadd.f32 %v5568, %v5569
      %v5571 = vsel %vm1712, %v5478, 0.0
      %v5572 = vadd.f32 %v5570, %v5571
      %v5573 = vsel %vm1712, %v5479, 0.0
      %v5574 = vadd.f32 %v5572, %v5573
      %v5575 = vsel %vm1712, %v5480, 0.0
      %v5576 = vadd.f32 %v5574, %v5575
      %v5577 = vsel %vm1712, %v5481, 0.0
      %v5578 = vadd.f32 %v5576, %v5577
      %v5579 = vsel %vm1712, %v5482, 0.0
      %v5580 = vadd.f32 %v5578, %v5579
      %v5581 = vsel %vm1712, %v5483, 0.0
      %v5582 = vadd.f32 %v5580, %v5581
      %v5583 = vsel %vm1712, %v5484, 0.0
      %v5584 = vadd.f32 %v5582, %v5583
      %v5585 = vsel %vm1712, %v5485, 0.0
      %v5586 = vadd.f32 %v5584, %v5585
      %v5587 = vsel %vm1712, %v5486, 0.0
      %v5588 = vadd.f32 %v5586, %v5587
      %v5589 = vsel %vm1712, %v5487, 0.0
      %v5590 = vadd.f32 %v5588, %v5589
      %v5591 = vsel %vm1712, %v5488, 0.0
      %v5592 = vadd.f32 %v5590, %v5591
      %v5593 = vsel %vm1712, %v5489, 0.0
      %v5594 = vadd.f32 %v5592, %v5593
      %v5595 = vsel %vm1712, %v5490, 0.0
      %v5596 = vadd.f32 %v5594, %v5595
      %v5597 = vsel %vm1712, %v5491, 0.0
      %v5598 = vadd.f32 %v5596, %v5597
      %v5599 = vsel %vm1712, %v5492, 0.0
      %v5600 = vadd.f32 %v5598, %v5599
      %v5601 = vsel %vm1712, %v5493, 0.0
      %v5602 = vadd.f32 %v5600, %v5601
      %v5603 = vsel %vm1712, %v5494, 0.0
      %v5604 = vadd.f32 %v5602, %v5603
      %v5605 = vsel %vm1712, %v5495, 0.0
      %v5606 = vadd.f32 %v5604, %v5605
      %v5607 = vsel %vm1712, %v5496, 0.0
      %v5608 = vadd.f32 %v5606, %v5607
      %v5609 = vsel %vm1712, %v5497, 0.0
      %v5610 = vadd.f32 %v5608, %v5609
      %v5611 = vsel %vm1712, %v5498, 0.0
      %v5612 = vadd.f32 %v5610, %v5611
      %v5613 = vsel %vm1712, %v5499, 0.0
      %v5614 = vadd.f32 %v5612, %v5613
      %v5615 = vsel %vm1712, %v5500, 0.0
      %v5616 = vadd.f32 %v5614, %v5615
      %v5617 = vsel %vm1712, %v5501, 0.0
      %v5618 = vadd.f32 %v5616, %v5617
      %v5619 = vsel %vm1712, %v5502, 0.0
      %v5620 = vadd.f32 %v5618, %v5619
      %v5621 = vsel %vm1712, %v5503, 0.0
      %v5622 = vadd.f32 %v5620, %v5621
      %v5623 = vsel %vm1712, %v5504, 0.0
      %v5624 = vadd.f32 %v5622, %v5623
      %v5625 = vsel %vm1712, %v5505, 0.0
      %v5626 = vadd.f32 %v5624, %v5625
      %v5627 = vsel %vm1712, %v5506, 0.0
      %v5628 = vadd.f32 %v5626, %v5627
      %v5629 = vsel %vm1712, %v5507, 0.0
      %v5630 = vadd.f32 %v5628, %v5629
      %v5631 = vsel %vm1712, %v5508, 0.0
      %v5632 = vadd.f32 %v5630, %v5631
      %v5633 = vsel %vm1712, %v5509, 0.0
      %v5634 = vadd.f32 %v5632, %v5633
      %v5635 = vsel %vm1712, %v5510, 0.0
      %v5636 = vadd.f32 %v5634, %v5635
      %v5637 = vsel %vm1712, %v5511, 0.0
      %v5638 = vadd.f32 %v5636, %v5637
      %v5639 = vrot.slane %v5638, 4
      %v5640 = vadd.f32 %v5638, %v5639
      %v5641 = vrot.slane %v5640, 2
      %v5642 = vadd.f32 %v5640, %v5641
      %v5643 = vrot.slane %v5642, 1
      %v5644 = vadd.f32 %v5642, %v5643
      %v5645 = vmul.f32 %v5644, 0.00390625
      %v5646 = vmul.f32 %v5448, %v5448
      %v5647 = vmul.f32 %v5449, %v5449
      %v5648 = vmul.f32 %v5450, %v5450
      %v5649 = vmul.f32 %v5451, %v5451
      %v5650 = vmul.f32 %v5452, %v5452
      %v5651 = vmul.f32 %v5453, %v5453
      %v5652 = vmul.f32 %v5454, %v5454
      %v5653 = vmul.f32 %v5455, %v5455
      %v5654 = vmul.f32 %v5456, %v5456
      %v5655 = vmul.f32 %v5457, %v5457
      %v5656 = vmul.f32 %v5458, %v5458
      %v5657 = vmul.f32 %v5459, %v5459
      %v5658 = vmul.f32 %v5460, %v5460
      %v5659 = vmul.f32 %v5461, %v5461
      %v5660 = vmul.f32 %v5462, %v5462
      %v5661 = vmul.f32 %v5463, %v5463
      %v5662 = vmul.f32 %v5464, %v5464
      %v5663 = vmul.f32 %v5465, %v5465
      %v5664 = vmul.f32 %v5466, %v5466
      %v5665 = vmul.f32 %v5467, %v5467
      %v5666 = vmul.f32 %v5468, %v5468
      %v5667 = vmul.f32 %v5469, %v5469
      %v5668 = vmul.f32 %v5470, %v5470
      %v5669 = vmul.f32 %v5471, %v5471
      %v5670 = vmul.f32 %v5472, %v5472
      %v5671 = vmul.f32 %v5473, %v5473
      %v5672 = vmul.f32 %v5474, %v5474
      %v5673 = vmul.f32 %v5475, %v5475
      %v5674 = vmul.f32 %v5476, %v5476
      %v5675 = vmul.f32 %v5477, %v5477
      %v5676 = vmul.f32 %v5478, %v5478
      %v5677 = vmul.f32 %v5479, %v5479
      %v5678 = vmul.f32 %v5480, %v5480
      %v5679 = vmul.f32 %v5481, %v5481
      %v5680 = vmul.f32 %v5482, %v5482
      %v5681 = vmul.f32 %v5483, %v5483
      %v5682 = vmul.f32 %v5484, %v5484
      %v5683 = vmul.f32 %v5485, %v5485
      %v5684 = vmul.f32 %v5486, %v5486
      %v5685 = vmul.f32 %v5487, %v5487
      %v5686 = vmul.f32 %v5488, %v5488
      %v5687 = vmul.f32 %v5489, %v5489
      %v5688 = vmul.f32 %v5490, %v5490
      %v5689 = vmul.f32 %v5491, %v5491
      %v5690 = vmul.f32 %v5492, %v5492
      %v5691 = vmul.f32 %v5493, %v5493
      %v5692 = vmul.f32 %v5494, %v5494
      %v5693 = vmul.f32 %v5495, %v5495
      %v5694 = vmul.f32 %v5496, %v5496
      %v5695 = vmul.f32 %v5497, %v5497
      %v5696 = vmul.f32 %v5498, %v5498
      %v5697 = vmul.f32 %v5499, %v5499
      %v5698 = vmul.f32 %v5500, %v5500
      %v5699 = vmul.f32 %v5501, %v5501
      %v5700 = vmul.f32 %v5502, %v5502
      %v5701 = vmul.f32 %v5503, %v5503
      %v5702 = vmul.f32 %v5504, %v5504
      %v5703 = vmul.f32 %v5505, %v5505
      %v5704 = vmul.f32 %v5506, %v5506
      %v5705 = vmul.f32 %v5507, %v5507
      %v5706 = vmul.f32 %v5508, %v5508
      %v5707 = vmul.f32 %v5509, %v5509
      %v5708 = vmul.f32 %v5510, %v5510
      %v5709 = vmul.f32 %v5511, %v5511
      %v5710 = vsel %vm1712, %v5646, 0.0
      %v5711 = vsel %vm1712, %v5647, 0.0
      %v5712 = vadd.f32 %v5710, %v5711
      %v5713 = vsel %vm1712, %v5648, 0.0
      %v5714 = vadd.f32 %v5712, %v5713
      %v5715 = vsel %vm1712, %v5649, 0.0
      %v5716 = vadd.f32 %v5714, %v5715
      %v5717 = vsel %vm1712, %v5650, 0.0
      %v5718 = vadd.f32 %v5716, %v5717
      %v5719 = vsel %vm1712, %v5651, 0.0
      %v5720 = vadd.f32 %v5718, %v5719
      %v5721 = vsel %vm1712, %v5652, 0.0
      %v5722 = vadd.f32 %v5720, %v5721
      %v5723 = vsel %vm1712, %v5653, 0.0
      %v5724 = vadd.f32 %v5722, %v5723
      %v5725 = vsel %vm1712, %v5654, 0.0
      %v5726 = vadd.f32 %v5724, %v5725
      %v5727 = vsel %vm1712, %v5655, 0.0
      %v5728 = vadd.f32 %v5726, %v5727
      %v5729 = vsel %vm1712, %v5656, 0.0
      %v5730 = vadd.f32 %v5728, %v5729
      %v5731 = vsel %vm1712, %v5657, 0.0
      %v5732 = vadd.f32 %v5730, %v5731
      %v5733 = vsel %vm1712, %v5658, 0.0
      %v5734 = vadd.f32 %v5732, %v5733
      %v5735 = vsel %vm1712, %v5659, 0.0
      %v5736 = vadd.f32 %v5734, %v5735
      %v5737 = vsel %vm1712, %v5660, 0.0
      %v5738 = vadd.f32 %v5736, %v5737
      %v5739 = vsel %vm1712, %v5661, 0.0
      %v5740 = vadd.f32 %v5738, %v5739
      %v5741 = vsel %vm1712, %v5662, 0.0
      %v5742 = vadd.f32 %v5740, %v5741
      %v5743 = vsel %vm1712, %v5663, 0.0
      %v5744 = vadd.f32 %v5742, %v5743
      %v5745 = vsel %vm1712, %v5664, 0.0
      %v5746 = vadd.f32 %v5744, %v5745
      %v5747 = vsel %vm1712, %v5665, 0.0
      %v5748 = vadd.f32 %v5746, %v5747
      %v5749 = vsel %vm1712, %v5666, 0.0
      %v5750 = vadd.f32 %v5748, %v5749
      %v5751 = vsel %vm1712, %v5667, 0.0
      %v5752 = vadd.f32 %v5750, %v5751
      %v5753 = vsel %vm1712, %v5668, 0.0
      %v5754 = vadd.f32 %v5752, %v5753
      %v5755 = vsel %vm1712, %v5669, 0.0
      %v5756 = vadd.f32 %v5754, %v5755
      %v5757 = vsel %vm1712, %v5670, 0.0
      %v5758 = vadd.f32 %v5756, %v5757
      %v5759 = vsel %vm1712, %v5671, 0.0
      %v5760 = vadd.f32 %v5758, %v5759
      %v5761 = vsel %vm1712, %v5672, 0.0
      %v5762 = vadd.f32 %v5760, %v5761
      %v5763 = vsel %vm1712, %v5673, 0.0
      %v5764 = vadd.f32 %v5762, %v5763
      %v5765 = vsel %vm1712, %v5674, 0.0
      %v5766 = vadd.f32 %v5764, %v5765
      %v5767 = vsel %vm1712, %v5675, 0.0
      %v5768 = vadd.f32 %v5766, %v5767
      %v5769 = vsel %vm1712, %v5676, 0.0
      %v5770 = vadd.f32 %v5768, %v5769
      %v5771 = vsel %vm1712, %v5677, 0.0
      %v5772 = vadd.f32 %v5770, %v5771
      %v5773 = vsel %vm1712, %v5678, 0.0
      %v5774 = vadd.f32 %v5772, %v5773
      %v5775 = vsel %vm1712, %v5679, 0.0
      %v5776 = vadd.f32 %v5774, %v5775
      %v5777 = vsel %vm1712, %v5680, 0.0
      %v5778 = vadd.f32 %v5776, %v5777
      %v5779 = vsel %vm1712, %v5681, 0.0
      %v5780 = vadd.f32 %v5778, %v5779
      %v5781 = vsel %vm1712, %v5682, 0.0
      %v5782 = vadd.f32 %v5780, %v5781
      %v5783 = vsel %vm1712, %v5683, 0.0
      %v5784 = vadd.f32 %v5782, %v5783
      %v5785 = vsel %vm1712, %v5684, 0.0
      %v5786 = vadd.f32 %v5784, %v5785
      %v5787 = vsel %vm1712, %v5685, 0.0
      %v5788 = vadd.f32 %v5786, %v5787
      %v5789 = vsel %vm1712, %v5686, 0.0
      %v5790 = vadd.f32 %v5788, %v5789
      %v5791 = vsel %vm1712, %v5687, 0.0
      %v5792 = vadd.f32 %v5790, %v5791
      %v5793 = vsel %vm1712, %v5688, 0.0
      %v5794 = vadd.f32 %v5792, %v5793
      %v5795 = vsel %vm1712, %v5689, 0.0
      %v5796 = vadd.f32 %v5794, %v5795
      %v5797 = vsel %vm1712, %v5690, 0.0
      %v5798 = vadd.f32 %v5796, %v5797
      %v5799 = vsel %vm1712, %v5691, 0.0
      %v5800 = vadd.f32 %v5798, %v5799
      %v5801 = vsel %vm1712, %v5692, 0.0
      %v5802 = vadd.f32 %v5800, %v5801
      %v5803 = vsel %vm1712, %v5693, 0.0
      %v5804 = vadd.f32 %v5802, %v5803
      %v5805 = vsel %vm1712, %v5694, 0.0
      %v5806 = vadd.f32 %v5804, %v5805
      %v5807 = vsel %vm1712, %v5695, 0.0
      %v5808 = vadd.f32 %v5806, %v5807
      %v5809 = vsel %vm1712, %v5696, 0.0
      %v5810 = vadd.f32 %v5808, %v5809
      %v5811 = vsel %vm1712, %v5697, 0.0
      %v5812 = vadd.f32 %v5810, %v5811
      %v5813 = vsel %vm1712, %v5698, 0.0
      %v5814 = vadd.f32 %v5812, %v5813
      %v5815 = vsel %vm1712, %v5699, 0.0
      %v5816 = vadd.f32 %v5814, %v5815
      %v5817 = vsel %vm1712, %v5700, 0.0
      %v5818 = vadd.f32 %v5816, %v5817
      %v5819 = vsel %vm1712, %v5701, 0.0
      %v5820 = vadd.f32 %v5818, %v5819
      %v5821 = vsel %vm1712, %v5702, 0.0
      %v5822 = vadd.f32 %v5820, %v5821
      %v5823 = vsel %vm1712, %v5703, 0.0
      %v5824 = vadd.f32 %v5822, %v5823
      %v5825 = vsel %vm1712, %v5704, 0.0
      %v5826 = vadd.f32 %v5824, %v5825
      %v5827 = vsel %vm1712, %v5705, 0.0
      %v5828 = vadd.f32 %v5826, %v5827
      %v5829 = vsel %vm1712, %v5706, 0.0
      %v5830 = vadd.f32 %v5828, %v5829
      %v5831 = vsel %vm1712, %v5707, 0.0
      %v5832 = vadd.f32 %v5830, %v5831
      %v5833 = vsel %vm1712, %v5708, 0.0
      %v5834 = vadd.f32 %v5832, %v5833
      %v5835 = vsel %vm1712, %v5709, 0.0
      %v5836 = vadd.f32 %v5834, %v5835
      %v5837 = vrot.slane %v5836, 4
      %v5838 = vadd.f32 %v5836, %v5837
      %v5839 = vrot.slane %v5838, 2
      %v5840 = vadd.f32 %v5838, %v5839
      %v5841 = vrot.slane %v5840, 1
      %v5842 = vadd.f32 %v5840, %v5841
      %v5843 = vmul.f32 %v5842, 0.00390625
      %v5844 = vmul.f32 %v5645, %v5645
      %v5845 = vsub.f32 %v5843, %v5844
      %v5846 = vmax.f32 %v5845, 0.0
      %v5847 = vsub.f32 %v5384, %v5645
      %v5848 = vsub.f32 %v5385, %v5645
      %v5849 = vsub.f32 %v5386, %v5645
      %v5850 = vsub.f32 %v5387, %v5645
      %v5851 = vsub.f32 %v5388, %v5645
      %v5852 = vsub.f32 %v5389, %v5645
      %v5853 = vsub.f32 %v5390, %v5645
      %v5854 = vsub.f32 %v5391, %v5645
      %v5855 = vsub.f32 %v5392, %v5645
      %v5856 = vsub.f32 %v5393, %v5645
      %v5857 = vsub.f32 %v5394, %v5645
      %v5858 = vsub.f32 %v5395, %v5645
      %v5859 = vsub.f32 %v5396, %v5645
      %v5860 = vsub.f32 %v5397, %v5645
      %v5861 = vsub.f32 %v5398, %v5645
      %v5862 = vsub.f32 %v5399, %v5645
      %v5863 = vsub.f32 %v5400, %v5645
      %v5864 = vsub.f32 %v5401, %v5645
      %v5865 = vsub.f32 %v5402, %v5645
      %v5866 = vsub.f32 %v5403, %v5645
      %v5867 = vsub.f32 %v5404, %v5645
      %v5868 = vsub.f32 %v5405, %v5645
      %v5869 = vsub.f32 %v5406, %v5645
      %v5870 = vsub.f32 %v5407, %v5645
      %v5871 = vsub.f32 %v5408, %v5645
      %v5872 = vsub.f32 %v5409, %v5645
      %v5873 = vsub.f32 %v5410, %v5645
      %v5874 = vsub.f32 %v5411, %v5645
      %v5875 = vsub.f32 %v5412, %v5645
      %v5876 = vsub.f32 %v5413, %v5645
      %v5877 = vsub.f32 %v5414, %v5645
      %v5878 = vsub.f32 %v5415, %v5645
      %v5879 = vsub.f32 %v5416, %v5645
      %v5880 = vsub.f32 %v5417, %v5645
      %v5881 = vsub.f32 %v5418, %v5645
      %v5882 = vsub.f32 %v5419, %v5645
      %v5883 = vsub.f32 %v5420, %v5645
      %v5884 = vsub.f32 %v5421, %v5645
      %v5885 = vsub.f32 %v5422, %v5645
      %v5886 = vsub.f32 %v5423, %v5645
      %v5887 = vsub.f32 %v5424, %v5645
      %v5888 = vsub.f32 %v5425, %v5645
      %v5889 = vsub.f32 %v5426, %v5645
      %v5890 = vsub.f32 %v5427, %v5645
      %v5891 = vsub.f32 %v5428, %v5645
      %v5892 = vsub.f32 %v5429, %v5645
      %v5893 = vsub.f32 %v5430, %v5645
      %v5894 = vsub.f32 %v5431, %v5645
      %v5895 = vsub.f32 %v5432, %v5645
      %v5896 = vsub.f32 %v5433, %v5645
      %v5897 = vsub.f32 %v5434, %v5645
      %v5898 = vsub.f32 %v5435, %v5645
      %v5899 = vsub.f32 %v5436, %v5645
      %v5900 = vsub.f32 %v5437, %v5645
      %v5901 = vsub.f32 %v5438, %v5645
      %v5902 = vsub.f32 %v5439, %v5645
      %v5903 = vsub.f32 %v5440, %v5645
      %v5904 = vsub.f32 %v5441, %v5645
      %v5905 = vsub.f32 %v5442, %v5645
      %v5906 = vsub.f32 %v5443, %v5645
      %v5907 = vsub.f32 %v5444, %v5645
      %v5908 = vsub.f32 %v5445, %v5645
      %v5909 = vsub.f32 %v5446, %v5645
      %v5910 = vsub.f32 %v5447, %v5645
      %v5911 = vadd.f32 %v5846, 1e-05
      %v5912 = vrsqrt.pop %v5911
      %v5913 = vmul.f32 %v5847, %v5912
      %v5914 = vmul.f32 %v5848, %v5912
      %v5915 = vmul.f32 %v5849, %v5912
      %v5916 = vmul.f32 %v5850, %v5912
      %v5917 = vmul.f32 %v5851, %v5912
      %v5918 = vmul.f32 %v5852, %v5912
      %v5919 = vmul.f32 %v5853, %v5912
      %v5920 = vmul.f32 %v5854, %v5912
      %v5921 = vmul.f32 %v5855, %v5912
      %v5922 = vmul.f32 %v5856, %v5912
      %v5923 = vmul.f32 %v5857, %v5912
      %v5924 = vmul.f32 %v5858, %v5912
      %v5925 = vmul.f32 %v5859, %v5912
      %v5926 = vmul.f32 %v5860, %v5912
      %v5927 = vmul.f32 %v5861, %v5912
      %v5928 = vmul.f32 %v5862, %v5912
      %v5929 = vmul.f32 %v5863, %v5912
      %v5930 = vmul.f32 %v5864, %v5912
      %v5931 = vmul.f32 %v5865, %v5912
      %v5932 = vmul.f32 %v5866, %v5912
      %v5933 = vmul.f32 %v5867, %v5912
      %v5934 = vmul.f32 %v5868, %v5912
      %v5935 = vmul.f32 %v5869, %v5912
      %v5936 = vmul.f32 %v5870, %v5912
      %v5937 = vmul.f32 %v5871, %v5912
      %v5938 = vmul.f32 %v5872, %v5912
      %v5939 = vmul.f32 %v5873, %v5912
      %v5940 = vmul.f32 %v5874, %v5912
      %v5941 = vmul.f32 %v5875, %v5912
      %v5942 = vmul.f32 %v5876, %v5912
      %v5943 = vmul.f32 %v5877, %v5912
      %v5944 = vmul.f32 %v5878, %v5912
      %v5945 = vmul.f32 %v5879, %v5912
      %v5946 = vmul.f32 %v5880, %v5912
      %v5947 = vmul.f32 %v5881, %v5912
      %v5948 = vmul.f32 %v5882, %v5912
      %v5949 = vmul.f32 %v5883, %v5912
      %v5950 = vmul.f32 %v5884, %v5912
      %v5951 = vmul.f32 %v5885, %v5912
      %v5952 = vmul.f32 %v5886, %v5912
      %v5953 = vmul.f32 %v5887, %v5912
      %v5954 = vmul.f32 %v5888, %v5912
      %v5955 = vmul.f32 %v5889, %v5912
      %v5956 = vmul.f32 %v5890, %v5912
      %v5957 = vmul.f32 %v5891, %v5912
      %v5958 = vmul.f32 %v5892, %v5912
      %v5959 = vmul.f32 %v5893, %v5912
      %v5960 = vmul.f32 %v5894, %v5912
      %v5961 = vmul.f32 %v5895, %v5912
      %v5962 = vmul.f32 %v5896, %v5912
      %v5963 = vmul.f32 %v5897, %v5912
      %v5964 = vmul.f32 %v5898, %v5912
      %v5965 = vmul.f32 %v5899, %v5912
      %v5966 = vmul.f32 %v5900, %v5912
      %v5967 = vmul.f32 %v5901, %v5912
      %v5968 = vmul.f32 %v5902, %v5912
      %v5969 = vmul.f32 %v5903, %v5912
      %v5970 = vmul.f32 %v5904, %v5912
      %v5971 = vmul.f32 %v5905, %v5912
      %v5972 = vmul.f32 %v5906, %v5912
      %v5973 = vmul.f32 %v5907, %v5912
      %v5974 = vmul.f32 %v5908, %v5912
      %v5975 = vmul.f32 %v5909, %v5912
      %v5976 = vmul.f32 %v5910, %v5912
      %v5977 = vmax.f32 %v5913, 0.0
      %v5978 = vmax.f32 %v5914, 0.0
      %v5979 = vmax.f32 %v5915, 0.0
      %v5980 = vmax.f32 %v5916, 0.0
      %v5981 = vmax.f32 %v5917, 0.0
      %v5982 = vmax.f32 %v5918, 0.0
      %v5983 = vmax.f32 %v5919, 0.0
      %v5984 = vmax.f32 %v5920, 0.0
      %v5985 = vmax.f32 %v5921, 0.0
      %v5986 = vmax.f32 %v5922, 0.0
      %v5987 = vmax.f32 %v5923, 0.0
      %v5988 = vmax.f32 %v5924, 0.0
      %v5989 = vmax.f32 %v5925, 0.0
      %v5990 = vmax.f32 %v5926, 0.0
      %v5991 = vmax.f32 %v5927, 0.0
      %v5992 = vmax.f32 %v5928, 0.0
      %v5993 = vmax.f32 %v5929, 0.0
      %v5994 = vmax.f32 %v5930, 0.0
      %v5995 = vmax.f32 %v5931, 0.0
      %v5996 = vmax.f32 %v5932, 0.0
      %v5997 = vmax.f32 %v5933, 0.0
      %v5998 = vmax.f32 %v5934, 0.0
      %v5999 = vmax.f32 %v5935, 0.0
      %v6000 = vmax.f32 %v5936, 0.0
      %v6001 = vmax.f32 %v5937, 0.0
      %v6002 = vmax.f32 %v5938, 0.0
      %v6003 = vmax.f32 %v5939, 0.0
      %v6004 = vmax.f32 %v5940, 0.0
      %v6005 = vmax.f32 %v5941, 0.0
      %v6006 = vmax.f32 %v5942, 0.0
      %v6007 = vmax.f32 %v5943, 0.0
      %v6008 = vmax.f32 %v5944, 0.0
      %v6009 = vmax.f32 %v5945, 0.0
      %v6010 = vmax.f32 %v5946, 0.0
      %v6011 = vmax.f32 %v5947, 0.0
      %v6012 = vmax.f32 %v5948, 0.0
      %v6013 = vmax.f32 %v5949, 0.0
      %v6014 = vmax.f32 %v5950, 0.0
      %v6015 = vmax.f32 %v5951, 0.0
      %v6016 = vmax.f32 %v5952, 0.0
      %v6017 = vmax.f32 %v5953, 0.0
      %v6018 = vmax.f32 %v5954, 0.0
      %v6019 = vmax.f32 %v5955, 0.0
      %v6020 = vmax.f32 %v5956, 0.0
      %v6021 = vmax.f32 %v5957, 0.0
      %v6022 = vmax.f32 %v5958, 0.0
      %v6023 = vmax.f32 %v5959, 0.0
      %v6024 = vmax.f32 %v5960, 0.0
      %v6025 = vmax.f32 %v5961, 0.0
      %v6026 = vmax.f32 %v5962, 0.0
      %v6027 = vmax.f32 %v5963, 0.0
      %v6028 = vmax.f32 %v5964, 0.0
      %v6029 = vmax.f32 %v5965, 0.0
      %v6030 = vmax.f32 %v5966, 0.0
      %v6031 = vmax.f32 %v5967, 0.0
      %v6032 = vmax.f32 %v5968, 0.0
      %v6033 = vmax.f32 %v5969, 0.0
      %v6034 = vmax.f32 %v5970, 0.0
      %v6035 = vmax.f32 %v5971, 0.0
      %v6036 = vmax.f32 %v5972, 0.0
      %v6037 = vmax.f32 %v5973, 0.0
      %v6038 = vmax.f32 %v5974, 0.0
      %v6039 = vmax.f32 %v5975, 0.0
      %v6040 = vmax.f32 %v5976, 0.0
      %v6041 = vrot.slane %v5977, 2
      %v6042 = vrot.slane %v5978, 2
      %v6043 = vrot.slane %v5979, 2
      %v6044 = vrot.slane %v5980, 2
      %v6045 = vrot.slane %v5981, 2
      %v6046 = vrot.slane %v5982, 2
      %v6047 = vrot.slane %v5983, 2
      %v6048 = vrot.slane %v5984, 2
      %v6049 = vrot.slane %v5985, 2
      %v6050 = vrot.slane %v5986, 2
      %v6051 = vrot.slane %v5987, 2
      %v6052 = vrot.slane %v5988, 2
      %v6053 = vrot.slane %v5989, 2
      %v6054 = vrot.slane %v5990, 2
      %v6055 = vrot.slane %v5991, 2
      %v6056 = vrot.slane %v5992, 2
      %v6057 = vrot.slane %v5993, 2
      %v6058 = vrot.slane %v5994, 2
      %v6059 = vrot.slane %v5995, 2
      %v6060 = vrot.slane %v5996, 2
      %v6061 = vrot.slane %v5997, 2
      %v6062 = vrot.slane %v5998, 2
      %v6063 = vrot.slane %v5999, 2
      %v6064 = vrot.slane %v6000, 2
      %v6065 = vrot.slane %v6001, 2
      %v6066 = vrot.slane %v6002, 2
      %v6067 = vrot.slane %v6003, 2
      %v6068 = vrot.slane %v6004, 2
      %v6069 = vrot.slane %v6005, 2
      %v6070 = vrot.slane %v6006, 2
      %v6071 = vrot.slane %v6007, 2
      %v6072 = vrot.slane %v6008, 2
      %v6073 = vrot.slane %v6009, 2
      %v6074 = vrot.slane %v6010, 2
      %v6075 = vrot.slane %v6011, 2
      %v6076 = vrot.slane %v6012, 2
      %v6077 = vrot.slane %v6013, 2
      %v6078 = vrot.slane %v6014, 2
      %v6079 = vrot.slane %v6015, 2
      %v6080 = vrot.slane %v6016, 2
      %v6081 = vrot.slane %v6017, 2
      %v6082 = vrot.slane %v6018, 2
      %v6083 = vrot.slane %v6019, 2
      %v6084 = vrot.slane %v6020, 2
      %v6085 = vrot.slane %v6021, 2
      %v6086 = vrot.slane %v6022, 2
      %v6087 = vrot.slane %v6023, 2
      %v6088 = vrot.slane %v6024, 2
      %v6089 = vrot.slane %v6025, 2
      %v6090 = vrot.slane %v6026, 2
      %v6091 = vrot.slane %v6027, 2
      %v6092 = vrot.slane %v6028, 2
      %v6093 = vrot.slane %v6029, 2
      %v6094 = vrot.slane %v6030, 2
      %v6095 = vrot.slane %v6031, 2
      %v6096 = vrot.slane %v6032, 2
      %v6097 = vrot.slane %v6033, 2
      %v6098 = vrot.slane %v6034, 2
      %v6099 = vrot.slane %v6035, 2
      %v6100 = vrot.slane %v6036, 2
      %v6101 = vrot.slane %v6037, 2
      %v6102 = vrot.slane %v6038, 2
      %v6103 = vrot.slane %v6039, 2
      %v6104 = vrot.slane %v6040, 2
      %vm6105 = vcmp.lt.s32.totalorder %v172, 6
      %v6106 = vsel %vm6105, %v6103, %v6104
      %v6107 = vsel %vm6105, %v6102, %v6103
      %v6108 = vsel %vm6105, %v6101, %v6102
      %v6109 = vsel %vm6105, %v6100, %v6101
      %v6110 = vsel %vm6105, %v6099, %v6100
      %v6111 = vsel %vm6105, %v6098, %v6099
      %v6112 = vsel %vm6105, %v6097, %v6098
      %v6113 = vsel %vm6105, %v6096, %v6097
      %v6114 = vsel %vm6105, %v6095, %v6096
      %v6115 = vsel %vm6105, %v6094, %v6095
      %v6116 = vsel %vm6105, %v6093, %v6094
      %v6117 = vsel %vm6105, %v6092, %v6093
      %v6118 = vsel %vm6105, %v6091, %v6092
      %v6119 = vsel %vm6105, %v6090, %v6091
      %v6120 = vsel %vm6105, %v6089, %v6090
      %v6121 = vsel %vm6105, %v6088, %v6089
      %v6122 = vsel %vm6105, %v6087, %v6088
      %v6123 = vsel %vm6105, %v6086, %v6087
      %v6124 = vsel %vm6105, %v6085, %v6086
      %v6125 = vsel %vm6105, %v6084, %v6085
      %v6126 = vsel %vm6105, %v6083, %v6084
      %v6127 = vsel %vm6105, %v6082, %v6083
      %v6128 = vsel %vm6105, %v6081, %v6082
      %v6129 = vsel %vm6105, %v6080, %v6081
      %v6130 = vsel %vm6105, %v6079, %v6080
      %v6131 = vsel %vm6105, %v6078, %v6079
      %v6132 = vsel %vm6105, %v6077, %v6078
      %v6133 = vsel %vm6105, %v6076, %v6077
      %v6134 = vsel %vm6105, %v6075, %v6076
      %v6135 = vsel %vm6105, %v6074, %v6075
      %v6136 = vsel %vm6105, %v6073, %v6074
      %v6137 = vsel %vm6105, %v6072, %v6073
      %v6138 = vsel %vm6105, %v6071, %v6072
      %v6139 = vsel %vm6105, %v6070, %v6071
      %v6140 = vsel %vm6105, %v6069, %v6070
      %v6141 = vsel %vm6105, %v6068, %v6069
      %v6142 = vsel %vm6105, %v6067, %v6068
      %v6143 = vsel %vm6105, %v6066, %v6067
      %v6144 = vsel %vm6105, %v6065, %v6066
      %v6145 = vsel %vm6105, %v6064, %v6065
      %v6146 = vsel %vm6105, %v6063, %v6064
      %v6147 = vsel %vm6105, %v6062, %v6063
      %v6148 = vsel %vm6105, %v6061, %v6062
      %v6149 = vsel %vm6105, %v6060, %v6061
      %v6150 = vsel %vm6105, %v6059, %v6060
      %v6151 = vsel %vm6105, %v6058, %v6059
      %v6152 = vsel %vm6105, %v6057, %v6058
      %v6153 = vsel %vm6105, %v6056, %v6057
      %v6154 = vsel %vm6105, %v6055, %v6056
      %v6155 = vsel %vm6105, %v6054, %v6055
      %v6156 = vsel %vm6105, %v6053, %v6054
      %v6157 = vsel %vm6105, %v6052, %v6053
      %v6158 = vsel %vm6105, %v6051, %v6052
      %v6159 = vsel %vm6105, %v6050, %v6051
      %v6160 = vsel %vm6105, %v6049, %v6050
      %v6161 = vsel %vm6105, %v6048, %v6049
      %v6162 = vsel %vm6105, %v6047, %v6048
      %v6163 = vsel %vm6105, %v6046, %v6047
      %v6164 = vsel %vm6105, %v6045, %v6046
      %v6165 = vsel %vm6105, %v6044, %v6045
      %v6166 = vsel %vm6105, %v6043, %v6044
      %v6167 = vsel %vm6105, %v6042, %v6043
      %v6168 = vsel %vm6105, %v6041, %v6042
      %v6169 = vsel %vm6105, %v6104, %v6041
      %v6170 = vrot.slane %v5977, 6
      %v6171 = vrot.slane %v5978, 6
      %v6172 = vrot.slane %v5979, 6
      %v6173 = vrot.slane %v5980, 6
      %v6174 = vrot.slane %v5981, 6
      %v6175 = vrot.slane %v5982, 6
      %v6176 = vrot.slane %v5983, 6
      %v6177 = vrot.slane %v5984, 6
      %v6178 = vrot.slane %v5985, 6
      %v6179 = vrot.slane %v5986, 6
      %v6180 = vrot.slane %v5987, 6
      %v6181 = vrot.slane %v5988, 6
      %v6182 = vrot.slane %v5989, 6
      %v6183 = vrot.slane %v5990, 6
      %v6184 = vrot.slane %v5991, 6
      %v6185 = vrot.slane %v5992, 6
      %v6186 = vrot.slane %v5993, 6
      %v6187 = vrot.slane %v5994, 6
      %v6188 = vrot.slane %v5995, 6
      %v6189 = vrot.slane %v5996, 6
      %v6190 = vrot.slane %v5997, 6
      %v6191 = vrot.slane %v5998, 6
      %v6192 = vrot.slane %v5999, 6
      %v6193 = vrot.slane %v6000, 6
      %v6194 = vrot.slane %v6001, 6
      %v6195 = vrot.slane %v6002, 6
      %v6196 = vrot.slane %v6003, 6
      %v6197 = vrot.slane %v6004, 6
      %v6198 = vrot.slane %v6005, 6
      %v6199 = vrot.slane %v6006, 6
      %v6200 = vrot.slane %v6007, 6
      %v6201 = vrot.slane %v6008, 6
      %v6202 = vrot.slane %v6009, 6
      %v6203 = vrot.slane %v6010, 6
      %v6204 = vrot.slane %v6011, 6
      %v6205 = vrot.slane %v6012, 6
      %v6206 = vrot.slane %v6013, 6
      %v6207 = vrot.slane %v6014, 6
      %v6208 = vrot.slane %v6015, 6
      %v6209 = vrot.slane %v6016, 6
      %v6210 = vrot.slane %v6017, 6
      %v6211 = vrot.slane %v6018, 6
      %v6212 = vrot.slane %v6019, 6
      %v6213 = vrot.slane %v6020, 6
      %v6214 = vrot.slane %v6021, 6
      %v6215 = vrot.slane %v6022, 6
      %v6216 = vrot.slane %v6023, 6
      %v6217 = vrot.slane %v6024, 6
      %v6218 = vrot.slane %v6025, 6
      %v6219 = vrot.slane %v6026, 6
      %v6220 = vrot.slane %v6027, 6
      %v6221 = vrot.slane %v6028, 6
      %v6222 = vrot.slane %v6029, 6
      %v6223 = vrot.slane %v6030, 6
      %v6224 = vrot.slane %v6031, 6
      %v6225 = vrot.slane %v6032, 6
      %v6226 = vrot.slane %v6033, 6
      %v6227 = vrot.slane %v6034, 6
      %v6228 = vrot.slane %v6035, 6
      %v6229 = vrot.slane %v6036, 6
      %v6230 = vrot.slane %v6037, 6
      %v6231 = vrot.slane %v6038, 6
      %v6232 = vrot.slane %v6039, 6
      %v6233 = vrot.slane %v6040, 6
      %vm6234 = vcmp.lt.s32.totalorder %v172, 2
      %v6235 = vsel %vm6234, %v6232, %v6233
      %v6236 = vsel %vm6234, %v6231, %v6232
      %v6237 = vsel %vm6234, %v6230, %v6231
      %v6238 = vsel %vm6234, %v6229, %v6230
      %v6239 = vsel %vm6234, %v6228, %v6229
      %v6240 = vsel %vm6234, %v6227, %v6228
      %v6241 = vsel %vm6234, %v6226, %v6227
      %v6242 = vsel %vm6234, %v6225, %v6226
      %v6243 = vsel %vm6234, %v6224, %v6225
      %v6244 = vsel %vm6234, %v6223, %v6224
      %v6245 = vsel %vm6234, %v6222, %v6223
      %v6246 = vsel %vm6234, %v6221, %v6222
      %v6247 = vsel %vm6234, %v6220, %v6221
      %v6248 = vsel %vm6234, %v6219, %v6220
      %v6249 = vsel %vm6234, %v6218, %v6219
      %v6250 = vsel %vm6234, %v6217, %v6218
      %v6251 = vsel %vm6234, %v6216, %v6217
      %v6252 = vsel %vm6234, %v6215, %v6216
      %v6253 = vsel %vm6234, %v6214, %v6215
      %v6254 = vsel %vm6234, %v6213, %v6214
      %v6255 = vsel %vm6234, %v6212, %v6213
      %v6256 = vsel %vm6234, %v6211, %v6212
      %v6257 = vsel %vm6234, %v6210, %v6211
      %v6258 = vsel %vm6234, %v6209, %v6210
      %v6259 = vsel %vm6234, %v6208, %v6209
      %v6260 = vsel %vm6234, %v6207, %v6208
      %v6261 = vsel %vm6234, %v6206, %v6207
      %v6262 = vsel %vm6234, %v6205, %v6206
      %v6263 = vsel %vm6234, %v6204, %v6205
      %v6264 = vsel %vm6234, %v6203, %v6204
      %v6265 = vsel %vm6234, %v6202, %v6203
      %v6266 = vsel %vm6234, %v6201, %v6202
      %v6267 = vsel %vm6234, %v6200, %v6201
      %v6268 = vsel %vm6234, %v6199, %v6200
      %v6269 = vsel %vm6234, %v6198, %v6199
      %v6270 = vsel %vm6234, %v6197, %v6198
      %v6271 = vsel %vm6234, %v6196, %v6197
      %v6272 = vsel %vm6234, %v6195, %v6196
      %v6273 = vsel %vm6234, %v6194, %v6195
      %v6274 = vsel %vm6234, %v6193, %v6194
      %v6275 = vsel %vm6234, %v6192, %v6193
      %v6276 = vsel %vm6234, %v6191, %v6192
      %v6277 = vsel %vm6234, %v6190, %v6191
      %v6278 = vsel %vm6234, %v6189, %v6190
      %v6279 = vsel %vm6234, %v6188, %v6189
      %v6280 = vsel %vm6234, %v6187, %v6188
      %v6281 = vsel %vm6234, %v6186, %v6187
      %v6282 = vsel %vm6234, %v6185, %v6186
      %v6283 = vsel %vm6234, %v6184, %v6185
      %v6284 = vsel %vm6234, %v6183, %v6184
      %v6285 = vsel %vm6234, %v6182, %v6183
      %v6286 = vsel %vm6234, %v6181, %v6182
      %v6287 = vsel %vm6234, %v6180, %v6181
      %v6288 = vsel %vm6234, %v6179, %v6180
      %v6289 = vsel %vm6234, %v6178, %v6179
      %v6290 = vsel %vm6234, %v6177, %v6178
      %v6291 = vsel %vm6234, %v6176, %v6177
      %v6292 = vsel %vm6234, %v6175, %v6176
      %v6293 = vsel %vm6234, %v6174, %v6175
      %v6294 = vsel %vm6234, %v6173, %v6174
      %v6295 = vsel %vm6234, %v6172, %v6173
      %v6296 = vsel %vm6234, %v6171, %v6172
      %v6297 = vsel %vm6234, %v6170, %v6171
      %v6298 = vsel %vm6234, %v6233, %v6170
      %v6299 = vsel %vm684, 1, 0
      %v6300 = vsel %vm685, 1, 0
      %v6301 = vsel %vm686, 1, 0
      %v6302 = vsel %vm687, 1, 0
      %v6303 = vsel %vm688, 1, 0
      %v6304 = vsel %vm689, 1, 0
      %v6305 = vsel %vm690, 1, 0
      %v6306 = vsel %vm691, 1, 0
      %v6307 = vsel %vm692, 1, 0
      %v6308 = vsel %vm693, 1, 0
      %v6309 = vsel %vm694, 1, 0
      %v6310 = vsel %vm695, 1, 0
      %v6311 = vsel %vm696, 1, 0
      %v6312 = vsel %vm697, 1, 0
      %v6313 = vsel %vm698, 1, 0
      %v6314 = vsel %vm699, 1, 0
      %v6315 = vsel %vm700, 1, 0
      %v6316 = vsel %vm701, 1, 0
      %v6317 = vsel %vm702, 1, 0
      %v6318 = vsel %vm703, 1, 0
      %v6319 = vsel %vm704, 1, 0
      %v6320 = vsel %vm705, 1, 0
      %v6321 = vsel %vm706, 1, 0
      %v6322 = vsel %vm707, 1, 0
      %v6323 = vsel %vm708, 1, 0
      %v6324 = vsel %vm709, 1, 0
      %v6325 = vsel %vm710, 1, 0
      %v6326 = vsel %vm711, 1, 0
      %v6327 = vsel %vm712, 1, 0
      %v6328 = vsel %vm713, 1, 0
      %v6329 = vsel %vm714, 1, 0
      %v6330 = vsel %vm715, 1, 0
      %v6331 = vsel %vm716, 1, 0
      %v6332 = vsel %vm717, 1, 0
      %v6333 = vsel %vm718, 1, 0
      %v6334 = vsel %vm719, 1, 0
      %v6335 = vsel %vm720, 1, 0
      %v6336 = vsel %vm721, 1, 0
      %v6337 = vsel %vm722, 1, 0
      %v6338 = vsel %vm723, 1, 0
      %v6339 = vsel %vm724, 1, 0
      %v6340 = vsel %vm725, 1, 0
      %v6341 = vsel %vm726, 1, 0
      %v6342 = vsel %vm727, 1, 0
      %v6343 = vsel %vm728, 1, 0
      %v6344 = vsel %vm729, 1, 0
      %v6345 = vsel %vm730, 1, 0
      %v6346 = vsel %vm731, 1, 0
      %v6347 = vsel %vm732, 1, 0
      %v6348 = vsel %vm733, 1, 0
      %v6349 = vsel %vm734, 1, 0
      %v6350 = vsel %vm735, 1, 0
      %v6351 = vsel %vm736, 1, 0
      %v6352 = vsel %vm737, 1, 0
      %v6353 = vsel %vm738, 1, 0
      %v6354 = vsel %vm739, 1, 0
      %v6355 = vsel %vm740, 1, 0
      %v6356 = vsel %vm741, 1, 0
      %v6357 = vsel %vm742, 1, 0
      %v6358 = vsel %vm743, 1, 0
      %v6359 = vsel %vm744, 1, 0
      %v6360 = vsel %vm745, 1, 0
      %v6361 = vsel %vm746, 1, 0
      %v6362 = vsel %vm747, 1, 0
      %vm6363 = vcmp.eq.s32.totalorder %v6299, 1
      %vm6364 = vcmp.eq.s32.totalorder %v6300, 1
      %vm6365 = vcmp.eq.s32.totalorder %v6301, 1
      %vm6366 = vcmp.eq.s32.totalorder %v6302, 1
      %vm6367 = vcmp.eq.s32.totalorder %v6303, 1
      %vm6368 = vcmp.eq.s32.totalorder %v6304, 1
      %vm6369 = vcmp.eq.s32.totalorder %v6305, 1
      %vm6370 = vcmp.eq.s32.totalorder %v6306, 1
      %vm6371 = vcmp.eq.s32.totalorder %v6307, 1
      %vm6372 = vcmp.eq.s32.totalorder %v6308, 1
      %vm6373 = vcmp.eq.s32.totalorder %v6309, 1
      %vm6374 = vcmp.eq.s32.totalorder %v6310, 1
      %vm6375 = vcmp.eq.s32.totalorder %v6311, 1
      %vm6376 = vcmp.eq.s32.totalorder %v6312, 1
      %vm6377 = vcmp.eq.s32.totalorder %v6313, 1
      %vm6378 = vcmp.eq.s32.totalorder %v6314, 1
      %vm6379 = vcmp.eq.s32.totalorder %v6315, 1
      %vm6380 = vcmp.eq.s32.totalorder %v6316, 1
      %vm6381 = vcmp.eq.s32.totalorder %v6317, 1
      %vm6382 = vcmp.eq.s32.totalorder %v6318, 1
      %vm6383 = vcmp.eq.s32.totalorder %v6319, 1
      %vm6384 = vcmp.eq.s32.totalorder %v6320, 1
      %vm6385 = vcmp.eq.s32.totalorder %v6321, 1
      %vm6386 = vcmp.eq.s32.totalorder %v6322, 1
      %vm6387 = vcmp.eq.s32.totalorder %v6323, 1
      %vm6388 = vcmp.eq.s32.totalorder %v6324, 1
      %vm6389 = vcmp.eq.s32.totalorder %v6325, 1
      %vm6390 = vcmp.eq.s32.totalorder %v6326, 1
      %vm6391 = vcmp.eq.s32.totalorder %v6327, 1
      %vm6392 = vcmp.eq.s32.totalorder %v6328, 1
      %vm6393 = vcmp.eq.s32.totalorder %v6329, 1
      %vm6394 = vcmp.eq.s32.totalorder %v6330, 1
      %vm6395 = vcmp.eq.s32.totalorder %v6331, 1
      %vm6396 = vcmp.eq.s32.totalorder %v6332, 1
      %vm6397 = vcmp.eq.s32.totalorder %v6333, 1
      %vm6398 = vcmp.eq.s32.totalorder %v6334, 1
      %vm6399 = vcmp.eq.s32.totalorder %v6335, 1
      %vm6400 = vcmp.eq.s32.totalorder %v6336, 1
      %vm6401 = vcmp.eq.s32.totalorder %v6337, 1
      %vm6402 = vcmp.eq.s32.totalorder %v6338, 1
      %vm6403 = vcmp.eq.s32.totalorder %v6339, 1
      %vm6404 = vcmp.eq.s32.totalorder %v6340, 1
      %vm6405 = vcmp.eq.s32.totalorder %v6341, 1
      %vm6406 = vcmp.eq.s32.totalorder %v6342, 1
      %vm6407 = vcmp.eq.s32.totalorder %v6343, 1
      %vm6408 = vcmp.eq.s32.totalorder %v6344, 1
      %vm6409 = vcmp.eq.s32.totalorder %v6345, 1
      %vm6410 = vcmp.eq.s32.totalorder %v6346, 1
      %vm6411 = vcmp.eq.s32.totalorder %v6347, 1
      %vm6412 = vcmp.eq.s32.totalorder %v6348, 1
      %vm6413 = vcmp.eq.s32.totalorder %v6349, 1
      %vm6414 = vcmp.eq.s32.totalorder %v6350, 1
      %vm6415 = vcmp.eq.s32.totalorder %v6351, 1
      %vm6416 = vcmp.eq.s32.totalorder %v6352, 1
      %vm6417 = vcmp.eq.s32.totalorder %v6353, 1
      %vm6418 = vcmp.eq.s32.totalorder %v6354, 1
      %vm6419 = vcmp.eq.s32.totalorder %v6355, 1
      %vm6420 = vcmp.eq.s32.totalorder %v6356, 1
      %vm6421 = vcmp.eq.s32.totalorder %v6357, 1
      %vm6422 = vcmp.eq.s32.totalorder %v6358, 1
      %vm6423 = vcmp.eq.s32.totalorder %v6359, 1
      %vm6424 = vcmp.eq.s32.totalorder %v6360, 1
      %vm6425 = vcmp.eq.s32.totalorder %v6361, 1
      %vm6426 = vcmp.eq.s32.totalorder %v6362, 1
      %v6427 = vsel %vm6363, %v6298, %v5977
      %v6428 = vsel %vm6364, %v6297, %v5978
      %v6429 = vsel %vm6365, %v6296, %v5979
      %v6430 = vsel %vm6366, %v6295, %v5980
      %v6431 = vsel %vm6367, %v6294, %v5981
      %v6432 = vsel %vm6368, %v6293, %v5982
      %v6433 = vsel %vm6369, %v6292, %v5983
      %v6434 = vsel %vm6370, %v6291, %v5984
      %v6435 = vsel %vm6371, %v6290, %v5985
      %v6436 = vsel %vm6372, %v6289, %v5986
      %v6437 = vsel %vm6373, %v6288, %v5987
      %v6438 = vsel %vm6374, %v6287, %v5988
      %v6439 = vsel %vm6375, %v6286, %v5989
      %v6440 = vsel %vm6376, %v6285, %v5990
      %v6441 = vsel %vm6377, %v6284, %v5991
      %v6442 = vsel %vm6378, %v6283, %v5992
      %v6443 = vsel %vm6379, %v6282, %v5993
      %v6444 = vsel %vm6380, %v6281, %v5994
      %v6445 = vsel %vm6381, %v6280, %v5995
      %v6446 = vsel %vm6382, %v6279, %v5996
      %v6447 = vsel %vm6383, %v6278, %v5997
      %v6448 = vsel %vm6384, %v6277, %v5998
      %v6449 = vsel %vm6385, %v6276, %v5999
      %v6450 = vsel %vm6386, %v6275, %v6000
      %v6451 = vsel %vm6387, %v6274, %v6001
      %v6452 = vsel %vm6388, %v6273, %v6002
      %v6453 = vsel %vm6389, %v6272, %v6003
      %v6454 = vsel %vm6390, %v6271, %v6004
      %v6455 = vsel %vm6391, %v6270, %v6005
      %v6456 = vsel %vm6392, %v6269, %v6006
      %v6457 = vsel %vm6393, %v6268, %v6007
      %v6458 = vsel %vm6394, %v6267, %v6008
      %v6459 = vsel %vm6395, %v6266, %v6009
      %v6460 = vsel %vm6396, %v6265, %v6010
      %v6461 = vsel %vm6397, %v6264, %v6011
      %v6462 = vsel %vm6398, %v6263, %v6012
      %v6463 = vsel %vm6399, %v6262, %v6013
      %v6464 = vsel %vm6400, %v6261, %v6014
      %v6465 = vsel %vm6401, %v6260, %v6015
      %v6466 = vsel %vm6402, %v6259, %v6016
      %v6467 = vsel %vm6403, %v6258, %v6017
      %v6468 = vsel %vm6404, %v6257, %v6018
      %v6469 = vsel %vm6405, %v6256, %v6019
      %v6470 = vsel %vm6406, %v6255, %v6020
      %v6471 = vsel %vm6407, %v6254, %v6021
      %v6472 = vsel %vm6408, %v6253, %v6022
      %v6473 = vsel %vm6409, %v6252, %v6023
      %v6474 = vsel %vm6410, %v6251, %v6024
      %v6475 = vsel %vm6411, %v6250, %v6025
      %v6476 = vsel %vm6412, %v6249, %v6026
      %v6477 = vsel %vm6413, %v6248, %v6027
      %v6478 = vsel %vm6414, %v6247, %v6028
      %v6479 = vsel %vm6415, %v6246, %v6029
      %v6480 = vsel %vm6416, %v6245, %v6030
      %v6481 = vsel %vm6417, %v6244, %v6031
      %v6482 = vsel %vm6418, %v6243, %v6032
      %v6483 = vsel %vm6419, %v6242, %v6033
      %v6484 = vsel %vm6420, %v6241, %v6034
      %v6485 = vsel %vm6421, %v6240, %v6035
      %v6486 = vsel %vm6422, %v6239, %v6036
      %v6487 = vsel %vm6423, %v6238, %v6037
      %v6488 = vsel %vm6424, %v6237, %v6038
      %v6489 = vsel %vm6425, %v6236, %v6039
      %v6490 = vsel %vm6426, %v6235, %v6040
      %v6491 = vsel %vm620, 1, 0
      %v6492 = vsel %vm621, 1, 0
      %v6493 = vsel %vm622, 1, 0
      %v6494 = vsel %vm623, 1, 0
      %v6495 = vsel %vm624, 1, 0
      %v6496 = vsel %vm625, 1, 0
      %v6497 = vsel %vm626, 1, 0
      %v6498 = vsel %vm627, 1, 0
      %v6499 = vsel %vm628, 1, 0
      %v6500 = vsel %vm629, 1, 0
      %v6501 = vsel %vm630, 1, 0
      %v6502 = vsel %vm631, 1, 0
      %v6503 = vsel %vm632, 1, 0
      %v6504 = vsel %vm633, 1, 0
      %v6505 = vsel %vm634, 1, 0
      %v6506 = vsel %vm635, 1, 0
      %v6507 = vsel %vm636, 1, 0
      %v6508 = vsel %vm637, 1, 0
      %v6509 = vsel %vm638, 1, 0
      %v6510 = vsel %vm639, 1, 0
      %v6511 = vsel %vm640, 1, 0
      %v6512 = vsel %vm641, 1, 0
      %v6513 = vsel %vm642, 1, 0
      %v6514 = vsel %vm643, 1, 0
      %v6515 = vsel %vm644, 1, 0
      %v6516 = vsel %vm645, 1, 0
      %v6517 = vsel %vm646, 1, 0
      %v6518 = vsel %vm647, 1, 0
      %v6519 = vsel %vm648, 1, 0
      %v6520 = vsel %vm649, 1, 0
      %v6521 = vsel %vm650, 1, 0
      %v6522 = vsel %vm651, 1, 0
      %v6523 = vsel %vm652, 1, 0
      %v6524 = vsel %vm653, 1, 0
      %v6525 = vsel %vm654, 1, 0
      %v6526 = vsel %vm655, 1, 0
      %v6527 = vsel %vm656, 1, 0
      %v6528 = vsel %vm657, 1, 0
      %v6529 = vsel %vm658, 1, 0
      %v6530 = vsel %vm659, 1, 0
      %v6531 = vsel %vm660, 1, 0
      %v6532 = vsel %vm661, 1, 0
      %v6533 = vsel %vm662, 1, 0
      %v6534 = vsel %vm663, 1, 0
      %v6535 = vsel %vm664, 1, 0
      %v6536 = vsel %vm665, 1, 0
      %v6537 = vsel %vm666, 1, 0
      %v6538 = vsel %vm667, 1, 0
      %v6539 = vsel %vm668, 1, 0
      %v6540 = vsel %vm669, 1, 0
      %v6541 = vsel %vm670, 1, 0
      %v6542 = vsel %vm671, 1, 0
      %v6543 = vsel %vm672, 1, 0
      %v6544 = vsel %vm673, 1, 0
      %v6545 = vsel %vm674, 1, 0
      %v6546 = vsel %vm675, 1, 0
      %v6547 = vsel %vm676, 1, 0
      %v6548 = vsel %vm677, 1, 0
      %v6549 = vsel %vm678, 1, 0
      %v6550 = vsel %vm679, 1, 0
      %v6551 = vsel %vm680, 1, 0
      %v6552 = vsel %vm681, 1, 0
      %v6553 = vsel %vm682, 1, 0
      %v6554 = vsel %vm683, 1, 0
      %vm6555 = vcmp.eq.s32.totalorder %v6491, 1
      %vm6556 = vcmp.eq.s32.totalorder %v6492, 1
      %vm6557 = vcmp.eq.s32.totalorder %v6493, 1
      %vm6558 = vcmp.eq.s32.totalorder %v6494, 1
      %vm6559 = vcmp.eq.s32.totalorder %v6495, 1
      %vm6560 = vcmp.eq.s32.totalorder %v6496, 1
      %vm6561 = vcmp.eq.s32.totalorder %v6497, 1
      %vm6562 = vcmp.eq.s32.totalorder %v6498, 1
      %vm6563 = vcmp.eq.s32.totalorder %v6499, 1
      %vm6564 = vcmp.eq.s32.totalorder %v6500, 1
      %vm6565 = vcmp.eq.s32.totalorder %v6501, 1
      %vm6566 = vcmp.eq.s32.totalorder %v6502, 1
      %vm6567 = vcmp.eq.s32.totalorder %v6503, 1
      %vm6568 = vcmp.eq.s32.totalorder %v6504, 1
      %vm6569 = vcmp.eq.s32.totalorder %v6505, 1
      %vm6570 = vcmp.eq.s32.totalorder %v6506, 1
      %vm6571 = vcmp.eq.s32.totalorder %v6507, 1
      %vm6572 = vcmp.eq.s32.totalorder %v6508, 1
      %vm6573 = vcmp.eq.s32.totalorder %v6509, 1
      %vm6574 = vcmp.eq.s32.totalorder %v6510, 1
      %vm6575 = vcmp.eq.s32.totalorder %v6511, 1
      %vm6576 = vcmp.eq.s32.totalorder %v6512, 1
      %vm6577 = vcmp.eq.s32.totalorder %v6513, 1
      %vm6578 = vcmp.eq.s32.totalorder %v6514, 1
      %vm6579 = vcmp.eq.s32.totalorder %v6515, 1
      %vm6580 = vcmp.eq.s32.totalorder %v6516, 1
      %vm6581 = vcmp.eq.s32.totalorder %v6517, 1
      %vm6582 = vcmp.eq.s32.totalorder %v6518, 1
      %vm6583 = vcmp.eq.s32.totalorder %v6519, 1
      %vm6584 = vcmp.eq.s32.totalorder %v6520, 1
      %vm6585 = vcmp.eq.s32.totalorder %v6521, 1
      %vm6586 = vcmp.eq.s32.totalorder %v6522, 1
      %vm6587 = vcmp.eq.s32.totalorder %v6523, 1
      %vm6588 = vcmp.eq.s32.totalorder %v6524, 1
      %vm6589 = vcmp.eq.s32.totalorder %v6525, 1
      %vm6590 = vcmp.eq.s32.totalorder %v6526, 1
      %vm6591 = vcmp.eq.s32.totalorder %v6527, 1
      %vm6592 = vcmp.eq.s32.totalorder %v6528, 1
      %vm6593 = vcmp.eq.s32.totalorder %v6529, 1
      %vm6594 = vcmp.eq.s32.totalorder %v6530, 1
      %vm6595 = vcmp.eq.s32.totalorder %v6531, 1
      %vm6596 = vcmp.eq.s32.totalorder %v6532, 1
      %vm6597 = vcmp.eq.s32.totalorder %v6533, 1
      %vm6598 = vcmp.eq.s32.totalorder %v6534, 1
      %vm6599 = vcmp.eq.s32.totalorder %v6535, 1
      %vm6600 = vcmp.eq.s32.totalorder %v6536, 1
      %vm6601 = vcmp.eq.s32.totalorder %v6537, 1
      %vm6602 = vcmp.eq.s32.totalorder %v6538, 1
      %vm6603 = vcmp.eq.s32.totalorder %v6539, 1
      %vm6604 = vcmp.eq.s32.totalorder %v6540, 1
      %vm6605 = vcmp.eq.s32.totalorder %v6541, 1
      %vm6606 = vcmp.eq.s32.totalorder %v6542, 1
      %vm6607 = vcmp.eq.s32.totalorder %v6543, 1
      %vm6608 = vcmp.eq.s32.totalorder %v6544, 1
      %vm6609 = vcmp.eq.s32.totalorder %v6545, 1
      %vm6610 = vcmp.eq.s32.totalorder %v6546, 1
      %vm6611 = vcmp.eq.s32.totalorder %v6547, 1
      %vm6612 = vcmp.eq.s32.totalorder %v6548, 1
      %vm6613 = vcmp.eq.s32.totalorder %v6549, 1
      %vm6614 = vcmp.eq.s32.totalorder %v6550, 1
      %vm6615 = vcmp.eq.s32.totalorder %v6551, 1
      %vm6616 = vcmp.eq.s32.totalorder %v6552, 1
      %vm6617 = vcmp.eq.s32.totalorder %v6553, 1
      %vm6618 = vcmp.eq.s32.totalorder %v6554, 1
      %v6619 = vsel %vm6555, %v6168, %v6427
      %v6620 = vsel %vm6556, %v6167, %v6428
      %v6621 = vsel %vm6557, %v6166, %v6429
      %v6622 = vsel %vm6558, %v6165, %v6430
      %v6623 = vsel %vm6559, %v6164, %v6431
      %v6624 = vsel %vm6560, %v6163, %v6432
      %v6625 = vsel %vm6561, %v6162, %v6433
      %v6626 = vsel %vm6562, %v6161, %v6434
      %v6627 = vsel %vm6563, %v6160, %v6435
      %v6628 = vsel %vm6564, %v6159, %v6436
      %v6629 = vsel %vm6565, %v6158, %v6437
      %v6630 = vsel %vm6566, %v6157, %v6438
      %v6631 = vsel %vm6567, %v6156, %v6439
      %v6632 = vsel %vm6568, %v6155, %v6440
      %v6633 = vsel %vm6569, %v6154, %v6441
      %v6634 = vsel %vm6570, %v6153, %v6442
      %v6635 = vsel %vm6571, %v6152, %v6443
      %v6636 = vsel %vm6572, %v6151, %v6444
      %v6637 = vsel %vm6573, %v6150, %v6445
      %v6638 = vsel %vm6574, %v6149, %v6446
      %v6639 = vsel %vm6575, %v6148, %v6447
      %v6640 = vsel %vm6576, %v6147, %v6448
      %v6641 = vsel %vm6577, %v6146, %v6449
      %v6642 = vsel %vm6578, %v6145, %v6450
      %v6643 = vsel %vm6579, %v6144, %v6451
      %v6644 = vsel %vm6580, %v6143, %v6452
      %v6645 = vsel %vm6581, %v6142, %v6453
      %v6646 = vsel %vm6582, %v6141, %v6454
      %v6647 = vsel %vm6583, %v6140, %v6455
      %v6648 = vsel %vm6584, %v6139, %v6456
      %v6649 = vsel %vm6585, %v6138, %v6457
      %v6650 = vsel %vm6586, %v6137, %v6458
      %v6651 = vsel %vm6587, %v6136, %v6459
      %v6652 = vsel %vm6588, %v6135, %v6460
      %v6653 = vsel %vm6589, %v6134, %v6461
      %v6654 = vsel %vm6590, %v6133, %v6462
      %v6655 = vsel %vm6591, %v6132, %v6463
      %v6656 = vsel %vm6592, %v6131, %v6464
      %v6657 = vsel %vm6593, %v6130, %v6465
      %v6658 = vsel %vm6594, %v6129, %v6466
      %v6659 = vsel %vm6595, %v6128, %v6467
      %v6660 = vsel %vm6596, %v6127, %v6468
      %v6661 = vsel %vm6597, %v6126, %v6469
      %v6662 = vsel %vm6598, %v6125, %v6470
      %v6663 = vsel %vm6599, %v6124, %v6471
      %v6664 = vsel %vm6600, %v6123, %v6472
      %v6665 = vsel %vm6601, %v6122, %v6473
      %v6666 = vsel %vm6602, %v6121, %v6474
      %v6667 = vsel %vm6603, %v6120, %v6475
      %v6668 = vsel %vm6604, %v6119, %v6476
      %v6669 = vsel %vm6605, %v6118, %v6477
      %v6670 = vsel %vm6606, %v6117, %v6478
      %v6671 = vsel %vm6607, %v6116, %v6479
      %v6672 = vsel %vm6608, %v6115, %v6480
      %v6673 = vsel %vm6609, %v6114, %v6481
      %v6674 = vsel %vm6610, %v6113, %v6482
      %v6675 = vsel %vm6611, %v6112, %v6483
      %v6676 = vsel %vm6612, %v6111, %v6484
      %v6677 = vsel %vm6613, %v6110, %v6485
      %v6678 = vsel %vm6614, %v6109, %v6486
      %v6679 = vsel %vm6615, %v6108, %v6487
      %v6680 = vsel %vm6616, %v6107, %v6488
      %v6681 = vsel %vm6617, %v6106, %v6489
      %v6682 = vsel %vm6618, %v6169, %v6490
      %s6683 = scalar_lea.vmem [#allocation2], 32
      %6684 = vst.msk [vmem:[%s6683] sm:$0xff] %vm1712, %v6619
      %6685 = vst.msk [vmem:[%s6683 + $0x8] sm:$0xff] %vm1712, %v6620
      %6686 = vst.msk [vmem:[%s6683 + $0x10] sm:$0xff] %vm1712, %v6621
      %6687 = vst.msk [vmem:[%s6683 + $0x18] sm:$0xff] %vm1712, %v6622
      %6688 = vst.msk [vmem:[%s6683 + $0x20] sm:$0xff] %vm1712, %v6623
      %6689 = vst.msk [vmem:[%s6683 + $0x28] sm:$0xff] %vm1712, %v6624
      %6690 = vst.msk [vmem:[%s6683 + $0x30] sm:$0xff] %vm1712, %v6625
      %6691 = vst.msk [vmem:[%s6683 + $0x38] sm:$0xff] %vm1712, %v6626
      %6692 = vst.msk [vmem:[%s6683 + $0x40] sm:$0xff] %vm1712, %v6627
      %6693 = vst.msk [vmem:[%s6683 + $0x48] sm:$0xff] %vm1712, %v6628
      %6694 = vst.msk [vmem:[%s6683 + $0x50] sm:$0xff] %vm1712, %v6629
      %6695 = vst.msk [vmem:[%s6683 + $0x58] sm:$0xff] %vm1712, %v6630
      %6696 = vst.msk [vmem:[%s6683 + $0x60] sm:$0xff] %vm1712, %v6631
      %6697 = vst.msk [vmem:[%s6683 + $0x68] sm:$0xff] %vm1712, %v6632
      %6698 = vst.msk [vmem:[%s6683 + $0x70] sm:$0xff] %vm1712, %v6633
      %6699 = vst.msk [vmem:[%s6683 + $0x78] sm:$0xff] %vm1712, %v6634
      %6700 = vst.msk [vmem:[%s6683 + $0x80] sm:$0xff] %vm1712, %v6635
      %6701 = vst.msk [vmem:[%s6683 + $0x88] sm:$0xff] %vm1712, %v6636
      %6702 = vst.msk [vmem:[%s6683 + $0x90] sm:$0xff] %vm1712, %v6637
      %6703 = vst.msk [vmem:[%s6683 + $0x98] sm:$0xff] %vm1712, %v6638
      %6704 = vst.msk [vmem:[%s6683 + $0xa0] sm:$0xff] %vm1712, %v6639
      %6705 = vst.msk [vmem:[%s6683 + $0xa8] sm:$0xff] %vm1712, %v6640
      %6706 = vst.msk [vmem:[%s6683 + $0xb0] sm:$0xff] %vm1712, %v6641
      %6707 = vst.msk [vmem:[%s6683 + $0xb8] sm:$0xff] %vm1712, %v6642
      %6708 = vst.msk [vmem:[%s6683 + $0xc0] sm:$0xff] %vm1712, %v6643
      %6709 = vst.msk [vmem:[%s6683 + $0xc8] sm:$0xff] %vm1712, %v6644
      %6710 = vst.msk [vmem:[%s6683 + $0xd0] sm:$0xff] %vm1712, %v6645
      %6711 = vst.msk [vmem:[%s6683 + $0xd8] sm:$0xff] %vm1712, %v6646
      %6712 = vst.msk [vmem:[%s6683 + $0xe0] sm:$0xff] %vm1712, %v6647
      %6713 = vst.msk [vmem:[%s6683 + $0xe8] sm:$0xff] %vm1712, %v6648
      %6714 = vst.msk [vmem:[%s6683 + $0xf0] sm:$0xff] %vm1712, %v6649
      %6715 = vst.msk [vmem:[%s6683 + $0xf8] sm:$0xff] %vm1712, %v6650
      %6716 = vst.msk [vmem:[%s6683 + $0x100] sm:$0xff] %vm1712, %v6651
      %6717 = vst.msk [vmem:[%s6683 + $0x108] sm:$0xff] %vm1712, %v6652
      %6718 = vst.msk [vmem:[%s6683 + $0x110] sm:$0xff] %vm1712, %v6653
      %6719 = vst.msk [vmem:[%s6683 + $0x118] sm:$0xff] %vm1712, %v6654
      %6720 = vst.msk [vmem:[%s6683 + $0x120] sm:$0xff] %vm1712, %v6655
      %6721 = vst.msk [vmem:[%s6683 + $0x128] sm:$0xff] %vm1712, %v6656
      %6722 = vst.msk [vmem:[%s6683 + $0x130] sm:$0xff] %vm1712, %v6657
      %6723 = vst.msk [vmem:[%s6683 + $0x138] sm:$0xff] %vm1712, %v6658
      %6724 = vst.msk [vmem:[%s6683 + $0x140] sm:$0xff] %vm1712, %v6659
      %6725 = vst.msk [vmem:[%s6683 + $0x148] sm:$0xff] %vm1712, %v6660
      %6726 = vst.msk [vmem:[%s6683 + $0x150] sm:$0xff] %vm1712, %v6661
      %6727 = vst.msk [vmem:[%s6683 + $0x158] sm:$0xff] %vm1712, %v6662
      %6728 = vst.msk [vmem:[%s6683 + $0x160] sm:$0xff] %vm1712, %v6663
      %6729 = vst.msk [vmem:[%s6683 + $0x168] sm:$0xff] %vm1712, %v6664
      %6730 = vst.msk [vmem:[%s6683 + $0x170] sm:$0xff] %vm1712, %v6665
      %6731 = vst.msk [vmem:[%s6683 + $0x178] sm:$0xff] %vm1712, %v6666
      %6732 = vst.msk [vmem:[%s6683 + $0x180] sm:$0xff] %vm1712, %v6667
      %6733 = vst.msk [vmem:[%s6683 + $0x188] sm:$0xff] %vm1712, %v6668
      %6734 = vst.msk [vmem:[%s6683 + $0x190] sm:$0xff] %vm1712, %v6669
      %6735 = vst.msk [vmem:[%s6683 + $0x198] sm:$0xff] %vm1712, %v6670
      %6736 = vst.msk [vmem:[%s6683 + $0x1a0] sm:$0xff] %vm1712, %v6671
      %6737 = vst.msk [vmem:[%s6683 + $0x1a8] sm:$0xff] %vm1712, %v6672
      %6738 = vst.msk [vmem:[%s6683 + $0x1b0] sm:$0xff] %vm1712, %v6673
      %6739 = vst.msk [vmem:[%s6683 + $0x1b8] sm:$0xff] %vm1712, %v6674
      %6740 = vst.msk [vmem:[%s6683 + $0x1c0] sm:$0xff] %vm1712, %v6675
      %6741 = vst.msk [vmem:[%s6683 + $0x1c8] sm:$0xff] %vm1712, %v6676
      %6742 = vst.msk [vmem:[%s6683 + $0x1d0] sm:$0xff] %vm1712, %v6677
      %6743 = vst.msk [vmem:[%s6683 + $0x1d8] sm:$0xff] %vm1712, %v6678
      %6744 = vst.msk [vmem:[%s6683 + $0x1e0] sm:$0xff] %vm1712, %v6679
      %6745 = vst.msk [vmem:[%s6683 + $0x1e8] sm:$0xff] %vm1712, %v6680
      %6746 = vst.msk [vmem:[%s6683 + $0x1f0] sm:$0xff] %vm1712, %v6681
      %6747 = vst.msk [vmem:[%s6683 + $0x1f8] sm:$0xff] %vm1712, %v6682
      %s6748 = scalar_lea.vmem [#allocation2], 64
      %v6749 = vld [vmem:[%s6748] sm:$0xff]
      %v6750 = vld [vmem:[%s6748 + $0x8] sm:$0xff]
      %v6751 = vld [vmem:[%s6748 + $0x10] sm:$0xff]
      %v6752 = vld [vmem:[%s6748 + $0x18] sm:$0xff]
      %6753 = vst.msk [vmem:[#allocation2] sm:$0xff] %vm1712, %v6749
      %6754 = vst.msk [vmem:[#allocation2 + $0x8] sm:$0xff] %vm1712, %v6750
      %6755 = vst.msk [vmem:[#allocation2 + $0x10] sm:$0xff] %vm1712, %v6751
      %6756 = vst.msk [vmem:[#allocation2 + $0x18] sm:$0xff] %vm1712, %v6752
      %s6757 = scalar_lea.vmem [#allocation2], 480
      %v6758 = vld [vmem:[%s6757] sm:$0xff]
      %v6759 = vld [vmem:[%s6757 + $0x8] sm:$0xff]
      %v6760 = vld [vmem:[%s6757 + $0x10] sm:$0xff]
      %v6761 = vld [vmem:[%s6757 + $0x18] sm:$0xff]
      %s6762 = scalar_lea.vmem [#allocation2], 544
      %6763 = vst.msk [vmem:[%s6762] sm:$0xff] %vm1712, %v6758
      %6764 = vst.msk [vmem:[%s6762 + $0x8] sm:$0xff] %vm1712, %v6759
      %6765 = vst.msk [vmem:[%s6762 + $0x10] sm:$0xff] %vm1712, %v6760
      %6766 = vst.msk [vmem:[%s6762 + $0x18] sm:$0xff] %vm1712, %v6761
      %v6767 = vld [vmem:[#allocation2] sm:$0xff]
      %v6768 = vld [vmem:[#allocation2 + $0x8] sm:$0xff]
      %v6769 = vld [vmem:[#allocation2 + $0x10] sm:$0xff]
      %v6770 = vld [vmem:[#allocation2 + $0x18] sm:$0xff]
      %v6771 = vld [vmem:[#allocation2 + $0x20] sm:$0xff]
      %v6772 = vld [vmem:[#allocation2 + $0x28] sm:$0xff]
      %v6773 = vld [vmem:[#allocation2 + $0x30] sm:$0xff]
      %v6774 = vld [vmem:[#allocation2 + $0x38] sm:$0xff]
      %v6775 = vld [vmem:[#allocation2 + $0x40] sm:$0xff]
      %v6776 = vld [vmem:[#allocation2 + $0x48] sm:$0xff]
      %v6777 = vld [vmem:[#allocation2 + $0x50] sm:$0xff]
      %v6778 = vld [vmem:[#allocation2 + $0x58] sm:$0xff]
      %v6779 = vld [vmem:[#allocation2 + $0x60] sm:$0xff]
      %v6780 = vld [vmem:[#allocation2 + $0x68] sm:$0xff]
      %v6781 = vld [vmem:[#allocation2 + $0x70] sm:$0xff]
      %v6782 = vld [vmem:[#allocation2 + $0x78] sm:$0xff]
      %v6783 = vld [vmem:[#allocation2 + $0x80] sm:$0xff]
      %v6784 = vld [vmem:[#allocation2 + $0x88] sm:$0xff]
      %v6785 = vld [vmem:[#allocation2 + $0x90] sm:$0xff]
      %v6786 = vld [vmem:[#allocation2 + $0x98] sm:$0xff]
      %v6787 = vld [vmem:[#allocation2 + $0xa0] sm:$0xff]
      %v6788 = vld [vmem:[#allocation2 + $0xa8] sm:$0xff]
      %v6789 = vld [vmem:[#allocation2 + $0xb0] sm:$0xff]
      %v6790 = vld [vmem:[#allocation2 + $0xb8] sm:$0xff]
      %v6791 = vld [vmem:[#allocation2 + $0xc0] sm:$0xff]
      %v6792 = vld [vmem:[#allocation2 + $0xc8] sm:$0xff]
      %v6793 = vld [vmem:[#allocation2 + $0xd0] sm:$0xff]
      %v6794 = vld [vmem:[#allocation2 + $0xd8] sm:$0xff]
      %v6795 = vld [vmem:[#allocation2 + $0xe0] sm:$0xff]
      %v6796 = vld [vmem:[#allocation2 + $0xe8] sm:$0xff]
      %v6797 = vld [vmem:[#allocation2 + $0xf0] sm:$0xff]
      %v6798 = vld [vmem:[#allocation2 + $0xf8] sm:$0xff]
      %v6799 = vld [vmem:[#allocation2 + $0x100] sm:$0xff]
      %v6800 = vld [vmem:[#allocation2 + $0x108] sm:$0xff]
      %v6801 = vld [vmem:[#allocation2 + $0x110] sm:$0xff]
      %v6802 = vld [vmem:[#allocation2 + $0x118] sm:$0xff]
      %v6803 = vld [vmem:[#allocation2 + $0x120] sm:$0xff]
      %v6804 = vld [vmem:[#allocation2 + $0x128] sm:$0xff]
      %v6805 = vld [vmem:[#allocation2 + $0x130] sm:$0xff]
      %v6806 = vld [vmem:[#allocation2 + $0x138] sm:$0xff]
      %v6807 = vld [vmem:[#allocation2 + $0x140] sm:$0xff]
      %v6808 = vld [vmem:[#allocation2 + $0x148] sm:$0xff]
      %v6809 = vld [vmem:[#allocation2 + $0x150] sm:$0xff]
      %v6810 = vld [vmem:[#allocation2 + $0x158] sm:$0xff]
      %v6811 = vld [vmem:[#allocation2 + $0x160] sm:$0xff]
      %v6812 = vld [vmem:[#allocation2 + $0x168] sm:$0xff]
      %v6813 = vld [vmem:[#allocation2 + $0x170] sm:$0xff]
      %v6814 = vld [vmem:[#allocation2 + $0x178] sm:$0xff]
      %v6815 = vld [vmem:[#allocation2 + $0x180] sm:$0xff]
      %v6816 = vld [vmem:[#allocation2 + $0x188] sm:$0xff]
      %v6817 = vld [vmem:[#allocation2 + $0x190] sm:$0xff]
      %v6818 = vld [vmem:[#allocation2 + $0x198] sm:$0xff]
      %v6819 = vld [vmem:[#allocation2 + $0x1a0] sm:$0xff]
      %v6820 = vld [vmem:[#allocation2 + $0x1a8] sm:$0xff]
      %v6821 = vld [vmem:[#allocation2 + $0x1b0] sm:$0xff]
      %v6822 = vld [vmem:[#allocation2 + $0x1b8] sm:$0xff]
      %v6823 = vld [vmem:[#allocation2 + $0x1c0] sm:$0xff]
      %v6824 = vld [vmem:[#allocation2 + $0x1c8] sm:$0xff]
      %v6825 = vld [vmem:[#allocation2 + $0x1d0] sm:$0xff]
      %v6826 = vld [vmem:[#allocation2 + $0x1d8] sm:$0xff]
      %v6827 = vld [vmem:[#allocation2 + $0x1e0] sm:$0xff]
      %v6828 = vld [vmem:[#allocation2 + $0x1e8] sm:$0xff]
      %v6829 = vld [vmem:[#allocation2 + $0x1f0] sm:$0xff]
      %v6830 = vld [vmem:[#allocation2 + $0x1f8] sm:$0xff]
      %v6831 = vld [vmem:[%s6748] sm:$0xff]
      %v6832 = vld [vmem:[%s6748 + $0x8] sm:$0xff]
      %v6833 = vld [vmem:[%s6748 + $0x10] sm:$0xff]
      %v6834 = vld [vmem:[%s6748 + $0x18] sm:$0xff]
      %v6835 = vld [vmem:[%s6748 + $0x20] sm:$0xff]
      %v6836 = vld [vmem:[%s6748 + $0x28] sm:$0xff]
      %v6837 = vld [vmem:[%s6748 + $0x30] sm:$0xff]
      %v6838 = vld [vmem:[%s6748 + $0x38] sm:$0xff]
      %v6839 = vld [vmem:[%s6748 + $0x40] sm:$0xff]
      %v6840 = vld [vmem:[%s6748 + $0x48] sm:$0xff]
      %v6841 = vld [vmem:[%s6748 + $0x50] sm:$0xff]
      %v6842 = vld [vmem:[%s6748 + $0x58] sm:$0xff]
      %v6843 = vld [vmem:[%s6748 + $0x60] sm:$0xff]
      %v6844 = vld [vmem:[%s6748 + $0x68] sm:$0xff]
      %v6845 = vld [vmem:[%s6748 + $0x70] sm:$0xff]
      %v6846 = vld [vmem:[%s6748 + $0x78] sm:$0xff]
      %v6847 = vld [vmem:[%s6748 + $0x80] sm:$0xff]
      %v6848 = vld [vmem:[%s6748 + $0x88] sm:$0xff]
      %v6849 = vld [vmem:[%s6748 + $0x90] sm:$0xff]
      %v6850 = vld [vmem:[%s6748 + $0x98] sm:$0xff]
      %v6851 = vld [vmem:[%s6748 + $0xa0] sm:$0xff]
      %v6852 = vld [vmem:[%s6748 + $0xa8] sm:$0xff]
      %v6853 = vld [vmem:[%s6748 + $0xb0] sm:$0xff]
      %v6854 = vld [vmem:[%s6748 + $0xb8] sm:$0xff]
      %v6855 = vld [vmem:[%s6748 + $0xc0] sm:$0xff]
      %v6856 = vld [vmem:[%s6748 + $0xc8] sm:$0xff]
      %v6857 = vld [vmem:[%s6748 + $0xd0] sm:$0xff]
      %v6858 = vld [vmem:[%s6748 + $0xd8] sm:$0xff]
      %v6859 = vld [vmem:[%s6748 + $0xe0] sm:$0xff]
      %v6860 = vld [vmem:[%s6748 + $0xe8] sm:$0xff]
      %v6861 = vld [vmem:[%s6748 + $0xf0] sm:$0xff]
      %v6862 = vld [vmem:[%s6748 + $0xf8] sm:$0xff]
      %v6863 = vld [vmem:[%s6748 + $0x100] sm:$0xff]
      %v6864 = vld [vmem:[%s6748 + $0x108] sm:$0xff]
      %v6865 = vld [vmem:[%s6748 + $0x110] sm:$0xff]
      %v6866 = vld [vmem:[%s6748 + $0x118] sm:$0xff]
      %v6867 = vld [vmem:[%s6748 + $0x120] sm:$0xff]
      %v6868 = vld [vmem:[%s6748 + $0x128] sm:$0xff]
      %v6869 = vld [vmem:[%s6748 + $0x130] sm:$0xff]
      %v6870 = vld [vmem:[%s6748 + $0x138] sm:$0xff]
      %v6871 = vld [vmem:[%s6748 + $0x140] sm:$0xff]
      %v6872 = vld [vmem:[%s6748 + $0x148] sm:$0xff]
      %v6873 = vld [vmem:[%s6748 + $0x150] sm:$0xff]
      %v6874 = vld [vmem:[%s6748 + $0x158] sm:$0xff]
      %v6875 = vld [vmem:[%s6748 + $0x160] sm:$0xff]
      %v6876 = vld [vmem:[%s6748 + $0x168] sm:$0xff]
      %v6877 = vld [vmem:[%s6748 + $0x170] sm:$0xff]
      %v6878 = vld [vmem:[%s6748 + $0x178] sm:$0xff]
      %v6879 = vld [vmem:[%s6748 + $0x180] sm:$0xff]
      %v6880 = vld [vmem:[%s6748 + $0x188] sm:$0xff]
      %v6881 = vld [vmem:[%s6748 + $0x190] sm:$0xff]
      %v6882 = vld [vmem:[%s6748 + $0x198] sm:$0xff]
      %v6883 = vld [vmem:[%s6748 + $0x1a0] sm:$0xff]
      %v6884 = vld [vmem:[%s6748 + $0x1a8] sm:$0xff]
      %v6885 = vld [vmem:[%s6748 + $0x1b0] sm:$0xff]
      %v6886 = vld [vmem:[%s6748 + $0x1b8] sm:$0xff]
      %v6887 = vld [vmem:[%s6748 + $0x1c0] sm:$0xff]
      %v6888 = vld [vmem:[%s6748 + $0x1c8] sm:$0xff]
      %v6889 = vld [vmem:[%s6748 + $0x1d0] sm:$0xff]
      %v6890 = vld [vmem:[%s6748 + $0x1d8] sm:$0xff]
      %v6891 = vld [vmem:[%s6748 + $0x1e0] sm:$0xff]
      %v6892 = vld [vmem:[%s6748 + $0x1e8] sm:$0xff]
      %v6893 = vld [vmem:[%s6748 + $0x1f0] sm:$0xff]
      %v6894 = vld [vmem:[%s6748 + $0x1f8] sm:$0xff]
      %v6895 = vrot.slane %v6767, 7
      %v6896 = vrot.slane %v6768, 7
      %v6897 = vrot.slane %v6769, 7
      %v6898 = vrot.slane %v6770, 7
      %v6899 = vrot.slane %v6771, 7
      %v6900 = vrot.slane %v6772, 7
      %v6901 = vrot.slane %v6773, 7
      %v6902 = vrot.slane %v6774, 7
      %v6903 = vrot.slane %v6775, 7
      %v6904 = vrot.slane %v6776, 7
      %v6905 = vrot.slane %v6777, 7
      %v6906 = vrot.slane %v6778, 7
      %v6907 = vrot.slane %v6779, 7
      %v6908 = vrot.slane %v6780, 7
      %v6909 = vrot.slane %v6781, 7
      %v6910 = vrot.slane %v6782, 7
      %v6911 = vrot.slane %v6783, 7
      %v6912 = vrot.slane %v6784, 7
      %v6913 = vrot.slane %v6785, 7
      %v6914 = vrot.slane %v6786, 7
      %v6915 = vrot.slane %v6787, 7
      %v6916 = vrot.slane %v6788, 7
      %v6917 = vrot.slane %v6789, 7
      %v6918 = vrot.slane %v6790, 7
      %v6919 = vrot.slane %v6791, 7
      %v6920 = vrot.slane %v6792, 7
      %v6921 = vrot.slane %v6793, 7
      %v6922 = vrot.slane %v6794, 7
      %v6923 = vrot.slane %v6795, 7
      %v6924 = vrot.slane %v6796, 7
      %v6925 = vrot.slane %v6797, 7
      %v6926 = vrot.slane %v6798, 7
      %v6927 = vrot.slane %v6799, 7
      %v6928 = vrot.slane %v6800, 7
      %v6929 = vrot.slane %v6801, 7
      %v6930 = vrot.slane %v6802, 7
      %v6931 = vrot.slane %v6803, 7
      %v6932 = vrot.slane %v6804, 7
      %v6933 = vrot.slane %v6805, 7
      %v6934 = vrot.slane %v6806, 7
      %v6935 = vrot.slane %v6807, 7
      %v6936 = vrot.slane %v6808, 7
      %v6937 = vrot.slane %v6809, 7
      %v6938 = vrot.slane %v6810, 7
      %v6939 = vrot.slane %v6811, 7
      %v6940 = vrot.slane %v6812, 7
      %v6941 = vrot.slane %v6813, 7
      %v6942 = vrot.slane %v6814, 7
      %v6943 = vrot.slane %v6815, 7
      %v6944 = vrot.slane %v6816, 7
      %v6945 = vrot.slane %v6817, 7
      %v6946 = vrot.slane %v6818, 7
      %v6947 = vrot.slane %v6819, 7
      %v6948 = vrot.slane %v6820, 7
      %v6949 = vrot.slane %v6821, 7
      %v6950 = vrot.slane %v6822, 7
      %v6951 = vrot.slane %v6823, 7
      %v6952 = vrot.slane %v6824, 7
      %v6953 = vrot.slane %v6825, 7
      %v6954 = vrot.slane %v6826, 7
      %v6955 = vrot.slane %v6827, 7
      %v6956 = vrot.slane %v6828, 7
      %v6957 = vrot.slane %v6829, 7
      %v6958 = vrot.slane %v6830, 7
      %v6959 = vsel %vm1006, %v6957, %v6958
      %v6960 = vsel %vm1006, %v6956, %v6957
      %v6961 = vsel %vm1006, %v6955, %v6956
      %v6962 = vsel %vm1006, %v6954, %v6955
      %v6963 = vsel %vm1006, %v6953, %v6954
      %v6964 = vsel %vm1006, %v6952, %v6953
      %v6965 = vsel %vm1006, %v6951, %v6952
      %v6966 = vsel %vm1006, %v6950, %v6951
      %v6967 = vsel %vm1006, %v6949, %v6950
      %v6968 = vsel %vm1006, %v6948, %v6949
      %v6969 = vsel %vm1006, %v6947, %v6948
      %v6970 = vsel %vm1006, %v6946, %v6947
      %v6971 = vsel %vm1006, %v6945, %v6946
      %v6972 = vsel %vm1006, %v6944, %v6945
      %v6973 = vsel %vm1006, %v6943, %v6944
      %v6974 = vsel %vm1006, %v6942, %v6943
      %v6975 = vsel %vm1006, %v6941, %v6942
      %v6976 = vsel %vm1006, %v6940, %v6941
      %v6977 = vsel %vm1006, %v6939, %v6940
      %v6978 = vsel %vm1006, %v6938, %v6939
      %v6979 = vsel %vm1006, %v6937, %v6938
      %v6980 = vsel %vm1006, %v6936, %v6937
      %v6981 = vsel %vm1006, %v6935, %v6936
      %v6982 = vsel %vm1006, %v6934, %v6935
      %v6983 = vsel %vm1006, %v6933, %v6934
      %v6984 = vsel %vm1006, %v6932, %v6933
      %v6985 = vsel %vm1006, %v6931, %v6932
      %v6986 = vsel %vm1006, %v6930, %v6931
      %v6987 = vsel %vm1006, %v6929, %v6930
      %v6988 = vsel %vm1006, %v6928, %v6929
      %v6989 = vsel %vm1006, %v6927, %v6928
      %v6990 = vsel %vm1006, %v6926, %v6927
      %v6991 = vsel %vm1006, %v6925, %v6926
      %v6992 = vsel %vm1006, %v6924, %v6925
      %v6993 = vsel %vm1006, %v6923, %v6924
      %v6994 = vsel %vm1006, %v6922, %v6923
      %v6995 = vsel %vm1006, %v6921, %v6922
      %v6996 = vsel %vm1006, %v6920, %v6921
      %v6997 = vsel %vm1006, %v6919, %v6920
      %v6998 = vsel %vm1006, %v6918, %v6919
      %v6999 = vsel %vm1006, %v6917, %v6918
      %v7000 = vsel %vm1006, %v6916, %v6917
      %v7001 = vsel %vm1006, %v6915, %v6916
      %v7002 = vsel %vm1006, %v6914, %v6915
      %v7003 = vsel %vm1006, %v6913, %v6914
      %v7004 = vsel %vm1006, %v6912, %v6913
      %v7005 = vsel %vm1006, %v6911, %v6912
      %v7006 = vsel %vm1006, %v6910, %v6911
      %v7007 = vsel %vm1006, %v6909, %v6910
      %v7008 = vsel %vm1006, %v6908, %v6909
      %v7009 = vsel %vm1006, %v6907, %v6908
      %v7010 = vsel %vm1006, %v6906, %v6907
      %v7011 = vsel %vm1006, %v6905, %v6906
      %v7012 = vsel %vm1006, %v6904, %v6905
      %v7013 = vsel %vm1006, %v6903, %v6904
      %v7014 = vsel %vm1006, %v6902, %v6903
      %v7015 = vsel %vm1006, %v6901, %v6902
      %v7016 = vsel %vm1006, %v6900, %v6901
      %v7017 = vsel %vm1006, %v6899, %v6900
      %v7018 = vsel %vm1006, %v6898, %v6899
      %v7019 = vsel %vm1006, %v6897, %v6898
      %v7020 = vsel %vm1006, %v6896, %v6897
      %v7021 = vsel %vm1006, %v6895, %v6896
      %v7022 = vsel %vm1006, %v6958, %v6895
      %v7023 = vrot.slane %v6767, 1
      %v7024 = vrot.slane %v6768, 1
      %v7025 = vrot.slane %v6769, 1
      %v7026 = vrot.slane %v6770, 1
      %v7027 = vrot.slane %v6771, 1
      %v7028 = vrot.slane %v6772, 1
      %v7029 = vrot.slane %v6773, 1
      %v7030 = vrot.slane %v6774, 1
      %v7031 = vrot.slane %v6775, 1
      %v7032 = vrot.slane %v6776, 1
      %v7033 = vrot.slane %v6777, 1
      %v7034 = vrot.slane %v6778, 1
      %v7035 = vrot.slane %v6779, 1
      %v7036 = vrot.slane %v6780, 1
      %v7037 = vrot.slane %v6781, 1
      %v7038 = vrot.slane %v6782, 1
      %v7039 = vrot.slane %v6783, 1
      %v7040 = vrot.slane %v6784, 1
      %v7041 = vrot.slane %v6785, 1
      %v7042 = vrot.slane %v6786, 1
      %v7043 = vrot.slane %v6787, 1
      %v7044 = vrot.slane %v6788, 1
      %v7045 = vrot.slane %v6789, 1
      %v7046 = vrot.slane %v6790, 1
      %v7047 = vrot.slane %v6791, 1
      %v7048 = vrot.slane %v6792, 1
      %v7049 = vrot.slane %v6793, 1
      %v7050 = vrot.slane %v6794, 1
      %v7051 = vrot.slane %v6795, 1
      %v7052 = vrot.slane %v6796, 1
      %v7053 = vrot.slane %v6797, 1
      %v7054 = vrot.slane %v6798, 1
      %v7055 = vrot.slane %v6799, 1
      %v7056 = vrot.slane %v6800, 1
      %v7057 = vrot.slane %v6801, 1
      %v7058 = vrot.slane %v6802, 1
      %v7059 = vrot.slane %v6803, 1
      %v7060 = vrot.slane %v6804, 1
      %v7061 = vrot.slane %v6805, 1
      %v7062 = vrot.slane %v6806, 1
      %v7063 = vrot.slane %v6807, 1
      %v7064 = vrot.slane %v6808, 1
      %v7065 = vrot.slane %v6809, 1
      %v7066 = vrot.slane %v6810, 1
      %v7067 = vrot.slane %v6811, 1
      %v7068 = vrot.slane %v6812, 1
      %v7069 = vrot.slane %v6813, 1
      %v7070 = vrot.slane %v6814, 1
      %v7071 = vrot.slane %v6815, 1
      %v7072 = vrot.slane %v6816, 1
      %v7073 = vrot.slane %v6817, 1
      %v7074 = vrot.slane %v6818, 1
      %v7075 = vrot.slane %v6819, 1
      %v7076 = vrot.slane %v6820, 1
      %v7077 = vrot.slane %v6821, 1
      %v7078 = vrot.slane %v6822, 1
      %v7079 = vrot.slane %v6823, 1
      %v7080 = vrot.slane %v6824, 1
      %v7081 = vrot.slane %v6825, 1
      %v7082 = vrot.slane %v6826, 1
      %v7083 = vrot.slane %v6827, 1
      %v7084 = vrot.slane %v6828, 1
      %v7085 = vrot.slane %v6829, 1
      %v7086 = vrot.slane %v6830, 1
      %v7087 = vsel %vm1135, %v7085, %v7086
      %v7088 = vsel %vm1135, %v7084, %v7085
      %v7089 = vsel %vm1135, %v7083, %v7084
      %v7090 = vsel %vm1135, %v7082, %v7083
      %v7091 = vsel %vm1135, %v7081, %v7082
      %v7092 = vsel %vm1135, %v7080, %v7081
      %v7093 = vsel %vm1135, %v7079, %v7080
      %v7094 = vsel %vm1135, %v7078, %v7079
      %v7095 = vsel %vm1135, %v7077, %v7078
      %v7096 = vsel %vm1135, %v7076, %v7077
      %v7097 = vsel %vm1135, %v7075, %v7076
      %v7098 = vsel %vm1135, %v7074, %v7075
      %v7099 = vsel %vm1135, %v7073, %v7074
      %v7100 = vsel %vm1135, %v7072, %v7073
      %v7101 = vsel %vm1135, %v7071, %v7072
      %v7102 = vsel %vm1135, %v7070, %v7071
      %v7103 = vsel %vm1135, %v7069, %v7070
      %v7104 = vsel %vm1135, %v7068, %v7069
      %v7105 = vsel %vm1135, %v7067, %v7068
      %v7106 = vsel %vm1135, %v7066, %v7067
      %v7107 = vsel %vm1135, %v7065, %v7066
      %v7108 = vsel %vm1135, %v7064, %v7065
      %v7109 = vsel %vm1135, %v7063, %v7064
      %v7110 = vsel %vm1135, %v7062, %v7063
      %v7111 = vsel %vm1135, %v7061, %v7062
      %v7112 = vsel %vm1135, %v7060, %v7061
      %v7113 = vsel %vm1135, %v7059, %v7060
      %v7114 = vsel %vm1135, %v7058, %v7059
      %v7115 = vsel %vm1135, %v7057, %v7058
      %v7116 = vsel %vm1135, %v7056, %v7057
      %v7117 = vsel %vm1135, %v7055, %v7056
      %v7118 = vsel %vm1135, %v7054, %v7055
      %v7119 = vsel %vm1135, %v7053, %v7054
      %v7120 = vsel %vm1135, %v7052, %v7053
      %v7121 = vsel %vm1135, %v7051, %v7052
      %v7122 = vsel %vm1135, %v7050, %v7051
      %v7123 = vsel %vm1135, %v7049, %v7050
      %v7124 = vsel %vm1135, %v7048, %v7049
      %v7125 = vsel %vm1135, %v7047, %v7048
      %v7126 = vsel %vm1135, %v7046, %v7047
      %v7127 = vsel %vm1135, %v7045, %v7046
      %v7128 = vsel %vm1135, %v7044, %v7045
      %v7129 = vsel %vm1135, %v7043, %v7044
      %v7130 = vsel %vm1135, %v7042, %v7043
      %v7131 = vsel %vm1135, %v7041, %v7042
      %v7132 = vsel %vm1135, %v7040, %v7041
      %v7133 = vsel %vm1135, %v7039, %v7040
      %v7134 = vsel %vm1135, %v7038, %v7039
      %v7135 = vsel %vm1135, %v7037, %v7038
      %v7136 = vsel %vm1135, %v7036, %v7037
      %v7137 = vsel %vm1135, %v7035, %v7036
      %v7138 = vsel %vm1135, %v7034, %v7035
      %v7139 = vsel %vm1135, %v7033, %v7034
      %v7140 = vsel %vm1135, %v7032, %v7033
      %v7141 = vsel %vm1135, %v7031, %v7032
      %v7142 = vsel %vm1135, %v7030, %v7031
      %v7143 = vsel %vm1135, %v7029, %v7030
      %v7144 = vsel %vm1135, %v7028, %v7029
      %v7145 = vsel %vm1135, %v7027, %v7028
      %v7146 = vsel %vm1135, %v7026, %v7027
      %v7147 = vsel %vm1135, %v7025, %v7026
      %v7148 = vsel %vm1135, %v7024, %v7025
      %v7149 = vsel %vm1135, %v7023, %v7024
      %v7150 = vsel %vm1135, %v7086, %v7023
      %7215 = vrot.lane.b32.xlu0 %v6767, 4
      %v7216 = vpop.permute.xlu0 %7215
      %7217 = vrot.lane.b32.xlu0 %v6768, 4
      %v7218 = vpop.permute.xlu0 %7217
      %7219 = vrot.lane.b32.xlu0 %v6769, 4
      %v7220 = vpop.permute.xlu0 %7219
      %7221 = vrot.lane.b32.xlu0 %v6770, 4
      %v7222 = vpop.permute.xlu0 %7221
      %7223 = vrot.lane.b32.xlu0 %v6771, 4
      %v7224 = vpop.permute.xlu0 %7223
      %7225 = vrot.lane.b32.xlu0 %v6772, 4
      %v7226 = vpop.permute.xlu0 %7225
      %7227 = vrot.lane.b32.xlu0 %v6773, 4
      %v7228 = vpop.permute.xlu0 %7227
      %7229 = vrot.lane.b32.xlu0 %v6774, 4
      %v7230 = vpop.permute.xlu0 %7229
      %7231 = vrot.lane.b32.xlu0 %v6775, 4
      %v7232 = vpop.permute.xlu0 %7231
      %7233 = vrot.lane.b32.xlu0 %v6776, 4
      %v7234 = vpop.permute.xlu0 %7233
      %7235 = vrot.lane.b32.xlu0 %v6777, 4
      %v7236 = vpop.permute.xlu0 %7235
      %7237 = vrot.lane.b32.xlu0 %v6778, 4
      %v7238 = vpop.permute.xlu0 %7237
      %7239 = vrot.lane.b32.xlu0 %v6779, 4
      %v7240 = vpop.permute.xlu0 %7239
      %7241 = vrot.lane.b32.xlu0 %v6780, 4
      %v7242 = vpop.permute.xlu0 %7241
      %7243 = vrot.lane.b32.xlu0 %v6781, 4
      %v7244 = vpop.permute.xlu0 %7243
      %7245 = vrot.lane.b32.xlu0 %v6782, 4
      %v7246 = vpop.permute.xlu0 %7245
      %7247 = vrot.lane.b32.xlu0 %v6783, 4
      %v7248 = vpop.permute.xlu0 %7247
      %7249 = vrot.lane.b32.xlu0 %v6784, 4
      %v7250 = vpop.permute.xlu0 %7249
      %7251 = vrot.lane.b32.xlu0 %v6785, 4
      %v7252 = vpop.permute.xlu0 %7251
      %7253 = vrot.lane.b32.xlu0 %v6786, 4
      %v7254 = vpop.permute.xlu0 %7253
      %7255 = vrot.lane.b32.xlu0 %v6787, 4
      %v7256 = vpop.permute.xlu0 %7255
      %7257 = vrot.lane.b32.xlu0 %v6788, 4
      %v7258 = vpop.permute.xlu0 %7257
      %7259 = vrot.lane.b32.xlu0 %v6789, 4
      %v7260 = vpop.permute.xlu0 %7259
      %7261 = vrot.lane.b32.xlu0 %v6790, 4
      %v7262 = vpop.permute.xlu0 %7261
      %7263 = vrot.lane.b32.xlu0 %v6791, 4
      %v7264 = vpop.permute.xlu0 %7263
      %7265 = vrot.lane.b32.xlu0 %v6792, 4
      %v7266 = vpop.permute.xlu0 %7265
      %7267 = vrot.lane.b32.xlu0 %v6793, 4
      %v7268 = vpop.permute.xlu0 %7267
      %7269 = vrot.lane.b32.xlu0 %v6794, 4
      %v7270 = vpop.permute.xlu0 %7269
      %7271 = vrot.lane.b32.xlu0 %v6795, 4
      %v7272 = vpop.permute.xlu0 %7271
      %7273 = vrot.lane.b32.xlu0 %v6796, 4
      %v7274 = vpop.permute.xlu0 %7273
      %7275 = vrot.lane.b32.xlu0 %v6797, 4
      %v7276 = vpop.permute.xlu0 %7275
      %7277 = vrot.lane.b32.xlu0 %v6798, 4
      %v7278 = vpop.permute.xlu0 %7277
      %7279 = vrot.lane.b32.xlu0 %v6799, 4
      %v7280 = vpop.permute.xlu0 %7279
      %7281 = vrot.lane.b32.xlu0 %v6800, 4
      %v7282 = vpop.permute.xlu0 %7281
      %7283 = vrot.lane.b32.xlu0 %v6801, 4
      %v7284 = vpop.permute.xlu0 %7283
      %7285 = vrot.lane.b32.xlu0 %v6802, 4
      %v7286 = vpop.permute.xlu0 %7285
      %7287 = vrot.lane.b32.xlu0 %v6803, 4
      %v7288 = vpop.permute.xlu0 %7287
      %7289 = vrot.lane.b32.xlu0 %v6804, 4
      %v7290 = vpop.permute.xlu0 %7289
      %7291 = vrot.lane.b32.xlu0 %v6805, 4
      %v7292 = vpop.permute.xlu0 %7291
      %7293 = vrot.lane.b32.xlu0 %v6806, 4
      %v7294 = vpop.permute.xlu0 %7293
      %7295 = vrot.lane.b32.xlu0 %v6807, 4
      %v7296 = vpop.permute.xlu0 %7295
      %7297 = vrot.lane.b32.xlu0 %v6808, 4
      %v7298 = vpop.permute.xlu0 %7297
      %7299 = vrot.lane.b32.xlu0 %v6809, 4
      %v7300 = vpop.permute.xlu0 %7299
      %7301 = vrot.lane.b32.xlu0 %v6810, 4
      %v7302 = vpop.permute.xlu0 %7301
      %7303 = vrot.lane.b32.xlu0 %v6811, 4
      %v7304 = vpop.permute.xlu0 %7303
      %7305 = vrot.lane.b32.xlu0 %v6812, 4
      %v7306 = vpop.permute.xlu0 %7305
      %7307 = vrot.lane.b32.xlu0 %v6813, 4
      %v7308 = vpop.permute.xlu0 %7307
      %7309 = vrot.lane.b32.xlu0 %v6814, 4
      %v7310 = vpop.permute.xlu0 %7309
      %7311 = vrot.lane.b32.xlu0 %v6815, 4
      %v7312 = vpop.permute.xlu0 %7311
      %7313 = vrot.lane.b32.xlu0 %v6816, 4
      %v7314 = vpop.permute.xlu0 %7313
      %7315 = vrot.lane.b32.xlu0 %v6817, 4
      %v7316 = vpop.permute.xlu0 %7315
      %7317 = vrot.lane.b32.xlu0 %v6818, 4
      %v7318 = vpop.permute.xlu0 %7317
      %7319 = vrot.lane.b32.xlu0 %v6819, 4
      %v7320 = vpop.permute.xlu0 %7319
      %7321 = vrot.lane.b32.xlu0 %v6820, 4
      %v7322 = vpop.permute.xlu0 %7321
      %7323 = vrot.lane.b32.xlu0 %v6821, 4
      %v7324 = vpop.permute.xlu0 %7323
      %7325 = vrot.lane.b32.xlu0 %v6822, 4
      %v7326 = vpop.permute.xlu0 %7325
      %7327 = vrot.lane.b32.xlu0 %v6823, 4
      %v7328 = vpop.permute.xlu0 %7327
      %7329 = vrot.lane.b32.xlu0 %v6824, 4
      %v7330 = vpop.permute.xlu0 %7329
      %7331 = vrot.lane.b32.xlu0 %v6825, 4
      %v7332 = vpop.permute.xlu0 %7331
      %7333 = vrot.lane.b32.xlu0 %v6826, 4
      %v7334 = vpop.permute.xlu0 %7333
      %7335 = vrot.lane.b32.xlu0 %v6827, 4
      %v7336 = vpop.permute.xlu0 %7335
      %7337 = vrot.lane.b32.xlu0 %v6828, 4
      %v7338 = vpop.permute.xlu0 %7337
      %7339 = vrot.lane.b32.xlu0 %v6829, 4
      %v7340 = vpop.permute.xlu0 %7339
      %7341 = vrot.lane.b32.xlu0 %v6830, 4
      %v7342 = vpop.permute.xlu0 %7341
      %7471 = vrot.lane.b32.xlu0 %v7149, 8
      %v7472 = vpop.permute.xlu0 %7471
      %7473 = vrot.lane.b32.xlu0 %v7148, 8
      %v7474 = vpop.permute.xlu0 %7473
      %7475 = vrot.lane.b32.xlu0 %v7147, 8
      %v7476 = vpop.permute.xlu0 %7475
      %7477 = vrot.lane.b32.xlu0 %v7146, 8
      %v7478 = vpop.permute.xlu0 %7477
      %7479 = vrot.lane.b32.xlu0 %v7145, 8
      %v7480 = vpop.permute.xlu0 %7479
      %7481 = vrot.lane.b32.xlu0 %v7144, 8
      %v7482 = vpop.permute.xlu0 %7481
      %7483 = vrot.lane.b32.xlu0 %v7143, 8
      %v7484 = vpop.permute.xlu0 %7483
      %7485 = vrot.lane.b32.xlu0 %v7142, 8
      %v7486 = vpop.permute.xlu0 %7485
      %7487 = vrot.lane.b32.xlu0 %v7141, 8
      %v7488 = vpop.permute.xlu0 %7487
      %7489 = vrot.lane.b32.xlu0 %v7140, 8
      %v7490 = vpop.permute.xlu0 %7489
      %7491 = vrot.lane.b32.xlu0 %v7139, 8
      %v7492 = vpop.permute.xlu0 %7491
      %7493 = vrot.lane.b32.xlu0 %v7138, 8
      %v7494 = vpop.permute.xlu0 %7493
      %7495 = vrot.lane.b32.xlu0 %v7137, 8
      %v7496 = vpop.permute.xlu0 %7495
      %7497 = vrot.lane.b32.xlu0 %v7136, 8
      %v7498 = vpop.permute.xlu0 %7497
      %7499 = vrot.lane.b32.xlu0 %v7135, 8
      %v7500 = vpop.permute.xlu0 %7499
      %7501 = vrot.lane.b32.xlu0 %v7134, 8
      %v7502 = vpop.permute.xlu0 %7501
      %7503 = vrot.lane.b32.xlu0 %v7133, 8
      %v7504 = vpop.permute.xlu0 %7503
      %7505 = vrot.lane.b32.xlu0 %v7132, 8
      %v7506 = vpop.permute.xlu0 %7505
      %7507 = vrot.lane.b32.xlu0 %v7131, 8
      %v7508 = vpop.permute.xlu0 %7507
      %7509 = vrot.lane.b32.xlu0 %v7130, 8
      %v7510 = vpop.permute.xlu0 %7509
      %7511 = vrot.lane.b32.xlu0 %v7129, 8
      %v7512 = vpop.permute.xlu0 %7511
      %7513 = vrot.lane.b32.xlu0 %v7128, 8
      %v7514 = vpop.permute.xlu0 %7513
      %7515 = vrot.lane.b32.xlu0 %v7127, 8
      %v7516 = vpop.permute.xlu0 %7515
      %7517 = vrot.lane.b32.xlu0 %v7126, 8
      %v7518 = vpop.permute.xlu0 %7517
      %7519 = vrot.lane.b32.xlu0 %v7125, 8
      %v7520 = vpop.permute.xlu0 %7519
      %7521 = vrot.lane.b32.xlu0 %v7124, 8
      %v7522 = vpop.permute.xlu0 %7521
      %7523 = vrot.lane.b32.xlu0 %v7123, 8
      %v7524 = vpop.permute.xlu0 %7523
      %7525 = vrot.lane.b32.xlu0 %v7122, 8
      %v7526 = vpop.permute.xlu0 %7525
      %7527 = vrot.lane.b32.xlu0 %v7121, 8
      %v7528 = vpop.permute.xlu0 %7527
      %7529 = vrot.lane.b32.xlu0 %v7120, 8
      %v7530 = vpop.permute.xlu0 %7529
      %7531 = vrot.lane.b32.xlu0 %v7119, 8
      %v7532 = vpop.permute.xlu0 %7531
      %7533 = vrot.lane.b32.xlu0 %v7118, 8
      %v7534 = vpop.permute.xlu0 %7533
      %7535 = vrot.lane.b32.xlu0 %v7117, 8
      %v7536 = vpop.permute.xlu0 %7535
      %7537 = vrot.lane.b32.xlu0 %v7116, 8
      %v7538 = vpop.permute.xlu0 %7537
      %7539 = vrot.lane.b32.xlu0 %v7115, 8
      %v7540 = vpop.permute.xlu0 %7539
      %7541 = vrot.lane.b32.xlu0 %v7114, 8
      %v7542 = vpop.permute.xlu0 %7541
      %7543 = vrot.lane.b32.xlu0 %v7113, 8
      %v7544 = vpop.permute.xlu0 %7543
      %7545 = vrot.lane.b32.xlu0 %v7112, 8
      %v7546 = vpop.permute.xlu0 %7545
      %7547 = vrot.lane.b32.xlu0 %v7111, 8
      %v7548 = vpop.permute.xlu0 %7547
      %7549 = vrot.lane.b32.xlu0 %v7110, 8
      %v7550 = vpop.permute.xlu0 %7549
      %7551 = vrot.lane.b32.xlu0 %v7109, 8
      %v7552 = vpop.permute.xlu0 %7551
      %7553 = vrot.lane.b32.xlu0 %v7108, 8
      %v7554 = vpop.permute.xlu0 %7553
      %7555 = vrot.lane.b32.xlu0 %v7107, 8
      %v7556 = vpop.permute.xlu0 %7555
      %7557 = vrot.lane.b32.xlu0 %v7106, 8
      %v7558 = vpop.permute.xlu0 %7557
      %7559 = vrot.lane.b32.xlu0 %v7105, 8
      %v7560 = vpop.permute.xlu0 %7559
      %7561 = vrot.lane.b32.xlu0 %v7104, 8
      %v7562 = vpop.permute.xlu0 %7561
      %7563 = vrot.lane.b32.xlu0 %v7103, 8
      %v7564 = vpop.permute.xlu0 %7563
      %7565 = vrot.lane.b32.xlu0 %v7102, 8
      %v7566 = vpop.permute.xlu0 %7565
      %7567 = vrot.lane.b32.xlu0 %v7101, 8
      %v7568 = vpop.permute.xlu0 %7567
      %7569 = vrot.lane.b32.xlu0 %v7100, 8
      %v7570 = vpop.permute.xlu0 %7569
      %7571 = vrot.lane.b32.xlu0 %v7099, 8
      %v7572 = vpop.permute.xlu0 %7571
      %7573 = vrot.lane.b32.xlu0 %v7098, 8
      %v7574 = vpop.permute.xlu0 %7573
      %7575 = vrot.lane.b32.xlu0 %v7097, 8
      %v7576 = vpop.permute.xlu0 %7575
      %7577 = vrot.lane.b32.xlu0 %v7096, 8
      %v7578 = vpop.permute.xlu0 %7577
      %7579 = vrot.lane.b32.xlu0 %v7095, 8
      %v7580 = vpop.permute.xlu0 %7579
      %7581 = vrot.lane.b32.xlu0 %v7094, 8
      %v7582 = vpop.permute.xlu0 %7581
      %7583 = vrot.lane.b32.xlu0 %v7093, 8
      %v7584 = vpop.permute.xlu0 %7583
      %7585 = vrot.lane.b32.xlu0 %v7092, 8
      %v7586 = vpop.permute.xlu0 %7585
      %7587 = vrot.lane.b32.xlu0 %v7091, 8
      %v7588 = vpop.permute.xlu0 %7587
      %7589 = vrot.lane.b32.xlu0 %v7090, 8
      %v7590 = vpop.permute.xlu0 %7589
      %7591 = vrot.lane.b32.xlu0 %v7089, 8
      %v7592 = vpop.permute.xlu0 %7591
      %7593 = vrot.lane.b32.xlu0 %v7088, 8
      %v7594 = vpop.permute.xlu0 %7593
      %7595 = vrot.lane.b32.xlu0 %v7087, 8
      %v7596 = vpop.permute.xlu0 %7595
      %7597 = vrot.lane.b32.xlu0 %v7150, 8
      %v7598 = vpop.permute.xlu0 %7597
      %v7663 = vsel %vm1712, %v7022, %v7216
      %v7664 = vsel %vm1712, %v7021, %v7218
      %v7665 = vsel %vm1712, %v7020, %v7220
      %v7666 = vsel %vm1712, %v7019, %v7222
      %v7667 = vsel %vm1712, %v7018, %v7224
      %v7668 = vsel %vm1712, %v7017, %v7226
      %v7669 = vsel %vm1712, %v7016, %v7228
      %v7670 = vsel %vm1712, %v7015, %v7230
      %v7671 = vsel %vm1712, %v7014, %v7232
      %v7672 = vsel %vm1712, %v7013, %v7234
      %v7673 = vsel %vm1712, %v7012, %v7236
      %v7674 = vsel %vm1712, %v7011, %v7238
      %v7675 = vsel %vm1712, %v7010, %v7240
      %v7676 = vsel %vm1712, %v7009, %v7242
      %v7677 = vsel %vm1712, %v7008, %v7244
      %v7678 = vsel %vm1712, %v7007, %v7246
      %v7679 = vsel %vm1712, %v7006, %v7248
      %v7680 = vsel %vm1712, %v7005, %v7250
      %v7681 = vsel %vm1712, %v7004, %v7252
      %v7682 = vsel %vm1712, %v7003, %v7254
      %v7683 = vsel %vm1712, %v7002, %v7256
      %v7684 = vsel %vm1712, %v7001, %v7258
      %v7685 = vsel %vm1712, %v7000, %v7260
      %v7686 = vsel %vm1712, %v6999, %v7262
      %v7687 = vsel %vm1712, %v6998, %v7264
      %v7688 = vsel %vm1712, %v6997, %v7266
      %v7689 = vsel %vm1712, %v6996, %v7268
      %v7690 = vsel %vm1712, %v6995, %v7270
      %v7691 = vsel %vm1712, %v6994, %v7272
      %v7692 = vsel %vm1712, %v6993, %v7274
      %v7693 = vsel %vm1712, %v6992, %v7276
      %v7694 = vsel %vm1712, %v6991, %v7278
      %v7695 = vsel %vm1712, %v6990, %v7280
      %v7696 = vsel %vm1712, %v6989, %v7282
      %v7697 = vsel %vm1712, %v6988, %v7284
      %v7698 = vsel %vm1712, %v6987, %v7286
      %v7699 = vsel %vm1712, %v6986, %v7288
      %v7700 = vsel %vm1712, %v6985, %v7290
      %v7701 = vsel %vm1712, %v6984, %v7292
      %v7702 = vsel %vm1712, %v6983, %v7294
      %v7703 = vsel %vm1712, %v6982, %v7296
      %v7704 = vsel %vm1712, %v6981, %v7298
      %v7705 = vsel %vm1712, %v6980, %v7300
      %v7706 = vsel %vm1712, %v6979, %v7302
      %v7707 = vsel %vm1712, %v6978, %v7304
      %v7708 = vsel %vm1712, %v6977, %v7306
      %v7709 = vsel %vm1712, %v6976, %v7308
      %v7710 = vsel %vm1712, %v6975, %v7310
      %v7711 = vsel %vm1712, %v6974, %v7312
      %v7712 = vsel %vm1712, %v6973, %v7314
      %v7713 = vsel %vm1712, %v6972, %v7316
      %v7714 = vsel %vm1712, %v6971, %v7318
      %v7715 = vsel %vm1712, %v6970, %v7320
      %v7716 = vsel %vm1712, %v6969, %v7322
      %v7717 = vsel %vm1712, %v6968, %v7324
      %v7718 = vsel %vm1712, %v6967, %v7326
      %v7719 = vsel %vm1712, %v6966, %v7328
      %v7720 = vsel %vm1712, %v6965, %v7330
      %v7721 = vsel %vm1712, %v6964, %v7332
      %v7722 = vsel %vm1712, %v6963, %v7334
      %v7723 = vsel %vm1712, %v6962, %v7336
      %v7724 = vsel %vm1712, %v6961, %v7338
      %v7725 = vsel %vm1712, %v6960, %v7340
      %v7726 = vsel %vm1712, %v6959, %v7342
      %v7727 = vsel %vm1777, %v7663, %v7472
      %v7728 = vsel %vm1777, %v7664, %v7474
      %v7729 = vsel %vm1777, %v7665, %v7476
      %v7730 = vsel %vm1777, %v7666, %v7478
      %v7731 = vsel %vm1777, %v7667, %v7480
      %v7732 = vsel %vm1777, %v7668, %v7482
      %v7733 = vsel %vm1777, %v7669, %v7484
      %v7734 = vsel %vm1777, %v7670, %v7486
      %v7735 = vsel %vm1777, %v7671, %v7488
      %v7736 = vsel %vm1777, %v7672, %v7490
      %v7737 = vsel %vm1777, %v7673, %v7492
      %v7738 = vsel %vm1777, %v7674, %v7494
      %v7739 = vsel %vm1777, %v7675, %v7496
      %v7740 = vsel %vm1777, %v7676, %v7498
      %v7741 = vsel %vm1777, %v7677, %v7500
      %v7742 = vsel %vm1777, %v7678, %v7502
      %v7743 = vsel %vm1777, %v7679, %v7504
      %v7744 = vsel %vm1777, %v7680, %v7506
      %v7745 = vsel %vm1777, %v7681, %v7508
      %v7746 = vsel %vm1777, %v7682, %v7510
      %v7747 = vsel %vm1777, %v7683, %v7512
      %v7748 = vsel %vm1777, %v7684, %v7514
      %v7749 = vsel %vm1777, %v7685, %v7516
      %v7750 = vsel %vm1777, %v7686, %v7518
      %v7751 = vsel %vm1777, %v7687, %v7520
      %v7752 = vsel %vm1777, %v7688, %v7522
      %v7753 = vsel %vm1777, %v7689, %v7524
      %v7754 = vsel %vm1777, %v7690, %v7526
      %v7755 = vsel %vm1777, %v7691, %v7528
      %v7756 = vsel %vm1777, %v7692, %v7530
      %v7757 = vsel %vm1777, %v7693, %v7532
      %v7758 = vsel %vm1777, %v7694, %v7534
      %v7759 = vsel %vm1777, %v7695, %v7536
      %v7760 = vsel %vm1777, %v7696, %v7538
      %v7761 = vsel %vm1777, %v7697, %v7540
      %v7762 = vsel %vm1777, %v7698, %v7542
      %v7763 = vsel %vm1777, %v7699, %v7544
      %v7764 = vsel %vm1777, %v7700, %v7546
      %v7765 = vsel %vm1777, %v7701, %v7548
      %v7766 = vsel %vm1777, %v7702, %v7550
      %v7767 = vsel %vm1777, %v7703, %v7552
      %v7768 = vsel %vm1777, %v7704, %v7554
      %v7769 = vsel %vm1777, %v7705, %v7556
      %v7770 = vsel %vm1777, %v7706, %v7558
      %v7771 = vsel %vm1777, %v7707, %v7560
      %v7772 = vsel %vm1777, %v7708, %v7562
      %v7773 = vsel %vm1777, %v7709, %v7564
      %v7774 = vsel %vm1777, %v7710, %v7566
      %v7775 = vsel %vm1777, %v7711, %v7568
      %v7776 = vsel %vm1777, %v7712, %v7570
      %v7777 = vsel %vm1777, %v7713, %v7572
      %v7778 = vsel %vm1777, %v7714, %v7574
      %v7779 = vsel %vm1777, %v7715, %v7576
      %v7780 = vsel %vm1777, %v7716, %v7578
      %v7781 = vsel %vm1777, %v7717, %v7580
      %v7782 = vsel %vm1777, %v7718, %v7582
      %v7783 = vsel %vm1777, %v7719, %v7584
      %v7784 = vsel %vm1777, %v7720, %v7586
      %v7785 = vsel %vm1777, %v7721, %v7588
      %v7786 = vsel %vm1777, %v7722, %v7590
      %v7787 = vsel %vm1777, %v7723, %v7592
      %v7788 = vsel %vm1777, %v7724, %v7594
      %v7789 = vsel %vm1777, %v7725, %v7596
      %v7790 = vsel %vm1777, %v7726, %v7598
      %v7791 = vld [vmem:[%s2] sm:$0xff]
      %v7792 = vld [vmem:[%s2 + $0x8] sm:$0xf]
      %v7793 = vrot.slane %v6619, 7
      %v7794 = vrot.slane %v6620, 7
      %v7795 = vrot.slane %v6621, 7
      %v7796 = vrot.slane %v6622, 7
      %v7797 = vrot.slane %v6623, 7
      %v7798 = vrot.slane %v6624, 7
      %v7799 = vrot.slane %v6625, 7
      %v7800 = vrot.slane %v6626, 7
      %v7801 = vrot.slane %v6627, 7
      %v7802 = vrot.slane %v6628, 7
      %v7803 = vrot.slane %v6629, 7
      %v7804 = vrot.slane %v6630, 7
      %v7805 = vrot.slane %v6631, 7
      %v7806 = vrot.slane %v6632, 7
      %v7807 = vrot.slane %v6633, 7
      %v7808 = vrot.slane %v6634, 7
      %v7809 = vrot.slane %v6635, 7
      %v7810 = vrot.slane %v6636, 7
      %v7811 = vrot.slane %v6637, 7
      %v7812 = vrot.slane %v6638, 7
      %v7813 = vrot.slane %v6639, 7
      %v7814 = vrot.slane %v6640, 7
      %v7815 = vrot.slane %v6641, 7
      %v7816 = vrot.slane %v6642, 7
      %v7817 = vrot.slane %v6643, 7
      %v7818 = vrot.slane %v6644, 7
      %v7819 = vrot.slane %v6645, 7
      %v7820 = vrot.slane %v6646, 7
      %v7821 = vrot.slane %v6647, 7
      %v7822 = vrot.slane %v6648, 7
      %v7823 = vrot.slane %v6649, 7
      %v7824 = vrot.slane %v6650, 7
      %v7825 = vrot.slane %v6651, 7
      %v7826 = vrot.slane %v6652, 7
      %v7827 = vrot.slane %v6653, 7
      %v7828 = vrot.slane %v6654, 7
      %v7829 = vrot.slane %v6655, 7
      %v7830 = vrot.slane %v6656, 7
      %v7831 = vrot.slane %v6657, 7
      %v7832 = vrot.slane %v6658, 7
      %v7833 = vrot.slane %v6659, 7
      %v7834 = vrot.slane %v6660, 7
      %v7835 = vrot.slane %v6661, 7
      %v7836 = vrot.slane %v6662, 7
      %v7837 = vrot.slane %v6663, 7
      %v7838 = vrot.slane %v6664, 7
      %v7839 = vrot.slane %v6665, 7
      %v7840 = vrot.slane %v6666, 7
      %v7841 = vrot.slane %v6667, 7
      %v7842 = vrot.slane %v6668, 7
      %v7843 = vrot.slane %v6669, 7
      %v7844 = vrot.slane %v6670, 7
      %v7845 = vrot.slane %v6671, 7
      %v7846 = vrot.slane %v6672, 7
      %v7847 = vrot.slane %v6673, 7
      %v7848 = vrot.slane %v6674, 7
      %v7849 = vrot.slane %v6675, 7
      %v7850 = vrot.slane %v6676, 7
      %v7851 = vrot.slane %v6677, 7
      %v7852 = vrot.slane %v6678, 7
      %v7853 = vrot.slane %v6679, 7
      %v7854 = vrot.slane %v6680, 7
      %v7855 = vrot.slane %v6681, 7
      %v7856 = vrot.slane %v6682, 7
      %v7857 = vsel %vm1006, %v7855, %v7856
      %v7858 = vsel %vm1006, %v7854, %v7855
      %v7859 = vsel %vm1006, %v7853, %v7854
      %v7860 = vsel %vm1006, %v7852, %v7853
      %v7861 = vsel %vm1006, %v7851, %v7852
      %v7862 = vsel %vm1006, %v7850, %v7851
      %v7863 = vsel %vm1006, %v7849, %v7850
      %v7864 = vsel %vm1006, %v7848, %v7849
      %v7865 = vsel %vm1006, %v7847, %v7848
      %v7866 = vsel %vm1006, %v7846, %v7847
      %v7867 = vsel %vm1006, %v7845, %v7846
      %v7868 = vsel %vm1006, %v7844, %v7845
      %v7869 = vsel %vm1006, %v7843, %v7844
      %v7870 = vsel %vm1006, %v7842, %v7843
      %v7871 = vsel %vm1006, %v7841, %v7842
      %v7872 = vsel %vm1006, %v7840, %v7841
      %v7873 = vsel %vm1006, %v7839, %v7840
      %v7874 = vsel %vm1006, %v7838, %v7839
      %v7875 = vsel %vm1006, %v7837, %v7838
      %v7876 = vsel %vm1006, %v7836, %v7837
      %v7877 = vsel %vm1006, %v7835, %v7836
      %v7878 = vsel %vm1006, %v7834, %v7835
      %v7879 = vsel %vm1006, %v7833, %v7834
      %v7880 = vsel %vm1006, %v7832, %v7833
      %v7881 = vsel %vm1006, %v7831, %v7832
      %v7882 = vsel %vm1006, %v7830, %v7831
      %v7883 = vsel %vm1006, %v7829, %v7830
      %v7884 = vsel %vm1006, %v7828, %v7829
      %v7885 = vsel %vm1006, %v7827, %v7828
      %v7886 = vsel %vm1006, %v7826, %v7827
      %v7887 = vsel %vm1006, %v7825, %v7826
      %v7888 = vsel %vm1006, %v7824, %v7825
      %v7889 = vsel %vm1006, %v7823, %v7824
      %v7890 = vsel %vm1006, %v7822, %v7823
      %v7891 = vsel %vm1006, %v7821, %v7822
      %v7892 = vsel %vm1006, %v7820, %v7821
      %v7893 = vsel %vm1006, %v7819, %v7820
      %v7894 = vsel %vm1006, %v7818, %v7819
      %v7895 = vsel %vm1006, %v7817, %v7818
      %v7896 = vsel %vm1006, %v7816, %v7817
      %v7897 = vsel %vm1006, %v7815, %v7816
      %v7898 = vsel %vm1006, %v7814, %v7815
      %v7899 = vsel %vm1006, %v7813, %v7814
      %v7900 = vsel %vm1006, %v7812, %v7813
      %v7901 = vsel %vm1006, %v7811, %v7812
      %v7902 = vsel %vm1006, %v7810, %v7811
      %v7903 = vsel %vm1006, %v7809, %v7810
      %v7904 = vsel %vm1006, %v7808, %v7809
      %v7905 = vsel %vm1006, %v7807, %v7808
      %v7906 = vsel %vm1006, %v7806, %v7807
      %v7907 = vsel %vm1006, %v7805, %v7806
      %v7908 = vsel %vm1006, %v7804, %v7805
      %v7909 = vsel %vm1006, %v7803, %v7804
      %v7910 = vsel %vm1006, %v7802, %v7803
      %v7911 = vsel %vm1006, %v7801, %v7802
      %v7912 = vsel %vm1006, %v7800, %v7801
      %v7913 = vsel %vm1006, %v7799, %v7800
      %v7914 = vsel %vm1006, %v7798, %v7799
      %v7915 = vsel %vm1006, %v7797, %v7798
      %v7916 = vsel %vm1006, %v7796, %v7797
      %v7917 = vsel %vm1006, %v7795, %v7796
      %v7918 = vsel %vm1006, %v7794, %v7795
      %v7919 = vsel %vm1006, %v7793, %v7794
      %v7920 = vsel %vm1006, %v7856, %v7793
      %v7921 = vrot.slane %v6619, 1
      %v7922 = vrot.slane %v6620, 1
      %v7923 = vrot.slane %v6621, 1
      %v7924 = vrot.slane %v6622, 1
      %v7925 = vrot.slane %v6623, 1
      %v7926 = vrot.slane %v6624, 1
      %v7927 = vrot.slane %v6625, 1
      %v7928 = vrot.slane %v6626, 1
      %v7929 = vrot.slane %v6627, 1
      %v7930 = vrot.slane %v6628, 1
      %v7931 = vrot.slane %v6629, 1
      %v7932 = vrot.slane %v6630, 1
      %v7933 = vrot.slane %v6631, 1
      %v7934 = vrot.slane %v6632, 1
      %v7935 = vrot.slane %v6633, 1
      %v7936 = vrot.slane %v6634, 1
      %v7937 = vrot.slane %v6635, 1
      %v7938 = vrot.slane %v6636, 1
      %v7939 = vrot.slane %v6637, 1
      %v7940 = vrot.slane %v6638, 1
      %v7941 = vrot.slane %v6639, 1
      %v7942 = vrot.slane %v6640, 1
      %v7943 = vrot.slane %v6641, 1
      %v7944 = vrot.slane %v6642, 1
      %v7945 = vrot.slane %v6643, 1
      %v7946 = vrot.slane %v6644, 1
      %v7947 = vrot.slane %v6645, 1
      %v7948 = vrot.slane %v6646, 1
      %v7949 = vrot.slane %v6647, 1
      %v7950 = vrot.slane %v6648, 1
      %v7951 = vrot.slane %v6649, 1
      %v7952 = vrot.slane %v6650, 1
      %v7953 = vrot.slane %v6651, 1
      %v7954 = vrot.slane %v6652, 1
      %v7955 = vrot.slane %v6653, 1
      %v7956 = vrot.slane %v6654, 1
      %v7957 = vrot.slane %v6655, 1
      %v7958 = vrot.slane %v6656, 1
      %v7959 = vrot.slane %v6657, 1
      %v7960 = vrot.slane %v6658, 1
      %v7961 = vrot.slane %v6659, 1
      %v7962 = vrot.slane %v6660, 1
      %v7963 = vrot.slane %v6661, 1
      %v7964 = vrot.slane %v6662, 1
      %v7965 = vrot.slane %v6663, 1
      %v7966 = vrot.slane %v6664, 1
      %v7967 = vrot.slane %v6665, 1
      %v7968 = vrot.slane %v6666, 1
      %v7969 = vrot.slane %v6667, 1
      %v7970 = vrot.slane %v6668, 1
      %v7971 = vrot.slane %v6669, 1
      %v7972 = vrot.slane %v6670, 1
      %v7973 = vrot.slane %v6671, 1
      %v7974 = vrot.slane %v6672, 1
      %v7975 = vrot.slane %v6673, 1
      %v7976 = vrot.slane %v6674, 1
      %v7977 = vrot.slane %v6675, 1
      %v7978 = vrot.slane %v6676, 1
      %v7979 = vrot.slane %v6677, 1
      %v7980 = vrot.slane %v6678, 1
      %v7981 = vrot.slane %v6679, 1
      %v7982 = vrot.slane %v6680, 1
      %v7983 = vrot.slane %v6681, 1
      %v7984 = vrot.slane %v6682, 1
      %v7985 = vsel %vm1135, %v7983, %v7984
      %v7986 = vsel %vm1135, %v7982, %v7983
      %v7987 = vsel %vm1135, %v7981, %v7982
      %v7988 = vsel %vm1135, %v7980, %v7981
      %v7989 = vsel %vm1135, %v7979, %v7980
      %v7990 = vsel %vm1135, %v7978, %v7979
      %v7991 = vsel %vm1135, %v7977, %v7978
      %v7992 = vsel %vm1135, %v7976, %v7977
      %v7993 = vsel %vm1135, %v7975, %v7976
      %v7994 = vsel %vm1135, %v7974, %v7975
      %v7995 = vsel %vm1135, %v7973, %v7974
      %v7996 = vsel %vm1135, %v7972, %v7973
      %v7997 = vsel %vm1135, %v7971, %v7972
      %v7998 = vsel %vm1135, %v7970, %v7971
      %v7999 = vsel %vm1135, %v7969, %v7970
      %v8000 = vsel %vm1135, %v7968, %v7969
      %v8001 = vsel %vm1135, %v7967, %v7968
      %v8002 = vsel %vm1135, %v7966, %v7967
      %v8003 = vsel %vm1135, %v7965, %v7966
      %v8004 = vsel %vm1135, %v7964, %v7965
      %v8005 = vsel %vm1135, %v7963, %v7964
      %v8006 = vsel %vm1135, %v7962, %v7963
      %v8007 = vsel %vm1135, %v7961, %v7962
      %v8008 = vsel %vm1135, %v7960, %v7961
      %v8009 = vsel %vm1135, %v7959, %v7960
      %v8010 = vsel %vm1135, %v7958, %v7959
      %v8011 = vsel %vm1135, %v7957, %v7958
      %v8012 = vsel %vm1135, %v7956, %v7957
      %v8013 = vsel %vm1135, %v7955, %v7956
      %v8014 = vsel %vm1135, %v7954, %v7955
      %v8015 = vsel %vm1135, %v7953, %v7954
      %v8016 = vsel %vm1135, %v7952, %v7953
      %v8017 = vsel %vm1135, %v7951, %v7952
      %v8018 = vsel %vm1135, %v7950, %v7951
      %v8019 = vsel %vm1135, %v7949, %v7950
      %v8020 = vsel %vm1135, %v7948, %v7949
      %v8021 = vsel %vm1135, %v7947, %v7948
      %v8022 = vsel %vm1135, %v7946, %v7947
      %v8023 = vsel %vm1135, %v7945, %v7946
      %v8024 = vsel %vm1135, %v7944, %v7945
      %v8025 = vsel %vm1135, %v7943, %v7944
      %v8026 = vsel %vm1135, %v7942, %v7943
      %v8027 = vsel %vm1135, %v7941, %v7942
      %v8028 = vsel %vm1135, %v7940, %v7941
      %v8029 = vsel %vm1135, %v7939, %v7940
      %v8030 = vsel %vm1135, %v7938, %v7939
      %v8031 = vsel %vm1135, %v7937, %v7938
      %v8032 = vsel %vm1135, %v7936, %v7937
      %v8033 = vsel %vm1135, %v7935, %v7936
      %v8034 = vsel %vm1135, %v7934, %v7935
      %v8035 = vsel %vm1135, %v7933, %v7934
      %v8036 = vsel %vm1135, %v7932, %v7933
      %v8037 = vsel %vm1135, %v7931, %v7932
      %v8038 = vsel %vm1135, %v7930, %v7931
      %v8039 = vsel %vm1135, %v7929, %v7930
      %v8040 = vsel %vm1135, %v7928, %v7929
      %v8041 = vsel %vm1135, %v7927, %v7928
      %v8042 = vsel %vm1135, %v7926, %v7927
      %v8043 = vsel %vm1135, %v7925, %v7926
      %v8044 = vsel %vm1135, %v7924, %v7925
      %v8045 = vsel %vm1135, %v7923, %v7924
      %v8046 = vsel %vm1135, %v7922, %v7923
      %v8047 = vsel %vm1135, %v7921, %v7922
      %v8048 = vsel %vm1135, %v7984, %v7921
      %8113 = vrot.lane.b32.xlu0 %v6619, 4
      %v8114 = vpop.permute.xlu0 %8113
      %8115 = vrot.lane.b32.xlu0 %v6620, 4
      %v8116 = vpop.permute.xlu0 %8115
      %8117 = vrot.lane.b32.xlu0 %v6621, 4
      %v8118 = vpop.permute.xlu0 %8117
      %8119 = vrot.lane.b32.xlu0 %v6622, 4
      %v8120 = vpop.permute.xlu0 %8119
      %8121 = vrot.lane.b32.xlu0 %v6623, 4
      %v8122 = vpop.permute.xlu0 %8121
      %8123 = vrot.lane.b32.xlu0 %v6624, 4
      %v8124 = vpop.permute.xlu0 %8123
      %8125 = vrot.lane.b32.xlu0 %v6625, 4
      %v8126 = vpop.permute.xlu0 %8125
      %8127 = vrot.lane.b32.xlu0 %v6626, 4
      %v8128 = vpop.permute.xlu0 %8127
      %8129 = vrot.lane.b32.xlu0 %v6627, 4
      %v8130 = vpop.permute.xlu0 %8129
      %8131 = vrot.lane.b32.xlu0 %v6628, 4
      %v8132 = vpop.permute.xlu0 %8131
      %8133 = vrot.lane.b32.xlu0 %v6629, 4
      %v8134 = vpop.permute.xlu0 %8133
      %8135 = vrot.lane.b32.xlu0 %v6630, 4
      %v8136 = vpop.permute.xlu0 %8135
      %8137 = vrot.lane.b32.xlu0 %v6631, 4
      %v8138 = vpop.permute.xlu0 %8137
      %8139 = vrot.lane.b32.xlu0 %v6632, 4
      %v8140 = vpop.permute.xlu0 %8139
      %8141 = vrot.lane.b32.xlu0 %v6633, 4
      %v8142 = vpop.permute.xlu0 %8141
      %8143 = vrot.lane.b32.xlu0 %v6634, 4
      %v8144 = vpop.permute.xlu0 %8143
      %8145 = vrot.lane.b32.xlu0 %v6635, 4
      %v8146 = vpop.permute.xlu0 %8145
      %8147 = vrot.lane.b32.xlu0 %v6636, 4
      %v8148 = vpop.permute.xlu0 %8147
      %8149 = vrot.lane.b32.xlu0 %v6637, 4
      %v8150 = vpop.permute.xlu0 %8149
      %8151 = vrot.lane.b32.xlu0 %v6638, 4
      %v8152 = vpop.permute.xlu0 %8151
      %8153 = vrot.lane.b32.xlu0 %v6639, 4
      %v8154 = vpop.permute.xlu0 %8153
      %8155 = vrot.lane.b32.xlu0 %v6640, 4
      %v8156 = vpop.permute.xlu0 %8155
      %8157 = vrot.lane.b32.xlu0 %v6641, 4
      %v8158 = vpop.permute.xlu0 %8157
      %8159 = vrot.lane.b32.xlu0 %v6642, 4
      %v8160 = vpop.permute.xlu0 %8159
      %8161 = vrot.lane.b32.xlu0 %v6643, 4
      %v8162 = vpop.permute.xlu0 %8161
      %8163 = vrot.lane.b32.xlu0 %v6644, 4
      %v8164 = vpop.permute.xlu0 %8163
      %8165 = vrot.lane.b32.xlu0 %v6645, 4
      %v8166 = vpop.permute.xlu0 %8165
      %8167 = vrot.lane.b32.xlu0 %v6646, 4
      %v8168 = vpop.permute.xlu0 %8167
      %8169 = vrot.lane.b32.xlu0 %v6647, 4
      %v8170 = vpop.permute.xlu0 %8169
      %8171 = vrot.lane.b32.xlu0 %v6648, 4
      %v8172 = vpop.permute.xlu0 %8171
      %8173 = vrot.lane.b32.xlu0 %v6649, 4
      %v8174 = vpop.permute.xlu0 %8173
      %8175 = vrot.lane.b32.xlu0 %v6650, 4
      %v8176 = vpop.permute.xlu0 %8175
      %8177 = vrot.lane.b32.xlu0 %v6651, 4
      %v8178 = vpop.permute.xlu0 %8177
      %8179 = vrot.lane.b32.xlu0 %v6652, 4
      %v8180 = vpop.permute.xlu0 %8179
      %8181 = vrot.lane.b32.xlu0 %v6653, 4
      %v8182 = vpop.permute.xlu0 %8181
      %8183 = vrot.lane.b32.xlu0 %v6654, 4
      %v8184 = vpop.permute.xlu0 %8183
      %8185 = vrot.lane.b32.xlu0 %v6655, 4
      %v8186 = vpop.permute.xlu0 %8185
      %8187 = vrot.lane.b32.xlu0 %v6656, 4
      %v8188 = vpop.permute.xlu0 %8187
      %8189 = vrot.lane.b32.xlu0 %v6657, 4
      %v8190 = vpop.permute.xlu0 %8189
      %8191 = vrot.lane.b32.xlu0 %v6658, 4
      %v8192 = vpop.permute.xlu0 %8191
      %8193 = vrot.lane.b32.xlu0 %v6659, 4
      %v8194 = vpop.permute.xlu0 %8193
      %8195 = vrot.lane.b32.xlu0 %v6660, 4
      %v8196 = vpop.permute.xlu0 %8195
      %8197 = vrot.lane.b32.xlu0 %v6661, 4
      %v8198 = vpop.permute.xlu0 %8197
      %8199 = vrot.lane.b32.xlu0 %v6662, 4
      %v8200 = vpop.permute.xlu0 %8199
      %8201 = vrot.lane.b32.xlu0 %v6663, 4
      %v8202 = vpop.permute.xlu0 %8201
      %8203 = vrot.lane.b32.xlu0 %v6664, 4
      %v8204 = vpop.permute.xlu0 %8203
      %8205 = vrot.lane.b32.xlu0 %v6665, 4
      %v8206 = vpop.permute.xlu0 %8205
      %8207 = vrot.lane.b32.xlu0 %v6666, 4
      %v8208 = vpop.permute.xlu0 %8207
      %8209 = vrot.lane.b32.xlu0 %v6667, 4
      %v8210 = vpop.permute.xlu0 %8209
      %8211 = vrot.lane.b32.xlu0 %v6668, 4
      %v8212 = vpop.permute.xlu0 %8211
      %8213 = vrot.lane.b32.xlu0 %v6669, 4
      %v8214 = vpop.permute.xlu0 %8213
      %8215 = vrot.lane.b32.xlu0 %v6670, 4
      %v8216 = vpop.permute.xlu0 %8215
      %8217 = vrot.lane.b32.xlu0 %v6671, 4
      %v8218 = vpop.permute.xlu0 %8217
      %8219 = vrot.lane.b32.xlu0 %v6672, 4
      %v8220 = vpop.permute.xlu0 %8219
      %8221 = vrot.lane.b32.xlu0 %v6673, 4
      %v8222 = vpop.permute.xlu0 %8221
      %8223 = vrot.lane.b32.xlu0 %v6674, 4
      %v8224 = vpop.permute.xlu0 %8223
      %8225 = vrot.lane.b32.xlu0 %v6675, 4
      %v8226 = vpop.permute.xlu0 %8225
      %8227 = vrot.lane.b32.xlu0 %v6676, 4
      %v8228 = vpop.permute.xlu0 %8227
      %8229 = vrot.lane.b32.xlu0 %v6677, 4
      %v8230 = vpop.permute.xlu0 %8229
      %8231 = vrot.lane.b32.xlu0 %v6678, 4
      %v8232 = vpop.permute.xlu0 %8231
      %8233 = vrot.lane.b32.xlu0 %v6679, 4
      %v8234 = vpop.permute.xlu0 %8233
      %8235 = vrot.lane.b32.xlu0 %v6680, 4
      %v8236 = vpop.permute.xlu0 %8235
      %8237 = vrot.lane.b32.xlu0 %v6681, 4
      %v8238 = vpop.permute.xlu0 %8237
      %8239 = vrot.lane.b32.xlu0 %v6682, 4
      %v8240 = vpop.permute.xlu0 %8239
      %8369 = vrot.lane.b32.xlu0 %v8047, 8
      %v8370 = vpop.permute.xlu0 %8369
      %8371 = vrot.lane.b32.xlu0 %v8046, 8
      %v8372 = vpop.permute.xlu0 %8371
      %8373 = vrot.lane.b32.xlu0 %v8045, 8
      %v8374 = vpop.permute.xlu0 %8373
      %8375 = vrot.lane.b32.xlu0 %v8044, 8
      %v8376 = vpop.permute.xlu0 %8375
      %8377 = vrot.lane.b32.xlu0 %v8043, 8
      %v8378 = vpop.permute.xlu0 %8377
      %8379 = vrot.lane.b32.xlu0 %v8042, 8
      %v8380 = vpop.permute.xlu0 %8379
      %8381 = vrot.lane.b32.xlu0 %v8041, 8
      %v8382 = vpop.permute.xlu0 %8381
      %8383 = vrot.lane.b32.xlu0 %v8040, 8
      %v8384 = vpop.permute.xlu0 %8383
      %8385 = vrot.lane.b32.xlu0 %v8039, 8
      %v8386 = vpop.permute.xlu0 %8385
      %8387 = vrot.lane.b32.xlu0 %v8038, 8
      %v8388 = vpop.permute.xlu0 %8387
      %8389 = vrot.lane.b32.xlu0 %v8037, 8
      %v8390 = vpop.permute.xlu0 %8389
      %8391 = vrot.lane.b32.xlu0 %v8036, 8
      %v8392 = vpop.permute.xlu0 %8391
      %8393 = vrot.lane.b32.xlu0 %v8035, 8
      %v8394 = vpop.permute.xlu0 %8393
      %8395 = vrot.lane.b32.xlu0 %v8034, 8
      %v8396 = vpop.permute.xlu0 %8395
      %8397 = vrot.lane.b32.xlu0 %v8033, 8
      %v8398 = vpop.permute.xlu0 %8397
      %8399 = vrot.lane.b32.xlu0 %v8032, 8
      %v8400 = vpop.permute.xlu0 %8399
      %8401 = vrot.lane.b32.xlu0 %v8031, 8
      %v8402 = vpop.permute.xlu0 %8401
      %8403 = vrot.lane.b32.xlu0 %v8030, 8
      %v8404 = vpop.permute.xlu0 %8403
      %8405 = vrot.lane.b32.xlu0 %v8029, 8
      %v8406 = vpop.permute.xlu0 %8405
      %8407 = vrot.lane.b32.xlu0 %v8028, 8
      %v8408 = vpop.permute.xlu0 %8407
      %8409 = vrot.lane.b32.xlu0 %v8027, 8
      %v8410 = vpop.permute.xlu0 %8409
      %8411 = vrot.lane.b32.xlu0 %v8026, 8
      %v8412 = vpop.permute.xlu0 %8411
      %8413 = vrot.lane.b32.xlu0 %v8025, 8
      %v8414 = vpop.permute.xlu0 %8413
      %8415 = vrot.lane.b32.xlu0 %v8024, 8
      %v8416 = vpop.permute.xlu0 %8415
      %8417 = vrot.lane.b32.xlu0 %v8023, 8
      %v8418 = vpop.permute.xlu0 %8417
      %8419 = vrot.lane.b32.xlu0 %v8022, 8
      %v8420 = vpop.permute.xlu0 %8419
      %8421 = vrot.lane.b32.xlu0 %v8021, 8
      %v8422 = vpop.permute.xlu0 %8421
      %8423 = vrot.lane.b32.xlu0 %v8020, 8
      %v8424 = vpop.permute.xlu0 %8423
      %8425 = vrot.lane.b32.xlu0 %v8019, 8
      %v8426 = vpop.permute.xlu0 %8425
      %8427 = vrot.lane.b32.xlu0 %v8018, 8
      %v8428 = vpop.permute.xlu0 %8427
      %8429 = vrot.lane.b32.xlu0 %v8017, 8
      %v8430 = vpop.permute.xlu0 %8429
      %8431 = vrot.lane.b32.xlu0 %v8016, 8
      %v8432 = vpop.permute.xlu0 %8431
      %8433 = vrot.lane.b32.xlu0 %v8015, 8
      %v8434 = vpop.permute.xlu0 %8433
      %8435 = vrot.lane.b32.xlu0 %v8014, 8
      %v8436 = vpop.permute.xlu0 %8435
      %8437 = vrot.lane.b32.xlu0 %v8013, 8
      %v8438 = vpop.permute.xlu0 %8437
      %8439 = vrot.lane.b32.xlu0 %v8012, 8
      %v8440 = vpop.permute.xlu0 %8439
      %8441 = vrot.lane.b32.xlu0 %v8011, 8
      %v8442 = vpop.permute.xlu0 %8441
      %8443 = vrot.lane.b32.xlu0 %v8010, 8
      %v8444 = vpop.permute.xlu0 %8443
      %8445 = vrot.lane.b32.xlu0 %v8009, 8
      %v8446 = vpop.permute.xlu0 %8445
      %8447 = vrot.lane.b32.xlu0 %v8008, 8
      %v8448 = vpop.permute.xlu0 %8447
      %8449 = vrot.lane.b32.xlu0 %v8007, 8
      %v8450 = vpop.permute.xlu0 %8449
      %8451 = vrot.lane.b32.xlu0 %v8006, 8
      %v8452 = vpop.permute.xlu0 %8451
      %8453 = vrot.lane.b32.xlu0 %v8005, 8
      %v8454 = vpop.permute.xlu0 %8453
      %8455 = vrot.lane.b32.xlu0 %v8004, 8
      %v8456 = vpop.permute.xlu0 %8455
      %8457 = vrot.lane.b32.xlu0 %v8003, 8
      %v8458 = vpop.permute.xlu0 %8457
      %8459 = vrot.lane.b32.xlu0 %v8002, 8
      %v8460 = vpop.permute.xlu0 %8459
      %8461 = vrot.lane.b32.xlu0 %v8001, 8
      %v8462 = vpop.permute.xlu0 %8461
      %8463 = vrot.lane.b32.xlu0 %v8000, 8
      %v8464 = vpop.permute.xlu0 %8463
      %8465 = vrot.lane.b32.xlu0 %v7999, 8
      %v8466 = vpop.permute.xlu0 %8465
      %8467 = vrot.lane.b32.xlu0 %v7998, 8
      %v8468 = vpop.permute.xlu0 %8467
      %8469 = vrot.lane.b32.xlu0 %v7997, 8
      %v8470 = vpop.permute.xlu0 %8469
      %8471 = vrot.lane.b32.xlu0 %v7996, 8
      %v8472 = vpop.permute.xlu0 %8471
      %8473 = vrot.lane.b32.xlu0 %v7995, 8
      %v8474 = vpop.permute.xlu0 %8473
      %8475 = vrot.lane.b32.xlu0 %v7994, 8
      %v8476 = vpop.permute.xlu0 %8475
      %8477 = vrot.lane.b32.xlu0 %v7993, 8
      %v8478 = vpop.permute.xlu0 %8477
      %8479 = vrot.lane.b32.xlu0 %v7992, 8
      %v8480 = vpop.permute.xlu0 %8479
      %8481 = vrot.lane.b32.xlu0 %v7991, 8
      %v8482 = vpop.permute.xlu0 %8481
      %8483 = vrot.lane.b32.xlu0 %v7990, 8
      %v8484 = vpop.permute.xlu0 %8483
      %8485 = vrot.lane.b32.xlu0 %v7989, 8
      %v8486 = vpop.permute.xlu0 %8485
      %8487 = vrot.lane.b32.xlu0 %v7988, 8
      %v8488 = vpop.permute.xlu0 %8487
      %8489 = vrot.lane.b32.xlu0 %v7987, 8
      %v8490 = vpop.permute.xlu0 %8489
      %8491 = vrot.lane.b32.xlu0 %v7986, 8
      %v8492 = vpop.permute.xlu0 %8491
      %8493 = vrot.lane.b32.xlu0 %v7985, 8
      %v8494 = vpop.permute.xlu0 %8493
      %8495 = vrot.lane.b32.xlu0 %v8048, 8
      %v8496 = vpop.permute.xlu0 %8495
      %v8561 = vsel %vm1712, %v7920, %v8114
      %v8562 = vsel %vm1712, %v7919, %v8116
      %v8563 = vsel %vm1712, %v7918, %v8118
      %v8564 = vsel %vm1712, %v7917, %v8120
      %v8565 = vsel %vm1712, %v7916, %v8122
      %v8566 = vsel %vm1712, %v7915, %v8124
      %v8567 = vsel %vm1712, %v7914, %v8126
      %v8568 = vsel %vm1712, %v7913, %v8128
      %v8569 = vsel %vm1712, %v7912, %v8130
      %v8570 = vsel %vm1712, %v7911, %v8132
      %v8571 = vsel %vm1712, %v7910, %v8134
      %v8572 = vsel %vm1712, %v7909, %v8136
      %v8573 = vsel %vm1712, %v7908, %v8138
      %v8574 = vsel %vm1712, %v7907, %v8140
      %v8575 = vsel %vm1712, %v7906, %v8142
      %v8576 = vsel %vm1712, %v7905, %v8144
      %v8577 = vsel %vm1712, %v7904, %v8146
      %v8578 = vsel %vm1712, %v7903, %v8148
      %v8579 = vsel %vm1712, %v7902, %v8150
      %v8580 = vsel %vm1712, %v7901, %v8152
      %v8581 = vsel %vm1712, %v7900, %v8154
      %v8582 = vsel %vm1712, %v7899, %v8156
      %v8583 = vsel %vm1712, %v7898, %v8158
      %v8584 = vsel %vm1712, %v7897, %v8160
      %v8585 = vsel %vm1712, %v7896, %v8162
      %v8586 = vsel %vm1712, %v7895, %v8164
      %v8587 = vsel %vm1712, %v7894, %v8166
      %v8588 = vsel %vm1712, %v7893, %v8168
      %v8589 = vsel %vm1712, %v7892, %v8170
      %v8590 = vsel %vm1712, %v7891, %v8172
      %v8591 = vsel %vm1712, %v7890, %v8174
      %v8592 = vsel %vm1712, %v7889, %v8176
      %v8593 = vsel %vm1712, %v7888, %v8178
      %v8594 = vsel %vm1712, %v7887, %v8180
      %v8595 = vsel %vm1712, %v7886, %v8182
      %v8596 = vsel %vm1712, %v7885, %v8184
      %v8597 = vsel %vm1712, %v7884, %v8186
      %v8598 = vsel %vm1712, %v7883, %v8188
      %v8599 = vsel %vm1712, %v7882, %v8190
      %v8600 = vsel %vm1712, %v7881, %v8192
      %v8601 = vsel %vm1712, %v7880, %v8194
      %v8602 = vsel %vm1712, %v7879, %v8196
      %v8603 = vsel %vm1712, %v7878, %v8198
      %v8604 = vsel %vm1712, %v7877, %v8200
      %v8605 = vsel %vm1712, %v7876, %v8202
      %v8606 = vsel %vm1712, %v7875, %v8204
      %v8607 = vsel %vm1712, %v7874, %v8206
      %v8608 = vsel %vm1712, %v7873, %v8208
      %v8609 = vsel %vm1712, %v7872, %v8210
      %v8610 = vsel %vm1712, %v7871, %v8212
      %v8611 = vsel %vm1712, %v7870, %v8214
      %v8612 = vsel %vm1712, %v7869, %v8216
      %v8613 = vsel %vm1712, %v7868, %v8218
      %v8614 = vsel %vm1712, %v7867, %v8220
      %v8615 = vsel %vm1712, %v7866, %v8222
      %v8616 = vsel %vm1712, %v7865, %v8224
      %v8617 = vsel %vm1712, %v7864, %v8226
      %v8618 = vsel %vm1712, %v7863, %v8228
      %v8619 = vsel %vm1712, %v7862, %v8230
      %v8620 = vsel %vm1712, %v7861, %v8232
      %v8621 = vsel %vm1712, %v7860, %v8234
      %v8622 = vsel %vm1712, %v7859, %v8236
      %v8623 = vsel %vm1712, %v7858, %v8238
      %v8624 = vsel %vm1712, %v7857, %v8240
      %v8625 = vsel %vm1777, %v8561, %v8370
      %v8626 = vsel %vm1777, %v8562, %v8372
      %v8627 = vsel %vm1777, %v8563, %v8374
      %v8628 = vsel %vm1777, %v8564, %v8376
      %v8629 = vsel %vm1777, %v8565, %v8378
      %v8630 = vsel %vm1777, %v8566, %v8380
      %v8631 = vsel %vm1777, %v8567, %v8382
      %v8632 = vsel %vm1777, %v8568, %v8384
      %v8633 = vsel %vm1777, %v8569, %v8386
      %v8634 = vsel %vm1777, %v8570, %v8388
      %v8635 = vsel %vm1777, %v8571, %v8390
      %v8636 = vsel %vm1777, %v8572, %v8392
      %v8637 = vsel %vm1777, %v8573, %v8394
      %v8638 = vsel %vm1777, %v8574, %v8396
      %v8639 = vsel %vm1777, %v8575, %v8398
      %v8640 = vsel %vm1777, %v8576, %v8400
      %v8641 = vsel %vm1777, %v8577, %v8402
      %v8642 = vsel %vm1777, %v8578, %v8404
      %v8643 = vsel %vm1777, %v8579, %v8406
      %v8644 = vsel %vm1777, %v8580, %v8408
      %v8645 = vsel %vm1777, %v8581, %v8410
      %v8646 = vsel %vm1777, %v8582, %v8412
      %v8647 = vsel %vm1777, %v8583, %v8414
      %v8648 = vsel %vm1777, %v8584, %v8416
      %v8649 = vsel %vm1777, %v8585, %v8418
      %v8650 = vsel %vm1777, %v8586, %v8420
      %v8651 = vsel %vm1777, %v8587, %v8422
      %v8652 = vsel %vm1777, %v8588, %v8424
      %v8653 = vsel %vm1777, %v8589, %v8426
      %v8654 = vsel %vm1777, %v8590, %v8428
      %v8655 = vsel %vm1777, %v8591, %v8430
      %v8656 = vsel %vm1777, %v8592, %v8432
      %v8657 = vsel %vm1777, %v8593, %v8434
      %v8658 = vsel %vm1777, %v8594, %v8436
      %v8659 = vsel %vm1777, %v8595, %v8438
      %v8660 = vsel %vm1777, %v8596, %v8440
      %v8661 = vsel %vm1777, %v8597, %v8442
      %v8662 = vsel %vm1777, %v8598, %v8444
      %v8663 = vsel %vm1777, %v8599, %v8446
      %v8664 = vsel %vm1777, %v8600, %v8448
      %v8665 = vsel %vm1777, %v8601, %v8450
      %v8666 = vsel %vm1777, %v8602, %v8452
      %v8667 = vsel %vm1777, %v8603, %v8454
      %v8668 = vsel %vm1777, %v8604, %v8456
      %v8669 = vsel %vm1777, %v8605, %v8458
      %v8670 = vsel %vm1777, %v8606, %v8460
      %v8671 = vsel %vm1777, %v8607, %v8462
      %v8672 = vsel %vm1777, %v8608, %v8464
      %v8673 = vsel %vm1777, %v8609, %v8466
      %v8674 = vsel %vm1777, %v8610, %v8468
      %v8675 = vsel %vm1777, %v8611, %v8470
      %v8676 = vsel %vm1777, %v8612, %v8472
      %v8677 = vsel %vm1777, %v8613, %v8474
      %v8678 = vsel %vm1777, %v8614, %v8476
      %v8679 = vsel %vm1777, %v8615, %v8478
      %v8680 = vsel %vm1777, %v8616, %v8480
      %v8681 = vsel %vm1777, %v8617, %v8482
      %v8682 = vsel %vm1777, %v8618, %v8484
      %v8683 = vsel %vm1777, %v8619, %v8486
      %v8684 = vsel %vm1777, %v8620, %v8488
      %v8685 = vsel %vm1777, %v8621, %v8490
      %v8686 = vsel %vm1777, %v8622, %v8492
      %v8687 = vsel %vm1777, %v8623, %v8494
      %v8688 = vsel %vm1777, %v8624, %v8496
      %s8689 = scalar_lea.vmem %s2, 16
      %v8690 = vld [vmem:[%s8689] sm:$0xff]
      %v8691 = vld [vmem:[%s8689 + $0x8] sm:$0xf]
      %v8693 = vsel %vm2743, %v8625, 0
      %v8696 = vsel %vm2743, %v8626, 0
      %v8699 = vsel %vm2743, %v8627, 0
      %v8702 = vsel %vm2743, %v8628, 0
      %v8705 = vsel %vm2743, %v8629, 0
      %v8708 = vsel %vm2743, %v8630, 0
      %v8711 = vsel %vm2743, %v8631, 0
      %v8714 = vsel %vm2743, %v8632, 0
      %v8717 = vsel %vm2743, %v8633, 0
      %v8720 = vsel %vm2743, %v8634, 0
      %v8723 = vsel %vm2743, %v8635, 0
      %v8726 = vsel %vm2743, %v8636, 0
      %v8729 = vsel %vm2743, %v8637, 0
      %v8732 = vsel %vm2743, %v8638, 0
      %v8735 = vsel %vm2743, %v8639, 0
      %v8738 = vsel %vm2743, %v8640, 0
      %v8741 = vsel %vm2743, %v8641, 0
      %v8744 = vsel %vm2743, %v8642, 0
      %v8747 = vsel %vm2743, %v8643, 0
      %v8750 = vsel %vm2743, %v8644, 0
      %v8753 = vsel %vm2743, %v8645, 0
      %v8756 = vsel %vm2743, %v8646, 0
      %v8759 = vsel %vm2743, %v8647, 0
      %v8762 = vsel %vm2743, %v8648, 0
      %v8765 = vsel %vm2743, %v8649, 0
      %v8768 = vsel %vm2743, %v8650, 0
      %v8771 = vsel %vm2743, %v8651, 0
      %v8774 = vsel %vm2743, %v8652, 0
      %v8777 = vsel %vm2743, %v8653, 0
      %v8780 = vsel %vm2743, %v8654, 0
      %v8783 = vsel %vm2743, %v8655, 0
      %v8786 = vsel %vm2743, %v8656, 0
      %v8789 = vsel %vm2743, %v8657, 0
      %v8792 = vsel %vm2743, %v8658, 0
      %v8795 = vsel %vm2743, %v8659, 0
      %v8798 = vsel %vm2743, %v8660, 0
      %v8801 = vsel %vm2743, %v8661, 0
      %v8804 = vsel %vm2743, %v8662, 0
      %v8807 = vsel %vm2743, %v8663, 0
      %v8810 = vsel %vm2743, %v8664, 0
      %v8813 = vsel %vm2743, %v8665, 0
      %v8816 = vsel %vm2743, %v8666, 0
      %v8819 = vsel %vm2743, %v8667, 0
      %v8822 = vsel %vm2743, %v8668, 0
      %v8825 = vsel %vm2743, %v8669, 0
      %v8828 = vsel %vm2743, %v8670, 0
      %v8831 = vsel %vm2743, %v8671, 0
      %v8834 = vsel %vm2743, %v8672, 0
      %v8837 = vsel %vm2743, %v8673, 0
      %v8840 = vsel %vm2743, %v8674, 0
      %v8843 = vsel %vm2743, %v8675, 0
      %v8846 = vsel %vm2743, %v8676, 0
      %v8849 = vsel %vm2743, %v8677, 0
      %v8852 = vsel %vm2743, %v8678, 0
      %v8855 = vsel %vm2743, %v8679, 0
      %v8858 = vsel %vm2743, %v8680, 0
      %v8861 = vsel %vm2743, %v8681, 0
      %v8864 = vsel %vm2743, %v8682, 0
      %v8867 = vsel %vm2743, %v8683, 0
      %v8870 = vsel %vm2743, %v8684, 0
      %v8873 = vsel %vm2743, %v8685, 0
      %v8876 = vsel %vm2743, %v8686, 0
      %v8879 = vsel %vm2743, %v8687, 0
      %v8882 = vsel %vm2743, %v8688, 0
      %v8885 = vsel %vm2936, %v8691, 0
      %8887 = vmatprep.subr.mxu0 0.0
      %8888 = vmatpush1.msra.mxu0 %v8690
      %8889 = vmatprep.subr.mxu0 0.0
      %8890 = vmatpush1.msra.mxu0 %v8885
      %8891 = vmatprep.subr.mxu0 0.0
      %8892 = vmatpush1.msra.mxu0 0.0
      %8893 = vmatprep.subr.mxu0 0.0
      %8894 = vmatpush1.msra.mxu0 0.0
      %8895 = vmatprep.subr.mxu0 0.0
      %8896 = vmatpush1.msra.mxu0 0.0
      %8897 = vmatprep.subr.mxu0 0.0
      %8898 = vmatpush1.msra.mxu0 0.0
      %8899 = vmatprep.subr.mxu0 0.0
      %8900 = vmatpush1.msra.mxu0 0.0
      %8901 = vmatprep.subr.mxu0 0.0
      %8902 = vmatpush1.msra.mxu0 0.0
      %8903 = vmatprep.subr.mxu0 0.0
      %8904 = vmatpush1.msra.mxu0 0.0
      %8905 = vmatprep.subr.mxu0 0.0
      %8906 = vmatpush1.msra.mxu0 0.0
      %8907 = vmatprep.subr.mxu0 0.0
      %8908 = vmatpush1.msra.mxu0 0.0
      %8909 = vmatprep.subr.mxu0 0.0
      %8910 = vmatpush1.msra.mxu0 0.0
      %8911 = vmatprep.subr.mxu0 0.0
      %8912 = vmatpush1.msra.mxu0 0.0
      %8913 = vmatprep.subr.mxu0 0.0
      %8914 = vmatpush1.msra.mxu0 0.0
      %8915 = vmatprep.subr.mxu0 0.0
      %8916 = vmatpush1.msra.mxu0 0.0
      %8917 = vmatprep.subr.mxu0 0.0
      %8918 = vmatpush1.msra.mxu0 0.0
      %8919 = vmatprep.subr.mxu0 0.0
      %8920 = vmatpush1.msra.mxu0 0.0
      %8921 = vmatprep.subr.mxu0 0.0
      %8922 = vmatpush1.msra.mxu0 0.0
      %8923 = vmatprep.subr.mxu0 0.0
      %8924 = vmatpush1.msra.mxu0 0.0
      %8925 = vmatprep.subr.mxu0 0.0
      %8926 = vmatpush1.msra.mxu0 0.0
      %8927 = vmatprep.subr.mxu0 0.0
      %8928 = vmatpush1.msra.mxu0 0.0
      %8929 = vmatprep.subr.mxu0 0.0
      %8930 = vmatpush1.msra.mxu0 0.0
      %8931 = vmatprep.subr.mxu0 0.0
      %8932 = vmatpush1.msra.mxu0 0.0
      %8933 = vmatprep.subr.mxu0 0.0
      %8934 = vmatpush1.msra.mxu0 0.0
      %8935 = vmatprep.subr.mxu0 0.0
      %8936 = vmatpush1.msra.mxu0 0.0
      %8937 = vmatprep.subr.mxu0 0.0
      %8938 = vmatpush1.msra.mxu0 0.0
      %8939 = vmatprep.subr.mxu0 0.0
      %8940 = vmatpush1.msra.mxu0 0.0
      %8941 = vmatprep.subr.mxu0 0.0
      %8942 = vmatpush1.msra.mxu0 0.0
      %8943 = vmatprep.subr.mxu0 0.0
      %8944 = vmatpush1.msra.mxu0 0.0
      %8945 = vmatprep.subr.mxu0 0.0
      %8946 = vmatpush1.msra.mxu0 0.0
      %8947 = vmatprep.subr.mxu0 0.0
      %8948 = vmatpush1.msra.mxu0 0.0
      %8949 = vmatprep.subr.mxu0 0.0
      %8950 = vmatpush1.msra.mxu0 0.0
      %8951 = vmatprep.mubr.f32.mxu0 0.0
      %8952 = vmatmul.mubr.f32.gmra.mrb[0].mxu0 %v8693
      %v8953 = vpop.f32.mrb[0].mxu0
      %v8954 = vadd.f32 0.0, %v8953
      %v8955 = vpop.f32.mrb[0].mxu0
      %8956 = vmatprep.mubr.f32.mxu0 0.0
      %8957 = vmatmul.mubr.f32.gmra.mrb[0].mxu0 %v8696
      %v8958 = vpop.f32.mrb[0].mxu0
      %v8959 = vadd.f32 0.0, %v8958
      %v8960 = vpop.f32.mrb[0].mxu0
      %8961 = vmatprep.mubr.f32.mxu0 0.0
      %8962 = vmatmul.mubr.f32.gmra.mrb[0].mxu0 %v8699
      %v8963 = vpop.f32.mrb[0].mxu0
      %v8964 = vadd.f32 0.0, %v8963
      %v8965 = vpop.f32.mrb[0].mxu0
      %8966 = vmatprep.mubr.f32.mxu0 0.0
      %8967 = vmatmul.mubr.f32.gmra.mrb[0].mxu0 %v8702
      %v8968 = vpop.f32.mrb[0].mxu0
      %v8969 = vadd.f32 0.0, %v8968
      %v8970 = vpop.f32.mrb[0].mxu0
      %8971 = vmatprep.mubr.f32.mxu0 0.0
      %8972 = vmatmul.mubr.f32.gmra.mrb[0].mxu0 %v8705
      %v8973 = vpop.f32.mrb[0].mxu0
      %v8974 = vadd.f32 0.0, %v8973
      %v8975 = vpop.f32.mrb[0].mxu0
      %8976 = vmatprep.mubr.f32.mxu0 0.0
      %8977 = vmatmul.mubr.f32.gmra.mrb[0].mxu0 %v8708
      %v8978 = vpop.f32.mrb[0].mxu0
      %v8979 = vadd.f32 0.0, %v8978
      %v8980 = vpop.f32.mrb[0].mxu0
      %8981 = vmatprep.mubr.f32.mxu0 0.0
      %8982 = vmatmul.mubr.f32.gmra.mrb[0].mxu0 %v8711
      %v8983 = vpop.f32.mrb[0].mxu0
      %v8984 = vadd.f32 0.0, %v8983
      %v8985 = vpop.f32.mrb[0].mxu0
      %8986 = vmatprep.mubr.f32.mxu0 0.0
      %8987 = vmatmul.mubr.f32.gmra.mrb[0].mxu0 %v8714
      %v8988 = vpop.f32.mrb[0].mxu0
      %v8989 = vadd.f32 0.0, %v8988
      %v8990 = vpop.f32.mrb[0].mxu0
      %8991 = vmatprep.mubr.f32.mxu0 0.0
      %8992 = vmatmul.mubr.f32.gmra.mrb[0].mxu0 %v8717
      %v8993 = vpop.f32.mrb[0].mxu0
      %v8994 = vadd.f32 0.0, %v8993
      %v8995 = vpop.f32.mrb[0].mxu0
      %8996 = vmatprep.mubr.f32.mxu0 0.0
      %8997 = vmatmul.mubr.f32.gmra.mrb[0].mxu0 %v8720
      %v8998 = vpop.f32.mrb[0].mxu0
      %v8999 = vadd.f32 0.0, %v8998
      %v9000 = vpop.f32.mrb[0].mxu0
      %9001 = vmatprep.mubr.f32.mxu0 0.0
      %9002 = vmatmul.mubr.f32.gmra.mrb[0].mxu0 %v8723
      %v9003 = vpop.f32.mrb[0].mxu0
      %v9004 = vadd.f32 0.0, %v9003
      %v9005 = vpop.f32.mrb[0].mxu0
      %9006 = vmatprep.mubr.f32.mxu0 0.0
      %9007 = vmatmul.mubr.f32.gmra.mrb[0].mxu0 %v8726
      %v9008 = vpop.f32.mrb[0].mxu0
      %v9009 = vadd.f32 0.0, %v9008
      %v9010 = vpop.f32.mrb[0].mxu0
      %9011 = vmatprep.mubr.f32.mxu0 0.0
      %9012 = vmatmul.mubr.f32.gmra.mrb[0].mxu0 %v8729
      %v9013 = vpop.f32.mrb[0].mxu0
      %v9014 = vadd.f32 0.0, %v9013
      %v9015 = vpop.f32.mrb[0].mxu0
      %9016 = vmatprep.mubr.f32.mxu0 0.0
      %9017 = vmatmul.mubr.f32.gmra.mrb[0].mxu0 %v8732
      %v9018 = vpop.f32.mrb[0].mxu0
      %v9019 = vadd.f32 0.0, %v9018
      %v9020 = vpop.f32.mrb[0].mxu0
      %9021 = vmatprep.mubr.f32.mxu0 0.0
      %9022 = vmatmul.mubr.f32.gmra.mrb[0].mxu0 %v8735
      %v9023 = vpop.f32.mrb[0].mxu0
      %v9024 = vadd.f32 0.0, %v9023
      %v9025 = vpop.f32.mrb[0].mxu0
      %9026 = vmatprep.mubr.f32.mxu0 0.0
      %9027 = vmatmul.mubr.f32.gmra.mrb[0].mxu0 %v8738
      %v9028 = vpop.f32.mrb[0].mxu0
      %v9029 = vadd.f32 0.0, %v9028
      %v9030 = vpop.f32.mrb[0].mxu0
      %9031 = vmatprep.mubr.f32.mxu0 0.0
      %9032 = vmatmul.mubr.f32.gmra.mrb[0].mxu0 %v8741
      %v9033 = vpop.f32.mrb[0].mxu0
      %v9034 = vadd.f32 0.0, %v9033
      %v9035 = vpop.f32.mrb[0].mxu0
      %9036 = vmatprep.mubr.f32.mxu0 0.0
      %9037 = vmatmul.mubr.f32.gmra.mrb[0].mxu0 %v8744
      %v9038 = vpop.f32.mrb[0].mxu0
      %v9039 = vadd.f32 0.0, %v9038
      %v9040 = vpop.f32.mrb[0].mxu0
      %9041 = vmatprep.mubr.f32.mxu0 0.0
      %9042 = vmatmul.mubr.f32.gmra.mrb[0].mxu0 %v8747
      %v9043 = vpop.f32.mrb[0].mxu0
      %v9044 = vadd.f32 0.0, %v9043
      %v9045 = vpop.f32.mrb[0].mxu0
      %9046 = vmatprep.mubr.f32.mxu0 0.0
      %9047 = vmatmul.mubr.f32.gmra.mrb[0].mxu0 %v8750
      %v9048 = vpop.f32.mrb[0].mxu0
      %v9049 = vadd.f32 0.0, %v9048
      %v9050 = vpop.f32.mrb[0].mxu0
      %9051 = vmatprep.mubr.f32.mxu0 0.0
      %9052 = vmatmul.mubr.f32.gmra.mrb[0].mxu0 %v8753
      %v9053 = vpop.f32.mrb[0].mxu0
      %v9054 = vadd.f32 0.0, %v9053
      %v9055 = vpop.f32.mrb[0].mxu0
      %9056 = vmatprep.mubr.f32.mxu0 0.0
      %9057 = vmatmul.mubr.f32.gmra.mrb[0].mxu0 %v8756
      %v9058 = vpop.f32.mrb[0].mxu0
      %v9059 = vadd.f32 0.0, %v9058
      %v9060 = vpop.f32.mrb[0].mxu0
      %9061 = vmatprep.mubr.f32.mxu0 0.0
      %9062 = vmatmul.mubr.f32.gmra.mrb[0].mxu0 %v8759
      %v9063 = vpop.f32.mrb[0].mxu0
      %v9064 = vadd.f32 0.0, %v9063
      %v9065 = vpop.f32.mrb[0].mxu0
      %9066 = vmatprep.mubr.f32.mxu0 0.0
      %9067 = vmatmul.mubr.f32.gmra.mrb[0].mxu0 %v8762
      %v9068 = vpop.f32.mrb[0].mxu0
      %v9069 = vadd.f32 0.0, %v9068
      %v9070 = vpop.f32.mrb[0].mxu0
      %9071 = vmatprep.mubr.f32.mxu0 0.0
      %9072 = vmatmul.mubr.f32.gmra.mrb[0].mxu0 %v8765
      %v9073 = vpop.f32.mrb[0].mxu0
      %v9074 = vadd.f32 0.0, %v9073
      %v9075 = vpop.f32.mrb[0].mxu0
      %9076 = vmatprep.mubr.f32.mxu0 0.0
      %9077 = vmatmul.mubr.f32.gmra.mrb[0].mxu0 %v8768
      %v9078 = vpop.f32.mrb[0].mxu0
      %v9079 = vadd.f32 0.0, %v9078
      %v9080 = vpop.f32.mrb[0].mxu0
      %9081 = vmatprep.mubr.f32.mxu0 0.0
      %9082 = vmatmul.mubr.f32.gmra.mrb[0].mxu0 %v8771
      %v9083 = vpop.f32.mrb[0].mxu0
      %v9084 = vadd.f32 0.0, %v9083
      %v9085 = vpop.f32.mrb[0].mxu0
      %9086 = vmatprep.mubr.f32.mxu0 0.0
      %9087 = vmatmul.mubr.f32.gmra.mrb[0].mxu0 %v8774
      %v9088 = vpop.f32.mrb[0].mxu0
      %v9089 = vadd.f32 0.0, %v9088
      %v9090 = vpop.f32.mrb[0].mxu0
      %9091 = vmatprep.mubr.f32.mxu0 0.0
      %9092 = vmatmul.mubr.f32.gmra.mrb[0].mxu0 %v8777
      %v9093 = vpop.f32.mrb[0].mxu0
      %v9094 = vadd.f32 0.0, %v9093
      %v9095 = vpop.f32.mrb[0].mxu0
      %9096 = vmatprep.mubr.f32.mxu0 0.0
      %9097 = vmatmul.mubr.f32.gmra.mrb[0].mxu0 %v8780
      %v9098 = vpop.f32.mrb[0].mxu0
      %v9099 = vadd.f32 0.0, %v9098
      %v9100 = vpop.f32.mrb[0].mxu0
      %9101 = vmatprep.mubr.f32.mxu0 0.0
      %9102 = vmatmul.mubr.f32.gmra.mrb[0].mxu0 %v8783
      %v9103 = vpop.f32.mrb[0].mxu0
      %v9104 = vadd.f32 0.0, %v9103
      %v9105 = vpop.f32.mrb[0].mxu0
      %9106 = vmatprep.mubr.f32.mxu0 0.0
      %9107 = vmatmul.mubr.f32.gmra.mrb[0].mxu0 %v8786
      %v9108 = vpop.f32.mrb[0].mxu0
      %v9109 = vadd.f32 0.0, %v9108
      %v9110 = vpop.f32.mrb[0].mxu0
      %9111 = vmatprep.mubr.f32.mxu0 0.0
      %9112 = vmatmul.mubr.f32.gmra.mrb[0].mxu0 %v8789
      %v9113 = vpop.f32.mrb[0].mxu0
      %v9114 = vadd.f32 0.0, %v9113
      %v9115 = vpop.f32.mrb[0].mxu0
      %9116 = vmatprep.mubr.f32.mxu0 0.0
      %9117 = vmatmul.mubr.f32.gmra.mrb[0].mxu0 %v8792
      %v9118 = vpop.f32.mrb[0].mxu0
      %v9119 = vadd.f32 0.0, %v9118
      %v9120 = vpop.f32.mrb[0].mxu0
      %9121 = vmatprep.mubr.f32.mxu0 0.0
      %9122 = vmatmul.mubr.f32.gmra.mrb[0].mxu0 %v8795
      %v9123 = vpop.f32.mrb[0].mxu0
      %v9124 = vadd.f32 0.0, %v9123
      %v9125 = vpop.f32.mrb[0].mxu0
      %9126 = vmatprep.mubr.f32.mxu0 0.0
      %9127 = vmatmul.mubr.f32.gmra.mrb[0].mxu0 %v8798
      %v9128 = vpop.f32.mrb[0].mxu0
      %v9129 = vadd.f32 0.0, %v9128
      %v9130 = vpop.f32.mrb[0].mxu0
      %9131 = vmatprep.mubr.f32.mxu0 0.0
      %9132 = vmatmul.mubr.f32.gmra.mrb[0].mxu0 %v8801
      %v9133 = vpop.f32.mrb[0].mxu0
      %v9134 = vadd.f32 0.0, %v9133
      %v9135 = vpop.f32.mrb[0].mxu0
      %9136 = vmatprep.mubr.f32.mxu0 0.0
      %9137 = vmatmul.mubr.f32.gmra.mrb[0].mxu0 %v8804
      %v9138 = vpop.f32.mrb[0].mxu0
      %v9139 = vadd.f32 0.0, %v9138
      %v9140 = vpop.f32.mrb[0].mxu0
      %9141 = vmatprep.mubr.f32.mxu0 0.0
      %9142 = vmatmul.mubr.f32.gmra.mrb[0].mxu0 %v8807
      %v9143 = vpop.f32.mrb[0].mxu0
      %v9144 = vadd.f32 0.0, %v9143
      %v9145 = vpop.f32.mrb[0].mxu0
      %9146 = vmatprep.mubr.f32.mxu0 0.0
      %9147 = vmatmul.mubr.f32.gmra.mrb[0].mxu0 %v8810
      %v9148 = vpop.f32.mrb[0].mxu0
      %v9149 = vadd.f32 0.0, %v9148
      %v9150 = vpop.f32.mrb[0].mxu0
      %9151 = vmatprep.mubr.f32.mxu0 0.0
      %9152 = vmatmul.mubr.f32.gmra.mrb[0].mxu0 %v8813
      %v9153 = vpop.f32.mrb[0].mxu0
      %v9154 = vadd.f32 0.0, %v9153
      %v9155 = vpop.f32.mrb[0].mxu0
      %9156 = vmatprep.mubr.f32.mxu0 0.0
      %9157 = vmatmul.mubr.f32.gmra.mrb[0].mxu0 %v8816
      %v9158 = vpop.f32.mrb[0].mxu0
      %v9159 = vadd.f32 0.0, %v9158
      %v9160 = vpop.f32.mrb[0].mxu0
      %9161 = vmatprep.mubr.f32.mxu0 0.0
      %9162 = vmatmul.mubr.f32.gmra.mrb[0].mxu0 %v8819
      %v9163 = vpop.f32.mrb[0].mxu0
      %v9164 = vadd.f32 0.0, %v9163
      %v9165 = vpop.f32.mrb[0].mxu0
      %9166 = vmatprep.mubr.f32.mxu0 0.0
      %9167 = vmatmul.mubr.f32.gmra.mrb[0].mxu0 %v8822
      %v9168 = vpop.f32.mrb[0].mxu0
      %v9169 = vadd.f32 0.0, %v9168
      %v9170 = vpop.f32.mrb[0].mxu0
      %9171 = vmatprep.mubr.f32.mxu0 0.0
      %9172 = vmatmul.mubr.f32.gmra.mrb[0].mxu0 %v8825
      %v9173 = vpop.f32.mrb[0].mxu0
      %v9174 = vadd.f32 0.0, %v9173
      %v9175 = vpop.f32.mrb[0].mxu0
      %9176 = vmatprep.mubr.f32.mxu0 0.0
      %9177 = vmatmul.mubr.f32.gmra.mrb[0].mxu0 %v8828
      %v9178 = vpop.f32.mrb[0].mxu0
      %v9179 = vadd.f32 0.0, %v9178
      %v9180 = vpop.f32.mrb[0].mxu0
      %9181 = vmatprep.mubr.f32.mxu0 0.0
      %9182 = vmatmul.mubr.f32.gmra.mrb[0].mxu0 %v8831
      %v9183 = vpop.f32.mrb[0].mxu0
      %v9184 = vadd.f32 0.0, %v9183
      %v9185 = vpop.f32.mrb[0].mxu0
      %9186 = vmatprep.mubr.f32.mxu0 0.0
      %9187 = vmatmul.mubr.f32.gmra.mrb[0].mxu0 %v8834
      %v9188 = vpop.f32.mrb[0].mxu0
      %v9189 = vadd.f32 0.0, %v9188
      %v9190 = vpop.f32.mrb[0].mxu0
      %9191 = vmatprep.mubr.f32.mxu0 0.0
      %9192 = vmatmul.mubr.f32.gmra.mrb[0].mxu0 %v8837
      %v9193 = vpop.f32.mrb[0].mxu0
      %v9194 = vadd.f32 0.0, %v9193
      %v9195 = vpop.f32.mrb[0].mxu0
      %9196 = vmatprep.mubr.f32.mxu0 0.0
      %9197 = vmatmul.mubr.f32.gmra.mrb[0].mxu0 %v8840
      %v9198 = vpop.f32.mrb[0].mxu0
      %v9199 = vadd.f32 0.0, %v9198
      %v9200 = vpop.f32.mrb[0].mxu0
      %9201 = vmatprep.mubr.f32.mxu0 0.0
      %9202 = vmatmul.mubr.f32.gmra.mrb[0].mxu0 %v8843
      %v9203 = vpop.f32.mrb[0].mxu0
      %v9204 = vadd.f32 0.0, %v9203
      %v9205 = vpop.f32.mrb[0].mxu0
      %9206 = vmatprep.mubr.f32.mxu0 0.0
      %9207 = vmatmul.mubr.f32.gmra.mrb[0].mxu0 %v8846
      %v9208 = vpop.f32.mrb[0].mxu0
      %v9209 = vadd.f32 0.0, %v9208
      %v9210 = vpop.f32.mrb[0].mxu0
      %9211 = vmatprep.mubr.f32.mxu0 0.0
      %9212 = vmatmul.mubr.f32.gmra.mrb[0].mxu0 %v8849
      %v9213 = vpop.f32.mrb[0].mxu0
      %v9214 = vadd.f32 0.0, %v9213
      %v9215 = vpop.f32.mrb[0].mxu0
      %9216 = vmatprep.mubr.f32.mxu0 0.0
      %9217 = vmatmul.mubr.f32.gmra.mrb[0].mxu0 %v8852
      %v9218 = vpop.f32.mrb[0].mxu0
      %v9219 = vadd.f32 0.0, %v9218
      %v9220 = vpop.f32.mrb[0].mxu0
      %9221 = vmatprep.mubr.f32.mxu0 0.0
      %9222 = vmatmul.mubr.f32.gmra.mrb[0].mxu0 %v8855
      %v9223 = vpop.f32.mrb[0].mxu0
      %v9224 = vadd.f32 0.0, %v9223
      %v9225 = vpop.f32.mrb[0].mxu0
      %9226 = vmatprep.mubr.f32.mxu0 0.0
      %9227 = vmatmul.mubr.f32.gmra.mrb[0].mxu0 %v8858
      %v9228 = vpop.f32.mrb[0].mxu0
      %v9229 = vadd.f32 0.0, %v9228
      %v9230 = vpop.f32.mrb[0].mxu0
      %9231 = vmatprep.mubr.f32.mxu0 0.0
      %9232 = vmatmul.mubr.f32.gmra.mrb[0].mxu0 %v8861
      %v9233 = vpop.f32.mrb[0].mxu0
      %v9234 = vadd.f32 0.0, %v9233
      %v9235 = vpop.f32.mrb[0].mxu0
      %9236 = vmatprep.mubr.f32.mxu0 0.0
      %9237 = vmatmul.mubr.f32.gmra.mrb[0].mxu0 %v8864
      %v9238 = vpop.f32.mrb[0].mxu0
      %v9239 = vadd.f32 0.0, %v9238
      %v9240 = vpop.f32.mrb[0].mxu0
      %9241 = vmatprep.mubr.f32.mxu0 0.0
      %9242 = vmatmul.mubr.f32.gmra.mrb[0].mxu0 %v8867
      %v9243 = vpop.f32.mrb[0].mxu0
      %v9244 = vadd.f32 0.0, %v9243
      %v9245 = vpop.f32.mrb[0].mxu0
      %9246 = vmatprep.mubr.f32.mxu0 0.0
      %9247 = vmatmul.mubr.f32.gmra.mrb[0].mxu0 %v8870
      %v9248 = vpop.f32.mrb[0].mxu0
      %v9249 = vadd.f32 0.0, %v9248
      %v9250 = vpop.f32.mrb[0].mxu0
      %9251 = vmatprep.mubr.f32.mxu0 0.0
      %9252 = vmatmul.mubr.f32.gmra.mrb[0].mxu0 %v8873
      %v9253 = vpop.f32.mrb[0].mxu0
      %v9254 = vadd.f32 0.0, %v9253
      %v9255 = vpop.f32.mrb[0].mxu0
      %9256 = vmatprep.mubr.f32.mxu0 0.0
      %9257 = vmatmul.mubr.f32.gmra.mrb[0].mxu0 %v8876
      %v9258 = vpop.f32.mrb[0].mxu0
      %v9259 = vadd.f32 0.0, %v9258
      %v9260 = vpop.f32.mrb[0].mxu0
      %9261 = vmatprep.mubr.f32.mxu0 0.0
      %9262 = vmatmul.mubr.f32.gmra.mrb[0].mxu0 %v8879
      %v9263 = vpop.f32.mrb[0].mxu0
      %v9264 = vadd.f32 0.0, %v9263
      %v9265 = vpop.f32.mrb[0].mxu0
      %9266 = vmatprep.mubr.f32.mxu0 0.0
      %9267 = vmatmul.mubr.f32.gmra.mrb[0].mxu0 %v8882
      %v9268 = vpop.f32.mrb[0].mxu0
      %v9269 = vadd.f32 0.0, %v9268
      %v9270 = vpop.f32.mrb[0].mxu0
      %9271 = vdwg.mxu0
      %v9273 = vsel %vm2743, %v7727, 0
      %v9276 = vsel %vm2743, %v7728, 0
      %v9279 = vsel %vm2743, %v7729, 0
      %v9282 = vsel %vm2743, %v7730, 0
      %v9285 = vsel %vm2743, %v7731, 0
      %v9288 = vsel %vm2743, %v7732, 0
      %v9291 = vsel %vm2743, %v7733, 0
      %v9294 = vsel %vm2743, %v7734, 0
      %v9297 = vsel %vm2743, %v7735, 0
      %v9300 = vsel %vm2743, %v7736, 0
      %v9303 = vsel %vm2743, %v7737, 0
      %v9306 = vsel %vm2743, %v7738, 0
      %v9309 = vsel %vm2743, %v7739, 0
      %v9312 = vsel %vm2743, %v7740, 0
      %v9315 = vsel %vm2743, %v7741, 0
      %v9318 = vsel %vm2743, %v7742, 0
      %v9321 = vsel %vm2743, %v7743, 0
      %v9324 = vsel %vm2743, %v7744, 0
      %v9327 = vsel %vm2743, %v7745, 0
      %v9330 = vsel %vm2743, %v7746, 0
      %v9333 = vsel %vm2743, %v7747, 0
      %v9336 = vsel %vm2743, %v7748, 0
      %v9339 = vsel %vm2743, %v7749, 0
      %v9342 = vsel %vm2743, %v7750, 0
      %v9345 = vsel %vm2743, %v7751, 0
      %v9348 = vsel %vm2743, %v7752, 0
      %v9351 = vsel %vm2743, %v7753, 0
      %v9354 = vsel %vm2743, %v7754, 0
      %v9357 = vsel %vm2743, %v7755, 0
      %v9360 = vsel %vm2743, %v7756, 0
      %v9363 = vsel %vm2743, %v7757, 0
      %v9366 = vsel %vm2743, %v7758, 0
      %v9369 = vsel %vm2743, %v7759, 0
      %v9372 = vsel %vm2743, %v7760, 0
      %v9375 = vsel %vm2743, %v7761, 0
      %v9378 = vsel %vm2743, %v7762, 0
      %v9381 = vsel %vm2743, %v7763, 0
      %v9384 = vsel %vm2743, %v7764, 0
      %v9387 = vsel %vm2743, %v7765, 0
      %v9390 = vsel %vm2743, %v7766, 0
      %v9393 = vsel %vm2743, %v7767, 0
      %v9396 = vsel %vm2743, %v7768, 0
      %v9399 = vsel %vm2743, %v7769, 0
      %v9402 = vsel %vm2743, %v7770, 0
      %v9405 = vsel %vm2743, %v7771, 0
      %v9408 = vsel %vm2743, %v7772, 0
      %v9411 = vsel %vm2743, %v7773, 0
      %v9414 = vsel %vm2743, %v7774, 0
      %v9417 = vsel %vm2743, %v7775, 0
      %v9420 = vsel %vm2743, %v7776, 0
      %v9423 = vsel %vm2743, %v7777, 0
      %v9426 = vsel %vm2743, %v7778, 0
      %v9429 = vsel %vm2743, %v7779, 0
      %v9432 = vsel %vm2743, %v7780, 0
      %v9435 = vsel %vm2743, %v7781, 0
      %v9438 = vsel %vm2743, %v7782, 0
      %v9441 = vsel %vm2743, %v7783, 0
      %v9444 = vsel %vm2743, %v7784, 0
      %v9447 = vsel %vm2743, %v7785, 0
      %v9450 = vsel %vm2743, %v7786, 0
      %v9453 = vsel %vm2743, %v7787, 0
      %v9456 = vsel %vm2743, %v7788, 0
      %v9459 = vsel %vm2743, %v7789, 0
      %v9462 = vsel %vm2743, %v7790, 0
      %v9465 = vsel %vm2936, %v7792, 0
      %9467 = vmatprep.subr.mxu0 0.0
      %9468 = vmatpush1.msra.mxu0 %v7791
      %9469 = vmatprep.subr.mxu0 0.0
      %9470 = vmatpush1.msra.mxu0 %v9465
      %9471 = vmatprep.subr.mxu0 0.0
      %9472 = vmatpush1.msra.mxu0 0.0
      %9473 = vmatprep.subr.mxu0 0.0
      %9474 = vmatpush1.msra.mxu0 0.0
      %9475 = vmatprep.subr.mxu0 0.0
      %9476 = vmatpush1.msra.mxu0 0.0
      %9477 = vmatprep.subr.mxu0 0.0
      %9478 = vmatpush1.msra.mxu0 0.0
      %9479 = vmatprep.subr.mxu0 0.0
      %9480 = vmatpush1.msra.mxu0 0.0
      %9481 = vmatprep.subr.mxu0 0.0
      %9482 = vmatpush1.msra.mxu0 0.0
      %9483 = vmatprep.subr.mxu0 0.0
      %9484 = vmatpush1.msra.mxu0 0.0
      %9485 = vmatprep.subr.mxu0 0.0
      %9486 = vmatpush1.msra.mxu0 0.0
      %9487 = vmatprep.subr.mxu0 0.0
      %9488 = vmatpush1.msra.mxu0 0.0
      %9489 = vmatprep.subr.mxu0 0.0
      %9490 = vmatpush1.msra.mxu0 0.0
      %9491 = vmatprep.subr.mxu0 0.0
      %9492 = vmatpush1.msra.mxu0 0.0
      %9493 = vmatprep.subr.mxu0 0.0
      %9494 = vmatpush1.msra.mxu0 0.0
      %9495 = vmatprep.subr.mxu0 0.0
      %9496 = vmatpush1.msra.mxu0 0.0
      %9497 = vmatprep.subr.mxu0 0.0
      %9498 = vmatpush1.msra.mxu0 0.0
      %9499 = vmatprep.subr.mxu0 0.0
      %9500 = vmatpush1.msra.mxu0 0.0
      %9501 = vmatprep.subr.mxu0 0.0
      %9502 = vmatpush1.msra.mxu0 0.0
      %9503 = vmatprep.subr.mxu0 0.0
      %9504 = vmatpush1.msra.mxu0 0.0
      %9505 = vmatprep.subr.mxu0 0.0
      %9506 = vmatpush1.msra.mxu0 0.0
      %9507 = vmatprep.subr.mxu0 0.0
      %9508 = vmatpush1.msra.mxu0 0.0
      %9509 = vmatprep.subr.mxu0 0.0
      %9510 = vmatpush1.msra.mxu0 0.0
      %9511 = vmatprep.subr.mxu0 0.0
      %9512 = vmatpush1.msra.mxu0 0.0
      %9513 = vmatprep.subr.mxu0 0.0
      %9514 = vmatpush1.msra.mxu0 0.0
      %9515 = vmatprep.subr.mxu0 0.0
      %9516 = vmatpush1.msra.mxu0 0.0
      %9517 = vmatprep.subr.mxu0 0.0
      %9518 = vmatpush1.msra.mxu0 0.0
      %9519 = vmatprep.subr.mxu0 0.0
      %9520 = vmatpush1.msra.mxu0 0.0
      %9521 = vmatprep.subr.mxu0 0.0
      %9522 = vmatpush1.msra.mxu0 0.0
      %9523 = vmatprep.subr.mxu0 0.0
      %9524 = vmatpush1.msra.mxu0 0.0
      %9525 = vmatprep.subr.mxu0 0.0
      %9526 = vmatpush1.msra.mxu0 0.0
      %9527 = vmatprep.subr.mxu0 0.0
      %9528 = vmatpush1.msra.mxu0 0.0
      %9529 = vmatprep.subr.mxu0 0.0
      %9530 = vmatpush1.msra.mxu0 0.0
      %9531 = vmatprep.mubr.f32.mxu0 0.0
      %9532 = vmatmul.mubr.f32.gmra.mrb[0].mxu0 %v9273
      %v9533 = vpop.f32.mrb[0].mxu0
      %v9534 = vadd.f32 %v8954, %v9533
      %v9535 = vpop.f32.mrb[0].mxu0
      %9536 = vmatprep.mubr.f32.mxu0 0.0
      %9537 = vmatmul.mubr.f32.gmra.mrb[0].mxu0 %v9276
      %v9538 = vpop.f32.mrb[0].mxu0
      %v9539 = vadd.f32 %v8959, %v9538
      %v9540 = vpop.f32.mrb[0].mxu0
      %9541 = vmatprep.mubr.f32.mxu0 0.0
      %9542 = vmatmul.mubr.f32.gmra.mrb[0].mxu0 %v9279
      %v9543 = vpop.f32.mrb[0].mxu0
      %v9544 = vadd.f32 %v8964, %v9543
      %v9545 = vpop.f32.mrb[0].mxu0
      %9546 = vmatprep.mubr.f32.mxu0 0.0
      %9547 = vmatmul.mubr.f32.gmra.mrb[0].mxu0 %v9282
      %v9548 = vpop.f32.mrb[0].mxu0
      %v9549 = vadd.f32 %v8969, %v9548
      %v9550 = vpop.f32.mrb[0].mxu0
      %9551 = vmatprep.mubr.f32.mxu0 0.0
      %9552 = vmatmul.mubr.f32.gmra.mrb[0].mxu0 %v9285
      %v9553 = vpop.f32.mrb[0].mxu0
      %v9554 = vadd.f32 %v8974, %v9553
      %v9555 = vpop.f32.mrb[0].mxu0
      %9556 = vmatprep.mubr.f32.mxu0 0.0
      %9557 = vmatmul.mubr.f32.gmra.mrb[0].mxu0 %v9288
      %v9558 = vpop.f32.mrb[0].mxu0
      %v9559 = vadd.f32 %v8979, %v9558
      %v9560 = vpop.f32.mrb[0].mxu0
      %9561 = vmatprep.mubr.f32.mxu0 0.0
      %9562 = vmatmul.mubr.f32.gmra.mrb[0].mxu0 %v9291
      %v9563 = vpop.f32.mrb[0].mxu0
      %v9564 = vadd.f32 %v8984, %v9563
      %v9565 = vpop.f32.mrb[0].mxu0
      %9566 = vmatprep.mubr.f32.mxu0 0.0
      %9567 = vmatmul.mubr.f32.gmra.mrb[0].mxu0 %v9294
      %v9568 = vpop.f32.mrb[0].mxu0
      %v9569 = vadd.f32 %v8989, %v9568
      %v9570 = vpop.f32.mrb[0].mxu0
      %9571 = vmatprep.mubr.f32.mxu0 0.0
      %9572 = vmatmul.mubr.f32.gmra.mrb[0].mxu0 %v9297
      %v9573 = vpop.f32.mrb[0].mxu0
      %v9574 = vadd.f32 %v8994, %v9573
      %v9575 = vpop.f32.mrb[0].mxu0
      %9576 = vmatprep.mubr.f32.mxu0 0.0
      %9577 = vmatmul.mubr.f32.gmra.mrb[0].mxu0 %v9300
      %v9578 = vpop.f32.mrb[0].mxu0
      %v9579 = vadd.f32 %v8999, %v9578
      %v9580 = vpop.f32.mrb[0].mxu0
      %9581 = vmatprep.mubr.f32.mxu0 0.0
      %9582 = vmatmul.mubr.f32.gmra.mrb[0].mxu0 %v9303
      %v9583 = vpop.f32.mrb[0].mxu0
      %v9584 = vadd.f32 %v9004, %v9583
      %v9585 = vpop.f32.mrb[0].mxu0
      %9586 = vmatprep.mubr.f32.mxu0 0.0
      %9587 = vmatmul.mubr.f32.gmra.mrb[0].mxu0 %v9306
      %v9588 = vpop.f32.mrb[0].mxu0
      %v9589 = vadd.f32 %v9009, %v9588
      %v9590 = vpop.f32.mrb[0].mxu0
      %9591 = vmatprep.mubr.f32.mxu0 0.0
      %9592 = vmatmul.mubr.f32.gmra.mrb[0].mxu0 %v9309
      %v9593 = vpop.f32.mrb[0].mxu0
      %v9594 = vadd.f32 %v9014, %v9593
      %v9595 = vpop.f32.mrb[0].mxu0
      %9596 = vmatprep.mubr.f32.mxu0 0.0
      %9597 = vmatmul.mubr.f32.gmra.mrb[0].mxu0 %v9312
      %v9598 = vpop.f32.mrb[0].mxu0
      %v9599 = vadd.f32 %v9019, %v9598
      %v9600 = vpop.f32.mrb[0].mxu0
      %9601 = vmatprep.mubr.f32.mxu0 0.0
      %9602 = vmatmul.mubr.f32.gmra.mrb[0].mxu0 %v9315
      %v9603 = vpop.f32.mrb[0].mxu0
      %v9604 = vadd.f32 %v9024, %v9603
      %v9605 = vpop.f32.mrb[0].mxu0
      %9606 = vmatprep.mubr.f32.mxu0 0.0
      %9607 = vmatmul.mubr.f32.gmra.mrb[0].mxu0 %v9318
      %v9608 = vpop.f32.mrb[0].mxu0
      %v9609 = vadd.f32 %v9029, %v9608
      %v9610 = vpop.f32.mrb[0].mxu0
      %9611 = vmatprep.mubr.f32.mxu0 0.0
      %9612 = vmatmul.mubr.f32.gmra.mrb[0].mxu0 %v9321
      %v9613 = vpop.f32.mrb[0].mxu0
      %v9614 = vadd.f32 %v9034, %v9613
      %v9615 = vpop.f32.mrb[0].mxu0
      %9616 = vmatprep.mubr.f32.mxu0 0.0
      %9617 = vmatmul.mubr.f32.gmra.mrb[0].mxu0 %v9324
      %v9618 = vpop.f32.mrb[0].mxu0
      %v9619 = vadd.f32 %v9039, %v9618
      %v9620 = vpop.f32.mrb[0].mxu0
      %9621 = vmatprep.mubr.f32.mxu0 0.0
      %9622 = vmatmul.mubr.f32.gmra.mrb[0].mxu0 %v9327
      %v9623 = vpop.f32.mrb[0].mxu0
      %v9624 = vadd.f32 %v9044, %v9623
      %v9625 = vpop.f32.mrb[0].mxu0
      %9626 = vmatprep.mubr.f32.mxu0 0.0
      %9627 = vmatmul.mubr.f32.gmra.mrb[0].mxu0 %v9330
      %v9628 = vpop.f32.mrb[0].mxu0
      %v9629 = vadd.f32 %v9049, %v9628
      %v9630 = vpop.f32.mrb[0].mxu0
      %9631 = vmatprep.mubr.f32.mxu0 0.0
      %9632 = vmatmul.mubr.f32.gmra.mrb[0].mxu0 %v9333
      %v9633 = vpop.f32.mrb[0].mxu0
      %v9634 = vadd.f32 %v9054, %v9633
      %v9635 = vpop.f32.mrb[0].mxu0
      %9636 = vmatprep.mubr.f32.mxu0 0.0
      %9637 = vmatmul.mubr.f32.gmra.mrb[0].mxu0 %v9336
      %v9638 = vpop.f32.mrb[0].mxu0
      %v9639 = vadd.f32 %v9059, %v9638
      %v9640 = vpop.f32.mrb[0].mxu0
      %9641 = vmatprep.mubr.f32.mxu0 0.0
      %9642 = vmatmul.mubr.f32.gmra.mrb[0].mxu0 %v9339
      %v9643 = vpop.f32.mrb[0].mxu0
      %v9644 = vadd.f32 %v9064, %v9643
      %v9645 = vpop.f32.mrb[0].mxu0
      %9646 = vmatprep.mubr.f32.mxu0 0.0
      %9647 = vmatmul.mubr.f32.gmra.mrb[0].mxu0 %v9342
      %v9648 = vpop.f32.mrb[0].mxu0
      %v9649 = vadd.f32 %v9069, %v9648
      %v9650 = vpop.f32.mrb[0].mxu0
      %9651 = vmatprep.mubr.f32.mxu0 0.0
      %9652 = vmatmul.mubr.f32.gmra.mrb[0].mxu0 %v9345
      %v9653 = vpop.f32.mrb[0].mxu0
      %v9654 = vadd.f32 %v9074, %v9653
      %v9655 = vpop.f32.mrb[0].mxu0
      %9656 = vmatprep.mubr.f32.mxu0 0.0
      %9657 = vmatmul.mubr.f32.gmra.mrb[0].mxu0 %v9348
      %v9658 = vpop.f32.mrb[0].mxu0
      %v9659 = vadd.f32 %v9079, %v9658
      %v9660 = vpop.f32.mrb[0].mxu0
      %9661 = vmatprep.mubr.f32.mxu0 0.0
      %9662 = vmatmul.mubr.f32.gmra.mrb[0].mxu0 %v9351
      %v9663 = vpop.f32.mrb[0].mxu0
      %v9664 = vadd.f32 %v9084, %v9663
      %v9665 = vpop.f32.mrb[0].mxu0
      %9666 = vmatprep.mubr.f32.mxu0 0.0
      %9667 = vmatmul.mubr.f32.gmra.mrb[0].mxu0 %v9354
      %v9668 = vpop.f32.mrb[0].mxu0
      %v9669 = vadd.f32 %v9089, %v9668
      %v9670 = vpop.f32.mrb[0].mxu0
      %9671 = vmatprep.mubr.f32.mxu0 0.0
      %9672 = vmatmul.mubr.f32.gmra.mrb[0].mxu0 %v9357
      %v9673 = vpop.f32.mrb[0].mxu0
      %v9674 = vadd.f32 %v9094, %v9673
      %v9675 = vpop.f32.mrb[0].mxu0
      %9676 = vmatprep.mubr.f32.mxu0 0.0
      %9677 = vmatmul.mubr.f32.gmra.mrb[0].mxu0 %v9360
      %v9678 = vpop.f32.mrb[0].mxu0
      %v9679 = vadd.f32 %v9099, %v9678
      %v9680 = vpop.f32.mrb[0].mxu0
      %9681 = vmatprep.mubr.f32.mxu0 0.0
      %9682 = vmatmul.mubr.f32.gmra.mrb[0].mxu0 %v9363
      %v9683 = vpop.f32.mrb[0].mxu0
      %v9684 = vadd.f32 %v9104, %v9683
      %v9685 = vpop.f32.mrb[0].mxu0
      %9686 = vmatprep.mubr.f32.mxu0 0.0
      %9687 = vmatmul.mubr.f32.gmra.mrb[0].mxu0 %v9366
      %v9688 = vpop.f32.mrb[0].mxu0
      %v9689 = vadd.f32 %v9109, %v9688
      %v9690 = vpop.f32.mrb[0].mxu0
      %9691 = vmatprep.mubr.f32.mxu0 0.0
      %9692 = vmatmul.mubr.f32.gmra.mrb[0].mxu0 %v9369
      %v9693 = vpop.f32.mrb[0].mxu0
      %v9694 = vadd.f32 %v9114, %v9693
      %v9695 = vpop.f32.mrb[0].mxu0
      %9696 = vmatprep.mubr.f32.mxu0 0.0
      %9697 = vmatmul.mubr.f32.gmra.mrb[0].mxu0 %v9372
      %v9698 = vpop.f32.mrb[0].mxu0
      %v9699 = vadd.f32 %v9119, %v9698
      %v9700 = vpop.f32.mrb[0].mxu0
      %9701 = vmatprep.mubr.f32.mxu0 0.0
      %9702 = vmatmul.mubr.f32.gmra.mrb[0].mxu0 %v9375
      %v9703 = vpop.f32.mrb[0].mxu0
      %v9704 = vadd.f32 %v9124, %v9703
      %v9705 = vpop.f32.mrb[0].mxu0
      %9706 = vmatprep.mubr.f32.mxu0 0.0
      %9707 = vmatmul.mubr.f32.gmra.mrb[0].mxu0 %v9378
      %v9708 = vpop.f32.mrb[0].mxu0
      %v9709 = vadd.f32 %v9129, %v9708
      %v9710 = vpop.f32.mrb[0].mxu0
      %9711 = vmatprep.mubr.f32.mxu0 0.0
      %9712 = vmatmul.mubr.f32.gmra.mrb[0].mxu0 %v9381
      %v9713 = vpop.f32.mrb[0].mxu0
      %v9714 = vadd.f32 %v9134, %v9713
      %v9715 = vpop.f32.mrb[0].mxu0
      %9716 = vmatprep.mubr.f32.mxu0 0.0
      %9717 = vmatmul.mubr.f32.gmra.mrb[0].mxu0 %v9384
      %v9718 = vpop.f32.mrb[0].mxu0
      %v9719 = vadd.f32 %v9139, %v9718
      %v9720 = vpop.f32.mrb[0].mxu0
      %9721 = vmatprep.mubr.f32.mxu0 0.0
      %9722 = vmatmul.mubr.f32.gmra.mrb[0].mxu0 %v9387
      %v9723 = vpop.f32.mrb[0].mxu0
      %v9724 = vadd.f32 %v9144, %v9723
      %v9725 = vpop.f32.mrb[0].mxu0
      %9726 = vmatprep.mubr.f32.mxu0 0.0
      %9727 = vmatmul.mubr.f32.gmra.mrb[0].mxu0 %v9390
      %v9728 = vpop.f32.mrb[0].mxu0
      %v9729 = vadd.f32 %v9149, %v9728
      %v9730 = vpop.f32.mrb[0].mxu0
      %9731 = vmatprep.mubr.f32.mxu0 0.0
      %9732 = vmatmul.mubr.f32.gmra.mrb[0].mxu0 %v9393
      %v9733 = vpop.f32.mrb[0].mxu0
      %v9734 = vadd.f32 %v9154, %v9733
      %v9735 = vpop.f32.mrb[0].mxu0
      %9736 = vmatprep.mubr.f32.mxu0 0.0
      %9737 = vmatmul.mubr.f32.gmra.mrb[0].mxu0 %v9396
      %v9738 = vpop.f32.mrb[0].mxu0
      %v9739 = vadd.f32 %v9159, %v9738
      %v9740 = vpop.f32.mrb[0].mxu0
      %9741 = vmatprep.mubr.f32.mxu0 0.0
      %9742 = vmatmul.mubr.f32.gmra.mrb[0].mxu0 %v9399
      %v9743 = vpop.f32.mrb[0].mxu0
      %v9744 = vadd.f32 %v9164, %v9743
      %v9745 = vpop.f32.mrb[0].mxu0
      %9746 = vmatprep.mubr.f32.mxu0 0.0
      %9747 = vmatmul.mubr.f32.gmra.mrb[0].mxu0 %v9402
      %v9748 = vpop.f32.mrb[0].mxu0
      %v9749 = vadd.f32 %v9169, %v9748
      %v9750 = vpop.f32.mrb[0].mxu0
      %9751 = vmatprep.mubr.f32.mxu0 0.0
      %9752 = vmatmul.mubr.f32.gmra.mrb[0].mxu0 %v9405
      %v9753 = vpop.f32.mrb[0].mxu0
      %v9754 = vadd.f32 %v9174, %v9753
      %v9755 = vpop.f32.mrb[0].mxu0
      %9756 = vmatprep.mubr.f32.mxu0 0.0
      %9757 = vmatmul.mubr.f32.gmra.mrb[0].mxu0 %v9408
      %v9758 = vpop.f32.mrb[0].mxu0
      %v9759 = vadd.f32 %v9179, %v9758
      %v9760 = vpop.f32.mrb[0].mxu0
      %9761 = vmatprep.mubr.f32.mxu0 0.0
      %9762 = vmatmul.mubr.f32.gmra.mrb[0].mxu0 %v9411
      %v9763 = vpop.f32.mrb[0].mxu0
      %v9764 = vadd.f32 %v9184, %v9763
      %v9765 = vpop.f32.mrb[0].mxu0
      %9766 = vmatprep.mubr.f32.mxu0 0.0
      %9767 = vmatmul.mubr.f32.gmra.mrb[0].mxu0 %v9414
      %v9768 = vpop.f32.mrb[0].mxu0
      %v9769 = vadd.f32 %v9189, %v9768
      %v9770 = vpop.f32.mrb[0].mxu0
      %9771 = vmatprep.mubr.f32.mxu0 0.0
      %9772 = vmatmul.mubr.f32.gmra.mrb[0].mxu0 %v9417
      %v9773 = vpop.f32.mrb[0].mxu0
      %v9774 = vadd.f32 %v9194, %v9773
      %v9775 = vpop.f32.mrb[0].mxu0
      %9776 = vmatprep.mubr.f32.mxu0 0.0
      %9777 = vmatmul.mubr.f32.gmra.mrb[0].mxu0 %v9420
      %v9778 = vpop.f32.mrb[0].mxu0
      %v9779 = vadd.f32 %v9199, %v9778
      %v9780 = vpop.f32.mrb[0].mxu0
      %9781 = vmatprep.mubr.f32.mxu0 0.0
      %9782 = vmatmul.mubr.f32.gmra.mrb[0].mxu0 %v9423
      %v9783 = vpop.f32.mrb[0].mxu0
      %v9784 = vadd.f32 %v9204, %v9783
      %v9785 = vpop.f32.mrb[0].mxu0
      %9786 = vmatprep.mubr.f32.mxu0 0.0
      %9787 = vmatmul.mubr.f32.gmra.mrb[0].mxu0 %v9426
      %v9788 = vpop.f32.mrb[0].mxu0
      %v9789 = vadd.f32 %v9209, %v9788
      %v9790 = vpop.f32.mrb[0].mxu0
      %9791 = vmatprep.mubr.f32.mxu0 0.0
      %9792 = vmatmul.mubr.f32.gmra.mrb[0].mxu0 %v9429
      %v9793 = vpop.f32.mrb[0].mxu0
      %v9794 = vadd.f32 %v9214, %v9793
      %v9795 = vpop.f32.mrb[0].mxu0
      %9796 = vmatprep.mubr.f32.mxu0 0.0
      %9797 = vmatmul.mubr.f32.gmra.mrb[0].mxu0 %v9432
      %v9798 = vpop.f32.mrb[0].mxu0
      %v9799 = vadd.f32 %v9219, %v9798
      %v9800 = vpop.f32.mrb[0].mxu0
      %9801 = vmatprep.mubr.f32.mxu0 0.0
      %9802 = vmatmul.mubr.f32.gmra.mrb[0].mxu0 %v9435
      %v9803 = vpop.f32.mrb[0].mxu0
      %v9804 = vadd.f32 %v9224, %v9803
      %v9805 = vpop.f32.mrb[0].mxu0
      %9806 = vmatprep.mubr.f32.mxu0 0.0
      %9807 = vmatmul.mubr.f32.gmra.mrb[0].mxu0 %v9438
      %v9808 = vpop.f32.mrb[0].mxu0
      %v9809 = vadd.f32 %v9229, %v9808
      %v9810 = vpop.f32.mrb[0].mxu0
      %9811 = vmatprep.mubr.f32.mxu0 0.0
      %9812 = vmatmul.mubr.f32.gmra.mrb[0].mxu0 %v9441
      %v9813 = vpop.f32.mrb[0].mxu0
      %v9814 = vadd.f32 %v9234, %v9813
      %v9815 = vpop.f32.mrb[0].mxu0
      %9816 = vmatprep.mubr.f32.mxu0 0.0
      %9817 = vmatmul.mubr.f32.gmra.mrb[0].mxu0 %v9444
      %v9818 = vpop.f32.mrb[0].mxu0
      %v9819 = vadd.f32 %v9239, %v9818
      %v9820 = vpop.f32.mrb[0].mxu0
      %9821 = vmatprep.mubr.f32.mxu0 0.0
      %9822 = vmatmul.mubr.f32.gmra.mrb[0].mxu0 %v9447
      %v9823 = vpop.f32.mrb[0].mxu0
      %v9824 = vadd.f32 %v9244, %v9823
      %v9825 = vpop.f32.mrb[0].mxu0
      %9826 = vmatprep.mubr.f32.mxu0 0.0
      %9827 = vmatmul.mubr.f32.gmra.mrb[0].mxu0 %v9450
      %v9828 = vpop.f32.mrb[0].mxu0
      %v9829 = vadd.f32 %v9249, %v9828
      %v9830 = vpop.f32.mrb[0].mxu0
      %9831 = vmatprep.mubr.f32.mxu0 0.0
      %9832 = vmatmul.mubr.f32.gmra.mrb[0].mxu0 %v9453
      %v9833 = vpop.f32.mrb[0].mxu0
      %v9834 = vadd.f32 %v9254, %v9833
      %v9835 = vpop.f32.mrb[0].mxu0
      %9836 = vmatprep.mubr.f32.mxu0 0.0
      %9837 = vmatmul.mubr.f32.gmra.mrb[0].mxu0 %v9456
      %v9838 = vpop.f32.mrb[0].mxu0
      %v9839 = vadd.f32 %v9259, %v9838
      %v9840 = vpop.f32.mrb[0].mxu0
      %9841 = vmatprep.mubr.f32.mxu0 0.0
      %9842 = vmatmul.mubr.f32.gmra.mrb[0].mxu0 %v9459
      %v9843 = vpop.f32.mrb[0].mxu0
      %v9844 = vadd.f32 %v9264, %v9843
      %v9845 = vpop.f32.mrb[0].mxu0
      %9846 = vmatprep.mubr.f32.mxu0 0.0
      %9847 = vmatmul.mubr.f32.gmra.mrb[0].mxu0 %v9462
      %v9848 = vpop.f32.mrb[0].mxu0
      %v9849 = vadd.f32 %v9269, %v9848
      %v9850 = vpop.f32.mrb[0].mxu0
      %9851 = vdwg.mxu0
      %v9852 = vrot.slane %v6831, 7
      %v9853 = vrot.slane %v6832, 7
      %v9854 = vrot.slane %v6833, 7
      %v9855 = vrot.slane %v6834, 7
      %v9856 = vrot.slane %v6835, 7
      %v9857 = vrot.slane %v6836, 7
      %v9858 = vrot.slane %v6837, 7
      %v9859 = vrot.slane %v6838, 7
      %v9860 = vrot.slane %v6839, 7
      %v9861 = vrot.slane %v6840, 7
      %v9862 = vrot.slane %v6841, 7
      %v9863 = vrot.slane %v6842, 7
      %v9864 = vrot.slane %v6843, 7
      %v9865 = vrot.slane %v6844, 7
      %v9866 = vrot.slane %v6845, 7
      %v9867 = vrot.slane %v6846, 7
      %v9868 = vrot.slane %v6847, 7
      %v9869 = vrot.slane %v6848, 7
      %v9870 = vrot.slane %v6849, 7
      %v9871 = vrot.slane %v6850, 7
      %v9872 = vrot.slane %v6851, 7
      %v9873 = vrot.slane %v6852, 7
      %v9874 = vrot.slane %v6853, 7
      %v9875 = vrot.slane %v6854, 7
      %v9876 = vrot.slane %v6855, 7
      %v9877 = vrot.slane %v6856, 7
      %v9878 = vrot.slane %v6857, 7
      %v9879 = vrot.slane %v6858, 7
      %v9880 = vrot.slane %v6859, 7
      %v9881 = vrot.slane %v6860, 7
      %v9882 = vrot.slane %v6861, 7
      %v9883 = vrot.slane %v6862, 7
      %v9884 = vrot.slane %v6863, 7
      %v9885 = vrot.slane %v6864, 7
      %v9886 = vrot.slane %v6865, 7
      %v9887 = vrot.slane %v6866, 7
      %v9888 = vrot.slane %v6867, 7
      %v9889 = vrot.slane %v6868, 7
      %v9890 = vrot.slane %v6869, 7
      %v9891 = vrot.slane %v6870, 7
      %v9892 = vrot.slane %v6871, 7
      %v9893 = vrot.slane %v6872, 7
      %v9894 = vrot.slane %v6873, 7
      %v9895 = vrot.slane %v6874, 7
      %v9896 = vrot.slane %v6875, 7
      %v9897 = vrot.slane %v6876, 7
      %v9898 = vrot.slane %v6877, 7
      %v9899 = vrot.slane %v6878, 7
      %v9900 = vrot.slane %v6879, 7
      %v9901 = vrot.slane %v6880, 7
      %v9902 = vrot.slane %v6881, 7
      %v9903 = vrot.slane %v6882, 7
      %v9904 = vrot.slane %v6883, 7
      %v9905 = vrot.slane %v6884, 7
      %v9906 = vrot.slane %v6885, 7
      %v9907 = vrot.slane %v6886, 7
      %v9908 = vrot.slane %v6887, 7
      %v9909 = vrot.slane %v6888, 7
      %v9910 = vrot.slane %v6889, 7
      %v9911 = vrot.slane %v6890, 7
      %v9912 = vrot.slane %v6891, 7
      %v9913 = vrot.slane %v6892, 7
      %v9914 = vrot.slane %v6893, 7
      %v9915 = vrot.slane %v6894, 7
      %v9916 = vsel %vm1006, %v9914, %v9915
      %v9917 = vsel %vm1006, %v9913, %v9914
      %v9918 = vsel %vm1006, %v9912, %v9913
      %v9919 = vsel %vm1006, %v9911, %v9912
      %v9920 = vsel %vm1006, %v9910, %v9911
      %v9921 = vsel %vm1006, %v9909, %v9910
      %v9922 = vsel %vm1006, %v9908, %v9909
      %v9923 = vsel %vm1006, %v9907, %v9908
      %v9924 = vsel %vm1006, %v9906, %v9907
      %v9925 = vsel %vm1006, %v9905, %v9906
      %v9926 = vsel %vm1006, %v9904, %v9905
      %v9927 = vsel %vm1006, %v9903, %v9904
      %v9928 = vsel %vm1006, %v9902, %v9903
      %v9929 = vsel %vm1006, %v9901, %v9902
      %v9930 = vsel %vm1006, %v9900, %v9901
      %v9931 = vsel %vm1006, %v9899, %v9900
      %v9932 = vsel %vm1006, %v9898, %v9899
      %v9933 = vsel %vm1006, %v9897, %v9898
      %v9934 = vsel %vm1006, %v9896, %v9897
      %v9935 = vsel %vm1006, %v9895, %v9896
      %v9936 = vsel %vm1006, %v9894, %v9895
      %v9937 = vsel %vm1006, %v9893, %v9894
      %v9938 = vsel %vm1006, %v9892, %v9893
      %v9939 = vsel %vm1006, %v9891, %v9892
      %v9940 = vsel %vm1006, %v9890, %v9891
      %v9941 = vsel %vm1006, %v9889, %v9890
      %v9942 = vsel %vm1006, %v9888, %v9889
      %v9943 = vsel %vm1006, %v9887, %v9888
      %v9944 = vsel %vm1006, %v9886, %v9887
      %v9945 = vsel %vm1006, %v9885, %v9886
      %v9946 = vsel %vm1006, %v9884, %v9885
      %v9947 = vsel %vm1006, %v9883, %v9884
      %v9948 = vsel %vm1006, %v9882, %v9883
      %v9949 = vsel %vm1006, %v9881, %v9882
      %v9950 = vsel %vm1006, %v9880, %v9881
      %v9951 = vsel %vm1006, %v9879, %v9880
      %v9952 = vsel %vm1006, %v9878, %v9879
      %v9953 = vsel %vm1006, %v9877, %v9878
      %v9954 = vsel %vm1006, %v9876, %v9877
      %v9955 = vsel %vm1006, %v9875, %v9876
      %v9956 = vsel %vm1006, %v9874, %v9875
      %v9957 = vsel %vm1006, %v9873, %v9874
      %v9958 = vsel %vm1006, %v9872, %v9873
      %v9959 = vsel %vm1006, %v9871, %v9872
      %v9960 = vsel %vm1006, %v9870, %v9871
      %v9961 = vsel %vm1006, %v9869, %v9870
      %v9962 = vsel %vm1006, %v9868, %v9869
      %v9963 = vsel %vm1006, %v9867, %v9868
      %v9964 = vsel %vm1006, %v9866, %v9867
      %v9965 = vsel %vm1006, %v9865, %v9866
      %v9966 = vsel %vm1006, %v9864, %v9865
      %v9967 = vsel %vm1006, %v9863, %v9864
      %v9968 = vsel %vm1006, %v9862, %v9863
      %v9969 = vsel %vm1006, %v9861, %v9862
      %v9970 = vsel %vm1006, %v9860, %v9861
      %v9971 = vsel %vm1006, %v9859, %v9860
      %v9972 = vsel %vm1006, %v9858, %v9859
      %v9973 = vsel %vm1006, %v9857, %v9858
      %v9974 = vsel %vm1006, %v9856, %v9857
      %v9975 = vsel %vm1006, %v9855, %v9856
      %v9976 = vsel %vm1006, %v9854, %v9855
      %v9977 = vsel %vm1006, %v9853, %v9854
      %v9978 = vsel %vm1006, %v9852, %v9853
      %v9979 = vsel %vm1006, %v9915, %v9852
      %v9980 = vrot.slane %v6831, 1
      %v9981 = vrot.slane %v6832, 1
      %v9982 = vrot.slane %v6833, 1
      %v9983 = vrot.slane %v6834, 1
      %v9984 = vrot.slane %v6835, 1
      %v9985 = vrot.slane %v6836, 1
      %v9986 = vrot.slane %v6837, 1
      %v9987 = vrot.slane %v6838, 1
      %v9988 = vrot.slane %v6839, 1
      %v9989 = vrot.slane %v6840, 1
      %v9990 = vrot.slane %v6841, 1
      %v9991 = vrot.slane %v6842, 1
      %v9992 = vrot.slane %v6843, 1
      %v9993 = vrot.slane %v6844, 1
      %v9994 = vrot.slane %v6845, 1
      %v9995 = vrot.slane %v6846, 1
      %v9996 = vrot.slane %v6847, 1
      %v9997 = vrot.slane %v6848, 1
      %v9998 = vrot.slane %v6849, 1
      %v9999 = vrot.slane %v6850, 1
      %v10000 = vrot.slane %v6851, 1
      %v10001 = vrot.slane %v6852, 1
      %v10002 = vrot.slane %v6853, 1
      %v10003 = vrot.slane %v6854, 1
      %v10004 = vrot.slane %v6855, 1
      %v10005 = vrot.slane %v6856, 1
      %v10006 = vrot.slane %v6857, 1
      %v10007 = vrot.slane %v6858, 1
      %v10008 = vrot.slane %v6859, 1
      %v10009 = vrot.slane %v6860, 1
      %v10010 = vrot.slane %v6861, 1
      %v10011 = vrot.slane %v6862, 1
      %v10012 = vrot.slane %v6863, 1
      %v10013 = vrot.slane %v6864, 1
      %v10014 = vrot.slane %v6865, 1
      %v10015 = vrot.slane %v6866, 1
      %v10016 = vrot.slane %v6867, 1
      %v10017 = vrot.slane %v6868, 1
      %v10018 = vrot.slane %v6869, 1
      %v10019 = vrot.slane %v6870, 1
      %v10020 = vrot.slane %v6871, 1
      %v10021 = vrot.slane %v6872, 1
      %v10022 = vrot.slane %v6873, 1
      %v10023 = vrot.slane %v6874, 1
      %v10024 = vrot.slane %v6875, 1
      %v10025 = vrot.slane %v6876, 1
      %v10026 = vrot.slane %v6877, 1
      %v10027 = vrot.slane %v6878, 1
      %v10028 = vrot.slane %v6879, 1
      %v10029 = vrot.slane %v6880, 1
      %v10030 = vrot.slane %v6881, 1
      %v10031 = vrot.slane %v6882, 1
      %v10032 = vrot.slane %v6883, 1
      %v10033 = vrot.slane %v6884, 1
      %v10034 = vrot.slane %v6885, 1
      %v10035 = vrot.slane %v6886, 1
      %v10036 = vrot.slane %v6887, 1
      %v10037 = vrot.slane %v6888, 1
      %v10038 = vrot.slane %v6889, 1
      %v10039 = vrot.slane %v6890, 1
      %v10040 = vrot.slane %v6891, 1
      %v10041 = vrot.slane %v6892, 1
      %v10042 = vrot.slane %v6893, 1
      %v10043 = vrot.slane %v6894, 1
      %v10044 = vsel %vm1135, %v10042, %v10043
      %v10045 = vsel %vm1135, %v10041, %v10042
      %v10046 = vsel %vm1135, %v10040, %v10041
      %v10047 = vsel %vm1135, %v10039, %v10040
      %v10048 = vsel %vm1135, %v10038, %v10039
      %v10049 = vsel %vm1135, %v10037, %v10038
      %v10050 = vsel %vm1135, %v10036, %v10037
      %v10051 = vsel %vm1135, %v10035, %v10036
      %v10052 = vsel %vm1135, %v10034, %v10035
      %v10053 = vsel %vm1135, %v10033, %v10034
      %v10054 = vsel %vm1135, %v10032, %v10033
      %v10055 = vsel %vm1135, %v10031, %v10032
      %v10056 = vsel %vm1135, %v10030, %v10031
      %v10057 = vsel %vm1135, %v10029, %v10030
      %v10058 = vsel %vm1135, %v10028, %v10029
      %v10059 = vsel %vm1135, %v10027, %v10028
      %v10060 = vsel %vm1135, %v10026, %v10027
      %v10061 = vsel %vm1135, %v10025, %v10026
      %v10062 = vsel %vm1135, %v10024, %v10025
      %v10063 = vsel %vm1135, %v10023, %v10024
      %v10064 = vsel %vm1135, %v10022, %v10023
      %v10065 = vsel %vm1135, %v10021, %v10022
      %v10066 = vsel %vm1135, %v10020, %v10021
      %v10067 = vsel %vm1135, %v10019, %v10020
      %v10068 = vsel %vm1135, %v10018, %v10019
      %v10069 = vsel %vm1135, %v10017, %v10018
      %v10070 = vsel %vm1135, %v10016, %v10017
      %v10071 = vsel %vm1135, %v10015, %v10016
      %v10072 = vsel %vm1135, %v10014, %v10015
      %v10073 = vsel %vm1135, %v10013, %v10014
      %v10074 = vsel %vm1135, %v10012, %v10013
      %v10075 = vsel %vm1135, %v10011, %v10012
      %v10076 = vsel %vm1135, %v10010, %v10011
      %v10077 = vsel %vm1135, %v10009, %v10010
      %v10078 = vsel %vm1135, %v10008, %v10009
      %v10079 = vsel %vm1135, %v10007, %v10008
      %v10080 = vsel %vm1135, %v10006, %v10007
      %v10081 = vsel %vm1135, %v10005, %v10006
      %v10082 = vsel %vm1135, %v10004, %v10005
      %v10083 = vsel %vm1135, %v10003, %v10004
      %v10084 = vsel %vm1135, %v10002, %v10003
      %v10085 = vsel %vm1135, %v10001, %v10002
      %v10086 = vsel %vm1135, %v10000, %v10001
      %v10087 = vsel %vm1135, %v9999, %v10000
      %v10088 = vsel %vm1135, %v9998, %v9999
      %v10089 = vsel %vm1135, %v9997, %v9998
      %v10090 = vsel %vm1135, %v9996, %v9997
      %v10091 = vsel %vm1135, %v9995, %v9996
      %v10092 = vsel %vm1135, %v9994, %v9995
      %v10093 = vsel %vm1135, %v9993, %v9994
      %v10094 = vsel %vm1135, %v9992, %v9993
      %v10095 = vsel %vm1135, %v9991, %v9992
      %v10096 = vsel %vm1135, %v9990, %v9991
      %v10097 = vsel %vm1135, %v9989, %v9990
      %v10098 = vsel %vm1135, %v9988, %v9989
      %v10099 = vsel %vm1135, %v9987, %v9988
      %v10100 = vsel %vm1135, %v9986, %v9987
      %v10101 = vsel %vm1135, %v9985, %v9986
      %v10102 = vsel %vm1135, %v9984, %v9985
      %v10103 = vsel %vm1135, %v9983, %v9984
      %v10104 = vsel %vm1135, %v9982, %v9983
      %v10105 = vsel %vm1135, %v9981, %v9982
      %v10106 = vsel %vm1135, %v9980, %v9981
      %v10107 = vsel %vm1135, %v10043, %v9980
      %10172 = vrot.lane.b32.xlu0 %v6831, 4
      %v10173 = vpop.permute.xlu0 %10172
      %10174 = vrot.lane.b32.xlu0 %v6832, 4
      %v10175 = vpop.permute.xlu0 %10174
      %10176 = vrot.lane.b32.xlu0 %v6833, 4
      %v10177 = vpop.permute.xlu0 %10176
      %10178 = vrot.lane.b32.xlu0 %v6834, 4
      %v10179 = vpop.permute.xlu0 %10178
      %10180 = vrot.lane.b32.xlu0 %v6835, 4
      %v10181 = vpop.permute.xlu0 %10180
      %10182 = vrot.lane.b32.xlu0 %v6836, 4
      %v10183 = vpop.permute.xlu0 %10182
      %10184 = vrot.lane.b32.xlu0 %v6837, 4
      %v10185 = vpop.permute.xlu0 %10184
      %10186 = vrot.lane.b32.xlu0 %v6838, 4
      %v10187 = vpop.permute.xlu0 %10186
      %10188 = vrot.lane.b32.xlu0 %v6839, 4
      %v10189 = vpop.permute.xlu0 %10188
      %10190 = vrot.lane.b32.xlu0 %v6840, 4
      %v10191 = vpop.permute.xlu0 %10190
      %10192 = vrot.lane.b32.xlu0 %v6841, 4
      %v10193 = vpop.permute.xlu0 %10192
      %10194 = vrot.lane.b32.xlu0 %v6842, 4
      %v10195 = vpop.permute.xlu0 %10194
      %10196 = vrot.lane.b32.xlu0 %v6843, 4
      %v10197 = vpop.permute.xlu0 %10196
      %10198 = vrot.lane.b32.xlu0 %v6844, 4
      %v10199 = vpop.permute.xlu0 %10198
      %10200 = vrot.lane.b32.xlu0 %v6845, 4
      %v10201 = vpop.permute.xlu0 %10200
      %10202 = vrot.lane.b32.xlu0 %v6846, 4
      %v10203 = vpop.permute.xlu0 %10202
      %10204 = vrot.lane.b32.xlu0 %v6847, 4
      %v10205 = vpop.permute.xlu0 %10204
      %10206 = vrot.lane.b32.xlu0 %v6848, 4
      %v10207 = vpop.permute.xlu0 %10206
      %10208 = vrot.lane.b32.xlu0 %v6849, 4
      %v10209 = vpop.permute.xlu0 %10208
      %10210 = vrot.lane.b32.xlu0 %v6850, 4
      %v10211 = vpop.permute.xlu0 %10210
      %10212 = vrot.lane.b32.xlu0 %v6851, 4
      %v10213 = vpop.permute.xlu0 %10212
      %10214 = vrot.lane.b32.xlu0 %v6852, 4
      %v10215 = vpop.permute.xlu0 %10214
      %10216 = vrot.lane.b32.xlu0 %v6853, 4
      %v10217 = vpop.permute.xlu0 %10216
      %10218 = vrot.lane.b32.xlu0 %v6854, 4
      %v10219 = vpop.permute.xlu0 %10218
      %10220 = vrot.lane.b32.xlu0 %v6855, 4
      %v10221 = vpop.permute.xlu0 %10220
      %10222 = vrot.lane.b32.xlu0 %v6856, 4
      %v10223 = vpop.permute.xlu0 %10222
      %10224 = vrot.lane.b32.xlu0 %v6857, 4
      %v10225 = vpop.permute.xlu0 %10224
      %10226 = vrot.lane.b32.xlu0 %v6858, 4
      %v10227 = vpop.permute.xlu0 %10226
      %10228 = vrot.lane.b32.xlu0 %v6859, 4
      %v10229 = vpop.permute.xlu0 %10228
      %10230 = vrot.lane.b32.xlu0 %v6860, 4
      %v10231 = vpop.permute.xlu0 %10230
      %10232 = vrot.lane.b32.xlu0 %v6861, 4
      %v10233 = vpop.permute.xlu0 %10232
      %10234 = vrot.lane.b32.xlu0 %v6862, 4
      %v10235 = vpop.permute.xlu0 %10234
      %10236 = vrot.lane.b32.xlu0 %v6863, 4
      %v10237 = vpop.permute.xlu0 %10236
      %10238 = vrot.lane.b32.xlu0 %v6864, 4
      %v10239 = vpop.permute.xlu0 %10238
      %10240 = vrot.lane.b32.xlu0 %v6865, 4
      %v10241 = vpop.permute.xlu0 %10240
      %10242 = vrot.lane.b32.xlu0 %v6866, 4
      %v10243 = vpop.permute.xlu0 %10242
      %10244 = vrot.lane.b32.xlu0 %v6867, 4
      %v10245 = vpop.permute.xlu0 %10244
      %10246 = vrot.lane.b32.xlu0 %v6868, 4
      %v10247 = vpop.permute.xlu0 %10246
      %10248 = vrot.lane.b32.xlu0 %v6869, 4
      %v10249 = vpop.permute.xlu0 %10248
      %10250 = vrot.lane.b32.xlu0 %v6870, 4
      %v10251 = vpop.permute.xlu0 %10250
      %10252 = vrot.lane.b32.xlu0 %v6871, 4
      %v10253 = vpop.permute.xlu0 %10252
      %10254 = vrot.lane.b32.xlu0 %v6872, 4
      %v10255 = vpop.permute.xlu0 %10254
      %10256 = vrot.lane.b32.xlu0 %v6873, 4
      %v10257 = vpop.permute.xlu0 %10256
      %10258 = vrot.lane.b32.xlu0 %v6874, 4
      %v10259 = vpop.permute.xlu0 %10258
      %10260 = vrot.lane.b32.xlu0 %v6875, 4
      %v10261 = vpop.permute.xlu0 %10260
      %10262 = vrot.lane.b32.xlu0 %v6876, 4
      %v10263 = vpop.permute.xlu0 %10262
      %10264 = vrot.lane.b32.xlu0 %v6877, 4
      %v10265 = vpop.permute.xlu0 %10264
      %10266 = vrot.lane.b32.xlu0 %v6878, 4
      %v10267 = vpop.permute.xlu0 %10266
      %10268 = vrot.lane.b32.xlu0 %v6879, 4
      %v10269 = vpop.permute.xlu0 %10268
      %10270 = vrot.lane.b32.xlu0 %v6880, 4
      %v10271 = vpop.permute.xlu0 %10270
      %10272 = vrot.lane.b32.xlu0 %v6881, 4
      %v10273 = vpop.permute.xlu0 %10272
      %10274 = vrot.lane.b32.xlu0 %v6882, 4
      %v10275 = vpop.permute.xlu0 %10274
      %10276 = vrot.lane.b32.xlu0 %v6883, 4
      %v10277 = vpop.permute.xlu0 %10276
      %10278 = vrot.lane.b32.xlu0 %v6884, 4
      %v10279 = vpop.permute.xlu0 %10278
      %10280 = vrot.lane.b32.xlu0 %v6885, 4
      %v10281 = vpop.permute.xlu0 %10280
      %10282 = vrot.lane.b32.xlu0 %v6886, 4
      %v10283 = vpop.permute.xlu0 %10282
      %10284 = vrot.lane.b32.xlu0 %v6887, 4
      %v10285 = vpop.permute.xlu0 %10284
      %10286 = vrot.lane.b32.xlu0 %v6888, 4
      %v10287 = vpop.permute.xlu0 %10286
      %10288 = vrot.lane.b32.xlu0 %v6889, 4
      %v10289 = vpop.permute.xlu0 %10288
      %10290 = vrot.lane.b32.xlu0 %v6890, 4
      %v10291 = vpop.permute.xlu0 %10290
      %10292 = vrot.lane.b32.xlu0 %v6891, 4
      %v10293 = vpop.permute.xlu0 %10292
      %10294 = vrot.lane.b32.xlu0 %v6892, 4
      %v10295 = vpop.permute.xlu0 %10294
      %10296 = vrot.lane.b32.xlu0 %v6893, 4
      %v10297 = vpop.permute.xlu0 %10296
      %10298 = vrot.lane.b32.xlu0 %v6894, 4
      %v10299 = vpop.permute.xlu0 %10298
      %10428 = vrot.lane.b32.xlu0 %v10106, 8
      %v10429 = vpop.permute.xlu0 %10428
      %10430 = vrot.lane.b32.xlu0 %v10105, 8
      %v10431 = vpop.permute.xlu0 %10430
      %10432 = vrot.lane.b32.xlu0 %v10104, 8
      %v10433 = vpop.permute.xlu0 %10432
      %10434 = vrot.lane.b32.xlu0 %v10103, 8
      %v10435 = vpop.permute.xlu0 %10434
      %10436 = vrot.lane.b32.xlu0 %v10102, 8
      %v10437 = vpop.permute.xlu0 %10436
      %10438 = vrot.lane.b32.xlu0 %v10101, 8
      %v10439 = vpop.permute.xlu0 %10438
      %10440 = vrot.lane.b32.xlu0 %v10100, 8
      %v10441 = vpop.permute.xlu0 %10440
      %10442 = vrot.lane.b32.xlu0 %v10099, 8
      %v10443 = vpop.permute.xlu0 %10442
      %10444 = vrot.lane.b32.xlu0 %v10098, 8
      %v10445 = vpop.permute.xlu0 %10444
      %10446 = vrot.lane.b32.xlu0 %v10097, 8
      %v10447 = vpop.permute.xlu0 %10446
      %10448 = vrot.lane.b32.xlu0 %v10096, 8
      %v10449 = vpop.permute.xlu0 %10448
      %10450 = vrot.lane.b32.xlu0 %v10095, 8
      %v10451 = vpop.permute.xlu0 %10450
      %10452 = vrot.lane.b32.xlu0 %v10094, 8
      %v10453 = vpop.permute.xlu0 %10452
      %10454 = vrot.lane.b32.xlu0 %v10093, 8
      %v10455 = vpop.permute.xlu0 %10454
      %10456 = vrot.lane.b32.xlu0 %v10092, 8
      %v10457 = vpop.permute.xlu0 %10456
      %10458 = vrot.lane.b32.xlu0 %v10091, 8
      %v10459 = vpop.permute.xlu0 %10458
      %10460 = vrot.lane.b32.xlu0 %v10090, 8
      %v10461 = vpop.permute.xlu0 %10460
      %10462 = vrot.lane.b32.xlu0 %v10089, 8
      %v10463 = vpop.permute.xlu0 %10462
      %10464 = vrot.lane.b32.xlu0 %v10088, 8
      %v10465 = vpop.permute.xlu0 %10464
      %10466 = vrot.lane.b32.xlu0 %v10087, 8
      %v10467 = vpop.permute.xlu0 %10466
      %10468 = vrot.lane.b32.xlu0 %v10086, 8
      %v10469 = vpop.permute.xlu0 %10468
      %10470 = vrot.lane.b32.xlu0 %v10085, 8
      %v10471 = vpop.permute.xlu0 %10470
      %10472 = vrot.lane.b32.xlu0 %v10084, 8
      %v10473 = vpop.permute.xlu0 %10472
      %10474 = vrot.lane.b32.xlu0 %v10083, 8
      %v10475 = vpop.permute.xlu0 %10474
      %10476 = vrot.lane.b32.xlu0 %v10082, 8
      %v10477 = vpop.permute.xlu0 %10476
      %10478 = vrot.lane.b32.xlu0 %v10081, 8
      %v10479 = vpop.permute.xlu0 %10478
      %10480 = vrot.lane.b32.xlu0 %v10080, 8
      %v10481 = vpop.permute.xlu0 %10480
      %10482 = vrot.lane.b32.xlu0 %v10079, 8
      %v10483 = vpop.permute.xlu0 %10482
      %10484 = vrot.lane.b32.xlu0 %v10078, 8
      %v10485 = vpop.permute.xlu0 %10484
      %10486 = vrot.lane.b32.xlu0 %v10077, 8
      %v10487 = vpop.permute.xlu0 %10486
      %10488 = vrot.lane.b32.xlu0 %v10076, 8
      %v10489 = vpop.permute.xlu0 %10488
      %10490 = vrot.lane.b32.xlu0 %v10075, 8
      %v10491 = vpop.permute.xlu0 %10490
      %10492 = vrot.lane.b32.xlu0 %v10074, 8
      %v10493 = vpop.permute.xlu0 %10492
      %10494 = vrot.lane.b32.xlu0 %v10073, 8
      %v10495 = vpop.permute.xlu0 %10494
      %10496 = vrot.lane.b32.xlu0 %v10072, 8
      %v10497 = vpop.permute.xlu0 %10496
      %10498 = vrot.lane.b32.xlu0 %v10071, 8
      %v10499 = vpop.permute.xlu0 %10498
      %10500 = vrot.lane.b32.xlu0 %v10070, 8
      %v10501 = vpop.permute.xlu0 %10500
      %10502 = vrot.lane.b32.xlu0 %v10069, 8
      %v10503 = vpop.permute.xlu0 %10502
      %10504 = vrot.lane.b32.xlu0 %v10068, 8
      %v10505 = vpop.permute.xlu0 %10504
      %10506 = vrot.lane.b32.xlu0 %v10067, 8
      %v10507 = vpop.permute.xlu0 %10506
      %10508 = vrot.lane.b32.xlu0 %v10066, 8
      %v10509 = vpop.permute.xlu0 %10508
      %10510 = vrot.lane.b32.xlu0 %v10065, 8
      %v10511 = vpop.permute.xlu0 %10510
      %10512 = vrot.lane.b32.xlu0 %v10064, 8
      %v10513 = vpop.permute.xlu0 %10512
      %10514 = vrot.lane.b32.xlu0 %v10063, 8
      %v10515 = vpop.permute.xlu0 %10514
      %10516 = vrot.lane.b32.xlu0 %v10062, 8
      %v10517 = vpop.permute.xlu0 %10516
      %10518 = vrot.lane.b32.xlu0 %v10061, 8
      %v10519 = vpop.permute.xlu0 %10518
      %10520 = vrot.lane.b32.xlu0 %v10060, 8
      %v10521 = vpop.permute.xlu0 %10520
      %10522 = vrot.lane.b32.xlu0 %v10059, 8
      %v10523 = vpop.permute.xlu0 %10522
      %10524 = vrot.lane.b32.xlu0 %v10058, 8
      %v10525 = vpop.permute.xlu0 %10524
      %10526 = vrot.lane.b32.xlu0 %v10057, 8
      %v10527 = vpop.permute.xlu0 %10526
      %10528 = vrot.lane.b32.xlu0 %v10056, 8
      %v10529 = vpop.permute.xlu0 %10528
      %10530 = vrot.lane.b32.xlu0 %v10055, 8
      %v10531 = vpop.permute.xlu0 %10530
      %10532 = vrot.lane.b32.xlu0 %v10054, 8
      %v10533 = vpop.permute.xlu0 %10532
      %10534 = vrot.lane.b32.xlu0 %v10053, 8
      %v10535 = vpop.permute.xlu0 %10534
      %10536 = vrot.lane.b32.xlu0 %v10052, 8
      %v10537 = vpop.permute.xlu0 %10536
      %10538 = vrot.lane.b32.xlu0 %v10051, 8
      %v10539 = vpop.permute.xlu0 %10538
      %10540 = vrot.lane.b32.xlu0 %v10050, 8
      %v10541 = vpop.permute.xlu0 %10540
      %10542 = vrot.lane.b32.xlu0 %v10049, 8
      %v10543 = vpop.permute.xlu0 %10542
      %10544 = vrot.lane.b32.xlu0 %v10048, 8
      %v10545 = vpop.permute.xlu0 %10544
      %10546 = vrot.lane.b32.xlu0 %v10047, 8
      %v10547 = vpop.permute.xlu0 %10546
      %10548 = vrot.lane.b32.xlu0 %v10046, 8
      %v10549 = vpop.permute.xlu0 %10548
      %10550 = vrot.lane.b32.xlu0 %v10045, 8
      %v10551 = vpop.permute.xlu0 %10550
      %10552 = vrot.lane.b32.xlu0 %v10044, 8
      %v10553 = vpop.permute.xlu0 %10552
      %10554 = vrot.lane.b32.xlu0 %v10107, 8
      %v10555 = vpop.permute.xlu0 %10554
      %v10620 = vsel %vm1712, %v9979, %v10173
      %v10621 = vsel %vm1712, %v9978, %v10175
      %v10622 = vsel %vm1712, %v9977, %v10177
      %v10623 = vsel %vm1712, %v9976, %v10179
      %v10624 = vsel %vm1712, %v9975, %v10181
      %v10625 = vsel %vm1712, %v9974, %v10183
      %v10626 = vsel %vm1712, %v9973, %v10185
      %v10627 = vsel %vm1712, %v9972, %v10187
      %v10628 = vsel %vm1712, %v9971, %v10189
      %v10629 = vsel %vm1712, %v9970, %v10191
      %v10630 = vsel %vm1712, %v9969, %v10193
      %v10631 = vsel %vm1712, %v9968, %v10195
      %v10632 = vsel %vm1712, %v9967, %v10197
      %v10633 = vsel %vm1712, %v9966, %v10199
      %v10634 = vsel %vm1712, %v9965, %v10201
      %v10635 = vsel %vm1712, %v9964, %v10203
      %v10636 = vsel %vm1712, %v9963, %v10205
      %v10637 = vsel %vm1712, %v9962, %v10207
      %v10638 = vsel %vm1712, %v9961, %v10209
      %v10639 = vsel %vm1712, %v9960, %v10211
      %v10640 = vsel %vm1712, %v9959, %v10213
      %v10641 = vsel %vm1712, %v9958, %v10215
      %v10642 = vsel %vm1712, %v9957, %v10217
      %v10643 = vsel %vm1712, %v9956, %v10219
      %v10644 = vsel %vm1712, %v9955, %v10221
      %v10645 = vsel %vm1712, %v9954, %v10223
      %v10646 = vsel %vm1712, %v9953, %v10225
      %v10647 = vsel %vm1712, %v9952, %v10227
      %v10648 = vsel %vm1712, %v9951, %v10229
      %v10649 = vsel %vm1712, %v9950, %v10231
      %v10650 = vsel %vm1712, %v9949, %v10233
      %v10651 = vsel %vm1712, %v9948, %v10235
      %v10652 = vsel %vm1712, %v9947, %v10237
      %v10653 = vsel %vm1712, %v9946, %v10239
      %v10654 = vsel %vm1712, %v9945, %v10241
      %v10655 = vsel %vm1712, %v9944, %v10243
      %v10656 = vsel %vm1712, %v9943, %v10245
      %v10657 = vsel %vm1712, %v9942, %v10247
      %v10658 = vsel %vm1712, %v9941, %v10249
      %v10659 = vsel %vm1712, %v9940, %v10251
      %v10660 = vsel %vm1712, %v9939, %v10253
      %v10661 = vsel %vm1712, %v9938, %v10255
      %v10662 = vsel %vm1712, %v9937, %v10257
      %v10663 = vsel %vm1712, %v9936, %v10259
      %v10664 = vsel %vm1712, %v9935, %v10261
      %v10665 = vsel %vm1712, %v9934, %v10263
      %v10666 = vsel %vm1712, %v9933, %v10265
      %v10667 = vsel %vm1712, %v9932, %v10267
      %v10668 = vsel %vm1712, %v9931, %v10269
      %v10669 = vsel %vm1712, %v9930, %v10271
      %v10670 = vsel %vm1712, %v9929, %v10273
      %v10671 = vsel %vm1712, %v9928, %v10275
      %v10672 = vsel %vm1712, %v9927, %v10277
      %v10673 = vsel %vm1712, %v9926, %v10279
      %v10674 = vsel %vm1712, %v9925, %v10281
      %v10675 = vsel %vm1712, %v9924, %v10283
      %v10676 = vsel %vm1712, %v9923, %v10285
      %v10677 = vsel %vm1712, %v9922, %v10287
      %v10678 = vsel %vm1712, %v9921, %v10289
      %v10679 = vsel %vm1712, %v9920, %v10291
      %v10680 = vsel %vm1712, %v9919, %v10293
      %v10681 = vsel %vm1712, %v9918, %v10295
      %v10682 = vsel %vm1712, %v9917, %v10297
      %v10683 = vsel %vm1712, %v9916, %v10299
      %v10684 = vsel %vm1777, %v10620, %v10429
      %v10685 = vsel %vm1777, %v10621, %v10431
      %v10686 = vsel %vm1777, %v10622, %v10433
      %v10687 = vsel %vm1777, %v10623, %v10435
      %v10688 = vsel %vm1777, %v10624, %v10437
      %v10689 = vsel %vm1777, %v10625, %v10439
      %v10690 = vsel %vm1777, %v10626, %v10441
      %v10691 = vsel %vm1777, %v10627, %v10443
      %v10692 = vsel %vm1777, %v10628, %v10445
      %v10693 = vsel %vm1777, %v10629, %v10447
      %v10694 = vsel %vm1777, %v10630, %v10449
      %v10695 = vsel %vm1777, %v10631, %v10451
      %v10696 = vsel %vm1777, %v10632, %v10453
      %v10697 = vsel %vm1777, %v10633, %v10455
      %v10698 = vsel %vm1777, %v10634, %v10457
      %v10699 = vsel %vm1777, %v10635, %v10459
      %v10700 = vsel %vm1777, %v10636, %v10461
      %v10701 = vsel %vm1777, %v10637, %v10463
      %v10702 = vsel %vm1777, %v10638, %v10465
      %v10703 = vsel %vm1777, %v10639, %v10467
      %v10704 = vsel %vm1777, %v10640, %v10469
      %v10705 = vsel %vm1777, %v10641, %v10471
      %v10706 = vsel %vm1777, %v10642, %v10473
      %v10707 = vsel %vm1777, %v10643, %v10475
      %v10708 = vsel %vm1777, %v10644, %v10477
      %v10709 = vsel %vm1777, %v10645, %v10479
      %v10710 = vsel %vm1777, %v10646, %v10481
      %v10711 = vsel %vm1777, %v10647, %v10483
      %v10712 = vsel %vm1777, %v10648, %v10485
      %v10713 = vsel %vm1777, %v10649, %v10487
      %v10714 = vsel %vm1777, %v10650, %v10489
      %v10715 = vsel %vm1777, %v10651, %v10491
      %v10716 = vsel %vm1777, %v10652, %v10493
      %v10717 = vsel %vm1777, %v10653, %v10495
      %v10718 = vsel %vm1777, %v10654, %v10497
      %v10719 = vsel %vm1777, %v10655, %v10499
      %v10720 = vsel %vm1777, %v10656, %v10501
      %v10721 = vsel %vm1777, %v10657, %v10503
      %v10722 = vsel %vm1777, %v10658, %v10505
      %v10723 = vsel %vm1777, %v10659, %v10507
      %v10724 = vsel %vm1777, %v10660, %v10509
      %v10725 = vsel %vm1777, %v10661, %v10511
      %v10726 = vsel %vm1777, %v10662, %v10513
      %v10727 = vsel %vm1777, %v10663, %v10515
      %v10728 = vsel %vm1777, %v10664, %v10517
      %v10729 = vsel %vm1777, %v10665, %v10519
      %v10730 = vsel %vm1777, %v10666, %v10521
      %v10731 = vsel %vm1777, %v10667, %v10523
      %v10732 = vsel %vm1777, %v10668, %v10525
      %v10733 = vsel %vm1777, %v10669, %v10527
      %v10734 = vsel %vm1777, %v10670, %v10529
      %v10735 = vsel %vm1777, %v10671, %v10531
      %v10736 = vsel %vm1777, %v10672, %v10533
      %v10737 = vsel %vm1777, %v10673, %v10535
      %v10738 = vsel %vm1777, %v10674, %v10537
      %v10739 = vsel %vm1777, %v10675, %v10539
      %v10740 = vsel %vm1777, %v10676, %v10541
      %v10741 = vsel %vm1777, %v10677, %v10543
      %v10742 = vsel %vm1777, %v10678, %v10545
      %v10743 = vsel %vm1777, %v10679, %v10547
      %v10744 = vsel %vm1777, %v10680, %v10549
      %v10745 = vsel %vm1777, %v10681, %v10551
      %v10746 = vsel %vm1777, %v10682, %v10553
      %v10747 = vsel %vm1777, %v10683, %v10555
      %s10748 = scalar_lea.vmem %s2, 32
      %v10749 = vld [vmem:[%s10748] sm:$0xff]
      %v10750 = vld [vmem:[%s10748 + $0x8] sm:$0xf]
      %v10752 = vsel %vm2743, %v10684, 0
      %v10755 = vsel %vm2743, %v10685, 0
      %v10758 = vsel %vm2743, %v10686, 0
      %v10761 = vsel %vm2743, %v10687, 0
      %v10764 = vsel %vm2743, %v10688, 0
      %v10767 = vsel %vm2743, %v10689, 0
      %v10770 = vsel %vm2743, %v10690, 0
      %v10773 = vsel %vm2743, %v10691, 0
      %v10776 = vsel %vm2743, %v10692, 0
      %v10779 = vsel %vm2743, %v10693, 0
      %v10782 = vsel %vm2743, %v10694, 0
      %v10785 = vsel %vm2743, %v10695, 0
      %v10788 = vsel %vm2743, %v10696, 0
      %v10791 = vsel %vm2743, %v10697, 0
      %v10794 = vsel %vm2743, %v10698, 0
      %v10797 = vsel %vm2743, %v10699, 0
      %v10800 = vsel %vm2743, %v10700, 0
      %v10803 = vsel %vm2743, %v10701, 0
      %v10806 = vsel %vm2743, %v10702, 0
      %v10809 = vsel %vm2743, %v10703, 0
      %v10812 = vsel %vm2743, %v10704, 0
      %v10815 = vsel %vm2743, %v10705, 0
      %v10818 = vsel %vm2743, %v10706, 0
      %v10821 = vsel %vm2743, %v10707, 0
      %v10824 = vsel %vm2743, %v10708, 0
      %v10827 = vsel %vm2743, %v10709, 0
      %v10830 = vsel %vm2743, %v10710, 0
      %v10833 = vsel %vm2743, %v10711, 0
      %v10836 = vsel %vm2743, %v10712, 0
      %v10839 = vsel %vm2743, %v10713, 0
      %v10842 = vsel %vm2743, %v10714, 0
      %v10845 = vsel %vm2743, %v10715, 0
      %v10848 = vsel %vm2743, %v10716, 0
      %v10851 = vsel %vm2743, %v10717, 0
      %v10854 = vsel %vm2743, %v10718, 0
      %v10857 = vsel %vm2743, %v10719, 0
      %v10860 = vsel %vm2743, %v10720, 0
      %v10863 = vsel %vm2743, %v10721, 0
      %v10866 = vsel %vm2743, %v10722, 0
      %v10869 = vsel %vm2743, %v10723, 0
      %v10872 = vsel %vm2743, %v10724, 0
      %v10875 = vsel %vm2743, %v10725, 0
      %v10878 = vsel %vm2743, %v10726, 0
      %v10881 = vsel %vm2743, %v10727, 0
      %v10884 = vsel %vm2743, %v10728, 0
      %v10887 = vsel %vm2743, %v10729, 0
      %v10890 = vsel %vm2743, %v10730, 0
      %v10893 = vsel %vm2743, %v10731, 0
      %v10896 = vsel %vm2743, %v10732, 0
      %v10899 = vsel %vm2743, %v10733, 0
      %v10902 = vsel %vm2743, %v10734, 0
      %v10905 = vsel %vm2743, %v10735, 0
      %v10908 = vsel %vm2743, %v10736, 0
      %v10911 = vsel %vm2743, %v10737, 0
      %v10914 = vsel %vm2743, %v10738, 0
      %v10917 = vsel %vm2743, %v10739, 0
      %v10920 = vsel %vm2743, %v10740, 0
      %v10923 = vsel %vm2743, %v10741, 0
      %v10926 = vsel %vm2743, %v10742, 0
      %v10929 = vsel %vm2743, %v10743, 0
      %v10932 = vsel %vm2743, %v10744, 0
      %v10935 = vsel %vm2743, %v10745, 0
      %v10938 = vsel %vm2743, %v10746, 0
      %v10941 = vsel %vm2743, %v10747, 0
      %v10944 = vsel %vm2936, %v10750, 0
      %10946 = vmatprep.subr.mxu0 0.0
      %10947 = vmatpush1.msra.mxu0 %v10749
      %10948 = vmatprep.subr.mxu0 0.0
      %10949 = vmatpush1.msra.mxu0 %v10944
      %10950 = vmatprep.subr.mxu0 0.0
      %10951 = vmatpush1.msra.mxu0 0.0
      %10952 = vmatprep.subr.mxu0 0.0
      %10953 = vmatpush1.msra.mxu0 0.0
      %10954 = vmatprep.subr.mxu0 0.0
      %10955 = vmatpush1.msra.mxu0 0.0
      %10956 = vmatprep.subr.mxu0 0.0
      %10957 = vmatpush1.msra.mxu0 0.0
      %10958 = vmatprep.subr.mxu0 0.0
      %10959 = vmatpush1.msra.mxu0 0.0
      %10960 = vmatprep.subr.mxu0 0.0
      %10961 = vmatpush1.msra.mxu0 0.0
      %10962 = vmatprep.subr.mxu0 0.0
      %10963 = vmatpush1.msra.mxu0 0.0
      %10964 = vmatprep.subr.mxu0 0.0
      %10965 = vmatpush1.msra.mxu0 0.0
      %10966 = vmatprep.subr.mxu0 0.0
      %10967 = vmatpush1.msra.mxu0 0.0
      %10968 = vmatprep.subr.mxu0 0.0
      %10969 = vmatpush1.msra.mxu0 0.0
      %10970 = vmatprep.subr.mxu0 0.0
      %10971 = vmatpush1.msra.mxu0 0.0
      %10972 = vmatprep.subr.mxu0 0.0
      %10973 = vmatpush1.msra.mxu0 0.0
      %10974 = vmatprep.subr.mxu0 0.0
      %10975 = vmatpush1.msra.mxu0 0.0
      %10976 = vmatprep.subr.mxu0 0.0
      %10977 = vmatpush1.msra.mxu0 0.0
      %10978 = vmatprep.subr.mxu0 0.0
      %10979 = vmatpush1.msra.mxu0 0.0
      %10980 = vmatprep.subr.mxu0 0.0
      %10981 = vmatpush1.msra.mxu0 0.0
      %10982 = vmatprep.subr.mxu0 0.0
      %10983 = vmatpush1.msra.mxu0 0.0
      %10984 = vmatprep.subr.mxu0 0.0
      %10985 = vmatpush1.msra.mxu0 0.0
      %10986 = vmatprep.subr.mxu0 0.0
      %10987 = vmatpush1.msra.mxu0 0.0
      %10988 = vmatprep.subr.mxu0 0.0
      %10989 = vmatpush1.msra.mxu0 0.0
      %10990 = vmatprep.subr.mxu0 0.0
      %10991 = vmatpush1.msra.mxu0 0.0
      %10992 = vmatprep.subr.mxu0 0.0
      %10993 = vmatpush1.msra.mxu0 0.0
      %10994 = vmatprep.subr.mxu0 0.0
      %10995 = vmatpush1.msra.mxu0 0.0
      %10996 = vmatprep.subr.mxu0 0.0
      %10997 = vmatpush1.msra.mxu0 0.0
      %10998 = vmatprep.subr.mxu0 0.0
      %10999 = vmatpush1.msra.mxu0 0.0
      %11000 = vmatprep.subr.mxu0 0.0
      %11001 = vmatpush1.msra.mxu0 0.0
      %11002 = vmatprep.subr.mxu0 0.0
      %11003 = vmatpush1.msra.mxu0 0.0
      %11004 = vmatprep.subr.mxu0 0.0
      %11005 = vmatpush1.msra.mxu0 0.0
      %11006 = vmatprep.subr.mxu0 0.0
      %11007 = vmatpush1.msra.mxu0 0.0
      %11008 = vmatprep.subr.mxu0 0.0
      %11009 = vmatpush1.msra.mxu0 0.0
      %11010 = vmatprep.mubr.f32.mxu0 0.0
      %11011 = vmatmul.mubr.f32.gmra.mrb[0].mxu0 %v10752
      %v11012 = vpop.f32.mrb[0].mxu0
      %v11013 = vadd.f32 0.0, %v11012
      %v11014 = vpop.f32.mrb[0].mxu0
      %11015 = vmatprep.mubr.f32.mxu0 0.0
      %11016 = vmatmul.mubr.f32.gmra.mrb[0].mxu0 %v10755
      %v11017 = vpop.f32.mrb[0].mxu0
      %v11018 = vadd.f32 0.0, %v11017
      %v11019 = vpop.f32.mrb[0].mxu0
      %11020 = vmatprep.mubr.f32.mxu0 0.0
      %11021 = vmatmul.mubr.f32.gmra.mrb[0].mxu0 %v10758
      %v11022 = vpop.f32.mrb[0].mxu0
      %v11023 = vadd.f32 0.0, %v11022
      %v11024 = vpop.f32.mrb[0].mxu0
      %11025 = vmatprep.mubr.f32.mxu0 0.0
      %11026 = vmatmul.mubr.f32.gmra.mrb[0].mxu0 %v10761
      %v11027 = vpop.f32.mrb[0].mxu0
      %v11028 = vadd.f32 0.0, %v11027
      %v11029 = vpop.f32.mrb[0].mxu0
      %11030 = vmatprep.mubr.f32.mxu0 0.0
      %11031 = vmatmul.mubr.f32.gmra.mrb[0].mxu0 %v10764
      %v11032 = vpop.f32.mrb[0].mxu0
      %v11033 = vadd.f32 0.0, %v11032
      %v11034 = vpop.f32.mrb[0].mxu0
      %11035 = vmatprep.mubr.f32.mxu0 0.0
      %11036 = vmatmul.mubr.f32.gmra.mrb[0].mxu0 %v10767
      %v11037 = vpop.f32.mrb[0].mxu0
      %v11038 = vadd.f32 0.0, %v11037
      %v11039 = vpop.f32.mrb[0].mxu0
      %11040 = vmatprep.mubr.f32.mxu0 0.0
      %11041 = vmatmul.mubr.f32.gmra.mrb[0].mxu0 %v10770
      %v11042 = vpop.f32.mrb[0].mxu0
      %v11043 = vadd.f32 0.0, %v11042
      %v11044 = vpop.f32.mrb[0].mxu0
      %11045 = vmatprep.mubr.f32.mxu0 0.0
      %11046 = vmatmul.mubr.f32.gmra.mrb[0].mxu0 %v10773
      %v11047 = vpop.f32.mrb[0].mxu0
      %v11048 = vadd.f32 0.0, %v11047
      %v11049 = vpop.f32.mrb[0].mxu0
      %11050 = vmatprep.mubr.f32.mxu0 0.0
      %11051 = vmatmul.mubr.f32.gmra.mrb[0].mxu0 %v10776
      %v11052 = vpop.f32.mrb[0].mxu0
      %v11053 = vadd.f32 0.0, %v11052
      %v11054 = vpop.f32.mrb[0].mxu0
      %11055 = vmatprep.mubr.f32.mxu0 0.0
      %11056 = vmatmul.mubr.f32.gmra.mrb[0].mxu0 %v10779
      %v11057 = vpop.f32.mrb[0].mxu0
      %v11058 = vadd.f32 0.0, %v11057
      %v11059 = vpop.f32.mrb[0].mxu0
      %11060 = vmatprep.mubr.f32.mxu0 0.0
      %11061 = vmatmul.mubr.f32.gmra.mrb[0].mxu0 %v10782
      %v11062 = vpop.f32.mrb[0].mxu0
      %v11063 = vadd.f32 0.0, %v11062
      %v11064 = vpop.f32.mrb[0].mxu0
      %11065 = vmatprep.mubr.f32.mxu0 0.0
      %11066 = vmatmul.mubr.f32.gmra.mrb[0].mxu0 %v10785
      %v11067 = vpop.f32.mrb[0].mxu0
      %v11068 = vadd.f32 0.0, %v11067
      %v11069 = vpop.f32.mrb[0].mxu0
      %11070 = vmatprep.mubr.f32.mxu0 0.0
      %11071 = vmatmul.mubr.f32.gmra.mrb[0].mxu0 %v10788
      %v11072 = vpop.f32.mrb[0].mxu0
      %v11073 = vadd.f32 0.0, %v11072
      %v11074 = vpop.f32.mrb[0].mxu0
      %11075 = vmatprep.mubr.f32.mxu0 0.0
      %11076 = vmatmul.mubr.f32.gmra.mrb[0].mxu0 %v10791
      %v11077 = vpop.f32.mrb[0].mxu0
      %v11078 = vadd.f32 0.0, %v11077
      %v11079 = vpop.f32.mrb[0].mxu0
      %11080 = vmatprep.mubr.f32.mxu0 0.0
      %11081 = vmatmul.mubr.f32.gmra.mrb[0].mxu0 %v10794
      %v11082 = vpop.f32.mrb[0].mxu0
      %v11083 = vadd.f32 0.0, %v11082
      %v11084 = vpop.f32.mrb[0].mxu0
      %11085 = vmatprep.mubr.f32.mxu0 0.0
      %11086 = vmatmul.mubr.f32.gmra.mrb[0].mxu0 %v10797
      %v11087 = vpop.f32.mrb[0].mxu0
      %v11088 = vadd.f32 0.0, %v11087
      %v11089 = vpop.f32.mrb[0].mxu0
      %11090 = vmatprep.mubr.f32.mxu0 0.0
      %11091 = vmatmul.mubr.f32.gmra.mrb[0].mxu0 %v10800
      %v11092 = vpop.f32.mrb[0].mxu0
      %v11093 = vadd.f32 0.0, %v11092
      %v11094 = vpop.f32.mrb[0].mxu0
      %11095 = vmatprep.mubr.f32.mxu0 0.0
      %11096 = vmatmul.mubr.f32.gmra.mrb[0].mxu0 %v10803
      %v11097 = vpop.f32.mrb[0].mxu0
      %v11098 = vadd.f32 0.0, %v11097
      %v11099 = vpop.f32.mrb[0].mxu0
      %11100 = vmatprep.mubr.f32.mxu0 0.0
      %11101 = vmatmul.mubr.f32.gmra.mrb[0].mxu0 %v10806
      %v11102 = vpop.f32.mrb[0].mxu0
      %v11103 = vadd.f32 0.0, %v11102
      %v11104 = vpop.f32.mrb[0].mxu0
      %11105 = vmatprep.mubr.f32.mxu0 0.0
      %11106 = vmatmul.mubr.f32.gmra.mrb[0].mxu0 %v10809
      %v11107 = vpop.f32.mrb[0].mxu0
      %v11108 = vadd.f32 0.0, %v11107
      %v11109 = vpop.f32.mrb[0].mxu0
      %11110 = vmatprep.mubr.f32.mxu0 0.0
      %11111 = vmatmul.mubr.f32.gmra.mrb[0].mxu0 %v10812
      %v11112 = vpop.f32.mrb[0].mxu0
      %v11113 = vadd.f32 0.0, %v11112
      %v11114 = vpop.f32.mrb[0].mxu0
      %11115 = vmatprep.mubr.f32.mxu0 0.0
      %11116 = vmatmul.mubr.f32.gmra.mrb[0].mxu0 %v10815
      %v11117 = vpop.f32.mrb[0].mxu0
      %v11118 = vadd.f32 0.0, %v11117
      %v11119 = vpop.f32.mrb[0].mxu0
      %11120 = vmatprep.mubr.f32.mxu0 0.0
      %11121 = vmatmul.mubr.f32.gmra.mrb[0].mxu0 %v10818
      %v11122 = vpop.f32.mrb[0].mxu0
      %v11123 = vadd.f32 0.0, %v11122
      %v11124 = vpop.f32.mrb[0].mxu0
      %11125 = vmatprep.mubr.f32.mxu0 0.0
      %11126 = vmatmul.mubr.f32.gmra.mrb[0].mxu0 %v10821
      %v11127 = vpop.f32.mrb[0].mxu0
      %v11128 = vadd.f32 0.0, %v11127
      %v11129 = vpop.f32.mrb[0].mxu0
      %11130 = vmatprep.mubr.f32.mxu0 0.0
      %11131 = vmatmul.mubr.f32.gmra.mrb[0].mxu0 %v10824
      %v11132 = vpop.f32.mrb[0].mxu0
      %v11133 = vadd.f32 0.0, %v11132
      %v11134 = vpop.f32.mrb[0].mxu0
      %11135 = vmatprep.mubr.f32.mxu0 0.0
      %11136 = vmatmul.mubr.f32.gmra.mrb[0].mxu0 %v10827
      %v11137 = vpop.f32.mrb[0].mxu0
      %v11138 = vadd.f32 0.0, %v11137
      %v11139 = vpop.f32.mrb[0].mxu0
      %11140 = vmatprep.mubr.f32.mxu0 0.0
      %11141 = vmatmul.mubr.f32.gmra.mrb[0].mxu0 %v10830
      %v11142 = vpop.f32.mrb[0].mxu0
      %v11143 = vadd.f32 0.0, %v11142
      %v11144 = vpop.f32.mrb[0].mxu0
      %11145 = vmatprep.mubr.f32.mxu0 0.0
      %11146 = vmatmul.mubr.f32.gmra.mrb[0].mxu0 %v10833
      %v11147 = vpop.f32.mrb[0].mxu0
      %v11148 = vadd.f32 0.0, %v11147
      %v11149 = vpop.f32.mrb[0].mxu0
      %11150 = vmatprep.mubr.f32.mxu0 0.0
      %11151 = vmatmul.mubr.f32.gmra.mrb[0].mxu0 %v10836
      %v11152 = vpop.f32.mrb[0].mxu0
      %v11153 = vadd.f32 0.0, %v11152
      %v11154 = vpop.f32.mrb[0].mxu0
      %11155 = vmatprep.mubr.f32.mxu0 0.0
      %11156 = vmatmul.mubr.f32.gmra.mrb[0].mxu0 %v10839
      %v11157 = vpop.f32.mrb[0].mxu0
      %v11158 = vadd.f32 0.0, %v11157
      %v11159 = vpop.f32.mrb[0].mxu0
      %11160 = vmatprep.mubr.f32.mxu0 0.0
      %11161 = vmatmul.mubr.f32.gmra.mrb[0].mxu0 %v10842
      %v11162 = vpop.f32.mrb[0].mxu0
      %v11163 = vadd.f32 0.0, %v11162
      %v11164 = vpop.f32.mrb[0].mxu0
      %11165 = vmatprep.mubr.f32.mxu0 0.0
      %11166 = vmatmul.mubr.f32.gmra.mrb[0].mxu0 %v10845
      %v11167 = vpop.f32.mrb[0].mxu0
      %v11168 = vadd.f32 0.0, %v11167
      %v11169 = vpop.f32.mrb[0].mxu0
      %11170 = vmatprep.mubr.f32.mxu0 0.0
      %11171 = vmatmul.mubr.f32.gmra.mrb[0].mxu0 %v10848
      %v11172 = vpop.f32.mrb[0].mxu0
      %v11173 = vadd.f32 0.0, %v11172
      %v11174 = vpop.f32.mrb[0].mxu0
      %11175 = vmatprep.mubr.f32.mxu0 0.0
      %11176 = vmatmul.mubr.f32.gmra.mrb[0].mxu0 %v10851
      %v11177 = vpop.f32.mrb[0].mxu0
      %v11178 = vadd.f32 0.0, %v11177
      %v11179 = vpop.f32.mrb[0].mxu0
      %11180 = vmatprep.mubr.f32.mxu0 0.0
      %11181 = vmatmul.mubr.f32.gmra.mrb[0].mxu0 %v10854
      %v11182 = vpop.f32.mrb[0].mxu0
      %v11183 = vadd.f32 0.0, %v11182
      %v11184 = vpop.f32.mrb[0].mxu0
      %11185 = vmatprep.mubr.f32.mxu0 0.0
      %11186 = vmatmul.mubr.f32.gmra.mrb[0].mxu0 %v10857
      %v11187 = vpop.f32.mrb[0].mxu0
      %v11188 = vadd.f32 0.0, %v11187
      %v11189 = vpop.f32.mrb[0].mxu0
      %11190 = vmatprep.mubr.f32.mxu0 0.0
      %11191 = vmatmul.mubr.f32.gmra.mrb[0].mxu0 %v10860
      %v11192 = vpop.f32.mrb[0].mxu0
      %v11193 = vadd.f32 0.0, %v11192
      %v11194 = vpop.f32.mrb[0].mxu0
      %11195 = vmatprep.mubr.f32.mxu0 0.0
      %11196 = vmatmul.mubr.f32.gmra.mrb[0].mxu0 %v10863
      %v11197 = vpop.f32.mrb[0].mxu0
      %v11198 = vadd.f32 0.0, %v11197
      %v11199 = vpop.f32.mrb[0].mxu0
      %11200 = vmatprep.mubr.f32.mxu0 0.0
      %11201 = vmatmul.mubr.f32.gmra.mrb[0].mxu0 %v10866
      %v11202 = vpop.f32.mrb[0].mxu0
      %v11203 = vadd.f32 0.0, %v11202
      %v11204 = vpop.f32.mrb[0].mxu0
      %11205 = vmatprep.mubr.f32.mxu0 0.0
      %11206 = vmatmul.mubr.f32.gmra.mrb[0].mxu0 %v10869
      %v11207 = vpop.f32.mrb[0].mxu0
      %v11208 = vadd.f32 0.0, %v11207
      %v11209 = vpop.f32.mrb[0].mxu0
      %11210 = vmatprep.mubr.f32.mxu0 0.0
      %11211 = vmatmul.mubr.f32.gmra.mrb[0].mxu0 %v10872
      %v11212 = vpop.f32.mrb[0].mxu0
      %v11213 = vadd.f32 0.0, %v11212
      %v11214 = vpop.f32.mrb[0].mxu0
      %11215 = vmatprep.mubr.f32.mxu0 0.0
      %11216 = vmatmul.mubr.f32.gmra.mrb[0].mxu0 %v10875
      %v11217 = vpop.f32.mrb[0].mxu0
      %v11218 = vadd.f32 0.0, %v11217
      %v11219 = vpop.f32.mrb[0].mxu0
      %11220 = vmatprep.mubr.f32.mxu0 0.0
      %11221 = vmatmul.mubr.f32.gmra.mrb[0].mxu0 %v10878
      %v11222 = vpop.f32.mrb[0].mxu0
      %v11223 = vadd.f32 0.0, %v11222
      %v11224 = vpop.f32.mrb[0].mxu0
      %11225 = vmatprep.mubr.f32.mxu0 0.0
      %11226 = vmatmul.mubr.f32.gmra.mrb[0].mxu0 %v10881
      %v11227 = vpop.f32.mrb[0].mxu0
      %v11228 = vadd.f32 0.0, %v11227
      %v11229 = vpop.f32.mrb[0].mxu0
      %11230 = vmatprep.mubr.f32.mxu0 0.0
      %11231 = vmatmul.mubr.f32.gmra.mrb[0].mxu0 %v10884
      %v11232 = vpop.f32.mrb[0].mxu0
      %v11233 = vadd.f32 0.0, %v11232
      %v11234 = vpop.f32.mrb[0].mxu0
      %11235 = vmatprep.mubr.f32.mxu0 0.0
      %11236 = vmatmul.mubr.f32.gmra.mrb[0].mxu0 %v10887
      %v11237 = vpop.f32.mrb[0].mxu0
      %v11238 = vadd.f32 0.0, %v11237
      %v11239 = vpop.f32.mrb[0].mxu0
      %11240 = vmatprep.mubr.f32.mxu0 0.0
      %11241 = vmatmul.mubr.f32.gmra.mrb[0].mxu0 %v10890
      %v11242 = vpop.f32.mrb[0].mxu0
      %v11243 = vadd.f32 0.0, %v11242
      %v11244 = vpop.f32.mrb[0].mxu0
      %11245 = vmatprep.mubr.f32.mxu0 0.0
      %11246 = vmatmul.mubr.f32.gmra.mrb[0].mxu0 %v10893
      %v11247 = vpop.f32.mrb[0].mxu0
      %v11248 = vadd.f32 0.0, %v11247
      %v11249 = vpop.f32.mrb[0].mxu0
      %11250 = vmatprep.mubr.f32.mxu0 0.0
      %11251 = vmatmul.mubr.f32.gmra.mrb[0].mxu0 %v10896
      %v11252 = vpop.f32.mrb[0].mxu0
      %v11253 = vadd.f32 0.0, %v11252
      %v11254 = vpop.f32.mrb[0].mxu0
      %11255 = vmatprep.mubr.f32.mxu0 0.0
      %11256 = vmatmul.mubr.f32.gmra.mrb[0].mxu0 %v10899
      %v11257 = vpop.f32.mrb[0].mxu0
      %v11258 = vadd.f32 0.0, %v11257
      %v11259 = vpop.f32.mrb[0].mxu0
      %11260 = vmatprep.mubr.f32.mxu0 0.0
      %11261 = vmatmul.mubr.f32.gmra.mrb[0].mxu0 %v10902
      %v11262 = vpop.f32.mrb[0].mxu0
      %v11263 = vadd.f32 0.0, %v11262
      %v11264 = vpop.f32.mrb[0].mxu0
      %11265 = vmatprep.mubr.f32.mxu0 0.0
      %11266 = vmatmul.mubr.f32.gmra.mrb[0].mxu0 %v10905
      %v11267 = vpop.f32.mrb[0].mxu0
      %v11268 = vadd.f32 0.0, %v11267
      %v11269 = vpop.f32.mrb[0].mxu0
      %11270 = vmatprep.mubr.f32.mxu0 0.0
      %11271 = vmatmul.mubr.f32.gmra.mrb[0].mxu0 %v10908
      %v11272 = vpop.f32.mrb[0].mxu0
      %v11273 = vadd.f32 0.0, %v11272
      %v11274 = vpop.f32.mrb[0].mxu0
      %11275 = vmatprep.mubr.f32.mxu0 0.0
      %11276 = vmatmul.mubr.f32.gmra.mrb[0].mxu0 %v10911
      %v11277 = vpop.f32.mrb[0].mxu0
      %v11278 = vadd.f32 0.0, %v11277
      %v11279 = vpop.f32.mrb[0].mxu0
      %11280 = vmatprep.mubr.f32.mxu0 0.0
      %11281 = vmatmul.mubr.f32.gmra.mrb[0].mxu0 %v10914
      %v11282 = vpop.f32.mrb[0].mxu0
      %v11283 = vadd.f32 0.0, %v11282
      %v11284 = vpop.f32.mrb[0].mxu0
      %11285 = vmatprep.mubr.f32.mxu0 0.0
      %11286 = vmatmul.mubr.f32.gmra.mrb[0].mxu0 %v10917
      %v11287 = vpop.f32.mrb[0].mxu0
      %v11288 = vadd.f32 0.0, %v11287
      %v11289 = vpop.f32.mrb[0].mxu0
      %11290 = vmatprep.mubr.f32.mxu0 0.0
      %11291 = vmatmul.mubr.f32.gmra.mrb[0].mxu0 %v10920
      %v11292 = vpop.f32.mrb[0].mxu0
      %v11293 = vadd.f32 0.0, %v11292
      %v11294 = vpop.f32.mrb[0].mxu0
      %11295 = vmatprep.mubr.f32.mxu0 0.0
      %11296 = vmatmul.mubr.f32.gmra.mrb[0].mxu0 %v10923
      %v11297 = vpop.f32.mrb[0].mxu0
      %v11298 = vadd.f32 0.0, %v11297
      %v11299 = vpop.f32.mrb[0].mxu0
      %11300 = vmatprep.mubr.f32.mxu0 0.0
      %11301 = vmatmul.mubr.f32.gmra.mrb[0].mxu0 %v10926
      %v11302 = vpop.f32.mrb[0].mxu0
      %v11303 = vadd.f32 0.0, %v11302
      %v11304 = vpop.f32.mrb[0].mxu0
      %11305 = vmatprep.mubr.f32.mxu0 0.0
      %11306 = vmatmul.mubr.f32.gmra.mrb[0].mxu0 %v10929
      %v11307 = vpop.f32.mrb[0].mxu0
      %v11308 = vadd.f32 0.0, %v11307
      %v11309 = vpop.f32.mrb[0].mxu0
      %11310 = vmatprep.mubr.f32.mxu0 0.0
      %11311 = vmatmul.mubr.f32.gmra.mrb[0].mxu0 %v10932
      %v11312 = vpop.f32.mrb[0].mxu0
      %v11313 = vadd.f32 0.0, %v11312
      %v11314 = vpop.f32.mrb[0].mxu0
      %11315 = vmatprep.mubr.f32.mxu0 0.0
      %11316 = vmatmul.mubr.f32.gmra.mrb[0].mxu0 %v10935
      %v11317 = vpop.f32.mrb[0].mxu0
      %v11318 = vadd.f32 0.0, %v11317
      %v11319 = vpop.f32.mrb[0].mxu0
      %11320 = vmatprep.mubr.f32.mxu0 0.0
      %11321 = vmatmul.mubr.f32.gmra.mrb[0].mxu0 %v10938
      %v11322 = vpop.f32.mrb[0].mxu0
      %v11323 = vadd.f32 0.0, %v11322
      %v11324 = vpop.f32.mrb[0].mxu0
      %11325 = vmatprep.mubr.f32.mxu0 0.0
      %11326 = vmatmul.mubr.f32.gmra.mrb[0].mxu0 %v10941
      %v11327 = vpop.f32.mrb[0].mxu0
      %v11328 = vadd.f32 0.0, %v11327
      %v11329 = vpop.f32.mrb[0].mxu0
      %11330 = vdwg.mxu0
      %v11331 = vadd.f32 %v9534, %v11013
      %v11332 = vadd.f32 %v9539, %v11018
      %v11333 = vadd.f32 %v9544, %v11023
      %v11334 = vadd.f32 %v9549, %v11028
      %v11335 = vadd.f32 %v9554, %v11033
      %v11336 = vadd.f32 %v9559, %v11038
      %v11337 = vadd.f32 %v9564, %v11043
      %v11338 = vadd.f32 %v9569, %v11048
      %v11339 = vadd.f32 %v9574, %v11053
      %v11340 = vadd.f32 %v9579, %v11058
      %v11341 = vadd.f32 %v9584, %v11063
      %v11342 = vadd.f32 %v9589, %v11068
      %v11343 = vadd.f32 %v9594, %v11073
      %v11344 = vadd.f32 %v9599, %v11078
      %v11345 = vadd.f32 %v9604, %v11083
      %v11346 = vadd.f32 %v9609, %v11088
      %v11347 = vadd.f32 %v9614, %v11093
      %v11348 = vadd.f32 %v9619, %v11098
      %v11349 = vadd.f32 %v9624, %v11103
      %v11350 = vadd.f32 %v9629, %v11108
      %v11351 = vadd.f32 %v9634, %v11113
      %v11352 = vadd.f32 %v9639, %v11118
      %v11353 = vadd.f32 %v9644, %v11123
      %v11354 = vadd.f32 %v9649, %v11128
      %v11355 = vadd.f32 %v9654, %v11133
      %v11356 = vadd.f32 %v9659, %v11138
      %v11357 = vadd.f32 %v9664, %v11143
      %v11358 = vadd.f32 %v9669, %v11148
      %v11359 = vadd.f32 %v9674, %v11153
      %v11360 = vadd.f32 %v9679, %v11158
      %v11361 = vadd.f32 %v9684, %v11163
      %v11362 = vadd.f32 %v9689, %v11168
      %v11363 = vadd.f32 %v9694, %v11173
      %v11364 = vadd.f32 %v9699, %v11178
      %v11365 = vadd.f32 %v9704, %v11183
      %v11366 = vadd.f32 %v9709, %v11188
      %v11367 = vadd.f32 %v9714, %v11193
      %v11368 = vadd.f32 %v9719, %v11198
      %v11369 = vadd.f32 %v9724, %v11203
      %v11370 = vadd.f32 %v9729, %v11208
      %v11371 = vadd.f32 %v9734, %v11213
      %v11372 = vadd.f32 %v9739, %v11218
      %v11373 = vadd.f32 %v9744, %v11223
      %v11374 = vadd.f32 %v9749, %v11228
      %v11375 = vadd.f32 %v9754, %v11233
      %v11376 = vadd.f32 %v9759, %v11238
      %v11377 = vadd.f32 %v9764, %v11243
      %v11378 = vadd.f32 %v9769, %v11248
      %v11379 = vadd.f32 %v9774, %v11253
      %v11380 = vadd.f32 %v9779, %v11258
      %v11381 = vadd.f32 %v9784, %v11263
      %v11382 = vadd.f32 %v9789, %v11268
      %v11383 = vadd.f32 %v9794, %v11273
      %v11384 = vadd.f32 %v9799, %v11278
      %v11385 = vadd.f32 %v9804, %v11283
      %v11386 = vadd.f32 %v9809, %v11288
      %v11387 = vadd.f32 %v9814, %v11293
      %v11388 = vadd.f32 %v9819, %v11298
      %v11389 = vadd.f32 %v9824, %v11303
      %v11390 = vadd.f32 %v9829, %v11308
      %v11391 = vadd.f32 %v9834, %v11313
      %v11392 = vadd.f32 %v9839, %v11318
      %v11393 = vadd.f32 %v9844, %v11323
      %v11394 = vadd.f32 %v9849, %v11328
      %v11395 = vmul.f32 %v11331, %v556
      %v11396 = vmul.f32 %v11332, %v557
      %v11397 = vmul.f32 %v11333, %v558
      %v11398 = vmul.f32 %v11334, %v559
      %v11399 = vmul.f32 %v11335, %v560
      %v11400 = vmul.f32 %v11336, %v561
      %v11401 = vmul.f32 %v11337, %v562
      %v11402 = vmul.f32 %v11338, %v563
      %v11403 = vmul.f32 %v11339, %v564
      %v11404 = vmul.f32 %v11340, %v565
      %v11405 = vmul.f32 %v11341, %v566
      %v11406 = vmul.f32 %v11342, %v567
      %v11407 = vmul.f32 %v11343, %v568
      %v11408 = vmul.f32 %v11344, %v569
      %v11409 = vmul.f32 %v11345, %v570
      %v11410 = vmul.f32 %v11346, %v571
      %v11411 = vmul.f32 %v11347, %v572
      %v11412 = vmul.f32 %v11348, %v573
      %v11413 = vmul.f32 %v11349, %v574
      %v11414 = vmul.f32 %v11350, %v575
      %v11415 = vmul.f32 %v11351, %v576
      %v11416 = vmul.f32 %v11352, %v577
      %v11417 = vmul.f32 %v11353, %v578
      %v11418 = vmul.f32 %v11354, %v579
      %v11419 = vmul.f32 %v11355, %v580
      %v11420 = vmul.f32 %v11356, %v581
      %v11421 = vmul.f32 %v11357, %v582
      %v11422 = vmul.f32 %v11358, %v583
      %v11423 = vmul.f32 %v11359, %v584
      %v11424 = vmul.f32 %v11360, %v585
      %v11425 = vmul.f32 %v11361, %v586
      %v11426 = vmul.f32 %v11362, %v587
      %v11427 = vmul.f32 %v11363, %v588
      %v11428 = vmul.f32 %v11364, %v589
      %v11429 = vmul.f32 %v11365, %v590
      %v11430 = vmul.f32 %v11366, %v591
      %v11431 = vmul.f32 %v11367, %v592
      %v11432 = vmul.f32 %v11368, %v593
      %v11433 = vmul.f32 %v11369, %v594
      %v11434 = vmul.f32 %v11370, %v595
      %v11435 = vmul.f32 %v11371, %v596
      %v11436 = vmul.f32 %v11372, %v597
      %v11437 = vmul.f32 %v11373, %v598
      %v11438 = vmul.f32 %v11374, %v599
      %v11439 = vmul.f32 %v11375, %v600
      %v11440 = vmul.f32 %v11376, %v601
      %v11441 = vmul.f32 %v11377, %v602
      %v11442 = vmul.f32 %v11378, %v603
      %v11443 = vmul.f32 %v11379, %v604
      %v11444 = vmul.f32 %v11380, %v605
      %v11445 = vmul.f32 %v11381, %v606
      %v11446 = vmul.f32 %v11382, %v607
      %v11447 = vmul.f32 %v11383, %v608
      %v11448 = vmul.f32 %v11384, %v609
      %v11449 = vmul.f32 %v11385, %v610
      %v11450 = vmul.f32 %v11386, %v611
      %v11451 = vmul.f32 %v11387, %v612
      %v11452 = vmul.f32 %v11388, %v613
      %v11453 = vmul.f32 %v11389, %v614
      %v11454 = vmul.f32 %v11390, %v615
      %v11455 = vmul.f32 %v11391, %v616
      %v11456 = vmul.f32 %v11392, %v617
      %v11457 = vmul.f32 %v11393, %v618
      %v11458 = vmul.f32 %v11394, %v619
      %v11459 = vsel %vm1712, %v11395, 0.0
      %v11460 = vsel %vm1712, %v11396, 0.0
      %v11461 = vadd.f32 %v11459, %v11460
      %v11462 = vsel %vm1712, %v11397, 0.0
      %v11463 = vadd.f32 %v11461, %v11462
      %v11464 = vsel %vm1712, %v11398, 0.0
      %v11465 = vadd.f32 %v11463, %v11464
      %v11466 = vsel %vm1712, %v11399, 0.0
      %v11467 = vadd.f32 %v11465, %v11466
      %v11468 = vsel %vm1712, %v11400, 0.0
      %v11469 = vadd.f32 %v11467, %v11468
      %v11470 = vsel %vm1712, %v11401, 0.0
      %v11471 = vadd.f32 %v11469, %v11470
      %v11472 = vsel %vm1712, %v11402, 0.0
      %v11473 = vadd.f32 %v11471, %v11472
      %v11474 = vsel %vm1712, %v11403, 0.0
      %v11475 = vadd.f32 %v11473, %v11474
      %v11476 = vsel %vm1712, %v11404, 0.0
      %v11477 = vadd.f32 %v11475, %v11476
      %v11478 = vsel %vm1712, %v11405, 0.0
      %v11479 = vadd.f32 %v11477, %v11478
      %v11480 = vsel %vm1712, %v11406, 0.0
      %v11481 = vadd.f32 %v11479, %v11480
      %v11482 = vsel %vm1712, %v11407, 0.0
      %v11483 = vadd.f32 %v11481, %v11482
      %v11484 = vsel %vm1712, %v11408, 0.0
      %v11485 = vadd.f32 %v11483, %v11484
      %v11486 = vsel %vm1712, %v11409, 0.0
      %v11487 = vadd.f32 %v11485, %v11486
      %v11488 = vsel %vm1712, %v11410, 0.0
      %v11489 = vadd.f32 %v11487, %v11488
      %v11490 = vsel %vm1712, %v11411, 0.0
      %v11491 = vadd.f32 %v11489, %v11490
      %v11492 = vsel %vm1712, %v11412, 0.0
      %v11493 = vadd.f32 %v11491, %v11492
      %v11494 = vsel %vm1712, %v11413, 0.0
      %v11495 = vadd.f32 %v11493, %v11494
      %v11496 = vsel %vm1712, %v11414, 0.0
      %v11497 = vadd.f32 %v11495, %v11496
      %v11498 = vsel %vm1712, %v11415, 0.0
      %v11499 = vadd.f32 %v11497, %v11498
      %v11500 = vsel %vm1712, %v11416, 0.0
      %v11501 = vadd.f32 %v11499, %v11500
      %v11502 = vsel %vm1712, %v11417, 0.0
      %v11503 = vadd.f32 %v11501, %v11502
      %v11504 = vsel %vm1712, %v11418, 0.0
      %v11505 = vadd.f32 %v11503, %v11504
      %v11506 = vsel %vm1712, %v11419, 0.0
      %v11507 = vadd.f32 %v11505, %v11506
      %v11508 = vsel %vm1712, %v11420, 0.0
      %v11509 = vadd.f32 %v11507, %v11508
      %v11510 = vsel %vm1712, %v11421, 0.0
      %v11511 = vadd.f32 %v11509, %v11510
      %v11512 = vsel %vm1712, %v11422, 0.0
      %v11513 = vadd.f32 %v11511, %v11512
      %v11514 = vsel %vm1712, %v11423, 0.0
      %v11515 = vadd.f32 %v11513, %v11514
      %v11516 = vsel %vm1712, %v11424, 0.0
      %v11517 = vadd.f32 %v11515, %v11516
      %v11518 = vsel %vm1712, %v11425, 0.0
      %v11519 = vadd.f32 %v11517, %v11518
      %v11520 = vsel %vm1712, %v11426, 0.0
      %v11521 = vadd.f32 %v11519, %v11520
      %v11522 = vsel %vm1712, %v11427, 0.0
      %v11523 = vadd.f32 %v11521, %v11522
      %v11524 = vsel %vm1712, %v11428, 0.0
      %v11525 = vadd.f32 %v11523, %v11524
      %v11526 = vsel %vm1712, %v11429, 0.0
      %v11527 = vadd.f32 %v11525, %v11526
      %v11528 = vsel %vm1712, %v11430, 0.0
      %v11529 = vadd.f32 %v11527, %v11528
      %v11530 = vsel %vm1712, %v11431, 0.0
      %v11531 = vadd.f32 %v11529, %v11530
      %v11532 = vsel %vm1712, %v11432, 0.0
      %v11533 = vadd.f32 %v11531, %v11532
      %v11534 = vsel %vm1712, %v11433, 0.0
      %v11535 = vadd.f32 %v11533, %v11534
      %v11536 = vsel %vm1712, %v11434, 0.0
      %v11537 = vadd.f32 %v11535, %v11536
      %v11538 = vsel %vm1712, %v11435, 0.0
      %v11539 = vadd.f32 %v11537, %v11538
      %v11540 = vsel %vm1712, %v11436, 0.0
      %v11541 = vadd.f32 %v11539, %v11540
      %v11542 = vsel %vm1712, %v11437, 0.0
      %v11543 = vadd.f32 %v11541, %v11542
      %v11544 = vsel %vm1712, %v11438, 0.0
      %v11545 = vadd.f32 %v11543, %v11544
      %v11546 = vsel %vm1712, %v11439, 0.0
      %v11547 = vadd.f32 %v11545, %v11546
      %v11548 = vsel %vm1712, %v11440, 0.0
      %v11549 = vadd.f32 %v11547, %v11548
      %v11550 = vsel %vm1712, %v11441, 0.0
      %v11551 = vadd.f32 %v11549, %v11550
      %v11552 = vsel %vm1712, %v11442, 0.0
      %v11553 = vadd.f32 %v11551, %v11552
      %v11554 = vsel %vm1712, %v11443, 0.0
      %v11555 = vadd.f32 %v11553, %v11554
      %v11556 = vsel %vm1712, %v11444, 0.0
      %v11557 = vadd.f32 %v11555, %v11556
      %v11558 = vsel %vm1712, %v11445, 0.0
      %v11559 = vadd.f32 %v11557, %v11558
      %v11560 = vsel %vm1712, %v11446, 0.0
      %v11561 = vadd.f32 %v11559, %v11560
      %v11562 = vsel %vm1712, %v11447, 0.0
      %v11563 = vadd.f32 %v11561, %v11562
      %v11564 = vsel %vm1712, %v11448, 0.0
      %v11565 = vadd.f32 %v11563, %v11564
      %v11566 = vsel %vm1712, %v11449, 0.0
      %v11567 = vadd.f32 %v11565, %v11566
      %v11568 = vsel %vm1712, %v11450, 0.0
      %v11569 = vadd.f32 %v11567, %v11568
      %v11570 = vsel %vm1712, %v11451, 0.0
      %v11571 = vadd.f32 %v11569, %v11570
      %v11572 = vsel %vm1712, %v11452, 0.0
      %v11573 = vadd.f32 %v11571, %v11572
      %v11574 = vsel %vm1712, %v11453, 0.0
      %v11575 = vadd.f32 %v11573, %v11574
      %v11576 = vsel %vm1712, %v11454, 0.0
      %v11577 = vadd.f32 %v11575, %v11576
      %v11578 = vsel %vm1712, %v11455, 0.0
      %v11579 = vadd.f32 %v11577, %v11578
      %v11580 = vsel %vm1712, %v11456, 0.0
      %v11581 = vadd.f32 %v11579, %v11580
      %v11582 = vsel %vm1712, %v11457, 0.0
      %v11583 = vadd.f32 %v11581, %v11582
      %v11584 = vsel %vm1712, %v11458, 0.0
      %v11585 = vadd.f32 %v11583, %v11584
      %v11586 = vrot.slane %v11585, 4
      %v11587 = vadd.f32 %v11585, %v11586
      %v11588 = vrot.slane %v11587, 2
      %v11589 = vadd.f32 %v11587, %v11588
      %v11590 = vrot.slane %v11589, 1
      %v11591 = vadd.f32 %v11589, %v11590
      %v11592 = vmul.f32 %v11591, 0.00390625
      %v11593 = vmul.f32 %v11395, %v11395
      %v11594 = vmul.f32 %v11396, %v11396
      %v11595 = vmul.f32 %v11397, %v11397
      %v11596 = vmul.f32 %v11398, %v11398
      %v11597 = vmul.f32 %v11399, %v11399
      %v11598 = vmul.f32 %v11400, %v11400
      %v11599 = vmul.f32 %v11401, %v11401
      %v11600 = vmul.f32 %v11402, %v11402
      %v11601 = vmul.f32 %v11403, %v11403
      %v11602 = vmul.f32 %v11404, %v11404
      %v11603 = vmul.f32 %v11405, %v11405
      %v11604 = vmul.f32 %v11406, %v11406
      %v11605 = vmul.f32 %v11407, %v11407
      %v11606 = vmul.f32 %v11408, %v11408
      %v11607 = vmul.f32 %v11409, %v11409
      %v11608 = vmul.f32 %v11410, %v11410
      %v11609 = vmul.f32 %v11411, %v11411
      %v11610 = vmul.f32 %v11412, %v11412
      %v11611 = vmul.f32 %v11413, %v11413
      %v11612 = vmul.f32 %v11414, %v11414
      %v11613 = vmul.f32 %v11415, %v11415
      %v11614 = vmul.f32 %v11416, %v11416
      %v11615 = vmul.f32 %v11417, %v11417
      %v11616 = vmul.f32 %v11418, %v11418
      %v11617 = vmul.f32 %v11419, %v11419
      %v11618 = vmul.f32 %v11420, %v11420
      %v11619 = vmul.f32 %v11421, %v11421
      %v11620 = vmul.f32 %v11422, %v11422
      %v11621 = vmul.f32 %v11423, %v11423
      %v11622 = vmul.f32 %v11424, %v11424
      %v11623 = vmul.f32 %v11425, %v11425
      %v11624 = vmul.f32 %v11426, %v11426
      %v11625 = vmul.f32 %v11427, %v11427
      %v11626 = vmul.f32 %v11428, %v11428
      %v11627 = vmul.f32 %v11429, %v11429
      %v11628 = vmul.f32 %v11430, %v11430
      %v11629 = vmul.f32 %v11431, %v11431
      %v11630 = vmul.f32 %v11432, %v11432
      %v11631 = vmul.f32 %v11433, %v11433
      %v11632 = vmul.f32 %v11434, %v11434
      %v11633 = vmul.f32 %v11435, %v11435
      %v11634 = vmul.f32 %v11436, %v11436
      %v11635 = vmul.f32 %v11437, %v11437
      %v11636 = vmul.f32 %v11438, %v11438
      %v11637 = vmul.f32 %v11439, %v11439
      %v11638 = vmul.f32 %v11440, %v11440
      %v11639 = vmul.f32 %v11441, %v11441
      %v11640 = vmul.f32 %v11442, %v11442
      %v11641 = vmul.f32 %v11443, %v11443
      %v11642 = vmul.f32 %v11444, %v11444
      %v11643 = vmul.f32 %v11445, %v11445
      %v11644 = vmul.f32 %v11446, %v11446
      %v11645 = vmul.f32 %v11447, %v11447
      %v11646 = vmul.f32 %v11448, %v11448
      %v11647 = vmul.f32 %v11449, %v11449
      %v11648 = vmul.f32 %v11450, %v11450
      %v11649 = vmul.f32 %v11451, %v11451
      %v11650 = vmul.f32 %v11452, %v11452
      %v11651 = vmul.f32 %v11453, %v11453
      %v11652 = vmul.f32 %v11454, %v11454
      %v11653 = vmul.f32 %v11455, %v11455
      %v11654 = vmul.f32 %v11456, %v11456
      %v11655 = vmul.f32 %v11457, %v11457
      %v11656 = vmul.f32 %v11458, %v11458
      %v11657 = vsel %vm1712, %v11593, 0.0
      %v11658 = vsel %vm1712, %v11594, 0.0
      %v11659 = vadd.f32 %v11657, %v11658
      %v11660 = vsel %vm1712, %v11595, 0.0
      %v11661 = vadd.f32 %v11659, %v11660
      %v11662 = vsel %vm1712, %v11596, 0.0
      %v11663 = vadd.f32 %v11661, %v11662
      %v11664 = vsel %vm1712, %v11597, 0.0
      %v11665 = vadd.f32 %v11663, %v11664
      %v11666 = vsel %vm1712, %v11598, 0.0
      %v11667 = vadd.f32 %v11665, %v11666
      %v11668 = vsel %vm1712, %v11599, 0.0
      %v11669 = vadd.f32 %v11667, %v11668
      %v11670 = vsel %vm1712, %v11600, 0.0
      %v11671 = vadd.f32 %v11669, %v11670
      %v11672 = vsel %vm1712, %v11601, 0.0
      %v11673 = vadd.f32 %v11671, %v11672
      %v11674 = vsel %vm1712, %v11602, 0.0
      %v11675 = vadd.f32 %v11673, %v11674
      %v11676 = vsel %vm1712, %v11603, 0.0
      %v11677 = vadd.f32 %v11675, %v11676
      %v11678 = vsel %vm1712, %v11604, 0.0
      %v11679 = vadd.f32 %v11677, %v11678
      %v11680 = vsel %vm1712, %v11605, 0.0
      %v11681 = vadd.f32 %v11679, %v11680
      %v11682 = vsel %vm1712, %v11606, 0.0
      %v11683 = vadd.f32 %v11681, %v11682
      %v11684 = vsel %vm1712, %v11607, 0.0
      %v11685 = vadd.f32 %v11683, %v11684
      %v11686 = vsel %vm1712, %v11608, 0.0
      %v11687 = vadd.f32 %v11685, %v11686
      %v11688 = vsel %vm1712, %v11609, 0.0
      %v11689 = vadd.f32 %v11687, %v11688
      %v11690 = vsel %vm1712, %v11610, 0.0
      %v11691 = vadd.f32 %v11689, %v11690
      %v11692 = vsel %vm1712, %v11611, 0.0
      %v11693 = vadd.f32 %v11691, %v11692
      %v11694 = vsel %vm1712, %v11612, 0.0
      %v11695 = vadd.f32 %v11693, %v11694
      %v11696 = vsel %vm1712, %v11613, 0.0
      %v11697 = vadd.f32 %v11695, %v11696
      %v11698 = vsel %vm1712, %v11614, 0.0
      %v11699 = vadd.f32 %v11697, %v11698
      %v11700 = vsel %vm1712, %v11615, 0.0
      %v11701 = vadd.f32 %v11699, %v11700
      %v11702 = vsel %vm1712, %v11616, 0.0
      %v11703 = vadd.f32 %v11701, %v11702
      %v11704 = vsel %vm1712, %v11617, 0.0
      %v11705 = vadd.f32 %v11703, %v11704
      %v11706 = vsel %vm1712, %v11618, 0.0
      %v11707 = vadd.f32 %v11705, %v11706
      %v11708 = vsel %vm1712, %v11619, 0.0
      %v11709 = vadd.f32 %v11707, %v11708
      %v11710 = vsel %vm1712, %v11620, 0.0
      %v11711 = vadd.f32 %v11709, %v11710
      %v11712 = vsel %vm1712, %v11621, 0.0
      %v11713 = vadd.f32 %v11711, %v11712
      %v11714 = vsel %vm1712, %v11622, 0.0
      %v11715 = vadd.f32 %v11713, %v11714
      %v11716 = vsel %vm1712, %v11623, 0.0
      %v11717 = vadd.f32 %v11715, %v11716
      %v11718 = vsel %vm1712, %v11624, 0.0
      %v11719 = vadd.f32 %v11717, %v11718
      %v11720 = vsel %vm1712, %v11625, 0.0
      %v11721 = vadd.f32 %v11719, %v11720
      %v11722 = vsel %vm1712, %v11626, 0.0
      %v11723 = vadd.f32 %v11721, %v11722
      %v11724 = vsel %vm1712, %v11627, 0.0
      %v11725 = vadd.f32 %v11723, %v11724
      %v11726 = vsel %vm1712, %v11628, 0.0
      %v11727 = vadd.f32 %v11725, %v11726
      %v11728 = vsel %vm1712, %v11629, 0.0
      %v11729 = vadd.f32 %v11727, %v11728
      %v11730 = vsel %vm1712, %v11630, 0.0
      %v11731 = vadd.f32 %v11729, %v11730
      %v11732 = vsel %vm1712, %v11631, 0.0
      %v11733 = vadd.f32 %v11731, %v11732
      %v11734 = vsel %vm1712, %v11632, 0.0
      %v11735 = vadd.f32 %v11733, %v11734
      %v11736 = vsel %vm1712, %v11633, 0.0
      %v11737 = vadd.f32 %v11735, %v11736
      %v11738 = vsel %vm1712, %v11634, 0.0
      %v11739 = vadd.f32 %v11737, %v11738
      %v11740 = vsel %vm1712, %v11635, 0.0
      %v11741 = vadd.f32 %v11739, %v11740
      %v11742 = vsel %vm1712, %v11636, 0.0
      %v11743 = vadd.f32 %v11741, %v11742
      %v11744 = vsel %vm1712, %v11637, 0.0
      %v11745 = vadd.f32 %v11743, %v11744
      %v11746 = vsel %vm1712, %v11638, 0.0
      %v11747 = vadd.f32 %v11745, %v11746
      %v11748 = vsel %vm1712, %v11639, 0.0
      %v11749 = vadd.f32 %v11747, %v11748
      %v11750 = vsel %vm1712, %v11640, 0.0
      %v11751 = vadd.f32 %v11749, %v11750
      %v11752 = vsel %vm1712, %v11641, 0.0
      %v11753 = vadd.f32 %v11751, %v11752
      %v11754 = vsel %vm1712, %v11642, 0.0
      %v11755 = vadd.f32 %v11753, %v11754
      %v11756 = vsel %vm1712, %v11643, 0.0
      %v11757 = vadd.f32 %v11755, %v11756
      %v11758 = vsel %vm1712, %v11644, 0.0
      %v11759 = vadd.f32 %v11757, %v11758
      %v11760 = vsel %vm1712, %v11645, 0.0
      %v11761 = vadd.f32 %v11759, %v11760
      %v11762 = vsel %vm1712, %v11646, 0.0
      %v11763 = vadd.f32 %v11761, %v11762
      %v11764 = vsel %vm1712, %v11647, 0.0
      %v11765 = vadd.f32 %v11763, %v11764
      %v11766 = vsel %vm1712, %v11648, 0.0
      %v11767 = vadd.f32 %v11765, %v11766
      %v11768 = vsel %vm1712, %v11649, 0.0
      %v11769 = vadd.f32 %v11767, %v11768
      %v11770 = vsel %vm1712, %v11650, 0.0
      %v11771 = vadd.f32 %v11769, %v11770
      %v11772 = vsel %vm1712, %v11651, 0.0
      %v11773 = vadd.f32 %v11771, %v11772
      %v11774 = vsel %vm1712, %v11652, 0.0
      %v11775 = vadd.f32 %v11773, %v11774
      %v11776 = vsel %vm1712, %v11653, 0.0
      %v11777 = vadd.f32 %v11775, %v11776
      %v11778 = vsel %vm1712, %v11654, 0.0
      %v11779 = vadd.f32 %v11777, %v11778
      %v11780 = vsel %vm1712, %v11655, 0.0
      %v11781 = vadd.f32 %v11779, %v11780
      %v11782 = vsel %vm1712, %v11656, 0.0
      %v11783 = vadd.f32 %v11781, %v11782
      %v11784 = vrot.slane %v11783, 4
      %v11785 = vadd.f32 %v11783, %v11784
      %v11786 = vrot.slane %v11785, 2
      %v11787 = vadd.f32 %v11785, %v11786
      %v11788 = vrot.slane %v11787, 1
      %v11789 = vadd.f32 %v11787, %v11788
      %v11790 = vmul.f32 %v11789, 0.00390625
      %v11791 = vmul.f32 %v11592, %v11592
      %v11792 = vsub.f32 %v11790, %v11791
      %v11793 = vmax.f32 %v11792, 0.0
      %v11794 = vsub.f32 %v11331, %v11592
      %v11795 = vsub.f32 %v11332, %v11592
      %v11796 = vsub.f32 %v11333, %v11592
      %v11797 = vsub.f32 %v11335, %v11592
      %v11798 = vsub.f32 %v11336, %v11592
      %v11799 = vsub.f32 %v11337, %v11592
      %v11800 = vsub.f32 %v11339, %v11592
      %v11801 = vsub.f32 %v11340, %v11592
      %v11802 = vsub.f32 %v11341, %v11592
      %v11803 = vsub.f32 %v11343, %v11592
      %v11804 = vsub.f32 %v11344, %v11592
      %v11805 = vsub.f32 %v11345, %v11592
      %v11806 = vsub.f32 %v11347, %v11592
      %v11807 = vsub.f32 %v11348, %v11592
      %v11808 = vsub.f32 %v11349, %v11592
      %v11809 = vsub.f32 %v11351, %v11592
      %v11810 = vsub.f32 %v11352, %v11592
      %v11811 = vsub.f32 %v11353, %v11592
      %v11812 = vsub.f32 %v11355, %v11592
      %v11813 = vsub.f32 %v11356, %v11592
      %v11814 = vsub.f32 %v11357, %v11592
      %v11815 = vsub.f32 %v11359, %v11592
      %v11816 = vsub.f32 %v11360, %v11592
      %v11817 = vsub.f32 %v11361, %v11592
      %v11818 = vsub.f32 %v11363, %v11592
      %v11819 = vsub.f32 %v11364, %v11592
      %v11820 = vsub.f32 %v11365, %v11592
      %v11821 = vsub.f32 %v11367, %v11592
      %v11822 = vsub.f32 %v11368, %v11592
      %v11823 = vsub.f32 %v11369, %v11592
      %v11824 = vsub.f32 %v11371, %v11592
      %v11825 = vsub.f32 %v11372, %v11592
      %v11826 = vsub.f32 %v11373, %v11592
      %v11827 = vsub.f32 %v11375, %v11592
      %v11828 = vsub.f32 %v11376, %v11592
      %v11829 = vsub.f32 %v11377, %v11592
      %v11830 = vsub.f32 %v11379, %v11592
      %v11831 = vsub.f32 %v11380, %v11592
      %v11832 = vsub.f32 %v11381, %v11592
      %v11833 = vsub.f32 %v11383, %v11592
      %v11834 = vsub.f32 %v11384, %v11592
      %v11835 = vsub.f32 %v11385, %v11592
      %v11836 = vsub.f32 %v11387, %v11592
      %v11837 = vsub.f32 %v11388, %v11592
      %v11838 = vsub.f32 %v11389, %v11592
      %v11839 = vsub.f32 %v11391, %v11592
      %v11840 = vsub.f32 %v11392, %v11592
      %v11841 = vsub.f32 %v11393, %v11592
      %v11842 = vadd.f32 %v11793, 1e-05
      %v11843 = vrsqrt.pop %v11842
      %v11844 = vmul.f32 %v11794, %v11843
      %v11845 = vmul.f32 %v11795, %v11843
      %v11846 = vmul.f32 %v11796, %v11843
      %v11847 = vmul.f32 %v11797, %v11843
      %v11848 = vmul.f32 %v11798, %v11843
      %v11849 = vmul.f32 %v11799, %v11843
      %v11850 = vmul.f32 %v11800, %v11843
      %v11851 = vmul.f32 %v11801, %v11843
      %v11852 = vmul.f32 %v11802, %v11843
      %v11853 = vmul.f32 %v11803, %v11843
      %v11854 = vmul.f32 %v11804, %v11843
      %v11855 = vmul.f32 %v11805, %v11843
      %v11856 = vmul.f32 %v11806, %v11843
      %v11857 = vmul.f32 %v11807, %v11843
      %v11858 = vmul.f32 %v11808, %v11843
      %v11859 = vmul.f32 %v11809, %v11843
      %v11860 = vmul.f32 %v11810, %v11843
      %v11861 = vmul.f32 %v11811, %v11843
      %v11862 = vmul.f32 %v11812, %v11843
      %v11863 = vmul.f32 %v11813, %v11843
      %v11864 = vmul.f32 %v11814, %v11843
      %v11865 = vmul.f32 %v11815, %v11843
      %v11866 = vmul.f32 %v11816, %v11843
      %v11867 = vmul.f32 %v11817, %v11843
      %v11868 = vmul.f32 %v11818, %v11843
      %v11869 = vmul.f32 %v11819, %v11843
      %v11870 = vmul.f32 %v11820, %v11843
      %v11871 = vmul.f32 %v11821, %v11843
      %v11872 = vmul.f32 %v11822, %v11843
      %v11873 = vmul.f32 %v11823, %v11843
      %v11874 = vmul.f32 %v11824, %v11843
      %v11875 = vmul.f32 %v11825, %v11843
      %v11876 = vmul.f32 %v11826, %v11843
      %v11877 = vmul.f32 %v11827, %v11843
      %v11878 = vmul.f32 %v11828, %v11843
      %v11879 = vmul.f32 %v11829, %v11843
      %v11880 = vmul.f32 %v11830, %v11843
      %v11881 = vmul.f32 %v11831, %v11843
      %v11882 = vmul.f32 %v11832, %v11843
      %v11883 = vmul.f32 %v11833, %v11843
      %v11884 = vmul.f32 %v11834, %v11843
      %v11885 = vmul.f32 %v11835, %v11843
      %v11886 = vmul.f32 %v11836, %v11843
      %v11887 = vmul.f32 %v11837, %v11843
      %v11888 = vmul.f32 %v11838, %v11843
      %v11889 = vmul.f32 %v11839, %v11843
      %v11890 = vmul.f32 %v11840, %v11843
      %v11891 = vmul.f32 %v11841, %v11843
      %v11892 = vadd.f32 %v813, %v11844
      %v11893 = vadd.f32 %v814, %v11845
      %v11894 = vadd.f32 %v815, %v11846
      %v11895 = vadd.f32 %v817, %v11847
      %v11896 = vadd.f32 %v818, %v11848
      %v11897 = vadd.f32 %v819, %v11849
      %v11898 = vadd.f32 %v821, %v11850
      %v11899 = vadd.f32 %v822, %v11851
      %v11900 = vadd.f32 %v823, %v11852
      %v11901 = vadd.f32 %v825, %v11853
      %v11902 = vadd.f32 %v826, %v11854
      %v11903 = vadd.f32 %v827, %v11855
      %v11904 = vadd.f32 %v829, %v11856
      %v11905 = vadd.f32 %v830, %v11857
      %v11906 = vadd.f32 %v831, %v11858
      %v11907 = vadd.f32 %v833, %v11859
      %v11908 = vadd.f32 %v834, %v11860
      %v11909 = vadd.f32 %v835, %v11861
      %v11910 = vadd.f32 %v837, %v11862
      %v11911 = vadd.f32 %v838, %v11863
      %v11912 = vadd.f32 %v839, %v11864
      %v11913 = vadd.f32 %v841, %v11865
      %v11914 = vadd.f32 %v842, %v11866
      %v11915 = vadd.f32 %v843, %v11867
      %v11916 = vadd.f32 %v845, %v11868
      %v11917 = vadd.f32 %v846, %v11869
      %v11918 = vadd.f32 %v847, %v11870
      %v11919 = vadd.f32 %v849, %v11871
      %v11920 = vadd.f32 %v850, %v11872
      %v11921 = vadd.f32 %v851, %v11873
      %v11922 = vadd.f32 %v853, %v11874
      %v11923 = vadd.f32 %v854, %v11875
      %v11924 = vadd.f32 %v855, %v11876
      %v11925 = vadd.f32 %v857, %v11877
      %v11926 = vadd.f32 %v858, %v11878
      %v11927 = vadd.f32 %v859, %v11879
      %v11928 = vadd.f32 %v861, %v11880
      %v11929 = vadd.f32 %v862, %v11881
      %v11930 = vadd.f32 %v863, %v11882
      %v11931 = vadd.f32 %v865, %v11883
      %v11932 = vadd.f32 %v866, %v11884
      %v11933 = vadd.f32 %v867, %v11885
      %v11934 = vadd.f32 %v869, %v11886
      %v11935 = vadd.f32 %v870, %v11887
      %v11936 = vadd.f32 %v871, %v11888
      %v11937 = vadd.f32 %v873, %v11889
      %v11938 = vadd.f32 %v874, %v11890
      %v11939 = vadd.f32 %v875, %v11891
      %v11940 = vrot.slane %v11892, 1
      %v11941 = vrot.slane %v11893, 1
      %v11942 = vrot.slane %v11894, 1
      %v11943 = vrot.slane %v11895, 1
      %v11944 = vrot.slane %v11896, 1
      %v11945 = vrot.slane %v11897, 1
      %v11946 = vrot.slane %v11898, 1
      %v11947 = vrot.slane %v11899, 1
      %v11948 = vrot.slane %v11900, 1
      %v11949 = vrot.slane %v11901, 1
      %v11950 = vrot.slane %v11902, 1
      %v11951 = vrot.slane %v11903, 1
      %v11952 = vrot.slane %v11904, 1
      %v11953 = vrot.slane %v11905, 1
      %v11954 = vrot.slane %v11906, 1
      %v11955 = vrot.slane %v11907, 1
      %v11956 = vrot.slane %v11908, 1
      %v11957 = vrot.slane %v11909, 1
      %v11958 = vrot.slane %v11910, 1
      %v11959 = vrot.slane %v11911, 1
      %v11960 = vrot.slane %v11912, 1
      %v11961 = vrot.slane %v11913, 1
      %v11962 = vrot.slane %v11914, 1
      %v11963 = vrot.slane %v11915, 1
      %v11964 = vrot.slane %v11916, 1
      %v11965 = vrot.slane %v11917, 1
      %v11966 = vrot.slane %v11918, 1
      %v11967 = vrot.slane %v11919, 1
      %v11968 = vrot.slane %v11920, 1
      %v11969 = vrot.slane %v11921, 1
      %v11970 = vrot.slane %v11922, 1
      %v11971 = vrot.slane %v11923, 1
      %v11972 = vrot.slane %v11924, 1
      %v11973 = vrot.slane %v11925, 1
      %v11974 = vrot.slane %v11926, 1
      %v11975 = vrot.slane %v11927, 1
      %v11976 = vrot.slane %v11928, 1
      %v11977 = vrot.slane %v11929, 1
      %v11978 = vrot.slane %v11930, 1
      %v11979 = vrot.slane %v11931, 1
      %v11980 = vrot.slane %v11932, 1
      %v11981 = vrot.slane %v11933, 1
      %v11982 = vrot.slane %v11934, 1
      %v11983 = vrot.slane %v11935, 1
      %v11984 = vrot.slane %v11936, 1
      %v11985 = vrot.slane %v11937, 1
      %v11986 = vrot.slane %v11938, 1
      %v11987 = vrot.slane %v11939, 1
      %v11988 = vsel %vm1135, %v11986, %v11987
      %v11989 = vsel %vm1135, %v11985, %v11986
      %v11990 = vsel %vm1135, %v11983, %v11984
      %v11991 = vsel %vm1135, %v11982, %v11983
      %v11992 = vsel %vm1135, %v11980, %v11981
      %v11993 = vsel %vm1135, %v11979, %v11980
      %v11994 = vsel %vm1135, %v11977, %v11978
      %v11995 = vsel %vm1135, %v11976, %v11977
      %v11996 = vsel %vm1135, %v11974, %v11975
      %v11997 = vsel %vm1135, %v11973, %v11974
      %v11998 = vsel %vm1135, %v11971, %v11972
      %v11999 = vsel %vm1135, %v11970, %v11971
      %v12000 = vsel %vm1135, %v11968, %v11969
      %v12001 = vsel %vm1135, %v11967, %v11968
      %v12002 = vsel %vm1135, %v11965, %v11966
      %v12003 = vsel %vm1135, %v11964, %v11965
      %v12004 = vsel %vm1135, %v11962, %v11963
      %v12005 = vsel %vm1135, %v11961, %v11962
      %v12006 = vsel %vm1135, %v11959, %v11960
      %v12007 = vsel %vm1135, %v11958, %v11959
      %v12008 = vsel %vm1135, %v11956, %v11957
      %v12009 = vsel %vm1135, %v11955, %v11956
      %v12010 = vsel %vm1135, %v11953, %v11954
      %v12011 = vsel %vm1135, %v11952, %v11953
      %v12012 = vsel %vm1135, %v11950, %v11951
      %v12013 = vsel %vm1135, %v11949, %v11950
      %v12014 = vsel %vm1135, %v11947, %v11948
      %v12015 = vsel %vm1135, %v11946, %v11947
      %v12016 = vsel %vm1135, %v11944, %v11945
      %v12017 = vsel %vm1135, %v11943, %v11944
      %v12018 = vsel %vm1135, %v11941, %v11942
      %v12019 = vsel %vm1135, %v11940, %v11941
      %12020 = vst.msk [vmem:[%s170] sm:$0xff] %vm1712, %v12019
      %12021 = vst.msk [vmem:[%s170 + $0x8] sm:$0xff] %vm1712, %v12018
      %12022 = vst.msk [vmem:[%s170 + $0x10] sm:$0xff] %vm1712, %v12017
      %12023 = vst.msk [vmem:[%s170 + $0x18] sm:$0xff] %vm1712, %v12016
      %12024 = vst.msk [vmem:[%s170 + $0x20] sm:$0xff] %vm1712, %v12015
      %12025 = vst.msk [vmem:[%s170 + $0x28] sm:$0xff] %vm1712, %v12014
      %12026 = vst.msk [vmem:[%s170 + $0x30] sm:$0xff] %vm1712, %v12013
      %12027 = vst.msk [vmem:[%s170 + $0x38] sm:$0xff] %vm1712, %v12012
      %12028 = vst.msk [vmem:[%s170 + $0x40] sm:$0xff] %vm1712, %v12011
      %12029 = vst.msk [vmem:[%s170 + $0x48] sm:$0xff] %vm1712, %v12010
      %12030 = vst.msk [vmem:[%s170 + $0x50] sm:$0xff] %vm1712, %v12009
      %12031 = vst.msk [vmem:[%s170 + $0x58] sm:$0xff] %vm1712, %v12008
      %12032 = vst.msk [vmem:[%s170 + $0x60] sm:$0xff] %vm1712, %v12007
      %12033 = vst.msk [vmem:[%s170 + $0x68] sm:$0xff] %vm1712, %v12006
      %12034 = vst.msk [vmem:[%s170 + $0x70] sm:$0xff] %vm1712, %v12005
      %12035 = vst.msk [vmem:[%s170 + $0x78] sm:$0xff] %vm1712, %v12004
      %12036 = vst.msk [vmem:[%s170 + $0x80] sm:$0xff] %vm1712, %v12003
      %12037 = vst.msk [vmem:[%s170 + $0x88] sm:$0xff] %vm1712, %v12002
      %12038 = vst.msk [vmem:[%s170 + $0x90] sm:$0xff] %vm1712, %v12001
      %12039 = vst.msk [vmem:[%s170 + $0x98] sm:$0xff] %vm1712, %v12000
      %12040 = vst.msk [vmem:[%s170 + $0xa0] sm:$0xff] %vm1712, %v11999
      %12041 = vst.msk [vmem:[%s170 + $0xa8] sm:$0xff] %vm1712, %v11998
      %12042 = vst.msk [vmem:[%s170 + $0xb0] sm:$0xff] %vm1712, %v11997
      %12043 = vst.msk [vmem:[%s170 + $0xb8] sm:$0xff] %vm1712, %v11996
      %12044 = vst.msk [vmem:[%s170 + $0xc0] sm:$0xff] %vm1712, %v11995
      %12045 = vst.msk [vmem:[%s170 + $0xc8] sm:$0xff] %vm1712, %v11994
      %12046 = vst.msk [vmem:[%s170 + $0xd0] sm:$0xff] %vm1712, %v11993
      %12047 = vst.msk [vmem:[%s170 + $0xd8] sm:$0xff] %vm1712, %v11992
      %12048 = vst.msk [vmem:[%s170 + $0xe0] sm:$0xff] %vm1712, %v11991
      %12049 = vst.msk [vmem:[%s170 + $0xe8] sm:$0xff] %vm1712, %v11990
      %12050 = vst.msk [vmem:[%s170 + $0xf0] sm:$0xff] %vm1712, %v11989
      %12051 = vst.msk [vmem:[%s170 + $0xf8] sm:$0xff] %vm1712, %v11988
      %p12052 = scmp.lt.s32.totalorder %s14, 1
      %s12053 = scalar_select %p12052, %s14, 1
      %s12054 = smul.addr %s12053, 32
      %s12055 = smul.addr %s12054, 8
      %s12056 = scalar_lea.vmem %s3, %s12055
      // Predicated region
      $region33: #{tpu_custom_call.1} parent=31 // pred_check
        %p12057 = pneg %p100
      $region34: #{tpu_custom_call.1} parent=31 // pred_check_branch
        %12059 = sbr.rel (%p12057) target = $region36
      $region35: #{tpu_custom_call.1} parent=31 // pred_region
        _
      $region36: #{tpu_custom_call.1} parent=31 // pred_fallthru
        _
    $region32: #{tpu_custom_call.1} parent=5 // pred_fallthru
      _
    %p12060 = scmp.le.s32.totalorder 2, %s9
    // Predicated region
    $region37: #{tpu_custom_call.1} parent=5 // pred_check
      %p12061 = pneg %p12060
    $region38: #{tpu_custom_call.1} parent=5 // pred_check_branch
      %12063 = sbr.rel (%p12061) target = $region40
    $region39: #{tpu_custom_call.1} parent=5 // pred_region
      %s12064 = ssub.s32 %s9, 2
      // Predicated region
      $region41: #{tpu_custom_call.1} parent=39 // pred_check
        %p12065 = pneg %p106
      $region42: #{tpu_custom_call.1} parent=39 // pred_check_branch
        %12067 = sbr.rel (%p12065) target = $region44
      $region43: #{tpu_custom_call.1} parent=39 // pred_region
        %p12068 = scmp.lt.s32.totalorder %s15, 1
        %s12069 = scalar_select %p12068, %s15, 1
        %s12070 = smul.addr %s12069, 32
        %s12071 = smul.addr %s12070, 8
        %s12072 = scalar_lea.vmem %s3, %s12071
      $region44: #{tpu_custom_call.1} parent=39 // pred_fallthru
        _
    $region40: #{tpu_custom_call.1} parent=5 // pred_fallthru
      _
  $region6: #{tpu_custom_call.1} parent=0 // loop_footer
    %s13 = sadd.s32 1, %s9
  $region7: #{tpu_custom_call.1} parent=0 // loop_footer_branch
    %8 = sbr.rel target = $region3
  $region8: #{tpu_custom_call.1} parent=0 // loop_exit
    _

</llo_original>
